<compile_context>
chip_gen: v7x
topology: tpu7x:2x2x1
jax: 0.10.0
libtpu: 0.0.40
codegen_flags: <defaults>
</compile_context>

<pallas_src>
import math

import numpy as np
import jax
import jax.numpy as jnp
from jax.experimental import pallas as pl
from jax.experimental.pallas import tpu as pltpu

# ---------------- configuration ----------------
SIZE = 16
NUM_CHANNELS = 4
PATCH_SIZE = 4
DIM_Z = 32
DIM_H = DIM_Z
NHEAD = 8
DIM_FF = 64
NUM_LAYERS = 2                    # encoder layers; nn.Transformer decoder has 1 layer here
HEAD_DIM = DIM_H // NHEAD
N_PATCH = SIZE // PATCH_SIZE
SEQ = N_PATCH * N_PATCH           # 16 "patches" (same reshape as the torch code)
PATCH_FEAT = NUM_CHANNELS * PATCH_SIZE ** 2
LN_EPS = 1e-5                     # PyTorch LayerNorm default
VEC_W = 3 * DIM_H                 # widest packed vector (fused QKV bias)
MAX_TB = 8                        # images per grid step, upper bound
NUM_ATT = NUM_LAYERS + 2          # enc0, enc1, dec_self, dec_cross
NUM_FFN = NUM_LAYERS + 1          # enc0, enc1, dec
NEG_INF = -1e30


def _vec_names():
    names = ['patch_b', 'query']
    for li in range(NUM_LAYERS):
        names += [f'enc{li}_ln1_g', f'enc{li}_ln1_b', f'enc{li}_ln2_g', f'enc{li}_ln2_b']
    names += ['enc_norm_g', 'enc_norm_b',
              'dec_ln1_g', 'dec_ln1_b', 'dec_ln2_g', 'dec_ln2_b', 'dec_ln3_g', 'dec_ln3_b',
              'dec_norm_g', 'dec_norm_b']
    names += [f'qkv_b_enc{li}' for li in range(NUM_LAYERS)] + ['qkv_b_dec_self', 'qkv_b_dec_cross']
    names += [f'out_b_enc{li}' for li in range(NUM_LAYERS)] + ['out_b_dec_self', 'out_b_dec_cross']
    names += [f'ffn_b1_enc{li}' for li in range(NUM_LAYERS)] + ['ffn_b1_dec']
    names += [f'ffn_b2_enc{li}' for li in range(NUM_LAYERS)] + ['ffn_b2_dec']
    return names


VEC_NAMES = _vec_names()
VEC_IDX = {n: i for i, n in enumerate(VEC_NAMES)}
NUM_VEC = len(VEC_NAMES)


# ---------------- in-kernel building blocks ----------------
def _layer_norm(x, g, b):
    mu = jnp.mean(x, axis=-1, keepdims=True)
    c = x - mu
    var = jnp.mean(c * c, axis=-1, keepdims=True)
    return c * jax.lax.rsqrt(var + LN_EPS) * g + b


# ---------------- the single fused kernel ----------------
def _fused_kernel(TB):
    R = TB * SEQ
    scale = 1.0 / math.sqrt(HEAD_DIM)
    A_DEC_SELF = NUM_LAYERS
    A_DEC_CROSS = NUM_LAYERS + 1
    F_DEC = NUM_LAYERS

    def kernel(h0_ref, pos_ref, patch_w_ref, qkv_w_ref, out_w_ref,
               ffn_w1_ref, ffn_w2_ref, vecs_ref, head_m_ref,
               enc_bias_ref, cross_bias_ref, out_ref):
        vtab = vecs_ref[...]                                    # [NUM_VEC, 96] f32

        def vec(name, width=DIM_H):
            i = VEC_IDX[name]
            return vtab[i:i + 1, :width]                        # [1, width]

        head_m = head_m_ref[...]                                # [NHEAD, DIM_H] 0/1 f32
        enc_bias = enc_bias_ref[...]                            # [R, R]   block-diag batch bias
        cross_bias = cross_bias_ref[...]                        # [TB, R]  query->own-image bias

        def attend(q, k, v, bias):
            # Exact multi-head attention on a batched row block.  Each head keeps its
            # own feature columns of full-width q/v (lane-dense, no head_dim=4
            # relayouts); per-head PV outputs land in disjoint columns and accumulate.
            # `bias` masks attention across different images in the block.
            k16 = k.astype(jnp.bfloat16)
            o = jnp.zeros(q.shape, jnp.float32)
            for hh in range(NHEAD):
                hm = head_m[hh:hh + 1, :]
                qh = (q * hm).astype(jnp.bfloat16)
                vh = (v * hm).astype(jnp.bfloat16)
                s = jax.lax.dot_general(qh, k16, (((1,), (1,)), ((), ())),
                                        preferred_element_type=jnp.float32)
                s = s * scale + bias
                s = s - jnp.max(s, axis=-1, keepdims=True)
                e = jnp.exp(s)
                p = e / jnp.sum(e, axis=-1, keepdims=True)
                o = o + jnp.dot(p.astype(jnp.bfloat16), vh,
                                preferred_element_type=jnp.float32)
            return o

        # ---- patch embedding + additive 2-D positional encoding ----
        h0 = h0_ref[...].reshape(R, PATCH_FEAT)
        h = jnp.dot(h0.astype(jnp.bfloat16), patch_w_ref[...],
                    preferred_element_type=jnp.float32) + vec('patch_b')
        h = h + pos_ref[...][:R, :]                             # pos pre-tiled host-side

        # ---- encoder stack (norm_first) + final encoder LayerNorm ----
        for li in range(NUM_LAYERS):
            n1 = _layer_norm(h, vec(f'enc{li}_ln1_g'), vec(f'enc{li}_ln1_b'))
            qkv = jnp.dot(n1.astype(jnp.bfloat16), qkv_w_ref[li],
                          preferred_element_type=jnp.float32) + vec(f'qkv_b_enc{li}', 3 * DIM_H)
            a = attend(qkv[:, :DIM_H], qkv[:, DIM_H:2 * DIM_H], qkv[:, 2 * DIM_H:], enc_bias)
            h = h + jnp.dot(a.astype(jnp.bfloat16), out_w_ref[li],
                            preferred_element_type=jnp.float32) + vec(f'out_b_enc{li}')
            n2 = _layer_norm(h, vec(f'enc{li}_ln2_g'), vec(f'enc{li}_ln2_b'))
            f1 = jnp.dot(n2.astype(jnp.bfloat16), ffn_w1_ref[li],
                         preferred_element_type=jnp.float32) + vec(f'ffn_b1_enc{li}', DIM_FF)
            f1 = f1 * jax.nn.sigmoid(f1)                        # SiLU
            h = h + jnp.dot(f1.astype(jnp.bfloat16), ffn_w2_ref[li],
                            preferred_element_type=jnp.float32) + vec(f'ffn_b2_enc{li}')
        mem = _layer_norm(h, vec('enc_norm_g'), vec('enc_norm_b'))

        # ---- decoder (1 layer, norm_first), learned query as length-1 target ----
        tgt = jnp.broadcast_to(vec('query'), (TB, DIM_H))
        # Self-attention over a length-1 target: softmax over one key == 1, so the
        # attention output equals the value projection (exact; dropout == 0).
        n1 = _layer_norm(tgt, vec('dec_ln1_g'), vec('dec_ln1_b'))
        v_sa = (jnp.dot(n1.astype(jnp.bfloat16), qkv_w_ref[A_DEC_SELF],
                        preferred_element_type=jnp.float32)
                + vec('qkv_b_dec_self', 3 * DIM_H))[:, 2 * DIM_H:]
        tgt = tgt + jnp.dot(v_sa.astype(jnp.bfloat16), out_w_ref[A_DEC_SELF],
                            preferred_element_type=jnp.float32) + vec('out_b_dec_self')
        # Cross-attention against this step's per-image encoder memory.
        n2 = _layer_norm(tgt, vec('dec_ln2_g'), vec('dec_ln2_b'))
        q_ca = (jnp.dot(n2.astype(jnp.bfloat16), qkv_w_ref[A_DEC_CROSS],
                        preferred_element_type=jnp.float32)
                + vec('qkv_b_dec_cross', 3 * DIM_H))[:, :DIM_H]
        kv_ca = (jnp.dot(mem.astype(jnp.bfloat16), qkv_w_ref[A_DEC_CROSS],
                         preferred_element_type=jnp.float32)
                 + vec('qkv_b_dec_cross', 3 * DIM_H))
        a = attend(q_ca, kv_ca[:, DIM_H:2 * DIM_H], kv_ca[:, 2 * DIM_H:], cross_bias)
        tgt = tgt + jnp.dot(a.astype(jnp.bfloat16), out_w_ref[A_DEC_CROSS],
                            preferred_element_type=jnp.float32) + vec('out_b_dec_cross')
        # Feed-forward.
        n3 = _layer_norm(tgt, vec('dec_ln3_g'), vec('dec_ln3_b'))
        f1 = jnp.dot(n3.astype(jnp.bfloat16), ffn_w1_ref[F_DEC],
                     preferred_element_type=jnp.float32) + vec('ffn_b1_dec', DIM_FF)
        f1 = f1 * jax.nn.sigmoid(f1)
        tgt = tgt + jnp.dot(f1.astype(jnp.bfloat16), ffn_w2_ref[F_DEC],
                            preferred_element_type=jnp.float32) + vec('ffn_b2_dec')
        # Final decoder LayerNorm; h_to_z is Identity (dim_h == dim_z, not variational).
        tgt = _layer_norm(tgt, vec('dec_norm_g'), vec('dec_norm_b'))
        out_ref[0] = tgt.astype(out_ref.dtype)                  # [TB, DIM_Z]

    return kernel


def _choose_tb(B):
    # Up to MAX_TB images per step, but keep >= 2 grid steps whenever B >= 2 so the
    # "parallel" grid axis can be split across the two v7x TensorCores.
    if B <= 1:
        return 1
    return int(min(MAX_TB, pl.cdiv(B, 2)))


# ---------------- wrapper ----------------
def forward(packed, x, c=None):
    """x: [B, C, H, W] (NCHW, like the PyTorch module). Returns z: [B, dim_z]."""
    if c is not None:
        # TODO(synk): the condition-tensor path (concat of c + condition_flag to the
        # encoder sequence) is not fused; the reference default (c=None) is implemented.
        raise NotImplementedError("fused kernel implements the c=None path")
    B = x.shape[0]
    TB = _choose_tb(B)
    G = int(pl.cdiv(B, TB))
    B_pad = G * TB
    R = TB * SEQ

    # Identical patchify to the torch code: permute(0,2,3,1).reshape(B, np, np, -1),
    # then flatten(1,2).  (Kept in the wrapper; under jit this is one small fused copy.
    # TODO(synk): could be removed entirely by feeding NHWC input.)
    h0 = jnp.transpose(x, (0, 2, 3, 1)).reshape(B, SEQ, PATCH_FEAT)
    if B_pad != B:
        h0 = jnp.concatenate(
            [h0, jnp.zeros((B_pad - B, SEQ, PATCH_FEAT), h0.dtype)], axis=0)

    # Trace-time constants (baked into the compiled graph, resident in VMEM):
    # per-head feature masks + block-diagonal "same image" attention biases.
    img_id = np.repeat(np.arange(TB), SEQ)
    enc_bias = np.where(img_id[:, None] == img_id[None, :], 0.0, NEG_INF).astype(np.float32)
    cross_bias = np.where(np.arange(TB)[:, None] == img_id[None, :], 0.0, NEG_INF).astype(np.float32)
    head_m = (np.arange(DIM_H)[None, :] // HEAD_DIM == np.arange(NHEAD)[:, None]).astype(np.float32)

    def const(nd):
        return lambda g: (0,) * nd

    in_specs = [
        pl.BlockSpec((TB, SEQ, PATCH_FEAT), lambda g: (g, 0, 0)),   # this step's images
        pl.BlockSpec((MAX_TB * SEQ, DIM_H), const(2)),              # tiled pos enc (resident)
        pl.BlockSpec((PATCH_FEAT, DIM_H), const(2)),                # patch embed weight
        pl.BlockSpec((NUM_ATT, DIM_H, 3 * DIM_H), const(3)),        # fused QKV weights
        pl.BlockSpec((NUM_ATT, DIM_H, DIM_H), const(3)),            # attention out weights
        pl.BlockSpec((NUM_FFN, DIM_H, DIM_FF), const(3)),           # FFN up weights
        pl.BlockSpec((NUM_FFN, DIM_FF, DIM_H), const(3)),           # FFN down weights
        pl.BlockSpec((NUM_VEC, VEC_W), const(2)),                   # packed biases/LN/query
        pl.BlockSpec((NHEAD, DIM_H), const(2)),                     # per-head masks
        pl.BlockSpec((R, R), const(2)),                             # encoder batch bias
        pl.BlockSpec((TB, R), const(2)),                            # cross-attn batch bias
    ]

    out = pl.pallas_call(
        _fused_kernel(TB),
        out_shape=jax.ShapeDtypeStruct((G, TB, DIM_Z), jnp.float32),
        grid=(G,),
        in_specs=in_specs,
        out_specs=pl.BlockSpec((1, TB, DIM_Z), lambda g: (g, 0, 0)),
        compiler_params=pltpu.CompilerParams(dimension_semantics=("parallel",)),
    )(h0, packed['pos_tiled'], packed['patch_w'], packed['qkv_w'], packed['out_w'],
      packed['ffn_w1'], packed['ffn_w2'], packed['vecs'],
      jnp.asarray(head_m), jnp.asarray(enc_bias), jnp.asarray(cross_bias))

    # num_encodings is None -> squeeze(1); h_to_z is Identity (dim_h == dim_z).
    return out.reshape(B_pad, DIM_Z)[:B]


# ---------------- host-side parameter packing ----------------
def pack_params(p):
    rows = {}

    def put(name, v):
        v = jnp.asarray(v, jnp.float32).reshape(-1)
        rows[name] = jnp.pad(v, (0, VEC_W - v.shape[0]))

    put('patch_b', p['patch_b'])
    put('query', p['query'])
    qkv_w, out_w, ffn_w1, ffn_w2 = [], [], [], []

    def add_attn(tag, a):
        qkv_w.append(jnp.concatenate([a['w_q'], a['w_k'], a['w_v']], axis=1))
        put(f'qkv_b_{tag}', jnp.concatenate([a['b_q'], a['b_k'], a['b_v']], axis=1))
        out_w.append(a['w_out'])
        put(f'out_b_{tag}', a['b_out'])

    def add_ffn(tag, f):
        ffn_w1.append(f['w1']); put(f'ffn_b1_{tag}', f['b1'])
        ffn_w2.append(f['w2']); put(f'ffn_b2_{tag}', f['b2'])

    for li, lp in enumerate(p['enc_layers']):
        put(f'enc{li}_ln1_g', lp['ln1']['g']); put(f'enc{li}_ln1_b', lp['ln1']['b'])
        put(f'enc{li}_ln2_g', lp['ln2']['g']); put(f'enc{li}_ln2_b', lp['ln2']['b'])
        add_attn(f'enc{li}', lp['attn'])
        add_ffn(f'enc{li}', lp['ffn'])
    put('enc_norm_g', p['enc_norm']['g']); put('enc_norm_b', p['enc_norm']['b'])
    d = p['dec_layer']
    put('dec_ln1_g', d['ln1']['g']); put('dec_ln1_b', d['ln1']['b'])
    put('dec_ln2_g', d['ln2']['g']); put('dec_ln2_b', d['ln2']['b'])
    put('dec_ln3_g', d['ln3']['g']); put('dec_ln3_b', d['ln3']['b'])
    put('dec_norm_g', p['dec_norm']['g']); put('dec_norm_b', p['dec_norm']['b'])
    add_attn('dec_self', d['self_attn'])
    add_attn('dec_cross', d['cross_attn'])
    add_ffn('dec', d['ffn'])

    pos = jnp.asarray(p['pos_enc'], jnp.float32).reshape(SEQ, DIM_H)
    return {
        'patch_w': p['patch_w'].astype(jnp.bfloat16),
        'pos_tiled': jnp.tile(pos, (MAX_TB, 1)),                       # [MAX_TB*SEQ, DIM_H] f32
        'qkv_w': jnp.stack(qkv_w).astype(jnp.bfloat16),                # [4, 32, 96]
        'out_w': jnp.stack(out_w).astype(jnp.bfloat16),                # [4, 32, 32]
        'ffn_w1': jnp.stack(ffn_w1).astype(jnp.bfloat16),              # [3, 32, 64]
        'ffn_w2': jnp.stack(ffn_w2).astype(jnp.bfloat16),              # [3, 64, 32]
        'vecs': jnp.stack([rows[n] for n in VEC_NAMES], axis=0),       # [34, 96] f32
    }


# ---------------- deterministic parameter construction ----------------
def positional_encoding_2d(d_model, height, width):
    # TODO(synk): exact PositionalEncoding2D source from gfn_attractors is unavailable;
    # standard additive 2-D sinusoidal encoding is used (concat=False -> added).
    pe = np.zeros((d_model, height, width), dtype=np.float32)
    d = d_model // 2
    div_term = np.exp(np.arange(0.0, d, 2) * -(math.log(10000.0) / d))
    pos_w = np.arange(0.0, width)[:, None]
    pos_h = np.arange(0.0, height)[:, None]
    pe[0:d:2, :, :] = np.sin(pos_w * div_term).T[:, None, :].repeat(height, axis=1)
    pe[1:d:2, :, :] = np.cos(pos_w * div_term).T[:, None, :].repeat(height, axis=1)
    pe[d::2, :, :] = np.sin(pos_h * div_term).T[:, :, None].repeat(width, axis=2)
    pe[d + 1::2, :, :] = np.cos(pos_h * div_term).T[:, :, None].repeat(width, axis=2)
    return np.transpose(pe, (1, 2, 0)).astype(np.float32)   # [H, W, d_model]


def init_params(key):
    keys = iter(jax.random.split(key, 64))

    def w(shape):
        return 0.02 * jax.random.normal(next(keys), shape, dtype=jnp.float32)

    def zeros(shape):
        return jnp.zeros(shape, jnp.float32)

    def ln():
        return {'g': jnp.ones((1, DIM_H), jnp.float32), 'b': zeros((1, DIM_H))}

    def attn_p():
        return {'w_q': w((DIM_H, DIM_H)), 'b_q': zeros((1, DIM_H)),
                'w_k': w((DIM_H, DIM_H)), 'b_k': zeros((1, DIM_H)),
                'w_v': w((DIM_H, DIM_H)), 'b_v': zeros((1, DIM_H)),
                'w_out': w((DIM_H, DIM_H)), 'b_out': zeros((1, DIM_H))}

    def ffn_p():
        return {'w1': w((DIM_H, DIM_FF)), 'b1': zeros((1, DIM_FF)),
                'w2': w((DIM_FF, DIM_H)), 'b2': zeros((1, DIM_H))}

    enc_layers = [{'ln1': ln(), 'attn': attn_p(), 'ln2': ln(), 'ffn': ffn_p()}
                  for _ in range(NUM_LAYERS)]
    dec_layer = {'ln1': ln(), 'self_attn': attn_p(),
                 'ln2': ln(), 'cross_attn': attn_p(),
                 'ln3': ln(), 'ffn': ffn_p()}
    return {
        'patch_w': w((PATCH_FEAT, DIM_H)),
        'patch_b': zeros((1, DIM_H)),
        'pos_enc': jnp.asarray(positional_encoding_2d(DIM_H, N_PATCH, N_PATCH)),
        'enc_layers': enc_layers,
        'enc_norm': ln(),
        'dec_layer': dec_layer,
        'dec_norm': ln(),
        'query': jax.random.normal(next(keys), (1, DIM_H), jnp.float32),            # torch.randn
        'condition_flag': jax.random.uniform(next(keys), (1, DIM_H), jnp.float32),   # torch.rand
    }


# ---------------- pure-JAX reference (f32, standard head-split MHA) ----------------
def _ref_ln(v, p):
    mu = v.mean(-1, keepdims=True)
    c = v - mu
    return c / jnp.sqrt((c * c).mean(-1, keepdims=True) + LN_EPS) * p['g'] + p['b']


def _ref_mha(q_in, kv_in, a):
    q = q_in @ a['w_q'] + a['b_q']
    k = kv_in @ a['w_k'] + a['b_k']
    v = kv_in @ a['w_v'] + a['b_v']
    lq, lk = q.shape[0], k.shape[0]
    qh = q.reshape(lq, NHEAD, HEAD_DIM).transpose(1, 0, 2)
    kh = k.reshape(lk, NHEAD, HEAD_DIM).transpose(1, 0, 2)
    vh = v.reshape(lk, NHEAD, HEAD_DIM).transpose(1, 0, 2)
    s = jnp.einsum('hqd,hkd->hqk', qh, kh) / math.sqrt(HEAD_DIM)
    p = jax.nn.softmax(s, axis=-1)
    o = jnp.einsum('hqk,hkd->hqd', p, vh).transpose(1, 0, 2).reshape(lq, DIM_H)
    return o @ a['w_out'] + a['b_out']


def forward_reference(params, x):
    B = x.shape[0]
    h0 = jnp.transpose(x, (0, 2, 3, 1)).reshape(B, SEQ, PATCH_FEAT)
    pos = params['pos_enc'].reshape(SEQ, DIM_H)

    def one(img):
        h = img @ params['patch_w'] + params['patch_b'] + pos
        for lp in params['enc_layers']:
            h = h + _ref_mha(_ref_ln(h, lp['ln1']), _ref_ln(h, lp['ln1']), lp['attn'])
            f1 = _ref_ln(h, lp['ln2']) @ lp['ffn']['w1'] + lp['ffn']['b1']
            f1 = f1 * jax.nn.sigmoid(f1)
            h = h + f1 @ lp['ffn']['w2'] + lp['ffn']['b2']
        mem = _ref_ln(h, params['enc_norm'])
        d = params['dec_layer']
        t = params['query']
        n1 = _ref_ln(t, d['ln1'])
        t = t + _ref_mha(n1, n1, d['self_attn'])
        t = t + _ref_mha(_ref_ln(t, d['ln2']), mem, d['cross_attn'])
        f1 = _ref_ln(t, d['ln3']) @ d['ffn']['w1'] + d['ffn']['b1']
        f1 = f1 * jax.nn.sigmoid(f1)
        t = t + f1 @ d['ffn']['w2'] + d['ffn']['b2']
        return _ref_ln(t, params['dec_norm'])[0]

    return jax.vmap(one)(h0)


if __name__ == "__main__":
    key = jax.random.PRNGKey(0)
    pkey, xkey = jax.random.split(key)
    params = init_params(pkey)
    packed = pack_params(params)
    x = jax.random.normal(xkey, (2, NUM_CHANNELS, SIZE, SIZE), dtype=jnp.float32)

    z = jax.jit(forward)(packed, x)
    jax.block_until_ready(z)
    assert z.shape == (2, DIM_Z), z.shape
    assert bool(jnp.all(jnp.isfinite(z)))

    # loose tolerance: kernel uses bf16 MXU operands, reference is full f32
    z_ref = jax.jit(forward_reference)(params, x)
    err = float(jnp.max(jnp.abs(z - z_ref)))
    assert err < 0.1, f"max abs error vs reference = {err}"

    print("KERNEL_OK")
</pallas_src>

<mosaic_0001>
module attributes {stable_mosaic.version = 11 : i64} {
  func.func @kernel(%arg0: i32, %arg1: memref<1x16x64xf32, #tpu.memory_space<vmem>>, %arg2: memref<128x32xf32, #tpu.memory_space<vmem>>, %arg3: memref<64x32xbf16, #tpu.memory_space<vmem>>, %arg4: memref<4x32x96xbf16, #tpu.memory_space<vmem>>, %arg5: memref<4x32x32xbf16, #tpu.memory_space<vmem>>, %arg6: memref<3x32x64xbf16, #tpu.memory_space<vmem>>, %arg7: memref<3x64x32xbf16, #tpu.memory_space<vmem>>, %arg8: memref<34x96xf32, #tpu.memory_space<vmem>>, %arg9: memref<8x32xf32, #tpu.memory_space<vmem>>, %arg10: memref<16x16xf32, #tpu.memory_space<vmem>>, %arg11: memref<1x16xf32, #tpu.memory_space<vmem>>, %arg12: memref<1x1x32xf32, #tpu.memory_space<vmem>>) attributes {dimension_semantics = [#tpu.dimension_semantics<parallel>], iteration_bounds = array<i64: 2>, scalar_prefetch = 0 : i64, scratch_operands = 0 : i64, tpu.core_type = #tpu.core_type<tc>, window_params = [{transform_indices = @transform_0, window_bounds = array<i64: 1, 16, 64>}, {pipeline_mode = #tpu.pipeline_mode<synchronous>, transform_indices = @transform_1, window_bounds = array<i64: 128, 32>}, {pipeline_mode = #tpu.pipeline_mode<synchronous>, transform_indices = @transform_2, window_bounds = array<i64: 64, 32>}, {pipeline_mode = #tpu.pipeline_mode<synchronous>, transform_indices = @transform_3, window_bounds = array<i64: 4, 32, 96>}, {pipeline_mode = #tpu.pipeline_mode<synchronous>, transform_indices = @transform_4, window_bounds = array<i64: 4, 32, 32>}, {pipeline_mode = #tpu.pipeline_mode<synchronous>, transform_indices = @transform_5, window_bounds = array<i64: 3, 32, 64>}, {pipeline_mode = #tpu.pipeline_mode<synchronous>, transform_indices = @transform_6, window_bounds = array<i64: 3, 64, 32>}, {pipeline_mode = #tpu.pipeline_mode<synchronous>, transform_indices = @transform_7, window_bounds = array<i64: 34, 96>}, {pipeline_mode = #tpu.pipeline_mode<synchronous>, transform_indices = @transform_8, window_bounds = array<i64: 8, 32>}, {pipeline_mode = #tpu.pipeline_mode<synchronous>, transform_indices = @transform_9, window_bounds = array<i64: 16, 16>}, {pipeline_mode = #tpu.pipeline_mode<synchronous>, transform_indices = @transform_10, window_bounds = array<i64: 1, 16>}, {transform_indices = @transform_11, window_bounds = array<i64: 1, 1, 32>}]} {
    %c0 = arith.constant 0 : index
    %c0_0 = arith.constant 0 : index
    %0 = vector.load %arg8[%c0, %c0_0] : memref<34x96xf32, #tpu.memory_space<vmem>>, vector<34x96xf32>
    %c0_1 = arith.constant 0 : index
    %c0_2 = arith.constant 0 : index
    %1 = vector.load %arg9[%c0_1, %c0_2] : memref<8x32xf32, #tpu.memory_space<vmem>>, vector<8x32xf32>
    %c0_3 = arith.constant 0 : index
    %c0_4 = arith.constant 0 : index
    %2 = vector.load %arg10[%c0_3, %c0_4] : memref<16x16xf32, #tpu.memory_space<vmem>>, vector<16x16xf32>
    %c0_5 = arith.constant 0 : index
    %c0_6 = arith.constant 0 : index
    %3 = vector.load %arg11[%c0_5, %c0_6] : memref<1x16xf32, #tpu.memory_space<vmem>>, vector<1x16xf32>
    %c0_7 = arith.constant 0 : index
    %c0_8 = arith.constant 0 : index
    %c0_9 = arith.constant 0 : index
    %4 = vector.load %arg1[%c0_7, %c0_8, %c0_9] : memref<1x16x64xf32, #tpu.memory_space<vmem>>, vector<1x16x64xf32>
    %5 = vector.shape_cast %4 : vector<1x16x64xf32> to vector<16x64xf32>
    %6 = arith.truncf %5 : vector<16x64xf32> to vector<16x64xbf16>
    %c0_10 = arith.constant 0 : index
    %c0_11 = arith.constant 0 : index
    %7 = vector.load %arg3[%c0_10, %c0_11] : memref<64x32xbf16, #tpu.memory_space<vmem>>, vector<64x32xbf16>
    %cst = arith.constant dense<0.000000e+00> : vector<16x32xf32>
    %8 = tpu.matmul %6, %7, %cst {dimension_numbers = #tpu.dot_dimension_numbers<[1], [0], [0], [1], [0, 0, 1, 1], [], []>} : vector<16x64xbf16>, vector<64x32xbf16>, vector<16x32xf32> -> vector<16x32xf32>
    %9 = vector.extract_strided_slice %0 {offsets = [0, 0], sizes = [1, 32], strides = [1, 1]} : vector<34x96xf32> to vector<1x32xf32>
    %10 = vector.broadcast %9 : vector<1x32xf32> to vector<16x32xf32>
    %11 = arith.addf %8, %10 : vector<16x32xf32>
    %c0_12 = arith.constant 0 : index
    %c0_13 = arith.constant 0 : index
    %12 = vector.load %arg2[%c0_12, %c0_13] : memref<128x32xf32, #tpu.memory_space<vmem>>, vector<128x32xf32>
    %13 = vector.extract_strided_slice %12 {offsets = [0, 0], sizes = [16, 32], strides = [1, 1]} : vector<128x32xf32> to vector<16x32xf32>
    %14 = arith.addf %11, %13 : vector<16x32xf32>
    %15 = vector.extract_strided_slice %0 {offsets = [2, 0], sizes = [1, 32], strides = [1, 1]} : vector<34x96xf32> to vector<1x32xf32>
    %16 = vector.extract_strided_slice %0 {offsets = [3, 0], sizes = [1, 32], strides = [1, 1]} : vector<34x96xf32> to vector<1x32xf32>
    %cst_14 = arith.constant dense<0.000000e+00> : vector<16xf32>
    %17 = vector.multi_reduction <add>, %14, %cst_14 [1] : vector<16x32xf32> to vector<16xf32>
    %18 = vector.shape_cast %17 : vector<16xf32> to vector<16x1xf32>
    %cst_15 = arith.constant 3.200000e+01 : f32
    %19 = vector.broadcast %cst_15 : f32 to vector<16x1xf32>
    %20 = arith.divf %18, %19 : vector<16x1xf32>
    %21 = vector.broadcast %20 : vector<16x1xf32> to vector<16x32xf32>
    %22 = arith.subf %14, %21 : vector<16x32xf32>
    %23 = arith.mulf %22, %22 : vector<16x32xf32>
    %cst_16 = arith.constant dense<0.000000e+00> : vector<16xf32>
    %24 = vector.multi_reduction <add>, %23, %cst_16 [1] : vector<16x32xf32> to vector<16xf32>
    %25 = vector.shape_cast %24 : vector<16xf32> to vector<16x1xf32>
    %cst_17 = arith.constant 3.200000e+01 : f32
    %26 = vector.broadcast %cst_17 : f32 to vector<16x1xf32>
    %27 = arith.divf %25, %26 : vector<16x1xf32>
    %cst_18 = arith.constant 9.99999974E-6 : f32
    %28 = vector.broadcast %cst_18 : f32 to vector<16x1xf32>
    %29 = arith.addf %27, %28 : vector<16x1xf32>
    %30 = math.rsqrt %29 : vector<16x1xf32>
    %31 = vector.broadcast %30 : vector<16x1xf32> to vector<16x32xf32>
    %32 = arith.mulf %22, %31 : vector<16x32xf32>
    %33 = vector.broadcast %15 : vector<1x32xf32> to vector<16x32xf32>
    %34 = arith.mulf %32, %33 : vector<16x32xf32>
    %35 = vector.broadcast %16 : vector<1x32xf32> to vector<16x32xf32>
    %36 = arith.addf %34, %35 : vector<16x32xf32>
    %37 = arith.truncf %36 : vector<16x32xf32> to vector<16x32xbf16>
    %c0_19 = arith.constant 0 : index
    %c0_20 = arith.constant 0 : index
    %c0_21 = arith.constant 0 : index
    %38 = vector.load %arg4[%c0_19, %c0_20, %c0_21] : memref<4x32x96xbf16, #tpu.memory_space<vmem>>, vector<1x32x96xbf16>
    %39 = vector.shape_cast %38 : vector<1x32x96xbf16> to vector<32x96xbf16>
    %cst_22 = arith.constant dense<0.000000e+00> : vector<16x96xf32>
    %40 = tpu.matmul %37, %39, %cst_22 {dimension_numbers = #tpu.dot_dimension_numbers<[1], [0], [0], [1], [0, 0, 1, 1], [], []>} : vector<16x32xbf16>, vector<32x96xbf16>, vector<16x96xf32> -> vector<16x96xf32>
    %41 = vector.extract_strided_slice %0 {offsets = [20, 0], sizes = [1, 96], strides = [1, 1]} : vector<34x96xf32> to vector<1x96xf32>
    %42 = vector.broadcast %41 : vector<1x96xf32> to vector<16x96xf32>
    %43 = arith.addf %40, %42 : vector<16x96xf32>
    %44 = vector.extract_strided_slice %43 {offsets = [0, 0], sizes = [16, 32], strides = [1, 1]} : vector<16x96xf32> to vector<16x32xf32>
    %45 = vector.extract_strided_slice %43 {offsets = [0, 32], sizes = [16, 32], strides = [1, 1]} : vector<16x96xf32> to vector<16x32xf32>
    %46 = vector.extract_strided_slice %43 {offsets = [0, 64], sizes = [16, 32], strides = [1, 1]} : vector<16x96xf32> to vector<16x32xf32>
    %47 = arith.truncf %45 : vector<16x32xf32> to vector<16x32xbf16>
    %cst_23 = arith.constant 0.000000e+00 : f32
    %48 = vector.broadcast %cst_23 : f32 to vector<16x32xf32>
    %49 = vector.extract_strided_slice %1 {offsets = [0, 0], sizes = [1, 32], strides = [1, 1]} : vector<8x32xf32> to vector<1x32xf32>
    %50 = vector.broadcast %49 : vector<1x32xf32> to vector<16x32xf32>
    %51 = arith.mulf %44, %50 : vector<16x32xf32>
    %52 = arith.truncf %51 : vector<16x32xf32> to vector<16x32xbf16>
    %53 = vector.broadcast %49 : vector<1x32xf32> to vector<16x32xf32>
    %54 = arith.mulf %46, %53 : vector<16x32xf32>
    %55 = arith.truncf %54 : vector<16x32xf32> to vector<16x32xbf16>
    %cst_24 = arith.constant dense<0.000000e+00> : vector<16x16xf32>
    %56 = tpu.matmul %52, %47, %cst_24 {dimension_numbers = #tpu.dot_dimension_numbers<[1], [1], [0], [0], [0, 0, 1, 0], [], []>} : vector<16x32xbf16>, vector<16x32xbf16>, vector<16x16xf32> -> vector<16x16xf32>
    %cst_25 = arith.constant 5.000000e-01 : f32
    %57 = vector.broadcast %cst_25 : f32 to vector<16x16xf32>
    %58 = arith.mulf %56, %57 : vector<16x16xf32>
    %59 = arith.addf %58, %2 : vector<16x16xf32>
    %cst_26 = arith.constant dense<0xFF800000> : vector<16xf32>
    %60 = vector.multi_reduction <maximumf>, %59, %cst_26 [1] : vector<16x16xf32> to vector<16xf32>
    %61 = vector.shape_cast %60 : vector<16xf32> to vector<16x1xf32>
    %62 = vector.broadcast %61 : vector<16x1xf32> to vector<16x16xf32>
    %63 = arith.subf %59, %62 : vector<16x16xf32>
    %64 = math.exp %63 : vector<16x16xf32>
    %cst_27 = arith.constant dense<0.000000e+00> : vector<16xf32>
    %65 = vector.multi_reduction <add>, %64, %cst_27 [1] : vector<16x16xf32> to vector<16xf32>
    %66 = vector.shape_cast %65 : vector<16xf32> to vector<16x1xf32>
    %67 = vector.broadcast %66 : vector<16x1xf32> to vector<16x16xf32>
    %68 = arith.divf %64, %67 : vector<16x16xf32>
    %69 = arith.truncf %68 : vector<16x16xf32> to vector<16x16xbf16>
    %cst_28 = arith.constant dense<0.000000e+00> : vector<16x32xf32>
    %70 = tpu.matmul %69, %55, %cst_28 {dimension_numbers = #tpu.dot_dimension_numbers<[1], [0], [0], [1], [0, 0, 1, 1], [], []>} : vector<16x16xbf16>, vector<16x32xbf16>, vector<16x32xf32> -> vector<16x32xf32>
    %71 = arith.addf %48, %70 : vector<16x32xf32>
    %72 = vector.extract_strided_slice %1 {offsets = [1, 0], sizes = [1, 32], strides = [1, 1]} : vector<8x32xf32> to vector<1x32xf32>
    %73 = vector.broadcast %72 : vector<1x32xf32> to vector<16x32xf32>
    %74 = arith.mulf %44, %73 : vector<16x32xf32>
    %75 = arith.truncf %74 : vector<16x32xf32> to vector<16x32xbf16>
    %76 = vector.broadcast %72 : vector<1x32xf32> to vector<16x32xf32>
    %77 = arith.mulf %46, %76 : vector<16x32xf32>
    %78 = arith.truncf %77 : vector<16x32xf32> to vector<16x32xbf16>
    %cst_29 = arith.constant dense<0.000000e+00> : vector<16x16xf32>
    %79 = tpu.matmul %75, %47, %cst_29 {dimension_numbers = #tpu.dot_dimension_numbers<[1], [1], [0], [0], [0, 0, 1, 0], [], []>} : vector<16x32xbf16>, vector<16x32xbf16>, vector<16x16xf32> -> vector<16x16xf32>
    %cst_30 = arith.constant 5.000000e-01 : f32
    %80 = vector.broadcast %cst_30 : f32 to vector<16x16xf32>
    %81 = arith.mulf %79, %80 : vector<16x16xf32>
    %82 = arith.addf %81, %2 : vector<16x16xf32>
    %cst_31 = arith.constant dense<0xFF800000> : vector<16xf32>
    %83 = vector.multi_reduction <maximumf>, %82, %cst_31 [1] : vector<16x16xf32> to vector<16xf32>
    %84 = vector.shape_cast %83 : vector<16xf32> to vector<16x1xf32>
    %85 = vector.broadcast %84 : vector<16x1xf32> to vector<16x16xf32>
    %86 = arith.subf %82, %85 : vector<16x16xf32>
    %87 = math.exp %86 : vector<16x16xf32>
    %cst_32 = arith.constant dense<0.000000e+00> : vector<16xf32>
    %88 = vector.multi_reduction <add>, %87, %cst_32 [1] : vector<16x16xf32> to vector<16xf32>
    %89 = vector.shape_cast %88 : vector<16xf32> to vector<16x1xf32>
    %90 = vector.broadcast %89 : vector<16x1xf32> to vector<16x16xf32>
    %91 = arith.divf %87, %90 : vector<16x16xf32>
    %92 = arith.truncf %91 : vector<16x16xf32> to vector<16x16xbf16>
    %cst_33 = arith.constant dense<0.000000e+00> : vector<16x32xf32>
    %93 = tpu.matmul %92, %78, %cst_33 {dimension_numbers = #tpu.dot_dimension_numbers<[1], [0], [0], [1], [0, 0, 1, 1], [], []>} : vector<16x16xbf16>, vector<16x32xbf16>, vector<16x32xf32> -> vector<16x32xf32>
    %94 = arith.addf %71, %93 : vector<16x32xf32>
    %95 = vector.extract_strided_slice %1 {offsets = [2, 0], sizes = [1, 32], strides = [1, 1]} : vector<8x32xf32> to vector<1x32xf32>
    %96 = vector.broadcast %95 : vector<1x32xf32> to vector<16x32xf32>
    %97 = arith.mulf %44, %96 : vector<16x32xf32>
    %98 = arith.truncf %97 : vector<16x32xf32> to vector<16x32xbf16>
    %99 = vector.broadcast %95 : vector<1x32xf32> to vector<16x32xf32>
    %100 = arith.mulf %46, %99 : vector<16x32xf32>
    %101 = arith.truncf %100 : vector<16x32xf32> to vector<16x32xbf16>
    %cst_34 = arith.constant dense<0.000000e+00> : vector<16x16xf32>
    %102 = tpu.matmul %98, %47, %cst_34 {dimension_numbers = #tpu.dot_dimension_numbers<[1], [1], [0], [0], [0, 0, 1, 0], [], []>} : vector<16x32xbf16>, vector<16x32xbf16>, vector<16x16xf32> -> vector<16x16xf32>
    %cst_35 = arith.constant 5.000000e-01 : f32
    %103 = vector.broadcast %cst_35 : f32 to vector<16x16xf32>
    %104 = arith.mulf %102, %103 : vector<16x16xf32>
    %105 = arith.addf %104, %2 : vector<16x16xf32>
    %cst_36 = arith.constant dense<0xFF800000> : vector<16xf32>
    %106 = vector.multi_reduction <maximumf>, %105, %cst_36 [1] : vector<16x16xf32> to vector<16xf32>
    %107 = vector.shape_cast %106 : vector<16xf32> to vector<16x1xf32>
    %108 = vector.broadcast %107 : vector<16x1xf32> to vector<16x16xf32>
    %109 = arith.subf %105, %108 : vector<16x16xf32>
    %110 = math.exp %109 : vector<16x16xf32>
    %cst_37 = arith.constant dense<0.000000e+00> : vector<16xf32>
    %111 = vector.multi_reduction <add>, %110, %cst_37 [1] : vector<16x16xf32> to vector<16xf32>
    %112 = vector.shape_cast %111 : vector<16xf32> to vector<16x1xf32>
    %113 = vector.broadcast %112 : vector<16x1xf32> to vector<16x16xf32>
    %114 = arith.divf %110, %113 : vector<16x16xf32>
    %115 = arith.truncf %114 : vector<16x16xf32> to vector<16x16xbf16>
    %cst_38 = arith.constant dense<0.000000e+00> : vector<16x32xf32>
    %116 = tpu.matmul %115, %101, %cst_38 {dimension_numbers = #tpu.dot_dimension_numbers<[1], [0], [0], [1], [0, 0, 1, 1], [], []>} : vector<16x16xbf16>, vector<16x32xbf16>, vector<16x32xf32> -> vector<16x32xf32>
    %117 = arith.addf %94, %116 : vector<16x32xf32>
    %118 = vector.extract_strided_slice %1 {offsets = [3, 0], sizes = [1, 32], strides = [1, 1]} : vector<8x32xf32> to vector<1x32xf32>
    %119 = vector.broadcast %118 : vector<1x32xf32> to vector<16x32xf32>
    %120 = arith.mulf %44, %119 : vector<16x32xf32>
    %121 = arith.truncf %120 : vector<16x32xf32> to vector<16x32xbf16>
    %122 = vector.broadcast %118 : vector<1x32xf32> to vector<16x32xf32>
    %123 = arith.mulf %46, %122 : vector<16x32xf32>
    %124 = arith.truncf %123 : vector<16x32xf32> to vector<16x32xbf16>
    %cst_39 = arith.constant dense<0.000000e+00> : vector<16x16xf32>
    %125 = tpu.matmul %121, %47, %cst_39 {dimension_numbers = #tpu.dot_dimension_numbers<[1], [1], [0], [0], [0, 0, 1, 0], [], []>} : vector<16x32xbf16>, vector<16x32xbf16>, vector<16x16xf32> -> vector<16x16xf32>
    %cst_40 = arith.constant 5.000000e-01 : f32
    %126 = vector.broadcast %cst_40 : f32 to vector<16x16xf32>
    %127 = arith.mulf %125, %126 : vector<16x16xf32>
    %128 = arith.addf %127, %2 : vector<16x16xf32>
    %cst_41 = arith.constant dense<0xFF800000> : vector<16xf32>
    %129 = vector.multi_reduction <maximumf>, %128, %cst_41 [1] : vector<16x16xf32> to vector<16xf32>
    %130 = vector.shape_cast %129 : vector<16xf32> to vector<16x1xf32>
    %131 = vector.broadcast %130 : vector<16x1xf32> to vector<16x16xf32>
    %132 = arith.subf %128, %131 : vector<16x16xf32>
    %133 = math.exp %132 : vector<16x16xf32>
    %cst_42 = arith.constant dense<0.000000e+00> : vector<16xf32>
    %134 = vector.multi_reduction <add>, %133, %cst_42 [1] : vector<16x16xf32> to vector<16xf32>
    %135 = vector.shape_cast %134 : vector<16xf32> to vector<16x1xf32>
    %136 = vector.broadcast %135 : vector<16x1xf32> to vector<16x16xf32>
    %137 = arith.divf %133, %136 : vector<16x16xf32>
    %138 = arith.truncf %137 : vector<16x16xf32> to vector<16x16xbf16>
    %cst_43 = arith.constant dense<0.000000e+00> : vector<16x32xf32>
    %139 = tpu.matmul %138, %124, %cst_43 {dimension_numbers = #tpu.dot_dimension_numbers<[1], [0], [0], [1], [0, 0, 1, 1], [], []>} : vector<16x16xbf16>, vector<16x32xbf16>, vector<16x32xf32> -> vector<16x32xf32>
    %140 = arith.addf %117, %139 : vector<16x32xf32>
    %141 = vector.extract_strided_slice %1 {offsets = [4, 0], sizes = [1, 32], strides = [1, 1]} : vector<8x32xf32> to vector<1x32xf32>
    %142 = vector.broadcast %141 : vector<1x32xf32> to vector<16x32xf32>
    %143 = arith.mulf %44, %142 : vector<16x32xf32>
    %144 = arith.truncf %143 : vector<16x32xf32> to vector<16x32xbf16>
    %145 = vector.broadcast %141 : vector<1x32xf32> to vector<16x32xf32>
    %146 = arith.mulf %46, %145 : vector<16x32xf32>
    %147 = arith.truncf %146 : vector<16x32xf32> to vector<16x32xbf16>
    %cst_44 = arith.constant dense<0.000000e+00> : vector<16x16xf32>
    %148 = tpu.matmul %144, %47, %cst_44 {dimension_numbers = #tpu.dot_dimension_numbers<[1], [1], [0], [0], [0, 0, 1, 0], [], []>} : vector<16x32xbf16>, vector<16x32xbf16>, vector<16x16xf32> -> vector<16x16xf32>
    %cst_45 = arith.constant 5.000000e-01 : f32
    %149 = vector.broadcast %cst_45 : f32 to vector<16x16xf32>
    %150 = arith.mulf %148, %149 : vector<16x16xf32>
    %151 = arith.addf %150, %2 : vector<16x16xf32>
    %cst_46 = arith.constant dense<0xFF800000> : vector<16xf32>
    %152 = vector.multi_reduction <maximumf>, %151, %cst_46 [1] : vector<16x16xf32> to vector<16xf32>
    %153 = vector.shape_cast %152 : vector<16xf32> to vector<16x1xf32>
    %154 = vector.broadcast %153 : vector<16x1xf32> to vector<16x16xf32>
    %155 = arith.subf %151, %154 : vector<16x16xf32>
    %156 = math.exp %155 : vector<16x16xf32>
    %cst_47 = arith.constant dense<0.000000e+00> : vector<16xf32>
    %157 = vector.multi_reduction <add>, %156, %cst_47 [1] : vector<16x16xf32> to vector<16xf32>
    %158 = vector.shape_cast %157 : vector<16xf32> to vector<16x1xf32>
    %159 = vector.broadcast %158 : vector<16x1xf32> to vector<16x16xf32>
    %160 = arith.divf %156, %159 : vector<16x16xf32>
    %161 = arith.truncf %160 : vector<16x16xf32> to vector<16x16xbf16>
    %cst_48 = arith.constant dense<0.000000e+00> : vector<16x32xf32>
    %162 = tpu.matmul %161, %147, %cst_48 {dimension_numbers = #tpu.dot_dimension_numbers<[1], [0], [0], [1], [0, 0, 1, 1], [], []>} : vector<16x16xbf16>, vector<16x32xbf16>, vector<16x32xf32> -> vector<16x32xf32>
    %163 = arith.addf %140, %162 : vector<16x32xf32>
    %164 = vector.extract_strided_slice %1 {offsets = [5, 0], sizes = [1, 32], strides = [1, 1]} : vector<8x32xf32> to vector<1x32xf32>
    %165 = vector.broadcast %164 : vector<1x32xf32> to vector<16x32xf32>
    %166 = arith.mulf %44, %165 : vector<16x32xf32>
    %167 = arith.truncf %166 : vector<16x32xf32> to vector<16x32xbf16>
    %168 = vector.broadcast %164 : vector<1x32xf32> to vector<16x32xf32>
    %169 = arith.mulf %46, %168 : vector<16x32xf32>
    %170 = arith.truncf %169 : vector<16x32xf32> to vector<16x32xbf16>
    %cst_49 = arith.constant dense<0.000000e+00> : vector<16x16xf32>
    %171 = tpu.matmul %167, %47, %cst_49 {dimension_numbers = #tpu.dot_dimension_numbers<[1], [1], [0], [0], [0, 0, 1, 0], [], []>} : vector<16x32xbf16>, vector<16x32xbf16>, vector<16x16xf32> -> vector<16x16xf32>
    %cst_50 = arith.constant 5.000000e-01 : f32
    %172 = vector.broadcast %cst_50 : f32 to vector<16x16xf32>
    %173 = arith.mulf %171, %172 : vector<16x16xf32>
    %174 = arith.addf %173, %2 : vector<16x16xf32>
    %cst_51 = arith.constant dense<0xFF800000> : vector<16xf32>
    %175 = vector.multi_reduction <maximumf>, %174, %cst_51 [1] : vector<16x16xf32> to vector<16xf32>
    %176 = vector.shape_cast %175 : vector<16xf32> to vector<16x1xf32>
    %177 = vector.broadcast %176 : vector<16x1xf32> to vector<16x16xf32>
    %178 = arith.subf %174, %177 : vector<16x16xf32>
    %179 = math.exp %178 : vector<16x16xf32>
    %cst_52 = arith.constant dense<0.000000e+00> : vector<16xf32>
    %180 = vector.multi_reduction <add>, %179, %cst_52 [1] : vector<16x16xf32> to vector<16xf32>
    %181 = vector.shape_cast %180 : vector<16xf32> to vector<16x1xf32>
    %182 = vector.broadcast %181 : vector<16x1xf32> to vector<16x16xf32>
    %183 = arith.divf %179, %182 : vector<16x16xf32>
    %184 = arith.truncf %183 : vector<16x16xf32> to vector<16x16xbf16>
    %cst_53 = arith.constant dense<0.000000e+00> : vector<16x32xf32>
    %185 = tpu.matmul %184, %170, %cst_53 {dimension_numbers = #tpu.dot_dimension_numbers<[1], [0], [0], [1], [0, 0, 1, 1], [], []>} : vector<16x16xbf16>, vector<16x32xbf16>, vector<16x32xf32> -> vector<16x32xf32>
    %186 = arith.addf %163, %185 : vector<16x32xf32>
    %187 = vector.extract_strided_slice %1 {offsets = [6, 0], sizes = [1, 32], strides = [1, 1]} : vector<8x32xf32> to vector<1x32xf32>
    %188 = vector.broadcast %187 : vector<1x32xf32> to vector<16x32xf32>
    %189 = arith.mulf %44, %188 : vector<16x32xf32>
    %190 = arith.truncf %189 : vector<16x32xf32> to vector<16x32xbf16>
    %191 = vector.broadcast %187 : vector<1x32xf32> to vector<16x32xf32>
    %192 = arith.mulf %46, %191 : vector<16x32xf32>
    %193 = arith.truncf %192 : vector<16x32xf32> to vector<16x32xbf16>
    %cst_54 = arith.constant dense<0.000000e+00> : vector<16x16xf32>
    %194 = tpu.matmul %190, %47, %cst_54 {dimension_numbers = #tpu.dot_dimension_numbers<[1], [1], [0], [0], [0, 0, 1, 0], [], []>} : vector<16x32xbf16>, vector<16x32xbf16>, vector<16x16xf32> -> vector<16x16xf32>
    %cst_55 = arith.constant 5.000000e-01 : f32
    %195 = vector.broadcast %cst_55 : f32 to vector<16x16xf32>
    %196 = arith.mulf %194, %195 : vector<16x16xf32>
    %197 = arith.addf %196, %2 : vector<16x16xf32>
    %cst_56 = arith.constant dense<0xFF800000> : vector<16xf32>
    %198 = vector.multi_reduction <maximumf>, %197, %cst_56 [1] : vector<16x16xf32> to vector<16xf32>
    %199 = vector.shape_cast %198 : vector<16xf32> to vector<16x1xf32>
    %200 = vector.broadcast %199 : vector<16x1xf32> to vector<16x16xf32>
    %201 = arith.subf %197, %200 : vector<16x16xf32>
    %202 = math.exp %201 : vector<16x16xf32>
    %cst_57 = arith.constant dense<0.000000e+00> : vector<16xf32>
    %203 = vector.multi_reduction <add>, %202, %cst_57 [1] : vector<16x16xf32> to vector<16xf32>
    %204 = vector.shape_cast %203 : vector<16xf32> to vector<16x1xf32>
    %205 = vector.broadcast %204 : vector<16x1xf32> to vector<16x16xf32>
    %206 = arith.divf %202, %205 : vector<16x16xf32>
    %207 = arith.truncf %206 : vector<16x16xf32> to vector<16x16xbf16>
    %cst_58 = arith.constant dense<0.000000e+00> : vector<16x32xf32>
    %208 = tpu.matmul %207, %193, %cst_58 {dimension_numbers = #tpu.dot_dimension_numbers<[1], [0], [0], [1], [0, 0, 1, 1], [], []>} : vector<16x16xbf16>, vector<16x32xbf16>, vector<16x32xf32> -> vector<16x32xf32>
    %209 = arith.addf %186, %208 : vector<16x32xf32>
    %210 = vector.extract_strided_slice %1 {offsets = [7, 0], sizes = [1, 32], strides = [1, 1]} : vector<8x32xf32> to vector<1x32xf32>
    %211 = vector.broadcast %210 : vector<1x32xf32> to vector<16x32xf32>
    %212 = arith.mulf %44, %211 : vector<16x32xf32>
    %213 = arith.truncf %212 : vector<16x32xf32> to vector<16x32xbf16>
    %214 = vector.broadcast %210 : vector<1x32xf32> to vector<16x32xf32>
    %215 = arith.mulf %46, %214 : vector<16x32xf32>
    %216 = arith.truncf %215 : vector<16x32xf32> to vector<16x32xbf16>
    %cst_59 = arith.constant dense<0.000000e+00> : vector<16x16xf32>
    %217 = tpu.matmul %213, %47, %cst_59 {dimension_numbers = #tpu.dot_dimension_numbers<[1], [1], [0], [0], [0, 0, 1, 0], [], []>} : vector<16x32xbf16>, vector<16x32xbf16>, vector<16x16xf32> -> vector<16x16xf32>
    %cst_60 = arith.constant 5.000000e-01 : f32
    %218 = vector.broadcast %cst_60 : f32 to vector<16x16xf32>
    %219 = arith.mulf %217, %218 : vector<16x16xf32>
    %220 = arith.addf %219, %2 : vector<16x16xf32>
    %cst_61 = arith.constant dense<0xFF800000> : vector<16xf32>
    %221 = vector.multi_reduction <maximumf>, %220, %cst_61 [1] : vector<16x16xf32> to vector<16xf32>
    %222 = vector.shape_cast %221 : vector<16xf32> to vector<16x1xf32>
    %223 = vector.broadcast %222 : vector<16x1xf32> to vector<16x16xf32>
    %224 = arith.subf %220, %223 : vector<16x16xf32>
    %225 = math.exp %224 : vector<16x16xf32>
    %cst_62 = arith.constant dense<0.000000e+00> : vector<16xf32>
    %226 = vector.multi_reduction <add>, %225, %cst_62 [1] : vector<16x16xf32> to vector<16xf32>
    %227 = vector.shape_cast %226 : vector<16xf32> to vector<16x1xf32>
    %228 = vector.broadcast %227 : vector<16x1xf32> to vector<16x16xf32>
    %229 = arith.divf %225, %228 : vector<16x16xf32>
    %230 = arith.truncf %229 : vector<16x16xf32> to vector<16x16xbf16>
    %cst_63 = arith.constant dense<0.000000e+00> : vector<16x32xf32>
    %231 = tpu.matmul %230, %216, %cst_63 {dimension_numbers = #tpu.dot_dimension_numbers<[1], [0], [0], [1], [0, 0, 1, 1], [], []>} : vector<16x16xbf16>, vector<16x32xbf16>, vector<16x32xf32> -> vector<16x32xf32>
    %232 = arith.addf %209, %231 : vector<16x32xf32>
    %233 = arith.truncf %232 : vector<16x32xf32> to vector<16x32xbf16>
    %c0_64 = arith.constant 0 : index
    %c0_65 = arith.constant 0 : index
    %c0_66 = arith.constant 0 : index
    %234 = vector.load %arg5[%c0_64, %c0_65, %c0_66] : memref<4x32x32xbf16, #tpu.memory_space<vmem>>, vector<1x32x32xbf16>
    %235 = vector.shape_cast %234 : vector<1x32x32xbf16> to vector<32x32xbf16>
    %cst_67 = arith.constant dense<0.000000e+00> : vector<16x32xf32>
    %236 = tpu.matmul %233, %235, %cst_67 {dimension_numbers = #tpu.dot_dimension_numbers<[1], [0], [0], [1], [0, 0, 1, 1], [], []>} : vector<16x32xbf16>, vector<32x32xbf16>, vector<16x32xf32> -> vector<16x32xf32>
    %237 = arith.addf %14, %236 : vector<16x32xf32>
    %238 = vector.extract_strided_slice %0 {offsets = [24, 0], sizes = [1, 32], strides = [1, 1]} : vector<34x96xf32> to vector<1x32xf32>
    %239 = vector.broadcast %238 : vector<1x32xf32> to vector<16x32xf32>
    %240 = arith.addf %237, %239 : vector<16x32xf32>
    %241 = vector.extract_strided_slice %0 {offsets = [4, 0], sizes = [1, 32], strides = [1, 1]} : vector<34x96xf32> to vector<1x32xf32>
    %242 = vector.extract_strided_slice %0 {offsets = [5, 0], sizes = [1, 32], strides = [1, 1]} : vector<34x96xf32> to vector<1x32xf32>
    %cst_68 = arith.constant dense<0.000000e+00> : vector<16xf32>
    %243 = vector.multi_reduction <add>, %240, %cst_68 [1] : vector<16x32xf32> to vector<16xf32>
    %244 = vector.shape_cast %243 : vector<16xf32> to vector<16x1xf32>
    %cst_69 = arith.constant 3.200000e+01 : f32
    %245 = vector.broadcast %cst_69 : f32 to vector<16x1xf32>
    %246 = arith.divf %244, %245 : vector<16x1xf32>
    %247 = vector.broadcast %246 : vector<16x1xf32> to vector<16x32xf32>
    %248 = arith.subf %240, %247 : vector<16x32xf32>
    %249 = arith.mulf %248, %248 : vector<16x32xf32>
    %cst_70 = arith.constant dense<0.000000e+00> : vector<16xf32>
    %250 = vector.multi_reduction <add>, %249, %cst_70 [1] : vector<16x32xf32> to vector<16xf32>
    %251 = vector.shape_cast %250 : vector<16xf32> to vector<16x1xf32>
    %cst_71 = arith.constant 3.200000e+01 : f32
    %252 = vector.broadcast %cst_71 : f32 to vector<16x1xf32>
    %253 = arith.divf %251, %252 : vector<16x1xf32>
    %cst_72 = arith.constant 9.99999974E-6 : f32
    %254 = vector.broadcast %cst_72 : f32 to vector<16x1xf32>
    %255 = arith.addf %253, %254 : vector<16x1xf32>
    %256 = math.rsqrt %255 : vector<16x1xf32>
    %257 = vector.broadcast %256 : vector<16x1xf32> to vector<16x32xf32>
    %258 = arith.mulf %248, %257 : vector<16x32xf32>
    %259 = vector.broadcast %241 : vector<1x32xf32> to vector<16x32xf32>
    %260 = arith.mulf %258, %259 : vector<16x32xf32>
    %261 = vector.broadcast %242 : vector<1x32xf32> to vector<16x32xf32>
    %262 = arith.addf %260, %261 : vector<16x32xf32>
    %263 = arith.truncf %262 : vector<16x32xf32> to vector<16x32xbf16>
    %c0_73 = arith.constant 0 : index
    %c0_74 = arith.constant 0 : index
    %c0_75 = arith.constant 0 : index
    %264 = vector.load %arg6[%c0_73, %c0_74, %c0_75] : memref<3x32x64xbf16, #tpu.memory_space<vmem>>, vector<1x32x64xbf16>
    %265 = vector.shape_cast %264 : vector<1x32x64xbf16> to vector<32x64xbf16>
    %cst_76 = arith.constant dense<0.000000e+00> : vector<16x64xf32>
    %266 = tpu.matmul %263, %265, %cst_76 {dimension_numbers = #tpu.dot_dimension_numbers<[1], [0], [0], [1], [0, 0, 1, 1], [], []>} : vector<16x32xbf16>, vector<32x64xbf16>, vector<16x64xf32> -> vector<16x64xf32>
    %267 = vector.extract_strided_slice %0 {offsets = [28, 0], sizes = [1, 64], strides = [1, 1]} : vector<34x96xf32> to vector<1x64xf32>
    %268 = vector.broadcast %267 : vector<1x64xf32> to vector<16x64xf32>
    %269 = arith.addf %266, %268 : vector<16x64xf32>
    %270 = arith.negf %269 : vector<16x64xf32>
    %271 = math.exp %270 : vector<16x64xf32>
    %cst_77 = arith.constant 1.000000e+00 : f32
    %272 = vector.broadcast %cst_77 : f32 to vector<16x64xf32>
    %273 = arith.addf %272, %271 : vector<16x64xf32>
    %274 = arith.divf %272, %273 : vector<16x64xf32>
    %275 = arith.mulf %269, %274 : vector<16x64xf32>
    %276 = arith.truncf %275 : vector<16x64xf32> to vector<16x64xbf16>
    %c0_78 = arith.constant 0 : index
    %c0_79 = arith.constant 0 : index
    %c0_80 = arith.constant 0 : index
    %277 = vector.load %arg7[%c0_78, %c0_79, %c0_80] : memref<3x64x32xbf16, #tpu.memory_space<vmem>>, vector<1x64x32xbf16>
    %278 = vector.shape_cast %277 : vector<1x64x32xbf16> to vector<64x32xbf16>
    %cst_81 = arith.constant dense<0.000000e+00> : vector<16x32xf32>
    %279 = tpu.matmul %276, %278, %cst_81 {dimension_numbers = #tpu.dot_dimension_numbers<[1], [0], [0], [1], [0, 0, 1, 1], [], []>} : vector<16x64xbf16>, vector<64x32xbf16>, vector<16x32xf32> -> vector<16x32xf32>
    %280 = arith.addf %240, %279 : vector<16x32xf32>
    %281 = vector.extract_strided_slice %0 {offsets = [31, 0], sizes = [1, 32], strides = [1, 1]} : vector<34x96xf32> to vector<1x32xf32>
    %282 = vector.broadcast %281 : vector<1x32xf32> to vector<16x32xf32>
    %283 = arith.addf %280, %282 : vector<16x32xf32>
    %284 = vector.extract_strided_slice %0 {offsets = [6, 0], sizes = [1, 32], strides = [1, 1]} : vector<34x96xf32> to vector<1x32xf32>
    %285 = vector.extract_strided_slice %0 {offsets = [7, 0], sizes = [1, 32], strides = [1, 1]} : vector<34x96xf32> to vector<1x32xf32>
    %cst_82 = arith.constant dense<0.000000e+00> : vector<16xf32>
    %286 = vector.multi_reduction <add>, %283, %cst_82 [1] : vector<16x32xf32> to vector<16xf32>
    %287 = vector.shape_cast %286 : vector<16xf32> to vector<16x1xf32>
    %cst_83 = arith.constant 3.200000e+01 : f32
    %288 = vector.broadcast %cst_83 : f32 to vector<16x1xf32>
    %289 = arith.divf %287, %288 : vector<16x1xf32>
    %290 = vector.broadcast %289 : vector<16x1xf32> to vector<16x32xf32>
    %291 = arith.subf %283, %290 : vector<16x32xf32>
    %292 = arith.mulf %291, %291 : vector<16x32xf32>
    %cst_84 = arith.constant dense<0.000000e+00> : vector<16xf32>
    %293 = vector.multi_reduction <add>, %292, %cst_84 [1] : vector<16x32xf32> to vector<16xf32>
    %294 = vector.shape_cast %293 : vector<16xf32> to vector<16x1xf32>
    %cst_85 = arith.constant 3.200000e+01 : f32
    %295 = vector.broadcast %cst_85 : f32 to vector<16x1xf32>
    %296 = arith.divf %294, %295 : vector<16x1xf32>
    %cst_86 = arith.constant 9.99999974E-6 : f32
    %297 = vector.broadcast %cst_86 : f32 to vector<16x1xf32>
    %298 = arith.addf %296, %297 : vector<16x1xf32>
    %299 = math.rsqrt %298 : vector<16x1xf32>
    %300 = vector.broadcast %299 : vector<16x1xf32> to vector<16x32xf32>
    %301 = arith.mulf %291, %300 : vector<16x32xf32>
    %302 = vector.broadcast %284 : vector<1x32xf32> to vector<16x32xf32>
    %303 = arith.mulf %301, %302 : vector<16x32xf32>
    %304 = vector.broadcast %285 : vector<1x32xf32> to vector<16x32xf32>
    %305 = arith.addf %303, %304 : vector<16x32xf32>
    %306 = arith.truncf %305 : vector<16x32xf32> to vector<16x32xbf16>
    %c1 = arith.constant 1 : index
    %c0_87 = arith.constant 0 : index
    %c0_88 = arith.constant 0 : index
    %307 = vector.load %arg4[%c1, %c0_87, %c0_88] : memref<4x32x96xbf16, #tpu.memory_space<vmem>>, vector<1x32x96xbf16>
    %308 = vector.shape_cast %307 : vector<1x32x96xbf16> to vector<32x96xbf16>
    %cst_89 = arith.constant dense<0.000000e+00> : vector<16x96xf32>
    %309 = tpu.matmul %306, %308, %cst_89 {dimension_numbers = #tpu.dot_dimension_numbers<[1], [0], [0], [1], [0, 0, 1, 1], [], []>} : vector<16x32xbf16>, vector<32x96xbf16>, vector<16x96xf32> -> vector<16x96xf32>
    %310 = vector.extract_strided_slice %0 {offsets = [21, 0], sizes = [1, 96], strides = [1, 1]} : vector<34x96xf32> to vector<1x96xf32>
    %311 = vector.broadcast %310 : vector<1x96xf32> to vector<16x96xf32>
    %312 = arith.addf %309, %311 : vector<16x96xf32>
    %313 = vector.extract_strided_slice %312 {offsets = [0, 0], sizes = [16, 32], strides = [1, 1]} : vector<16x96xf32> to vector<16x32xf32>
    %314 = vector.extract_strided_slice %312 {offsets = [0, 32], sizes = [16, 32], strides = [1, 1]} : vector<16x96xf32> to vector<16x32xf32>
    %315 = vector.extract_strided_slice %312 {offsets = [0, 64], sizes = [16, 32], strides = [1, 1]} : vector<16x96xf32> to vector<16x32xf32>
    %316 = arith.truncf %314 : vector<16x32xf32> to vector<16x32xbf16>
    %cst_90 = arith.constant 0.000000e+00 : f32
    %317 = vector.broadcast %cst_90 : f32 to vector<16x32xf32>
    %318 = vector.extract_strided_slice %1 {offsets = [0, 0], sizes = [1, 32], strides = [1, 1]} : vector<8x32xf32> to vector<1x32xf32>
    %319 = vector.broadcast %318 : vector<1x32xf32> to vector<16x32xf32>
    %320 = arith.mulf %313, %319 : vector<16x32xf32>
    %321 = arith.truncf %320 : vector<16x32xf32> to vector<16x32xbf16>
    %322 = vector.broadcast %318 : vector<1x32xf32> to vector<16x32xf32>
    %323 = arith.mulf %315, %322 : vector<16x32xf32>
    %324 = arith.truncf %323 : vector<16x32xf32> to vector<16x32xbf16>
    %cst_91 = arith.constant dense<0.000000e+00> : vector<16x16xf32>
    %325 = tpu.matmul %321, %316, %cst_91 {dimension_numbers = #tpu.dot_dimension_numbers<[1], [1], [0], [0], [0, 0, 1, 0], [], []>} : vector<16x32xbf16>, vector<16x32xbf16>, vector<16x16xf32> -> vector<16x16xf32>
    %cst_92 = arith.constant 5.000000e-01 : f32
    %326 = vector.broadcast %cst_92 : f32 to vector<16x16xf32>
    %327 = arith.mulf %325, %326 : vector<16x16xf32>
    %328 = arith.addf %327, %2 : vector<16x16xf32>
    %cst_93 = arith.constant dense<0xFF800000> : vector<16xf32>
    %329 = vector.multi_reduction <maximumf>, %328, %cst_93 [1] : vector<16x16xf32> to vector<16xf32>
    %330 = vector.shape_cast %329 : vector<16xf32> to vector<16x1xf32>
    %331 = vector.broadcast %330 : vector<16x1xf32> to vector<16x16xf32>
    %332 = arith.subf %328, %331 : vector<16x16xf32>
    %333 = math.exp %332 : vector<16x16xf32>
    %cst_94 = arith.constant dense<0.000000e+00> : vector<16xf32>
    %334 = vector.multi_reduction <add>, %333, %cst_94 [1] : vector<16x16xf32> to vector<16xf32>
    %335 = vector.shape_cast %334 : vector<16xf32> to vector<16x1xf32>
    %336 = vector.broadcast %335 : vector<16x1xf32> to vector<16x16xf32>
    %337 = arith.divf %333, %336 : vector<16x16xf32>
    %338 = arith.truncf %337 : vector<16x16xf32> to vector<16x16xbf16>
    %cst_95 = arith.constant dense<0.000000e+00> : vector<16x32xf32>
    %339 = tpu.matmul %338, %324, %cst_95 {dimension_numbers = #tpu.dot_dimension_numbers<[1], [0], [0], [1], [0, 0, 1, 1], [], []>} : vector<16x16xbf16>, vector<16x32xbf16>, vector<16x32xf32> -> vector<16x32xf32>
    %340 = arith.addf %317, %339 : vector<16x32xf32>
    %341 = vector.extract_strided_slice %1 {offsets = [1, 0], sizes = [1, 32], strides = [1, 1]} : vector<8x32xf32> to vector<1x32xf32>
    %342 = vector.broadcast %341 : vector<1x32xf32> to vector<16x32xf32>
    %343 = arith.mulf %313, %342 : vector<16x32xf32>
    %344 = arith.truncf %343 : vector<16x32xf32> to vector<16x32xbf16>
    %345 = vector.broadcast %341 : vector<1x32xf32> to vector<16x32xf32>
    %346 = arith.mulf %315, %345 : vector<16x32xf32>
    %347 = arith.truncf %346 : vector<16x32xf32> to vector<16x32xbf16>
    %cst_96 = arith.constant dense<0.000000e+00> : vector<16x16xf32>
    %348 = tpu.matmul %344, %316, %cst_96 {dimension_numbers = #tpu.dot_dimension_numbers<[1], [1], [0], [0], [0, 0, 1, 0], [], []>} : vector<16x32xbf16>, vector<16x32xbf16>, vector<16x16xf32> -> vector<16x16xf32>
    %cst_97 = arith.constant 5.000000e-01 : f32
    %349 = vector.broadcast %cst_97 : f32 to vector<16x16xf32>
    %350 = arith.mulf %348, %349 : vector<16x16xf32>
    %351 = arith.addf %350, %2 : vector<16x16xf32>
    %cst_98 = arith.constant dense<0xFF800000> : vector<16xf32>
    %352 = vector.multi_reduction <maximumf>, %351, %cst_98 [1] : vector<16x16xf32> to vector<16xf32>
    %353 = vector.shape_cast %352 : vector<16xf32> to vector<16x1xf32>
    %354 = vector.broadcast %353 : vector<16x1xf32> to vector<16x16xf32>
    %355 = arith.subf %351, %354 : vector<16x16xf32>
    %356 = math.exp %355 : vector<16x16xf32>
    %cst_99 = arith.constant dense<0.000000e+00> : vector<16xf32>
    %357 = vector.multi_reduction <add>, %356, %cst_99 [1] : vector<16x16xf32> to vector<16xf32>
    %358 = vector.shape_cast %357 : vector<16xf32> to vector<16x1xf32>
    %359 = vector.broadcast %358 : vector<16x1xf32> to vector<16x16xf32>
    %360 = arith.divf %356, %359 : vector<16x16xf32>
    %361 = arith.truncf %360 : vector<16x16xf32> to vector<16x16xbf16>
    %cst_100 = arith.constant dense<0.000000e+00> : vector<16x32xf32>
    %362 = tpu.matmul %361, %347, %cst_100 {dimension_numbers = #tpu.dot_dimension_numbers<[1], [0], [0], [1], [0, 0, 1, 1], [], []>} : vector<16x16xbf16>, vector<16x32xbf16>, vector<16x32xf32> -> vector<16x32xf32>
    %363 = arith.addf %340, %362 : vector<16x32xf32>
    %364 = vector.extract_strided_slice %1 {offsets = [2, 0], sizes = [1, 32], strides = [1, 1]} : vector<8x32xf32> to vector<1x32xf32>
    %365 = vector.broadcast %364 : vector<1x32xf32> to vector<16x32xf32>
    %366 = arith.mulf %313, %365 : vector<16x32xf32>
    %367 = arith.truncf %366 : vector<16x32xf32> to vector<16x32xbf16>
    %368 = vector.broadcast %364 : vector<1x32xf32> to vector<16x32xf32>
    %369 = arith.mulf %315, %368 : vector<16x32xf32>
    %370 = arith.truncf %369 : vector<16x32xf32> to vector<16x32xbf16>
    %cst_101 = arith.constant dense<0.000000e+00> : vector<16x16xf32>
    %371 = tpu.matmul %367, %316, %cst_101 {dimension_numbers = #tpu.dot_dimension_numbers<[1], [1], [0], [0], [0, 0, 1, 0], [], []>} : vector<16x32xbf16>, vector<16x32xbf16>, vector<16x16xf32> -> vector<16x16xf32>
    %cst_102 = arith.constant 5.000000e-01 : f32
    %372 = vector.broadcast %cst_102 : f32 to vector<16x16xf32>
    %373 = arith.mulf %371, %372 : vector<16x16xf32>
    %374 = arith.addf %373, %2 : vector<16x16xf32>
    %cst_103 = arith.constant dense<0xFF800000> : vector<16xf32>
    %375 = vector.multi_reduction <maximumf>, %374, %cst_103 [1] : vector<16x16xf32> to vector<16xf32>
    %376 = vector.shape_cast %375 : vector<16xf32> to vector<16x1xf32>
    %377 = vector.broadcast %376 : vector<16x1xf32> to vector<16x16xf32>
    %378 = arith.subf %374, %377 : vector<16x16xf32>
    %379 = math.exp %378 : vector<16x16xf32>
    %cst_104 = arith.constant dense<0.000000e+00> : vector<16xf32>
    %380 = vector.multi_reduction <add>, %379, %cst_104 [1] : vector<16x16xf32> to vector<16xf32>
    %381 = vector.shape_cast %380 : vector<16xf32> to vector<16x1xf32>
    %382 = vector.broadcast %381 : vector<16x1xf32> to vector<16x16xf32>
    %383 = arith.divf %379, %382 : vector<16x16xf32>
    %384 = arith.truncf %383 : vector<16x16xf32> to vector<16x16xbf16>
    %cst_105 = arith.constant dense<0.000000e+00> : vector<16x32xf32>
    %385 = tpu.matmul %384, %370, %cst_105 {dimension_numbers = #tpu.dot_dimension_numbers<[1], [0], [0], [1], [0, 0, 1, 1], [], []>} : vector<16x16xbf16>, vector<16x32xbf16>, vector<16x32xf32> -> vector<16x32xf32>
    %386 = arith.addf %363, %385 : vector<16x32xf32>
    %387 = vector.extract_strided_slice %1 {offsets = [3, 0], sizes = [1, 32], strides = [1, 1]} : vector<8x32xf32> to vector<1x32xf32>
    %388 = vector.broadcast %387 : vector<1x32xf32> to vector<16x32xf32>
    %389 = arith.mulf %313, %388 : vector<16x32xf32>
    %390 = arith.truncf %389 : vector<16x32xf32> to vector<16x32xbf16>
    %391 = vector.broadcast %387 : vector<1x32xf32> to vector<16x32xf32>
    %392 = arith.mulf %315, %391 : vector<16x32xf32>
    %393 = arith.truncf %392 : vector<16x32xf32> to vector<16x32xbf16>
    %cst_106 = arith.constant dense<0.000000e+00> : vector<16x16xf32>
    %394 = tpu.matmul %390, %316, %cst_106 {dimension_numbers = #tpu.dot_dimension_numbers<[1], [1], [0], [0], [0, 0, 1, 0], [], []>} : vector<16x32xbf16>, vector<16x32xbf16>, vector<16x16xf32> -> vector<16x16xf32>
    %cst_107 = arith.constant 5.000000e-01 : f32
    %395 = vector.broadcast %cst_107 : f32 to vector<16x16xf32>
    %396 = arith.mulf %394, %395 : vector<16x16xf32>
    %397 = arith.addf %396, %2 : vector<16x16xf32>
    %cst_108 = arith.constant dense<0xFF800000> : vector<16xf32>
    %398 = vector.multi_reduction <maximumf>, %397, %cst_108 [1] : vector<16x16xf32> to vector<16xf32>
    %399 = vector.shape_cast %398 : vector<16xf32> to vector<16x1xf32>
    %400 = vector.broadcast %399 : vector<16x1xf32> to vector<16x16xf32>
    %401 = arith.subf %397, %400 : vector<16x16xf32>
    %402 = math.exp %401 : vector<16x16xf32>
    %cst_109 = arith.constant dense<0.000000e+00> : vector<16xf32>
    %403 = vector.multi_reduction <add>, %402, %cst_109 [1] : vector<16x16xf32> to vector<16xf32>
    %404 = vector.shape_cast %403 : vector<16xf32> to vector<16x1xf32>
    %405 = vector.broadcast %404 : vector<16x1xf32> to vector<16x16xf32>
    %406 = arith.divf %402, %405 : vector<16x16xf32>
    %407 = arith.truncf %406 : vector<16x16xf32> to vector<16x16xbf16>
    %cst_110 = arith.constant dense<0.000000e+00> : vector<16x32xf32>
    %408 = tpu.matmul %407, %393, %cst_110 {dimension_numbers = #tpu.dot_dimension_numbers<[1], [0], [0], [1], [0, 0, 1, 1], [], []>} : vector<16x16xbf16>, vector<16x32xbf16>, vector<16x32xf32> -> vector<16x32xf32>
    %409 = arith.addf %386, %408 : vector<16x32xf32>
    %410 = vector.extract_strided_slice %1 {offsets = [4, 0], sizes = [1, 32], strides = [1, 1]} : vector<8x32xf32> to vector<1x32xf32>
    %411 = vector.broadcast %410 : vector<1x32xf32> to vector<16x32xf32>
    %412 = arith.mulf %313, %411 : vector<16x32xf32>
    %413 = arith.truncf %412 : vector<16x32xf32> to vector<16x32xbf16>
    %414 = vector.broadcast %410 : vector<1x32xf32> to vector<16x32xf32>
    %415 = arith.mulf %315, %414 : vector<16x32xf32>
    %416 = arith.truncf %415 : vector<16x32xf32> to vector<16x32xbf16>
    %cst_111 = arith.constant dense<0.000000e+00> : vector<16x16xf32>
    %417 = tpu.matmul %413, %316, %cst_111 {dimension_numbers = #tpu.dot_dimension_numbers<[1], [1], [0], [0], [0, 0, 1, 0], [], []>} : vector<16x32xbf16>, vector<16x32xbf16>, vector<16x16xf32> -> vector<16x16xf32>
    %cst_112 = arith.constant 5.000000e-01 : f32
    %418 = vector.broadcast %cst_112 : f32 to vector<16x16xf32>
    %419 = arith.mulf %417, %418 : vector<16x16xf32>
    %420 = arith.addf %419, %2 : vector<16x16xf32>
    %cst_113 = arith.constant dense<0xFF800000> : vector<16xf32>
    %421 = vector.multi_reduction <maximumf>, %420, %cst_113 [1] : vector<16x16xf32> to vector<16xf32>
    %422 = vector.shape_cast %421 : vector<16xf32> to vector<16x1xf32>
    %423 = vector.broadcast %422 : vector<16x1xf32> to vector<16x16xf32>
    %424 = arith.subf %420, %423 : vector<16x16xf32>
    %425 = math.exp %424 : vector<16x16xf32>
    %cst_114 = arith.constant dense<0.000000e+00> : vector<16xf32>
    %426 = vector.multi_reduction <add>, %425, %cst_114 [1] : vector<16x16xf32> to vector<16xf32>
    %427 = vector.shape_cast %426 : vector<16xf32> to vector<16x1xf32>
    %428 = vector.broadcast %427 : vector<16x1xf32> to vector<16x16xf32>
    %429 = arith.divf %425, %428 : vector<16x16xf32>
    %430 = arith.truncf %429 : vector<16x16xf32> to vector<16x16xbf16>
    %cst_115 = arith.constant dense<0.000000e+00> : vector<16x32xf32>
    %431 = tpu.matmul %430, %416, %cst_115 {dimension_numbers = #tpu.dot_dimension_numbers<[1], [0], [0], [1], [0, 0, 1, 1], [], []>} : vector<16x16xbf16>, vector<16x32xbf16>, vector<16x32xf32> -> vector<16x32xf32>
    %432 = arith.addf %409, %431 : vector<16x32xf32>
    %433 = vector.extract_strided_slice %1 {offsets = [5, 0], sizes = [1, 32], strides = [1, 1]} : vector<8x32xf32> to vector<1x32xf32>
    %434 = vector.broadcast %433 : vector<1x32xf32> to vector<16x32xf32>
    %435 = arith.mulf %313, %434 : vector<16x32xf32>
    %436 = arith.truncf %435 : vector<16x32xf32> to vector<16x32xbf16>
    %437 = vector.broadcast %433 : vector<1x32xf32> to vector<16x32xf32>
    %438 = arith.mulf %315, %437 : vector<16x32xf32>
    %439 = arith.truncf %438 : vector<16x32xf32> to vector<16x32xbf16>
    %cst_116 = arith.constant dense<0.000000e+00> : vector<16x16xf32>
    %440 = tpu.matmul %436, %316, %cst_116 {dimension_numbers = #tpu.dot_dimension_numbers<[1], [1], [0], [0], [0, 0, 1, 0], [], []>} : vector<16x32xbf16>, vector<16x32xbf16>, vector<16x16xf32> -> vector<16x16xf32>
    %cst_117 = arith.constant 5.000000e-01 : f32
    %441 = vector.broadcast %cst_117 : f32 to vector<16x16xf32>
    %442 = arith.mulf %440, %441 : vector<16x16xf32>
    %443 = arith.addf %442, %2 : vector<16x16xf32>
    %cst_118 = arith.constant dense<0xFF800000> : vector<16xf32>
    %444 = vector.multi_reduction <maximumf>, %443, %cst_118 [1] : vector<16x16xf32> to vector<16xf32>
    %445 = vector.shape_cast %444 : vector<16xf32> to vector<16x1xf32>
    %446 = vector.broadcast %445 : vector<16x1xf32> to vector<16x16xf32>
    %447 = arith.subf %443, %446 : vector<16x16xf32>
    %448 = math.exp %447 : vector<16x16xf32>
    %cst_119 = arith.constant dense<0.000000e+00> : vector<16xf32>
    %449 = vector.multi_reduction <add>, %448, %cst_119 [1] : vector<16x16xf32> to vector<16xf32>
    %450 = vector.shape_cast %449 : vector<16xf32> to vector<16x1xf32>
    %451 = vector.broadcast %450 : vector<16x1xf32> to vector<16x16xf32>
    %452 = arith.divf %448, %451 : vector<16x16xf32>
    %453 = arith.truncf %452 : vector<16x16xf32> to vector<16x16xbf16>
    %cst_120 = arith.constant dense<0.000000e+00> : vector<16x32xf32>
    %454 = tpu.matmul %453, %439, %cst_120 {dimension_numbers = #tpu.dot_dimension_numbers<[1], [0], [0], [1], [0, 0, 1, 1], [], []>} : vector<16x16xbf16>, vector<16x32xbf16>, vector<16x32xf32> -> vector<16x32xf32>
    %455 = arith.addf %432, %454 : vector<16x32xf32>
    %456 = vector.extract_strided_slice %1 {offsets = [6, 0], sizes = [1, 32], strides = [1, 1]} : vector<8x32xf32> to vector<1x32xf32>
    %457 = vector.broadcast %456 : vector<1x32xf32> to vector<16x32xf32>
    %458 = arith.mulf %313, %457 : vector<16x32xf32>
    %459 = arith.truncf %458 : vector<16x32xf32> to vector<16x32xbf16>
    %460 = vector.broadcast %456 : vector<1x32xf32> to vector<16x32xf32>
    %461 = arith.mulf %315, %460 : vector<16x32xf32>
    %462 = arith.truncf %461 : vector<16x32xf32> to vector<16x32xbf16>
    %cst_121 = arith.constant dense<0.000000e+00> : vector<16x16xf32>
    %463 = tpu.matmul %459, %316, %cst_121 {dimension_numbers = #tpu.dot_dimension_numbers<[1], [1], [0], [0], [0, 0, 1, 0], [], []>} : vector<16x32xbf16>, vector<16x32xbf16>, vector<16x16xf32> -> vector<16x16xf32>
    %cst_122 = arith.constant 5.000000e-01 : f32
    %464 = vector.broadcast %cst_122 : f32 to vector<16x16xf32>
    %465 = arith.mulf %463, %464 : vector<16x16xf32>
    %466 = arith.addf %465, %2 : vector<16x16xf32>
    %cst_123 = arith.constant dense<0xFF800000> : vector<16xf32>
    %467 = vector.multi_reduction <maximumf>, %466, %cst_123 [1] : vector<16x16xf32> to vector<16xf32>
    %468 = vector.shape_cast %467 : vector<16xf32> to vector<16x1xf32>
    %469 = vector.broadcast %468 : vector<16x1xf32> to vector<16x16xf32>
    %470 = arith.subf %466, %469 : vector<16x16xf32>
    %471 = math.exp %470 : vector<16x16xf32>
    %cst_124 = arith.constant dense<0.000000e+00> : vector<16xf32>
    %472 = vector.multi_reduction <add>, %471, %cst_124 [1] : vector<16x16xf32> to vector<16xf32>
    %473 = vector.shape_cast %472 : vector<16xf32> to vector<16x1xf32>
    %474 = vector.broadcast %473 : vector<16x1xf32> to vector<16x16xf32>
    %475 = arith.divf %471, %474 : vector<16x16xf32>
    %476 = arith.truncf %475 : vector<16x16xf32> to vector<16x16xbf16>
    %cst_125 = arith.constant dense<0.000000e+00> : vector<16x32xf32>
    %477 = tpu.matmul %476, %462, %cst_125 {dimension_numbers = #tpu.dot_dimension_numbers<[1], [0], [0], [1], [0, 0, 1, 1], [], []>} : vector<16x16xbf16>, vector<16x32xbf16>, vector<16x32xf32> -> vector<16x32xf32>
    %478 = arith.addf %455, %477 : vector<16x32xf32>
    %479 = vector.extract_strided_slice %1 {offsets = [7, 0], sizes = [1, 32], strides = [1, 1]} : vector<8x32xf32> to vector<1x32xf32>
    %480 = vector.broadcast %479 : vector<1x32xf32> to vector<16x32xf32>
    %481 = arith.mulf %313, %480 : vector<16x32xf32>
    %482 = arith.truncf %481 : vector<16x32xf32> to vector<16x32xbf16>
    %483 = vector.broadcast %479 : vector<1x32xf32> to vector<16x32xf32>
    %484 = arith.mulf %315, %483 : vector<16x32xf32>
    %485 = arith.truncf %484 : vector<16x32xf32> to vector<16x32xbf16>
    %cst_126 = arith.constant dense<0.000000e+00> : vector<16x16xf32>
    %486 = tpu.matmul %482, %316, %cst_126 {dimension_numbers = #tpu.dot_dimension_numbers<[1], [1], [0], [0], [0, 0, 1, 0], [], []>} : vector<16x32xbf16>, vector<16x32xbf16>, vector<16x16xf32> -> vector<16x16xf32>
    %cst_127 = arith.constant 5.000000e-01 : f32
    %487 = vector.broadcast %cst_127 : f32 to vector<16x16xf32>
    %488 = arith.mulf %486, %487 : vector<16x16xf32>
    %489 = arith.addf %488, %2 : vector<16x16xf32>
    %cst_128 = arith.constant dense<0xFF800000> : vector<16xf32>
    %490 = vector.multi_reduction <maximumf>, %489, %cst_128 [1] : vector<16x16xf32> to vector<16xf32>
    %491 = vector.shape_cast %490 : vector<16xf32> to vector<16x1xf32>
    %492 = vector.broadcast %491 : vector<16x1xf32> to vector<16x16xf32>
    %493 = arith.subf %489, %492 : vector<16x16xf32>
    %494 = math.exp %493 : vector<16x16xf32>
    %cst_129 = arith.constant dense<0.000000e+00> : vector<16xf32>
    %495 = vector.multi_reduction <add>, %494, %cst_129 [1] : vector<16x16xf32> to vector<16xf32>
    %496 = vector.shape_cast %495 : vector<16xf32> to vector<16x1xf32>
    %497 = vector.broadcast %496 : vector<16x1xf32> to vector<16x16xf32>
    %498 = arith.divf %494, %497 : vector<16x16xf32>
    %499 = arith.truncf %498 : vector<16x16xf32> to vector<16x16xbf16>
    %cst_130 = arith.constant dense<0.000000e+00> : vector<16x32xf32>
    %500 = tpu.matmul %499, %485, %cst_130 {dimension_numbers = #tpu.dot_dimension_numbers<[1], [0], [0], [1], [0, 0, 1, 1], [], []>} : vector<16x16xbf16>, vector<16x32xbf16>, vector<16x32xf32> -> vector<16x32xf32>
    %501 = arith.addf %478, %500 : vector<16x32xf32>
    %502 = arith.truncf %501 : vector<16x32xf32> to vector<16x32xbf16>
    %c1_131 = arith.constant 1 : index
    %c0_132 = arith.constant 0 : index
    %c0_133 = arith.constant 0 : index
    %503 = vector.load %arg5[%c1_131, %c0_132, %c0_133] : memref<4x32x32xbf16, #tpu.memory_space<vmem>>, vector<1x32x32xbf16>
    %504 = vector.shape_cast %503 : vector<1x32x32xbf16> to vector<32x32xbf16>
    %cst_134 = arith.constant dense<0.000000e+00> : vector<16x32xf32>
    %505 = tpu.matmul %502, %504, %cst_134 {dimension_numbers = #tpu.dot_dimension_numbers<[1], [0], [0], [1], [0, 0, 1, 1], [], []>} : vector<16x32xbf16>, vector<32x32xbf16>, vector<16x32xf32> -> vector<16x32xf32>
    %506 = arith.addf %283, %505 : vector<16x32xf32>
    %507 = vector.extract_strided_slice %0 {offsets = [25, 0], sizes = [1, 32], strides = [1, 1]} : vector<34x96xf32> to vector<1x32xf32>
    %508 = vector.broadcast %507 : vector<1x32xf32> to vector<16x32xf32>
    %509 = arith.addf %506, %508 : vector<16x32xf32>
    %510 = vector.extract_strided_slice %0 {offsets = [8, 0], sizes = [1, 32], strides = [1, 1]} : vector<34x96xf32> to vector<1x32xf32>
    %511 = vector.extract_strided_slice %0 {offsets = [9, 0], sizes = [1, 32], strides = [1, 1]} : vector<34x96xf32> to vector<1x32xf32>
    %cst_135 = arith.constant dense<0.000000e+00> : vector<16xf32>
    %512 = vector.multi_reduction <add>, %509, %cst_135 [1] : vector<16x32xf32> to vector<16xf32>
    %513 = vector.shape_cast %512 : vector<16xf32> to vector<16x1xf32>
    %cst_136 = arith.constant 3.200000e+01 : f32
    %514 = vector.broadcast %cst_136 : f32 to vector<16x1xf32>
    %515 = arith.divf %513, %514 : vector<16x1xf32>
    %516 = vector.broadcast %515 : vector<16x1xf32> to vector<16x32xf32>
    %517 = arith.subf %509, %516 : vector<16x32xf32>
    %518 = arith.mulf %517, %517 : vector<16x32xf32>
    %cst_137 = arith.constant dense<0.000000e+00> : vector<16xf32>
    %519 = vector.multi_reduction <add>, %518, %cst_137 [1] : vector<16x32xf32> to vector<16xf32>
    %520 = vector.shape_cast %519 : vector<16xf32> to vector<16x1xf32>
    %cst_138 = arith.constant 3.200000e+01 : f32
    %521 = vector.broadcast %cst_138 : f32 to vector<16x1xf32>
    %522 = arith.divf %520, %521 : vector<16x1xf32>
    %cst_139 = arith.constant 9.99999974E-6 : f32
    %523 = vector.broadcast %cst_139 : f32 to vector<16x1xf32>
    %524 = arith.addf %522, %523 : vector<16x1xf32>
    %525 = math.rsqrt %524 : vector<16x1xf32>
    %526 = vector.broadcast %525 : vector<16x1xf32> to vector<16x32xf32>
    %527 = arith.mulf %517, %526 : vector<16x32xf32>
    %528 = vector.broadcast %510 : vector<1x32xf32> to vector<16x32xf32>
    %529 = arith.mulf %527, %528 : vector<16x32xf32>
    %530 = vector.broadcast %511 : vector<1x32xf32> to vector<16x32xf32>
    %531 = arith.addf %529, %530 : vector<16x32xf32>
    %532 = arith.truncf %531 : vector<16x32xf32> to vector<16x32xbf16>
    %c1_140 = arith.constant 1 : index
    %c0_141 = arith.constant 0 : index
    %c0_142 = arith.constant 0 : index
    %533 = vector.load %arg6[%c1_140, %c0_141, %c0_142] : memref<3x32x64xbf16, #tpu.memory_space<vmem>>, vector<1x32x64xbf16>
    %534 = vector.shape_cast %533 : vector<1x32x64xbf16> to vector<32x64xbf16>
    %cst_143 = arith.constant dense<0.000000e+00> : vector<16x64xf32>
    %535 = tpu.matmul %532, %534, %cst_143 {dimension_numbers = #tpu.dot_dimension_numbers<[1], [0], [0], [1], [0, 0, 1, 1], [], []>} : vector<16x32xbf16>, vector<32x64xbf16>, vector<16x64xf32> -> vector<16x64xf32>
    %536 = vector.extract_strided_slice %0 {offsets = [29, 0], sizes = [1, 64], strides = [1, 1]} : vector<34x96xf32> to vector<1x64xf32>
    %537 = vector.broadcast %536 : vector<1x64xf32> to vector<16x64xf32>
    %538 = arith.addf %535, %537 : vector<16x64xf32>
    %539 = arith.negf %538 : vector<16x64xf32>
    %540 = math.exp %539 : vector<16x64xf32>
    %cst_144 = arith.constant 1.000000e+00 : f32
    %541 = vector.broadcast %cst_144 : f32 to vector<16x64xf32>
    %542 = arith.addf %541, %540 : vector<16x64xf32>
    %543 = arith.divf %541, %542 : vector<16x64xf32>
    %544 = arith.mulf %538, %543 : vector<16x64xf32>
    %545 = arith.truncf %544 : vector<16x64xf32> to vector<16x64xbf16>
    %c1_145 = arith.constant 1 : index
    %c0_146 = arith.constant 0 : index
    %c0_147 = arith.constant 0 : index
    %546 = vector.load %arg7[%c1_145, %c0_146, %c0_147] : memref<3x64x32xbf16, #tpu.memory_space<vmem>>, vector<1x64x32xbf16>
    %547 = vector.shape_cast %546 : vector<1x64x32xbf16> to vector<64x32xbf16>
    %cst_148 = arith.constant dense<0.000000e+00> : vector<16x32xf32>
    %548 = tpu.matmul %545, %547, %cst_148 {dimension_numbers = #tpu.dot_dimension_numbers<[1], [0], [0], [1], [0, 0, 1, 1], [], []>} : vector<16x64xbf16>, vector<64x32xbf16>, vector<16x32xf32> -> vector<16x32xf32>
    %549 = arith.addf %509, %548 : vector<16x32xf32>
    %550 = vector.extract_strided_slice %0 {offsets = [32, 0], sizes = [1, 32], strides = [1, 1]} : vector<34x96xf32> to vector<1x32xf32>
    %551 = vector.broadcast %550 : vector<1x32xf32> to vector<16x32xf32>
    %552 = arith.addf %549, %551 : vector<16x32xf32>
    %553 = vector.extract_strided_slice %0 {offsets = [10, 0], sizes = [1, 32], strides = [1, 1]} : vector<34x96xf32> to vector<1x32xf32>
    %554 = vector.extract_strided_slice %0 {offsets = [11, 0], sizes = [1, 32], strides = [1, 1]} : vector<34x96xf32> to vector<1x32xf32>
    %cst_149 = arith.constant dense<0.000000e+00> : vector<16xf32>
    %555 = vector.multi_reduction <add>, %552, %cst_149 [1] : vector<16x32xf32> to vector<16xf32>
    %556 = vector.shape_cast %555 : vector<16xf32> to vector<16x1xf32>
    %cst_150 = arith.constant 3.200000e+01 : f32
    %557 = vector.broadcast %cst_150 : f32 to vector<16x1xf32>
    %558 = arith.divf %556, %557 : vector<16x1xf32>
    %559 = vector.broadcast %558 : vector<16x1xf32> to vector<16x32xf32>
    %560 = arith.subf %552, %559 : vector<16x32xf32>
    %561 = arith.mulf %560, %560 : vector<16x32xf32>
    %cst_151 = arith.constant dense<0.000000e+00> : vector<16xf32>
    %562 = vector.multi_reduction <add>, %561, %cst_151 [1] : vector<16x32xf32> to vector<16xf32>
    %563 = vector.shape_cast %562 : vector<16xf32> to vector<16x1xf32>
    %cst_152 = arith.constant 3.200000e+01 : f32
    %564 = vector.broadcast %cst_152 : f32 to vector<16x1xf32>
    %565 = arith.divf %563, %564 : vector<16x1xf32>
    %cst_153 = arith.constant 9.99999974E-6 : f32
    %566 = vector.broadcast %cst_153 : f32 to vector<16x1xf32>
    %567 = arith.addf %565, %566 : vector<16x1xf32>
    %568 = math.rsqrt %567 : vector<16x1xf32>
    %569 = vector.broadcast %568 : vector<16x1xf32> to vector<16x32xf32>
    %570 = arith.mulf %560, %569 : vector<16x32xf32>
    %571 = vector.broadcast %553 : vector<1x32xf32> to vector<16x32xf32>
    %572 = arith.mulf %570, %571 : vector<16x32xf32>
    %573 = vector.broadcast %554 : vector<1x32xf32> to vector<16x32xf32>
    %574 = arith.addf %572, %573 : vector<16x32xf32>
    %575 = vector.extract_strided_slice %0 {offsets = [1, 0], sizes = [1, 32], strides = [1, 1]} : vector<34x96xf32> to vector<1x32xf32>
    %576 = vector.extract_strided_slice %0 {offsets = [12, 0], sizes = [1, 32], strides = [1, 1]} : vector<34x96xf32> to vector<1x32xf32>
    %577 = vector.extract_strided_slice %0 {offsets = [13, 0], sizes = [1, 32], strides = [1, 1]} : vector<34x96xf32> to vector<1x32xf32>
    %cst_154 = arith.constant dense<0.000000e+00> : vector<1xf32>
    %578 = vector.multi_reduction <add>, %575, %cst_154 [1] : vector<1x32xf32> to vector<1xf32>
    %579 = vector.shape_cast %578 : vector<1xf32> to vector<1x1xf32>
    %cst_155 = arith.constant 3.200000e+01 : f32
    %580 = vector.broadcast %cst_155 : f32 to vector<1x1xf32>
    %581 = arith.divf %579, %580 : vector<1x1xf32>
    %582 = vector.broadcast %581 : vector<1x1xf32> to vector<1x32xf32>
    %583 = arith.subf %575, %582 : vector<1x32xf32>
    %584 = arith.mulf %583, %583 : vector<1x32xf32>
    %cst_156 = arith.constant dense<0.000000e+00> : vector<1xf32>
    %585 = vector.multi_reduction <add>, %584, %cst_156 [1] : vector<1x32xf32> to vector<1xf32>
    %586 = vector.shape_cast %585 : vector<1xf32> to vector<1x1xf32>
    %cst_157 = arith.constant 3.200000e+01 : f32
    %587 = vector.broadcast %cst_157 : f32 to vector<1x1xf32>
    %588 = arith.divf %586, %587 : vector<1x1xf32>
    %cst_158 = arith.constant 9.99999974E-6 : f32
    %589 = vector.broadcast %cst_158 : f32 to vector<1x1xf32>
    %590 = arith.addf %588, %589 : vector<1x1xf32>
    %591 = math.rsqrt %590 : vector<1x1xf32>
    %592 = vector.broadcast %591 : vector<1x1xf32> to vector<1x32xf32>
    %593 = arith.mulf %583, %592 : vector<1x32xf32>
    %594 = arith.mulf %593, %576 : vector<1x32xf32>
    %595 = arith.addf %594, %577 : vector<1x32xf32>
    %596 = arith.truncf %595 : vector<1x32xf32> to vector<1x32xbf16>
    %c2 = arith.constant 2 : index
    %c0_159 = arith.constant 0 : index
    %c0_160 = arith.constant 0 : index
    %597 = vector.load %arg4[%c2, %c0_159, %c0_160] : memref<4x32x96xbf16, #tpu.memory_space<vmem>>, vector<1x32x96xbf16>
    %598 = vector.shape_cast %597 : vector<1x32x96xbf16> to vector<32x96xbf16>
    %cst_161 = arith.constant dense<0.000000e+00> : vector<1x96xf32>
    %599 = tpu.matmul %596, %598, %cst_161 {dimension_numbers = #tpu.dot_dimension_numbers<[1], [0], [0], [1], [0, 0, 1, 1], [], []>} : vector<1x32xbf16>, vector<32x96xbf16>, vector<1x96xf32> -> vector<1x96xf32>
    %600 = vector.extract_strided_slice %0 {offsets = [22, 0], sizes = [1, 96], strides = [1, 1]} : vector<34x96xf32> to vector<1x96xf32>
    %601 = arith.addf %599, %600 : vector<1x96xf32>
    %602 = vector.extract_strided_slice %601 {offsets = [0, 64], sizes = [1, 32], strides = [1, 1]} : vector<1x96xf32> to vector<1x32xf32>
    %603 = arith.truncf %602 : vector<1x32xf32> to vector<1x32xbf16>
    %c2_162 = arith.constant 2 : index
    %c0_163 = arith.constant 0 : index
    %c0_164 = arith.constant 0 : index
    %604 = vector.load %arg5[%c2_162, %c0_163, %c0_164] : memref<4x32x32xbf16, #tpu.memory_space<vmem>>, vector<1x32x32xbf16>
    %605 = vector.shape_cast %604 : vector<1x32x32xbf16> to vector<32x32xbf16>
    %cst_165 = arith.constant dense<0.000000e+00> : vector<1x32xf32>
    %606 = tpu.matmul %603, %605, %cst_165 {dimension_numbers = #tpu.dot_dimension_numbers<[1], [0], [0], [1], [0, 0, 1, 1], [], []>} : vector<1x32xbf16>, vector<32x32xbf16>, vector<1x32xf32> -> vector<1x32xf32>
    %607 = arith.addf %575, %606 : vector<1x32xf32>
    %608 = vector.extract_strided_slice %0 {offsets = [26, 0], sizes = [1, 32], strides = [1, 1]} : vector<34x96xf32> to vector<1x32xf32>
    %609 = arith.addf %607, %608 : vector<1x32xf32>
    %610 = vector.extract_strided_slice %0 {offsets = [14, 0], sizes = [1, 32], strides = [1, 1]} : vector<34x96xf32> to vector<1x32xf32>
    %611 = vector.extract_strided_slice %0 {offsets = [15, 0], sizes = [1, 32], strides = [1, 1]} : vector<34x96xf32> to vector<1x32xf32>
    %cst_166 = arith.constant dense<0.000000e+00> : vector<1xf32>
    %612 = vector.multi_reduction <add>, %609, %cst_166 [1] : vector<1x32xf32> to vector<1xf32>
    %613 = vector.shape_cast %612 : vector<1xf32> to vector<1x1xf32>
    %cst_167 = arith.constant 3.200000e+01 : f32
    %614 = vector.broadcast %cst_167 : f32 to vector<1x1xf32>
    %615 = arith.divf %613, %614 : vector<1x1xf32>
    %616 = vector.broadcast %615 : vector<1x1xf32> to vector<1x32xf32>
    %617 = arith.subf %609, %616 : vector<1x32xf32>
    %618 = arith.mulf %617, %617 : vector<1x32xf32>
    %cst_168 = arith.constant dense<0.000000e+00> : vector<1xf32>
    %619 = vector.multi_reduction <add>, %618, %cst_168 [1] : vector<1x32xf32> to vector<1xf32>
    %620 = vector.shape_cast %619 : vector<1xf32> to vector<1x1xf32>
    %cst_169 = arith.constant 3.200000e+01 : f32
    %621 = vector.broadcast %cst_169 : f32 to vector<1x1xf32>
    %622 = arith.divf %620, %621 : vector<1x1xf32>
    %cst_170 = arith.constant 9.99999974E-6 : f32
    %623 = vector.broadcast %cst_170 : f32 to vector<1x1xf32>
    %624 = arith.addf %622, %623 : vector<1x1xf32>
    %625 = math.rsqrt %624 : vector<1x1xf32>
    %626 = vector.broadcast %625 : vector<1x1xf32> to vector<1x32xf32>
    %627 = arith.mulf %617, %626 : vector<1x32xf32>
    %628 = arith.mulf %627, %610 : vector<1x32xf32>
    %629 = arith.addf %628, %611 : vector<1x32xf32>
    %630 = arith.truncf %629 : vector<1x32xf32> to vector<1x32xbf16>
    %c3 = arith.constant 3 : index
    %c0_171 = arith.constant 0 : index
    %c0_172 = arith.constant 0 : index
    %631 = vector.load %arg4[%c3, %c0_171, %c0_172] : memref<4x32x96xbf16, #tpu.memory_space<vmem>>, vector<1x32x96xbf16>
    %632 = vector.shape_cast %631 : vector<1x32x96xbf16> to vector<32x96xbf16>
    %cst_173 = arith.constant dense<0.000000e+00> : vector<1x96xf32>
    %633 = tpu.matmul %630, %632, %cst_173 {dimension_numbers = #tpu.dot_dimension_numbers<[1], [0], [0], [1], [0, 0, 1, 1], [], []>} : vector<1x32xbf16>, vector<32x96xbf16>, vector<1x96xf32> -> vector<1x96xf32>
    %634 = vector.extract_strided_slice %0 {offsets = [23, 0], sizes = [1, 96], strides = [1, 1]} : vector<34x96xf32> to vector<1x96xf32>
    %635 = arith.addf %633, %634 : vector<1x96xf32>
    %636 = vector.extract_strided_slice %635 {offsets = [0, 0], sizes = [1, 32], strides = [1, 1]} : vector<1x96xf32> to vector<1x32xf32>
    %637 = arith.truncf %574 : vector<16x32xf32> to vector<16x32xbf16>
    %c3_174 = arith.constant 3 : index
    %c0_175 = arith.constant 0 : index
    %c0_176 = arith.constant 0 : index
    %638 = vector.load %arg4[%c3_174, %c0_175, %c0_176] : memref<4x32x96xbf16, #tpu.memory_space<vmem>>, vector<1x32x96xbf16>
    %639 = vector.shape_cast %638 : vector<1x32x96xbf16> to vector<32x96xbf16>
    %cst_177 = arith.constant dense<0.000000e+00> : vector<16x96xf32>
    %640 = tpu.matmul %637, %639, %cst_177 {dimension_numbers = #tpu.dot_dimension_numbers<[1], [0], [0], [1], [0, 0, 1, 1], [], []>} : vector<16x32xbf16>, vector<32x96xbf16>, vector<16x96xf32> -> vector<16x96xf32>
    %641 = vector.extract_strided_slice %0 {offsets = [23, 0], sizes = [1, 96], strides = [1, 1]} : vector<34x96xf32> to vector<1x96xf32>
    %642 = vector.broadcast %641 : vector<1x96xf32> to vector<16x96xf32>
    %643 = arith.addf %640, %642 : vector<16x96xf32>
    %644 = vector.extract_strided_slice %643 {offsets = [0, 32], sizes = [16, 32], strides = [1, 1]} : vector<16x96xf32> to vector<16x32xf32>
    %645 = vector.extract_strided_slice %643 {offsets = [0, 64], sizes = [16, 32], strides = [1, 1]} : vector<16x96xf32> to vector<16x32xf32>
    %646 = arith.truncf %644 : vector<16x32xf32> to vector<16x32xbf16>
    %cst_178 = arith.constant 0.000000e+00 : f32
    %647 = vector.broadcast %cst_178 : f32 to vector<1x32xf32>
    %648 = vector.extract_strided_slice %1 {offsets = [0, 0], sizes = [1, 32], strides = [1, 1]} : vector<8x32xf32> to vector<1x32xf32>
    %649 = arith.mulf %636, %648 : vector<1x32xf32>
    %650 = arith.truncf %649 : vector<1x32xf32> to vector<1x32xbf16>
    %651 = vector.broadcast %648 : vector<1x32xf32> to vector<16x32xf32>
    %652 = arith.mulf %645, %651 : vector<16x32xf32>
    %653 = arith.truncf %652 : vector<16x32xf32> to vector<16x32xbf16>
    %cst_179 = arith.constant dense<0.000000e+00> : vector<1x16xf32>
    %654 = tpu.matmul %650, %646, %cst_179 {dimension_numbers = #tpu.dot_dimension_numbers<[1], [1], [0], [0], [0, 0, 1, 0], [], []>} : vector<1x32xbf16>, vector<16x32xbf16>, vector<1x16xf32> -> vector<1x16xf32>
    %cst_180 = arith.constant 5.000000e-01 : f32
    %655 = vector.broadcast %cst_180 : f32 to vector<1x16xf32>
    %656 = arith.mulf %654, %655 : vector<1x16xf32>
    %657 = arith.addf %656, %3 : vector<1x16xf32>
    %cst_181 = arith.constant dense<0xFF800000> : vector<1xf32>
    %658 = vector.multi_reduction <maximumf>, %657, %cst_181 [1] : vector<1x16xf32> to vector<1xf32>
    %659 = vector.shape_cast %658 : vector<1xf32> to vector<1x1xf32>
    %660 = vector.broadcast %659 : vector<1x1xf32> to vector<1x16xf32>
    %661 = arith.subf %657, %660 : vector<1x16xf32>
    %662 = math.exp %661 : vector<1x16xf32>
    %cst_182 = arith.constant dense<0.000000e+00> : vector<1xf32>
    %663 = vector.multi_reduction <add>, %662, %cst_182 [1] : vector<1x16xf32> to vector<1xf32>
    %664 = vector.shape_cast %663 : vector<1xf32> to vector<1x1xf32>
    %665 = vector.broadcast %664 : vector<1x1xf32> to vector<1x16xf32>
    %666 = arith.divf %662, %665 : vector<1x16xf32>
    %667 = arith.truncf %666 : vector<1x16xf32> to vector<1x16xbf16>
    %cst_183 = arith.constant dense<0.000000e+00> : vector<1x32xf32>
    %668 = tpu.matmul %667, %653, %cst_183 {dimension_numbers = #tpu.dot_dimension_numbers<[1], [0], [0], [1], [0, 0, 1, 1], [], []>} : vector<1x16xbf16>, vector<16x32xbf16>, vector<1x32xf32> -> vector<1x32xf32>
    %669 = arith.addf %647, %668 : vector<1x32xf32>
    %670 = vector.extract_strided_slice %1 {offsets = [1, 0], sizes = [1, 32], strides = [1, 1]} : vector<8x32xf32> to vector<1x32xf32>
    %671 = arith.mulf %636, %670 : vector<1x32xf32>
    %672 = arith.truncf %671 : vector<1x32xf32> to vector<1x32xbf16>
    %673 = vector.broadcast %670 : vector<1x32xf32> to vector<16x32xf32>
    %674 = arith.mulf %645, %673 : vector<16x32xf32>
    %675 = arith.truncf %674 : vector<16x32xf32> to vector<16x32xbf16>
    %cst_184 = arith.constant dense<0.000000e+00> : vector<1x16xf32>
    %676 = tpu.matmul %672, %646, %cst_184 {dimension_numbers = #tpu.dot_dimension_numbers<[1], [1], [0], [0], [0, 0, 1, 0], [], []>} : vector<1x32xbf16>, vector<16x32xbf16>, vector<1x16xf32> -> vector<1x16xf32>
    %cst_185 = arith.constant 5.000000e-01 : f32
    %677 = vector.broadcast %cst_185 : f32 to vector<1x16xf32>
    %678 = arith.mulf %676, %677 : vector<1x16xf32>
    %679 = arith.addf %678, %3 : vector<1x16xf32>
    %cst_186 = arith.constant dense<0xFF800000> : vector<1xf32>
    %680 = vector.multi_reduction <maximumf>, %679, %cst_186 [1] : vector<1x16xf32> to vector<1xf32>
    %681 = vector.shape_cast %680 : vector<1xf32> to vector<1x1xf32>
    %682 = vector.broadcast %681 : vector<1x1xf32> to vector<1x16xf32>
    %683 = arith.subf %679, %682 : vector<1x16xf32>
    %684 = math.exp %683 : vector<1x16xf32>
    %cst_187 = arith.constant dense<0.000000e+00> : vector<1xf32>
    %685 = vector.multi_reduction <add>, %684, %cst_187 [1] : vector<1x16xf32> to vector<1xf32>
    %686 = vector.shape_cast %685 : vector<1xf32> to vector<1x1xf32>
    %687 = vector.broadcast %686 : vector<1x1xf32> to vector<1x16xf32>
    %688 = arith.divf %684, %687 : vector<1x16xf32>
    %689 = arith.truncf %688 : vector<1x16xf32> to vector<1x16xbf16>
    %cst_188 = arith.constant dense<0.000000e+00> : vector<1x32xf32>
    %690 = tpu.matmul %689, %675, %cst_188 {dimension_numbers = #tpu.dot_dimension_numbers<[1], [0], [0], [1], [0, 0, 1, 1], [], []>} : vector<1x16xbf16>, vector<16x32xbf16>, vector<1x32xf32> -> vector<1x32xf32>
    %691 = arith.addf %669, %690 : vector<1x32xf32>
    %692 = vector.extract_strided_slice %1 {offsets = [2, 0], sizes = [1, 32], strides = [1, 1]} : vector<8x32xf32> to vector<1x32xf32>
    %693 = arith.mulf %636, %692 : vector<1x32xf32>
    %694 = arith.truncf %693 : vector<1x32xf32> to vector<1x32xbf16>
    %695 = vector.broadcast %692 : vector<1x32xf32> to vector<16x32xf32>
    %696 = arith.mulf %645, %695 : vector<16x32xf32>
    %697 = arith.truncf %696 : vector<16x32xf32> to vector<16x32xbf16>
    %cst_189 = arith.constant dense<0.000000e+00> : vector<1x16xf32>
    %698 = tpu.matmul %694, %646, %cst_189 {dimension_numbers = #tpu.dot_dimension_numbers<[1], [1], [0], [0], [0, 0, 1, 0], [], []>} : vector<1x32xbf16>, vector<16x32xbf16>, vector<1x16xf32> -> vector<1x16xf32>
    %cst_190 = arith.constant 5.000000e-01 : f32
    %699 = vector.broadcast %cst_190 : f32 to vector<1x16xf32>
    %700 = arith.mulf %698, %699 : vector<1x16xf32>
    %701 = arith.addf %700, %3 : vector<1x16xf32>
    %cst_191 = arith.constant dense<0xFF800000> : vector<1xf32>
    %702 = vector.multi_reduction <maximumf>, %701, %cst_191 [1] : vector<1x16xf32> to vector<1xf32>
    %703 = vector.shape_cast %702 : vector<1xf32> to vector<1x1xf32>
    %704 = vector.broadcast %703 : vector<1x1xf32> to vector<1x16xf32>
    %705 = arith.subf %701, %704 : vector<1x16xf32>
    %706 = math.exp %705 : vector<1x16xf32>
    %cst_192 = arith.constant dense<0.000000e+00> : vector<1xf32>
    %707 = vector.multi_reduction <add>, %706, %cst_192 [1] : vector<1x16xf32> to vector<1xf32>
    %708 = vector.shape_cast %707 : vector<1xf32> to vector<1x1xf32>
    %709 = vector.broadcast %708 : vector<1x1xf32> to vector<1x16xf32>
    %710 = arith.divf %706, %709 : vector<1x16xf32>
    %711 = arith.truncf %710 : vector<1x16xf32> to vector<1x16xbf16>
    %cst_193 = arith.constant dense<0.000000e+00> : vector<1x32xf32>
    %712 = tpu.matmul %711, %697, %cst_193 {dimension_numbers = #tpu.dot_dimension_numbers<[1], [0], [0], [1], [0, 0, 1, 1], [], []>} : vector<1x16xbf16>, vector<16x32xbf16>, vector<1x32xf32> -> vector<1x32xf32>
    %713 = arith.addf %691, %712 : vector<1x32xf32>
    %714 = vector.extract_strided_slice %1 {offsets = [3, 0], sizes = [1, 32], strides = [1, 1]} : vector<8x32xf32> to vector<1x32xf32>
    %715 = arith.mulf %636, %714 : vector<1x32xf32>
    %716 = arith.truncf %715 : vector<1x32xf32> to vector<1x32xbf16>
    %717 = vector.broadcast %714 : vector<1x32xf32> to vector<16x32xf32>
    %718 = arith.mulf %645, %717 : vector<16x32xf32>
    %719 = arith.truncf %718 : vector<16x32xf32> to vector<16x32xbf16>
    %cst_194 = arith.constant dense<0.000000e+00> : vector<1x16xf32>
    %720 = tpu.matmul %716, %646, %cst_194 {dimension_numbers = #tpu.dot_dimension_numbers<[1], [1], [0], [0], [0, 0, 1, 0], [], []>} : vector<1x32xbf16>, vector<16x32xbf16>, vector<1x16xf32> -> vector<1x16xf32>
    %cst_195 = arith.constant 5.000000e-01 : f32
    %721 = vector.broadcast %cst_195 : f32 to vector<1x16xf32>
    %722 = arith.mulf %720, %721 : vector<1x16xf32>
    %723 = arith.addf %722, %3 : vector<1x16xf32>
    %cst_196 = arith.constant dense<0xFF800000> : vector<1xf32>
    %724 = vector.multi_reduction <maximumf>, %723, %cst_196 [1] : vector<1x16xf32> to vector<1xf32>
    %725 = vector.shape_cast %724 : vector<1xf32> to vector<1x1xf32>
    %726 = vector.broadcast %725 : vector<1x1xf32> to vector<1x16xf32>
    %727 = arith.subf %723, %726 : vector<1x16xf32>
    %728 = math.exp %727 : vector<1x16xf32>
    %cst_197 = arith.constant dense<0.000000e+00> : vector<1xf32>
    %729 = vector.multi_reduction <add>, %728, %cst_197 [1] : vector<1x16xf32> to vector<1xf32>
    %730 = vector.shape_cast %729 : vector<1xf32> to vector<1x1xf32>
    %731 = vector.broadcast %730 : vector<1x1xf32> to vector<1x16xf32>
    %732 = arith.divf %728, %731 : vector<1x16xf32>
    %733 = arith.truncf %732 : vector<1x16xf32> to vector<1x16xbf16>
    %cst_198 = arith.constant dense<0.000000e+00> : vector<1x32xf32>
    %734 = tpu.matmul %733, %719, %cst_198 {dimension_numbers = #tpu.dot_dimension_numbers<[1], [0], [0], [1], [0, 0, 1, 1], [], []>} : vector<1x16xbf16>, vector<16x32xbf16>, vector<1x32xf32> -> vector<1x32xf32>
    %735 = arith.addf %713, %734 : vector<1x32xf32>
    %736 = vector.extract_strided_slice %1 {offsets = [4, 0], sizes = [1, 32], strides = [1, 1]} : vector<8x32xf32> to vector<1x32xf32>
    %737 = arith.mulf %636, %736 : vector<1x32xf32>
    %738 = arith.truncf %737 : vector<1x32xf32> to vector<1x32xbf16>
    %739 = vector.broadcast %736 : vector<1x32xf32> to vector<16x32xf32>
    %740 = arith.mulf %645, %739 : vector<16x32xf32>
    %741 = arith.truncf %740 : vector<16x32xf32> to vector<16x32xbf16>
    %cst_199 = arith.constant dense<0.000000e+00> : vector<1x16xf32>
    %742 = tpu.matmul %738, %646, %cst_199 {dimension_numbers = #tpu.dot_dimension_numbers<[1], [1], [0], [0], [0, 0, 1, 0], [], []>} : vector<1x32xbf16>, vector<16x32xbf16>, vector<1x16xf32> -> vector<1x16xf32>
    %cst_200 = arith.constant 5.000000e-01 : f32
    %743 = vector.broadcast %cst_200 : f32 to vector<1x16xf32>
    %744 = arith.mulf %742, %743 : vector<1x16xf32>
    %745 = arith.addf %744, %3 : vector<1x16xf32>
    %cst_201 = arith.constant dense<0xFF800000> : vector<1xf32>
    %746 = vector.multi_reduction <maximumf>, %745, %cst_201 [1] : vector<1x16xf32> to vector<1xf32>
    %747 = vector.shape_cast %746 : vector<1xf32> to vector<1x1xf32>
    %748 = vector.broadcast %747 : vector<1x1xf32> to vector<1x16xf32>
    %749 = arith.subf %745, %748 : vector<1x16xf32>
    %750 = math.exp %749 : vector<1x16xf32>
    %cst_202 = arith.constant dense<0.000000e+00> : vector<1xf32>
    %751 = vector.multi_reduction <add>, %750, %cst_202 [1] : vector<1x16xf32> to vector<1xf32>
    %752 = vector.shape_cast %751 : vector<1xf32> to vector<1x1xf32>
    %753 = vector.broadcast %752 : vector<1x1xf32> to vector<1x16xf32>
    %754 = arith.divf %750, %753 : vector<1x16xf32>
    %755 = arith.truncf %754 : vector<1x16xf32> to vector<1x16xbf16>
    %cst_203 = arith.constant dense<0.000000e+00> : vector<1x32xf32>
    %756 = tpu.matmul %755, %741, %cst_203 {dimension_numbers = #tpu.dot_dimension_numbers<[1], [0], [0], [1], [0, 0, 1, 1], [], []>} : vector<1x16xbf16>, vector<16x32xbf16>, vector<1x32xf32> -> vector<1x32xf32>
    %757 = arith.addf %735, %756 : vector<1x32xf32>
    %758 = vector.extract_strided_slice %1 {offsets = [5, 0], sizes = [1, 32], strides = [1, 1]} : vector<8x32xf32> to vector<1x32xf32>
    %759 = arith.mulf %636, %758 : vector<1x32xf32>
    %760 = arith.truncf %759 : vector<1x32xf32> to vector<1x32xbf16>
    %761 = vector.broadcast %758 : vector<1x32xf32> to vector<16x32xf32>
    %762 = arith.mulf %645, %761 : vector<16x32xf32>
    %763 = arith.truncf %762 : vector<16x32xf32> to vector<16x32xbf16>
    %cst_204 = arith.constant dense<0.000000e+00> : vector<1x16xf32>
    %764 = tpu.matmul %760, %646, %cst_204 {dimension_numbers = #tpu.dot_dimension_numbers<[1], [1], [0], [0], [0, 0, 1, 0], [], []>} : vector<1x32xbf16>, vector<16x32xbf16>, vector<1x16xf32> -> vector<1x16xf32>
    %cst_205 = arith.constant 5.000000e-01 : f32
    %765 = vector.broadcast %cst_205 : f32 to vector<1x16xf32>
    %766 = arith.mulf %764, %765 : vector<1x16xf32>
    %767 = arith.addf %766, %3 : vector<1x16xf32>
    %cst_206 = arith.constant dense<0xFF800000> : vector<1xf32>
    %768 = vector.multi_reduction <maximumf>, %767, %cst_206 [1] : vector<1x16xf32> to vector<1xf32>
    %769 = vector.shape_cast %768 : vector<1xf32> to vector<1x1xf32>
    %770 = vector.broadcast %769 : vector<1x1xf32> to vector<1x16xf32>
    %771 = arith.subf %767, %770 : vector<1x16xf32>
    %772 = math.exp %771 : vector<1x16xf32>
    %cst_207 = arith.constant dense<0.000000e+00> : vector<1xf32>
    %773 = vector.multi_reduction <add>, %772, %cst_207 [1] : vector<1x16xf32> to vector<1xf32>
    %774 = vector.shape_cast %773 : vector<1xf32> to vector<1x1xf32>
    %775 = vector.broadcast %774 : vector<1x1xf32> to vector<1x16xf32>
    %776 = arith.divf %772, %775 : vector<1x16xf32>
    %777 = arith.truncf %776 : vector<1x16xf32> to vector<1x16xbf16>
    %cst_208 = arith.constant dense<0.000000e+00> : vector<1x32xf32>
    %778 = tpu.matmul %777, %763, %cst_208 {dimension_numbers = #tpu.dot_dimension_numbers<[1], [0], [0], [1], [0, 0, 1, 1], [], []>} : vector<1x16xbf16>, vector<16x32xbf16>, vector<1x32xf32> -> vector<1x32xf32>
    %779 = arith.addf %757, %778 : vector<1x32xf32>
    %780 = vector.extract_strided_slice %1 {offsets = [6, 0], sizes = [1, 32], strides = [1, 1]} : vector<8x32xf32> to vector<1x32xf32>
    %781 = arith.mulf %636, %780 : vector<1x32xf32>
    %782 = arith.truncf %781 : vector<1x32xf32> to vector<1x32xbf16>
    %783 = vector.broadcast %780 : vector<1x32xf32> to vector<16x32xf32>
    %784 = arith.mulf %645, %783 : vector<16x32xf32>
    %785 = arith.truncf %784 : vector<16x32xf32> to vector<16x32xbf16>
    %cst_209 = arith.constant dense<0.000000e+00> : vector<1x16xf32>
    %786 = tpu.matmul %782, %646, %cst_209 {dimension_numbers = #tpu.dot_dimension_numbers<[1], [1], [0], [0], [0, 0, 1, 0], [], []>} : vector<1x32xbf16>, vector<16x32xbf16>, vector<1x16xf32> -> vector<1x16xf32>
    %cst_210 = arith.constant 5.000000e-01 : f32
    %787 = vector.broadcast %cst_210 : f32 to vector<1x16xf32>
    %788 = arith.mulf %786, %787 : vector<1x16xf32>
    %789 = arith.addf %788, %3 : vector<1x16xf32>
    %cst_211 = arith.constant dense<0xFF800000> : vector<1xf32>
    %790 = vector.multi_reduction <maximumf>, %789, %cst_211 [1] : vector<1x16xf32> to vector<1xf32>
    %791 = vector.shape_cast %790 : vector<1xf32> to vector<1x1xf32>
    %792 = vector.broadcast %791 : vector<1x1xf32> to vector<1x16xf32>
    %793 = arith.subf %789, %792 : vector<1x16xf32>
    %794 = math.exp %793 : vector<1x16xf32>
    %cst_212 = arith.constant dense<0.000000e+00> : vector<1xf32>
    %795 = vector.multi_reduction <add>, %794, %cst_212 [1] : vector<1x16xf32> to vector<1xf32>
    %796 = vector.shape_cast %795 : vector<1xf32> to vector<1x1xf32>
    %797 = vector.broadcast %796 : vector<1x1xf32> to vector<1x16xf32>
    %798 = arith.divf %794, %797 : vector<1x16xf32>
    %799 = arith.truncf %798 : vector<1x16xf32> to vector<1x16xbf16>
    %cst_213 = arith.constant dense<0.000000e+00> : vector<1x32xf32>
    %800 = tpu.matmul %799, %785, %cst_213 {dimension_numbers = #tpu.dot_dimension_numbers<[1], [0], [0], [1], [0, 0, 1, 1], [], []>} : vector<1x16xbf16>, vector<16x32xbf16>, vector<1x32xf32> -> vector<1x32xf32>
    %801 = arith.addf %779, %800 : vector<1x32xf32>
    %802 = vector.extract_strided_slice %1 {offsets = [7, 0], sizes = [1, 32], strides = [1, 1]} : vector<8x32xf32> to vector<1x32xf32>
    %803 = arith.mulf %636, %802 : vector<1x32xf32>
    %804 = arith.truncf %803 : vector<1x32xf32> to vector<1x32xbf16>
    %805 = vector.broadcast %802 : vector<1x32xf32> to vector<16x32xf32>
    %806 = arith.mulf %645, %805 : vector<16x32xf32>
    %807 = arith.truncf %806 : vector<16x32xf32> to vector<16x32xbf16>
    %cst_214 = arith.constant dense<0.000000e+00> : vector<1x16xf32>
    %808 = tpu.matmul %804, %646, %cst_214 {dimension_numbers = #tpu.dot_dimension_numbers<[1], [1], [0], [0], [0, 0, 1, 0], [], []>} : vector<1x32xbf16>, vector<16x32xbf16>, vector<1x16xf32> -> vector<1x16xf32>
    %cst_215 = arith.constant 5.000000e-01 : f32
    %809 = vector.broadcast %cst_215 : f32 to vector<1x16xf32>
    %810 = arith.mulf %808, %809 : vector<1x16xf32>
    %811 = arith.addf %810, %3 : vector<1x16xf32>
    %cst_216 = arith.constant dense<0xFF800000> : vector<1xf32>
    %812 = vector.multi_reduction <maximumf>, %811, %cst_216 [1] : vector<1x16xf32> to vector<1xf32>
    %813 = vector.shape_cast %812 : vector<1xf32> to vector<1x1xf32>
    %814 = vector.broadcast %813 : vector<1x1xf32> to vector<1x16xf32>
    %815 = arith.subf %811, %814 : vector<1x16xf32>
    %816 = math.exp %815 : vector<1x16xf32>
    %cst_217 = arith.constant dense<0.000000e+00> : vector<1xf32>
    %817 = vector.multi_reduction <add>, %816, %cst_217 [1] : vector<1x16xf32> to vector<1xf32>
    %818 = vector.shape_cast %817 : vector<1xf32> to vector<1x1xf32>
    %819 = vector.broadcast %818 : vector<1x1xf32> to vector<1x16xf32>
    %820 = arith.divf %816, %819 : vector<1x16xf32>
    %821 = arith.truncf %820 : vector<1x16xf32> to vector<1x16xbf16>
    %cst_218 = arith.constant dense<0.000000e+00> : vector<1x32xf32>
    %822 = tpu.matmul %821, %807, %cst_218 {dimension_numbers = #tpu.dot_dimension_numbers<[1], [0], [0], [1], [0, 0, 1, 1], [], []>} : vector<1x16xbf16>, vector<16x32xbf16>, vector<1x32xf32> -> vector<1x32xf32>
    %823 = arith.addf %801, %822 : vector<1x32xf32>
    %824 = arith.truncf %823 : vector<1x32xf32> to vector<1x32xbf16>
    %c3_219 = arith.constant 3 : index
    %c0_220 = arith.constant 0 : index
    %c0_221 = arith.constant 0 : index
    %825 = vector.load %arg5[%c3_219, %c0_220, %c0_221] : memref<4x32x32xbf16, #tpu.memory_space<vmem>>, vector<1x32x32xbf16>
    %826 = vector.shape_cast %825 : vector<1x32x32xbf16> to vector<32x32xbf16>
    %cst_222 = arith.constant dense<0.000000e+00> : vector<1x32xf32>
    %827 = tpu.matmul %824, %826, %cst_222 {dimension_numbers = #tpu.dot_dimension_numbers<[1], [0], [0], [1], [0, 0, 1, 1], [], []>} : vector<1x32xbf16>, vector<32x32xbf16>, vector<1x32xf32> -> vector<1x32xf32>
    %828 = arith.addf %609, %827 : vector<1x32xf32>
    %829 = vector.extract_strided_slice %0 {offsets = [27, 0], sizes = [1, 32], strides = [1, 1]} : vector<34x96xf32> to vector<1x32xf32>
    %830 = arith.addf %828, %829 : vector<1x32xf32>
    %831 = vector.extract_strided_slice %0 {offsets = [16, 0], sizes = [1, 32], strides = [1, 1]} : vector<34x96xf32> to vector<1x32xf32>
    %832 = vector.extract_strided_slice %0 {offsets = [17, 0], sizes = [1, 32], strides = [1, 1]} : vector<34x96xf32> to vector<1x32xf32>
    %cst_223 = arith.constant dense<0.000000e+00> : vector<1xf32>
    %833 = vector.multi_reduction <add>, %830, %cst_223 [1] : vector<1x32xf32> to vector<1xf32>
    %834 = vector.shape_cast %833 : vector<1xf32> to vector<1x1xf32>
    %cst_224 = arith.constant 3.200000e+01 : f32
    %835 = vector.broadcast %cst_224 : f32 to vector<1x1xf32>
    %836 = arith.divf %834, %835 : vector<1x1xf32>
    %837 = vector.broadcast %836 : vector<1x1xf32> to vector<1x32xf32>
    %838 = arith.subf %830, %837 : vector<1x32xf32>
    %839 = arith.mulf %838, %838 : vector<1x32xf32>
    %cst_225 = arith.constant dense<0.000000e+00> : vector<1xf32>
    %840 = vector.multi_reduction <add>, %839, %cst_225 [1] : vector<1x32xf32> to vector<1xf32>
    %841 = vector.shape_cast %840 : vector<1xf32> to vector<1x1xf32>
    %cst_226 = arith.constant 3.200000e+01 : f32
    %842 = vector.broadcast %cst_226 : f32 to vector<1x1xf32>
    %843 = arith.divf %841, %842 : vector<1x1xf32>
    %cst_227 = arith.constant 9.99999974E-6 : f32
    %844 = vector.broadcast %cst_227 : f32 to vector<1x1xf32>
    %845 = arith.addf %843, %844 : vector<1x1xf32>
    %846 = math.rsqrt %845 : vector<1x1xf32>
    %847 = vector.broadcast %846 : vector<1x1xf32> to vector<1x32xf32>
    %848 = arith.mulf %838, %847 : vector<1x32xf32>
    %849 = arith.mulf %848, %831 : vector<1x32xf32>
    %850 = arith.addf %849, %832 : vector<1x32xf32>
    %851 = arith.truncf %850 : vector<1x32xf32> to vector<1x32xbf16>
    %c2_228 = arith.constant 2 : index
    %c0_229 = arith.constant 0 : index
    %c0_230 = arith.constant 0 : index
    %852 = vector.load %arg6[%c2_228, %c0_229, %c0_230] : memref<3x32x64xbf16, #tpu.memory_space<vmem>>, vector<1x32x64xbf16>
    %853 = vector.shape_cast %852 : vector<1x32x64xbf16> to vector<32x64xbf16>
    %cst_231 = arith.constant dense<0.000000e+00> : vector<1x64xf32>
    %854 = tpu.matmul %851, %853, %cst_231 {dimension_numbers = #tpu.dot_dimension_numbers<[1], [0], [0], [1], [0, 0, 1, 1], [], []>} : vector<1x32xbf16>, vector<32x64xbf16>, vector<1x64xf32> -> vector<1x64xf32>
    %855 = vector.extract_strided_slice %0 {offsets = [30, 0], sizes = [1, 64], strides = [1, 1]} : vector<34x96xf32> to vector<1x64xf32>
    %856 = arith.addf %854, %855 : vector<1x64xf32>
    %857 = arith.negf %856 : vector<1x64xf32>
    %858 = math.exp %857 : vector<1x64xf32>
    %cst_232 = arith.constant 1.000000e+00 : f32
    %859 = vector.broadcast %cst_232 : f32 to vector<1x64xf32>
    %860 = arith.addf %859, %858 : vector<1x64xf32>
    %861 = arith.divf %859, %860 : vector<1x64xf32>
    %862 = arith.mulf %856, %861 : vector<1x64xf32>
    %863 = arith.truncf %862 : vector<1x64xf32> to vector<1x64xbf16>
    %c2_233 = arith.constant 2 : index
    %c0_234 = arith.constant 0 : index
    %c0_235 = arith.constant 0 : index
    %864 = vector.load %arg7[%c2_233, %c0_234, %c0_235] : memref<3x64x32xbf16, #tpu.memory_space<vmem>>, vector<1x64x32xbf16>
    %865 = vector.shape_cast %864 : vector<1x64x32xbf16> to vector<64x32xbf16>
    %cst_236 = arith.constant dense<0.000000e+00> : vector<1x32xf32>
    %866 = tpu.matmul %863, %865, %cst_236 {dimension_numbers = #tpu.dot_dimension_numbers<[1], [0], [0], [1], [0, 0, 1, 1], [], []>} : vector<1x64xbf16>, vector<64x32xbf16>, vector<1x32xf32> -> vector<1x32xf32>
    %867 = arith.addf %830, %866 : vector<1x32xf32>
    %868 = vector.extract_strided_slice %0 {offsets = [33, 0], sizes = [1, 32], strides = [1, 1]} : vector<34x96xf32> to vector<1x32xf32>
    %869 = arith.addf %867, %868 : vector<1x32xf32>
    %870 = vector.extract_strided_slice %0 {offsets = [18, 0], sizes = [1, 32], strides = [1, 1]} : vector<34x96xf32> to vector<1x32xf32>
    %871 = vector.extract_strided_slice %0 {offsets = [19, 0], sizes = [1, 32], strides = [1, 1]} : vector<34x96xf32> to vector<1x32xf32>
    %cst_237 = arith.constant dense<0.000000e+00> : vector<1xf32>
    %872 = vector.multi_reduction <add>, %869, %cst_237 [1] : vector<1x32xf32> to vector<1xf32>
    %873 = vector.shape_cast %872 : vector<1xf32> to vector<1x1xf32>
    %cst_238 = arith.constant 3.200000e+01 : f32
    %874 = vector.broadcast %cst_238 : f32 to vector<1x1xf32>
    %875 = arith.divf %873, %874 : vector<1x1xf32>
    %876 = vector.broadcast %875 : vector<1x1xf32> to vector<1x32xf32>
    %877 = arith.subf %869, %876 : vector<1x32xf32>
    %878 = arith.mulf %877, %877 : vector<1x32xf32>
    %cst_239 = arith.constant dense<0.000000e+00> : vector<1xf32>
    %879 = vector.multi_reduction <add>, %878, %cst_239 [1] : vector<1x32xf32> to vector<1xf32>
    %880 = vector.shape_cast %879 : vector<1xf32> to vector<1x1xf32>
    %cst_240 = arith.constant 3.200000e+01 : f32
    %881 = vector.broadcast %cst_240 : f32 to vector<1x1xf32>
    %882 = arith.divf %880, %881 : vector<1x1xf32>
    %cst_241 = arith.constant 9.99999974E-6 : f32
    %883 = vector.broadcast %cst_241 : f32 to vector<1x1xf32>
    %884 = arith.addf %882, %883 : vector<1x1xf32>
    %885 = math.rsqrt %884 : vector<1x1xf32>
    %886 = vector.broadcast %885 : vector<1x1xf32> to vector<1x32xf32>
    %887 = arith.mulf %877, %886 : vector<1x32xf32>
    %888 = arith.mulf %887, %870 : vector<1x32xf32>
    %889 = arith.addf %888, %871 : vector<1x32xf32>
    %c0_242 = arith.constant 0 : index
    %c0_243 = arith.constant 0 : index
    %c0_244 = arith.constant 0 : index
    %890 = vector.load %arg12[%c0_242, %c0_243, %c0_244] : memref<1x1x32xf32, #tpu.memory_space<vmem>>, vector<1x1x32xf32>
    %891 = vector.shape_cast %890 : vector<1x1x32xf32> to vector<1x32xf32>
    %892 = vector.shape_cast %889 : vector<1x32xf32> to vector<1x1x32xf32>
    tpu.vector_store %arg12[%c0_242, %c0_243, %c0_244], %892 {strides = array<i32>} : memref<1x1x32xf32, #tpu.memory_space<vmem>>, vector<1x1x32xf32>,
    return
  }
  func.func @transform_0(%arg0: i32) -> (i32, i32, i32) {
    %c0_i32 = arith.constant 0 : i32
    %c0_i32_0 = arith.constant 0 : i32
    %c0_i32_1 = arith.constant 0 : i32
    return %arg0, %c0_i32, %c0_i32_0 : i32, i32, i32
  }
  func.func @transform_1(%arg0: i32) -> (i32, i32) {
    %c0_i32 = arith.constant 0 : i32
    %c0_i32_0 = arith.constant 0 : i32
    %c0_i32_1 = arith.constant 0 : i32
    return %c0_i32, %c0_i32_0 : i32, i32
  }
  func.func @transform_2(%arg0: i32) -> (i32, i32) {
    %c0_i32 = arith.constant 0 : i32
    %c0_i32_0 = arith.constant 0 : i32
    %c0_i32_1 = arith.constant 0 : i32
    return %c0_i32, %c0_i32_0 : i32, i32
  }
  func.func @transform_3(%arg0: i32) -> (i32, i32, i32) {
    %c0_i32 = arith.constant 0 : i32
    %c0_i32_0 = arith.constant 0 : i32
    %c0_i32_1 = arith.constant 0 : i32
    %c0_i32_2 = arith.constant 0 : i32
    return %c0_i32, %c0_i32_0, %c0_i32_1 : i32, i32, i32
  }
  func.func @transform_4(%arg0: i32) -> (i32, i32, i32) {
    %c0_i32 = arith.constant 0 : i32
    %c0_i32_0 = arith.constant 0 : i32
    %c0_i32_1 = arith.constant 0 : i32
    %c0_i32_2 = arith.constant 0 : i32
    return %c0_i32, %c0_i32_0, %c0_i32_1 : i32, i32, i32
  }
  func.func @transform_5(%arg0: i32) -> (i32, i32, i32) {
    %c0_i32 = arith.constant 0 : i32
    %c0_i32_0 = arith.constant 0 : i32
    %c0_i32_1 = arith.constant 0 : i32
    %c0_i32_2 = arith.constant 0 : i32
    return %c0_i32, %c0_i32_0, %c0_i32_1 : i32, i32, i32
  }
  func.func @transform_6(%arg0: i32) -> (i32, i32, i32) {
    %c0_i32 = arith.constant 0 : i32
    %c0_i32_0 = arith.constant 0 : i32
    %c0_i32_1 = arith.constant 0 : i32
    %c0_i32_2 = arith.constant 0 : i32
    return %c0_i32, %c0_i32_0, %c0_i32_1 : i32, i32, i32
  }
  func.func @transform_7(%arg0: i32) -> (i32, i32) {
    %c0_i32 = arith.constant 0 : i32
    %c0_i32_0 = arith.constant 0 : i32
    %c0_i32_1 = arith.constant 0 : i32
    return %c0_i32, %c0_i32_0 : i32, i32
  }
  func.func @transform_8(%arg0: i32) -> (i32, i32) {
    %c0_i32 = arith.constant 0 : i32
    %c0_i32_0 = arith.constant 0 : i32
    %c0_i32_1 = arith.constant 0 : i32
    return %c0_i32, %c0_i32_0 : i32, i32
  }
  func.func @transform_9(%arg0: i32) -> (i32, i32) {
    %c0_i32 = arith.constant 0 : i32
    %c0_i32_0 = arith.constant 0 : i32
    %c0_i32_1 = arith.constant 0 : i32
    return %c0_i32, %c0_i32_0 : i32, i32
  }
  func.func @transform_10(%arg0: i32) -> (i32, i32) {
    %c0_i32 = arith.constant 0 : i32
    %c0_i32_0 = arith.constant 0 : i32
    %c0_i32_1 = arith.constant 0 : i32
    return %c0_i32, %c0_i32_0 : i32, i32
  }
  func.func @transform_11(%arg0: i32) -> (i32, i32, i32) {
    %c0_i32 = arith.constant 0 : i32
    %c0_i32_0 = arith.constant 0 : i32
    %c0_i32_1 = arith.constant 0 : i32
    return %arg0, %c0_i32, %c0_i32_0 : i32, i32, i32
  }
}

</mosaic_0001>

<llo_original>
// kernel: forward.1
$region0: #{forward.1}
  #allocation0 [shape = 'u32[]', space=smem, size = 0x4, offset = 0x4, fixed_abs, tag = 'smem constant byte address 0x4 - core index']
  #allocation1 [shape = 'u32[144,128]{1,0:T(1,128)}', space=vmem, size = 0x12000, scoped, tag = 'internal scratch']
  %s0 = inlined_call_operand.vmem [shape: f32[2,16,64], index: 0, kind: input, shape index: {}]
  %s1 = inlined_call_operand.vmem [shape: f32[128,32], index: 1, kind: input, shape index: {}]
  %s2 = inlined_call_operand.vmem [shape: bf16[64,32], index: 2, kind: input, shape index: {}]
  %s3 = inlined_call_operand.vmem [shape: bf16[4,32,96], index: 3, kind: input, shape index: {}]
  %s4 = inlined_call_operand.vmem [shape: bf16[4,32,32], index: 4, kind: input, shape index: {}]
  %s5 = inlined_call_operand.vmem [shape: bf16[3,32,64], index: 5, kind: input, shape index: {}]
  %s6 = inlined_call_operand.vmem [shape: bf16[3,64,32], index: 6, kind: input, shape index: {}]
  %s7 = inlined_call_operand.vmem [shape: f32[34,96], index: 7, kind: input, shape index: {}]
  %s8 = inlined_call_operand.vmem [shape: f32[8,32], index: 8, kind: input, shape index: {}]
  %s9 = inlined_call_operand.vmem [shape: f32[16,16], index: 9, kind: input, shape index: {}]
  %s10 = inlined_call_operand.vmem [shape: f32[1,16], index: 10, kind: input, shape index: {}]
  %s11 = inlined_call_operand.hbm [shape: f32[2,1,32], index: 11, kind: output, shape index: {}]
  %s12 = sld [smem:[#allocation0]]
  $region77: #{forward.1} parent=0
    _
  %s14 = ssub.s32 1, %s12
  %s15 = scalar_select 0, %s14, %s12
  $region1: #{forward.1} parent=0
    #allocation2 [shape = 'u8[1024]{0}', space=vmem, size = 0x400, scoped, tag = 'output window, operand 0']
    #allocation3 [shape = 's32[2]{0}', space=sflag, size = 0x8, scoped, tag = 'scoped memory for forward.1']
    %16 = vsyncpa [#allocation3], 0
    %s17 = scalar_lea.sflag [#allocation3], 1
    %18 = vsyncpa %s17, 0
    loop: start=0, step=1, limit=4
    $region2: #{forward.1} parent=1 // loop_pre_header
      _
    $region3: #{forward.1} parent=1 // loop_header
      %s20 = sphi 0, %s24
      %p21 = scmp.ge.s32.totalorder %s20, 4
      %s30 = sphi 0, %s32
      %s33 = sphi 0, %s30
      %s34 = sphi 0, %s33
      %s50 = sphi 0, %s34
      %s54 = sphi 0, %s54
      %s56 = sphi 0, %s54
      %s57 = sphi 0, %s56
      %s71 = sphi 0, %s57
      %s75 = sphi 0, %s75
      %s77 = sphi 0, %s75
      %s78 = sphi 0, %s77
      %s92 = sphi 0, %s78
      %s96 = sphi 0, %s96
      %s98 = sphi 0, %s96
      %s99 = sphi 0, %s98
      %s113 = sphi 0, %s99
      %s117 = sphi 0, %s117
      %s119 = sphi 0, %s117
      %s120 = sphi 0, %s119
      %s134 = sphi 0, %s120
      %s138 = sphi 0, %s138
      %s140 = sphi 0, %s138
      %s141 = sphi 0, %s140
      %s155 = sphi 0, %s141
      %s159 = sphi 0, %s159
      %s161 = sphi 0, %s159
      %s162 = sphi 0, %s161
      %s176 = sphi 0, %s162
      %s180 = sphi 0, %s180
      %s182 = sphi 0, %s180
      %s183 = sphi 0, %s182
      %s197 = sphi 0, %s183
      %s201 = sphi 0, %s201
      %s203 = sphi 0, %s201
      %s204 = sphi 0, %s203
      %s218 = sphi 0, %s204
      %s222 = sphi 0, %s222
      %s224 = sphi 0, %s222
      %s225 = sphi 0, %s224
      %s239 = sphi 0, %s225
      %s243 = sphi 0, %s243
      %s245 = sphi 0, %s243
      %s246 = sphi 0, %s245
      %s260 = sphi 0, %s246
      %s266 = sphi 0, %s268
      %s269 = sphi 0, %s266
      %s270 = sphi 0, %s269
      %s286 = sphi 0, %s270
    $region4: #{forward.1} parent=1 // loop_header_branch
      %23 = sbr.rel (%p21) target = $region8
    $region5: #{forward.1} parent=1 // loop_body
      %s25 = ssub.s32 %s20, 1
      %s26 = ssub.s32 %s20, 2
      %s27 = sadd.s32 %s20, 1
      %s28 = ssub.s32 %s20, %s27
      %p29 = scmp.eq.s32.totalorder %s28, 0
      %s31 = sadd.s32 %s30, 1
      %s32 = scalar_select %p29, %s30, %s31
      %p35 = pneg %p29
      %p36 = scmp.eq.s32.totalorder %s20, 1
      %p37 = por %p35, %p36
      %p38 = scmp.ne.s32.totalorder %s30, %s33
      %p39 = scmp.eq.s32.totalorder %s20, 0
      %p40 = por %p38, %p39
      %p41 = scmp.ne.s32.totalorder %s30, %s33
      %p42 = scmp.eq.s32.totalorder %s25, 1
      %p43 = por %p41, %p42
      %p44 = scmp.ne.s32.totalorder %s33, %s34
      %p45 = scmp.eq.s32.totalorder %s25, 0
      %p46 = por %p44, %p45
      %p47 = scmp.ne.s32.totalorder %s33, %s34
      %p48 = scmp.eq.s32.totalorder %s26, 1
      %p49 = por %p47, %p48
      %p51 = scmp.ne.s32.totalorder %s34, %s50
      %p52 = scmp.eq.s32.totalorder %s26, 0
      %p53 = por %p51, %p52
      %s55 = sadd.s32 %s54, 1
      %p58 = scmp.eq.s32.totalorder %s20, 1
      %p59 = scmp.ne.s32.totalorder %s54, %s56
      %p60 = scmp.eq.s32.totalorder %s20, 0
      %p61 = por %p59, %p60
      %p62 = scmp.ne.s32.totalorder %s54, %s56
      %p63 = scmp.eq.s32.totalorder %s25, 1
      %p64 = por %p62, %p63
      %p65 = scmp.ne.s32.totalorder %s56, %s57
      %p66 = scmp.eq.s32.totalorder %s25, 0
      %p67 = por %p65, %p66
      %p68 = scmp.ne.s32.totalorder %s56, %s57
      %p69 = scmp.eq.s32.totalorder %s26, 1
      %p70 = por %p68, %p69
      %p72 = scmp.ne.s32.totalorder %s57, %s71
      %p73 = scmp.eq.s32.totalorder %s26, 0
      %p74 = por %p72, %p73
      %s76 = sadd.s32 %s75, 1
      %p79 = scmp.eq.s32.totalorder %s20, 1
      %p80 = scmp.ne.s32.totalorder %s75, %s77
      %p81 = scmp.eq.s32.totalorder %s20, 0
      %p82 = por %p80, %p81
      %p83 = scmp.ne.s32.totalorder %s75, %s77
      %p84 = scmp.eq.s32.totalorder %s25, 1
      %p85 = por %p83, %p84
      %p86 = scmp.ne.s32.totalorder %s77, %s78
      %p87 = scmp.eq.s32.totalorder %s25, 0
      %p88 = por %p86, %p87
      %p89 = scmp.ne.s32.totalorder %s77, %s78
      %p90 = scmp.eq.s32.totalorder %s26, 1
      %p91 = por %p89, %p90
      %p93 = scmp.ne.s32.totalorder %s78, %s92
      %p94 = scmp.eq.s32.totalorder %s26, 0
      %p95 = por %p93, %p94
      %s97 = sadd.s32 %s96, 1
      %p100 = scmp.eq.s32.totalorder %s20, 1
      %p101 = scmp.ne.s32.totalorder %s96, %s98
      %p102 = scmp.eq.s32.totalorder %s20, 0
      %p103 = por %p101, %p102
      %p104 = scmp.ne.s32.totalorder %s96, %s98
      %p105 = scmp.eq.s32.totalorder %s25, 1
      %p106 = por %p104, %p105
      %p107 = scmp.ne.s32.totalorder %s98, %s99
      %p108 = scmp.eq.s32.totalorder %s25, 0
      %p109 = por %p107, %p108
      %p110 = scmp.ne.s32.totalorder %s98, %s99
      %p111 = scmp.eq.s32.totalorder %s26, 1
      %p112 = por %p110, %p111
      %p114 = scmp.ne.s32.totalorder %s99, %s113
      %p115 = scmp.eq.s32.totalorder %s26, 0
      %p116 = por %p114, %p115
      %s118 = sadd.s32 %s117, 1
      %p121 = scmp.eq.s32.totalorder %s20, 1
      %p122 = scmp.ne.s32.totalorder %s117, %s119
      %p123 = scmp.eq.s32.totalorder %s20, 0
      %p124 = por %p122, %p123
      %p125 = scmp.ne.s32.totalorder %s117, %s119
      %p126 = scmp.eq.s32.totalorder %s25, 1
      %p127 = por %p125, %p126
      %p128 = scmp.ne.s32.totalorder %s119, %s120
      %p129 = scmp.eq.s32.totalorder %s25, 0
      %p130 = por %p128, %p129
      %p131 = scmp.ne.s32.totalorder %s119, %s120
      %p132 = scmp.eq.s32.totalorder %s26, 1
      %p133 = por %p131, %p132
      %p135 = scmp.ne.s32.totalorder %s120, %s134
      %p136 = scmp.eq.s32.totalorder %s26, 0
      %p137 = por %p135, %p136
      %s139 = sadd.s32 %s138, 1
      %p142 = scmp.eq.s32.totalorder %s20, 1
      %p143 = scmp.ne.s32.totalorder %s138, %s140
      %p144 = scmp.eq.s32.totalorder %s20, 0
      %p145 = por %p143, %p144
      %p146 = scmp.ne.s32.totalorder %s138, %s140
      %p147 = scmp.eq.s32.totalorder %s25, 1
      %p148 = por %p146, %p147
      %p149 = scmp.ne.s32.totalorder %s140, %s141
      %p150 = scmp.eq.s32.totalorder %s25, 0
      %p151 = por %p149, %p150
      %p152 = scmp.ne.s32.totalorder %s140, %s141
      %p153 = scmp.eq.s32.totalorder %s26, 1
      %p154 = por %p152, %p153
      %p156 = scmp.ne.s32.totalorder %s141, %s155
      %p157 = scmp.eq.s32.totalorder %s26, 0
      %p158 = por %p156, %p157
      %s160 = sadd.s32 %s159, 1
      %p163 = scmp.eq.s32.totalorder %s20, 1
      %p164 = scmp.ne.s32.totalorder %s159, %s161
      %p165 = scmp.eq.s32.totalorder %s20, 0
      %p166 = por %p164, %p165
      %p167 = scmp.ne.s32.totalorder %s159, %s161
      %p168 = scmp.eq.s32.totalorder %s25, 1
      %p169 = por %p167, %p168
      %p170 = scmp.ne.s32.totalorder %s161, %s162
      %p171 = scmp.eq.s32.totalorder %s25, 0
      %p172 = por %p170, %p171
      %p173 = scmp.ne.s32.totalorder %s161, %s162
      %p174 = scmp.eq.s32.totalorder %s26, 1
      %p175 = por %p173, %p174
      %p177 = scmp.ne.s32.totalorder %s162, %s176
      %p178 = scmp.eq.s32.totalorder %s26, 0
      %p179 = por %p177, %p178
      %s181 = sadd.s32 %s180, 1
      %p184 = scmp.eq.s32.totalorder %s20, 1
      %p185 = scmp.ne.s32.totalorder %s180, %s182
      %p186 = scmp.eq.s32.totalorder %s20, 0
      %p187 = por %p185, %p186
      %p188 = scmp.ne.s32.totalorder %s180, %s182
      %p189 = scmp.eq.s32.totalorder %s25, 1
      %p190 = por %p188, %p189
      %p191 = scmp.ne.s32.totalorder %s182, %s183
      %p192 = scmp.eq.s32.totalorder %s25, 0
      %p193 = por %p191, %p192
      %p194 = scmp.ne.s32.totalorder %s182, %s183
      %p195 = scmp.eq.s32.totalorder %s26, 1
      %p196 = por %p194, %p195
      %p198 = scmp.ne.s32.totalorder %s183, %s197
      %p199 = scmp.eq.s32.totalorder %s26, 0
      %p200 = por %p198, %p199
      %s202 = sadd.s32 %s201, 1
      %p205 = scmp.eq.s32.totalorder %s20, 1
      %p206 = scmp.ne.s32.totalorder %s201, %s203
      %p207 = scmp.eq.s32.totalorder %s20, 0
      %p208 = por %p206, %p207
      %p209 = scmp.ne.s32.totalorder %s201, %s203
      %p210 = scmp.eq.s32.totalorder %s25, 1
      %p211 = por %p209, %p210
      %p212 = scmp.ne.s32.totalorder %s203, %s204
      %p213 = scmp.eq.s32.totalorder %s25, 0
      %p214 = por %p212, %p213
      %p215 = scmp.ne.s32.totalorder %s203, %s204
      %p216 = scmp.eq.s32.totalorder %s26, 1
      %p217 = por %p215, %p216
      %p219 = scmp.ne.s32.totalorder %s204, %s218
      %p220 = scmp.eq.s32.totalorder %s26, 0
      %p221 = por %p219, %p220
      %s223 = sadd.s32 %s222, 1
      %p226 = scmp.eq.s32.totalorder %s20, 1
      %p227 = scmp.ne.s32.totalorder %s222, %s224
      %p228 = scmp.eq.s32.totalorder %s20, 0
      %p229 = por %p227, %p228
      %p230 = scmp.ne.s32.totalorder %s222, %s224
      %p231 = scmp.eq.s32.totalorder %s25, 1
      %p232 = por %p230, %p231
      %p233 = scmp.ne.s32.totalorder %s224, %s225
      %p234 = scmp.eq.s32.totalorder %s25, 0
      %p235 = por %p233, %p234
      %p236 = scmp.ne.s32.totalorder %s224, %s225
      %p237 = scmp.eq.s32.totalorder %s26, 1
      %p238 = por %p236, %p237
      %p240 = scmp.ne.s32.totalorder %s225, %s239
      %p241 = scmp.eq.s32.totalorder %s26, 0
      %p242 = por %p240, %p241
      %s244 = sadd.s32 %s243, 1
      %p247 = scmp.eq.s32.totalorder %s20, 1
      %p248 = scmp.ne.s32.totalorder %s243, %s245
      %p249 = scmp.eq.s32.totalorder %s20, 0
      %p250 = por %p248, %p249
      %p251 = scmp.ne.s32.totalorder %s243, %s245
      %p252 = scmp.eq.s32.totalorder %s25, 1
      %p253 = por %p251, %p252
      %p254 = scmp.ne.s32.totalorder %s245, %s246
      %p255 = scmp.eq.s32.totalorder %s25, 0
      %p256 = por %p254, %p255
      %p257 = scmp.ne.s32.totalorder %s245, %s246
      %p258 = scmp.eq.s32.totalorder %s26, 1
      %p259 = por %p257, %p258
      %p261 = scmp.ne.s32.totalorder %s246, %s260
      %p262 = scmp.eq.s32.totalorder %s26, 0
      %p263 = por %p261, %p262
      %s264 = ssub.s32 %s20, %s27
      %p265 = scmp.eq.s32.totalorder %s264, 0
      %s267 = sadd.s32 %s266, 1
      %s268 = scalar_select %p265, %s266, %s267
      %p271 = pneg %p265
      %p272 = scmp.eq.s32.totalorder %s20, 1
      %p273 = por %p271, %p272
      %p274 = scmp.ne.s32.totalorder %s266, %s269
      %p275 = scmp.eq.s32.totalorder %s20, 0
      %p276 = por %p274, %p275
      %p277 = scmp.ne.s32.totalorder %s266, %s269
      %p278 = scmp.eq.s32.totalorder %s25, 1
      %p279 = por %p277, %p278
      %p280 = scmp.ne.s32.totalorder %s269, %s270
      %p281 = scmp.eq.s32.totalorder %s25, 0
      %p282 = por %p280, %p281
      %p283 = scmp.ne.s32.totalorder %s269, %s270
      %p284 = scmp.eq.s32.totalorder %s26, 1
      %p285 = por %p283, %p284
      %p287 = scmp.ne.s32.totalorder %s270, %s286
      %p288 = scmp.eq.s32.totalorder %s26, 0
      %p289 = por %p287, %p288
      %p290 = scmp.le.s32.totalorder 1, %s20
      %p291 = scmp.lt.s32.totalorder %s20, 3
      %p292 = pnand %p290, %p291
      %p293 = pneg %p292
      // Predicated region
      $region9: #{forward.1} parent=5 // pred_check
        _
      $region10: #{forward.1} parent=5 // pred_check_branch
        %295 = sbr.rel (%p292) target = $region12
      $region11: #{forward.1} parent=5 // pred_region
        %s296 = ssub.s32 %s20, 1
        // Predicated region
        $region13: #{forward.1} parent=11 // pred_check
          %p297 = pneg %p67
        $region14: #{forward.1} parent=11 // pred_check_branch
          %299 = sbr.rel (%p297) target = $region16
        $region15: #{forward.1} parent=11 // pred_region
          _
        $region16: #{forward.1} parent=11 // pred_fallthru
          _
        // Predicated region
        $region17: #{forward.1} parent=11 // pred_check
          %p300 = pneg %p88
        $region18: #{forward.1} parent=11 // pred_check_branch
          %302 = sbr.rel (%p300) target = $region20
        $region19: #{forward.1} parent=11 // pred_region
          _
        $region20: #{forward.1} parent=11 // pred_fallthru
          _
        // Predicated region
        $region21: #{forward.1} parent=11 // pred_check
          %p303 = pneg %p109
        $region22: #{forward.1} parent=11 // pred_check_branch
          %305 = sbr.rel (%p303) target = $region24
        $region23: #{forward.1} parent=11 // pred_region
          _
        $region24: #{forward.1} parent=11 // pred_fallthru
          _
        // Predicated region
        $region25: #{forward.1} parent=11 // pred_check
          %p306 = pneg %p130
        $region26: #{forward.1} parent=11 // pred_check_branch
          %308 = sbr.rel (%p306) target = $region28
        $region27: #{forward.1} parent=11 // pred_region
          _
        $region28: #{forward.1} parent=11 // pred_fallthru
          _
        // Predicated region
        $region29: #{forward.1} parent=11 // pred_check
          %p309 = pneg %p151
        $region30: #{forward.1} parent=11 // pred_check_branch
          %311 = sbr.rel (%p309) target = $region32
        $region31: #{forward.1} parent=11 // pred_region
          _
        $region32: #{forward.1} parent=11 // pred_fallthru
          _
        // Predicated region
        $region33: #{forward.1} parent=11 // pred_check
          %p312 = pneg %p172
        $region34: #{forward.1} parent=11 // pred_check_branch
          %314 = sbr.rel (%p312) target = $region36
        $region35: #{forward.1} parent=11 // pred_region
          _
        $region36: #{forward.1} parent=11 // pred_fallthru
          _
        // Predicated region
        $region37: #{forward.1} parent=11 // pred_check
          %p315 = pneg %p193
        $region38: #{forward.1} parent=11 // pred_check_branch
          %317 = sbr.rel (%p315) target = $region40
        $region39: #{forward.1} parent=11 // pred_region
          _
        $region40: #{forward.1} parent=11 // pred_fallthru
          _
        // Predicated region
        $region41: #{forward.1} parent=11 // pred_check
          %p318 = pneg %p214
        $region42: #{forward.1} parent=11 // pred_check_branch
          %320 = sbr.rel (%p318) target = $region44
        $region43: #{forward.1} parent=11 // pred_region
          _
        $region44: #{forward.1} parent=11 // pred_fallthru
          _
        // Predicated region
        $region45: #{forward.1} parent=11 // pred_check
          %p321 = pneg %p235
        $region46: #{forward.1} parent=11 // pred_check_branch
          %323 = sbr.rel (%p321) target = $region48
        $region47: #{forward.1} parent=11 // pred_region
          _
        $region48: #{forward.1} parent=11 // pred_fallthru
          _
        // Predicated region
        $region49: #{forward.1} parent=11 // pred_check
          %p324 = pneg %p256
        $region50: #{forward.1} parent=11 // pred_check_branch
          %326 = sbr.rel (%p324) target = $region52
        $region51: #{forward.1} parent=11 // pred_region
          _
        $region52: #{forward.1} parent=11 // pred_fallthru
          _
      $region12: #{forward.1} parent=5 // pred_fallthru
        _
      %p327 = scmp.lt.s32.totalorder %s20, 2
      // Predicated region
      $region53: #{forward.1} parent=5 // pred_check
        %p328 = pneg %p327
      $region54: #{forward.1} parent=5 // pred_check_branch
        %330 = sbr.rel (%p328) target = $region56
      $region55: #{forward.1} parent=5 // pred_region
        // Predicated region
        $region57: #{forward.1} parent=55 // pred_check
          %p331 = pneg %p40
        $region58: #{forward.1} parent=55 // pred_check_branch
          %333 = sbr.rel (%p331) target = $region60
        $region59: #{forward.1} parent=55 // pred_region
          %p334 = scmp.lt.s32.totalorder %s20, 1
          %s335 = scalar_select %p334, %s20, 1
          %s336 = smul.addr %s335, 2
          %s337 = smul.addr %s336, 8
          %s338 = scalar_lea.vmem %s0, %s337
        $region60: #{forward.1} parent=55 // pred_fallthru
          _
      $region56: #{forward.1} parent=5 // pred_fallthru
        _
      %p339 = scmp.le.s32.totalorder 1, %s20
      %p340 = scmp.lt.s32.totalorder %s20, 3
      %p341 = pnand %p339, %p340
      %p342 = pneg %p341
      // Predicated region
      $region61: #{forward.1} parent=5 // pred_check
        _
      $region62: #{forward.1} parent=5 // pred_check_branch
        %344 = sbr.rel (%p341) target = $region64
      $region63: #{forward.1} parent=5 // pred_region
        %s345 = ssub.s32 %s20, 1
        %p346 = scmp.lt.s32.totalorder %s25, 1
        %s347 = scalar_select %p346, %s25, 1
        %s348 = smul.addr %s347, 2
        %s349 = smul.addr %s348, 8
        %s350 = scalar_lea.vmem %s0, %s349
        %p351 = pneg %p46
        %p352 = pneg %p43
        %p353 = pneg %p67
        %p354 = pneg %p64
        %p355 = pneg %p88
        %p356 = pneg %p85
        %p357 = pneg %p109
        %p358 = pneg %p106
        %p359 = pneg %p130
        %p360 = pneg %p127
        %p361 = pneg %p151
        %p362 = pneg %p148
        %p363 = pneg %p172
        %p364 = pneg %p169
        %p365 = pneg %p193
        %p366 = pneg %p190
        %p367 = pneg %p214
        %p368 = pneg %p211
        %p369 = pneg %p235
        %p370 = pneg %p232
        %p371 = pneg %p256
        %p372 = pneg %p253
        %p373 = pneg %p282
        %p374 = pneg %p279
        %s375 = sand.u32 %s269, 1
        %s376 = scalar_lea.sflag [#allocation3], %s375
        %s377 = sand.u32 %s269, 1
        %s378 = scalar_lea.vmem [#allocation2], %s377
        %p379 = scmp.lt.s32.totalorder %s25, 1
        %s380 = scalar_select %p379, %s25, 1
        %s381 = smul.addr %s380, 2
        %s382 = smul.addr %s381, 8
        %s383 = scalar_lea.vmem %s0, %s382
        %v385 = vld [vmem:[%s7] sm:$0xff]
        %v386 = vld [vmem:[%s7 + $0x8] sm:$0xff]
        %v387 = vld [vmem:[%s7 + $0x10] sm:$0xff]
        %v388 = vld [vmem:[%s7 + $0x18] sm:$0xff]
        %v389 = vld [vmem:[%s7 + $0x20] sm:$0x3]
        %v390 = vld [vmem:[%s8] sm:$0xff]
        %v391 = vld [vmem:[%s9] sm:$0xff]
        %v392 = vld [vmem:[%s9 + $0x8] sm:$0xff]
        %v393 = vld [vmem:[%s10] sm:$0x1]
        %v394 = vld [vmem:[%s383] sm:$0xff]
        %v395 = vld [vmem:[%s383 + $0x8] sm:$0xff]
        %v396 = vpack.c.bf16 %v395, %v394
        %v397 = vld [vmem:[%s2] sm:$0xf]
        %v398 = vld [vmem:[%s2 + $0x4] sm:$0xf]
        %v399 = vld [vmem:[%s2 + $0x8] sm:$0xf]
        %v400 = vld [vmem:[%s2 + $0xc] sm:$0xf]
        %v401 = vld [vmem:[%s2 + $0x10] sm:$0xf]
        %v402 = vld [vmem:[%s2 + $0x14] sm:$0xf]
        %v403 = vld [vmem:[%s2 + $0x18] sm:$0xf]
        %v404 = vld [vmem:[%s2 + $0x1c] sm:$0xf]
        %v405 = vlaneseq
        %v406 = vshrl.u32 %v405, 7
        %v407 = vsub.s32 0, %v406
        %v408 = vrot.slane %v385, %v407
        %v417 = vunpack.c.l.b16 %v397
        %v418 = vunpack.c.l.b16 %v398
        %v419 = vunpack.c.l.b16 %v399
        %v420 = vunpack.c.l.b16 %v400
        %v421 = vunpack.c.l.b16 %v401
        %v422 = vunpack.c.l.b16 %v402
        %v423 = vunpack.c.l.b16 %v403
        %v424 = vunpack.c.l.b16 %v404
        %v425 = vpack.c.b16 %v418, %v417
        %v426 = vpack.c.b16 %v420, %v419
        %v427 = vpack.c.b16 %v422, %v421
        %v428 = vpack.c.b16 %v424, %v423
        %vm433 = vcmask 523264
        %v435 = vsel %vm433, %v396, 0
        %437 = vmatprep.subr.bf16.mxu0 0
        %438 = vmatpush1.bf16.msra.mxu0 %v425
        %439 = vmatprep.subr.bf16.mxu0 0
        %440 = vmatpush1.bf16.msra.mxu0 %v426
        %441 = vmatprep.subr.bf16.mxu0 0
        %442 = vmatpush1.bf16.msra.mxu0 %v427
        %443 = vmatprep.subr.bf16.mxu0 0
        %444 = vmatpush1.bf16.msra.mxu0 %v428
        %445 = vmatprep.subr.bf16.mxu0 0
        %446 = vmatpush1.bf16.msra.mxu0 0
        %447 = vmatprep.subr.bf16.mxu0 0
        %448 = vmatpush1.bf16.msra.mxu0 0
        %449 = vmatprep.subr.bf16.mxu0 0
        %450 = vmatpush1.bf16.msra.mxu0 0
        %451 = vmatprep.subr.bf16.mxu0 0
        %452 = vmatpush1.bf16.msra.mxu0 0
        %453 = vmatprep.subr.bf16.mxu0 0
        %454 = vmatpush1.bf16.msra.mxu0 0
        %455 = vmatprep.subr.bf16.mxu0 0
        %456 = vmatpush1.bf16.msra.mxu0 0
        %457 = vmatprep.subr.bf16.mxu0 0
        %458 = vmatpush1.bf16.msra.mxu0 0
        %459 = vmatprep.subr.bf16.mxu0 0
        %460 = vmatpush1.bf16.msra.mxu0 0
        %461 = vmatprep.subr.bf16.mxu0 0
        %462 = vmatpush1.bf16.msra.mxu0 0
        %463 = vmatprep.subr.bf16.mxu0 0
        %464 = vmatpush1.bf16.msra.mxu0 0
        %465 = vmatprep.subr.bf16.mxu0 0
        %466 = vmatpush1.bf16.msra.mxu0 0
        %467 = vmatprep.subr.bf16.mxu0 0
        %468 = vmatpush1.bf16.msra.mxu0 0
        %469 = vmatprep.mubr.bf16.mxu0 0
        %470 = vmatmul.mubr.bf16.gmra.mrb[0].mxu0 %v435
        %v471 = vpop.f32.mrb[0].mxu0
        %v472 = vadd.f32 %v408, %v471
        %v473 = vpop.f32.mrb[0].mxu0
        %v474 = vpop.f32.mrb[0].mxu0
        %v475 = vadd.f32 %v408, %v474
        %v476 = vpop.f32.mrb[0].mxu0
        %477 = vdwg.mxu0
        %v478 = vld [vmem:[%s1] sm:$0xff]
        %v479 = vld [vmem:[%s1 + $0x8] sm:$0xff]
        %v480 = vadd.f32 %v472, %v478
        %v481 = vadd.f32 %v475, %v479
        %vm482 = vcmask 261120
        %v483 = vsel %vm482, %v480, 0.0
        %484 = vadd.xlane.f32.xlu0 %v483
        %v485 = vpop.xlane.xlu0 %484
        %v486 = vsel %vm482, %v481, 0.0
        %487 = vadd.xlane.f32.xlu0 %v486
        %v488 = vpop.xlane.xlu0 %487
        %v489 = vrcp.pop 32.0
        %v490 = vmul.f32 %v485, %v489
        %v491 = vmul.f32 %v488, %v489
        %v492 = vsub.f32 %v480, %v490
        %v493 = vsub.f32 %v481, %v491
        %v494 = vmul.f32 %v492, %v492
        %v495 = vmul.f32 %v493, %v493
        %v496 = vsel %vm482, %v494, 0.0
        %497 = vadd.xlane.f32.xlu0 %v496
        %v498 = vpop.xlane.xlu0 %497
        %v499 = vsel %vm482, %v495, 0.0
        %500 = vadd.xlane.f32.xlu0 %v499
        %v501 = vpop.xlane.xlu0 %500
        %v502 = vmul.f32 %v498, %v489
        %v503 = vmul.f32 %v501, %v489
        %v504 = vadd.f32 %v502, 1e-05
        %v505 = vadd.f32 %v503, 1e-05
        %v506 = vrsqrt.pop %v504
        %v507 = vrsqrt.pop %v505
        %v508 = vmul.f32 %v492, %v506
        %v509 = vmul.f32 %v493, %v507
        %v510 = vlaneseq
        %v511 = vshrl.u32 %v510, 7
        %v512 = vsub.s32 2, %v511
        %v513 = vrot.slane %v385, %v512
        %v514 = vmul.f32 %v508, %v513
        %v515 = vmul.f32 %v509, %v513
        %v516 = vlaneseq
        %v517 = vshrl.u32 %v516, 7
        %v518 = vsub.s32 3, %v517
        %v519 = vrot.slane %v385, %v518
        %v520 = vadd.f32 %v514, %v519
        %v521 = vadd.f32 %v515, %v519
        %v522 = vpack.c.bf16 %v521, %v520
        %v523 = vld [vmem:[%s3] sm:$0xf]
        %v524 = vld [vmem:[%s3 + $0x4] sm:$0xf]
        %v525 = vld [vmem:[%s3 + $0x8] sm:$0xf]
        %v526 = vld [vmem:[%s3 + $0xc] sm:$0xf]
        %v527 = vlaneseq
        %v528 = vshrl.u32 %v527, 7
        %v529 = vsub.s32 4, %v528
        %v530 = vrot.slane %v387, %v529
        %v535 = vunpack.c.l.b16 %v523
        %v536 = vunpack.c.l.b16 %v524
        %v537 = vunpack.c.l.b16 %v525
        %v538 = vunpack.c.l.b16 %v526
        %v539 = vpack.c.b16 %v536, %v535
        %v540 = vpack.c.b16 %v538, %v537
        %v544 = vsel %vm482, %v522, 0
        %546 = vmatprep.subr.bf16.mxu0 0
        %547 = vmatpush1.bf16.msra.mxu0 %v539
        %548 = vmatprep.subr.bf16.mxu0 0
        %549 = vmatpush1.bf16.msra.mxu0 %v540
        %550 = vmatprep.subr.bf16.mxu0 0
        %551 = vmatpush1.bf16.msra.mxu0 0
        %552 = vmatprep.subr.bf16.mxu0 0
        %553 = vmatpush1.bf16.msra.mxu0 0
        %554 = vmatprep.subr.bf16.mxu0 0
        %555 = vmatpush1.bf16.msra.mxu0 0
        %556 = vmatprep.subr.bf16.mxu0 0
        %557 = vmatpush1.bf16.msra.mxu0 0
        %558 = vmatprep.subr.bf16.mxu0 0
        %559 = vmatpush1.bf16.msra.mxu0 0
        %560 = vmatprep.subr.bf16.mxu0 0
        %561 = vmatpush1.bf16.msra.mxu0 0
        %562 = vmatprep.subr.bf16.mxu0 0
        %563 = vmatpush1.bf16.msra.mxu0 0
        %564 = vmatprep.subr.bf16.mxu0 0
        %565 = vmatpush1.bf16.msra.mxu0 0
        %566 = vmatprep.subr.bf16.mxu0 0
        %567 = vmatpush1.bf16.msra.mxu0 0
        %568 = vmatprep.subr.bf16.mxu0 0
        %569 = vmatpush1.bf16.msra.mxu0 0
        %570 = vmatprep.subr.bf16.mxu0 0
        %571 = vmatpush1.bf16.msra.mxu0 0
        %572 = vmatprep.subr.bf16.mxu0 0
        %573 = vmatpush1.bf16.msra.mxu0 0
        %574 = vmatprep.subr.bf16.mxu0 0
        %575 = vmatpush1.bf16.msra.mxu0 0
        %576 = vmatprep.subr.bf16.mxu0 0
        %577 = vmatpush1.bf16.msra.mxu0 0
        %578 = vmatprep.mubr.bf16.mxu0 0
        %579 = vmatmul.mubr.bf16.gmra.mrb[0].mxu0 %v544
        %v580 = vpop.f32.mrb[0].mxu0
        %v581 = vadd.f32 %v530, %v580
        %v582 = vpop.f32.mrb[0].mxu0
        %v583 = vpop.f32.mrb[0].mxu0
        %v584 = vadd.f32 %v530, %v583
        %v585 = vpop.f32.mrb[0].mxu0
        %586 = vdwg.mxu0
        %v587 = vpack.c.bf16 %v584, %v581
        %v588 = vlaneseq
        %v589 = vshrl.u32 %v588, 7
        %v590 = vsub.s32 0, %v589
        %v591 = vrot.slane %v390, %v590
        %v592 = vmul.f32 %v581, %v591
        %v593 = vmul.f32 %v584, %v591
        %v594 = vpack.c.bf16 %v593, %v592
        %596 = vrot.lane.b32.xlu0 %v591, 64
        %v597 = vpop.permute.xlu0 %596
        %v599 = vmul.f32 %v581, %v597
        %v600 = vmul.f32 %v584, %v597
        %v601 = vpack.c.bf16 %v600, %v599
        %603 = vrot.lane.b32.xlu0 %v587, 96
        %v604 = vpop.permute.xlu0 %603
        %v606 = vsel %vm482, %v594, 0
        %v609 = vsel %vm482, %v604, 0
        %611 = vmatprep.subr.bf16.mxu0 0
        %612 = vmatpush1.bf16.xpose.msra.mxu0 %v609
        %613 = vmatprep.subr.bf16.mxu0 0
        %614 = vmatpush1.bf16.xpose.msra.mxu0 0
        %615 = vmatprep.subr.bf16.mxu0 0
        %616 = vmatpush1.bf16.xpose.msra.mxu0 0
        %617 = vmatprep.subr.bf16.mxu0 0
        %618 = vmatpush1.bf16.xpose.msra.mxu0 0
        %619 = vmatprep.subr.bf16.mxu0 0
        %620 = vmatpush1.bf16.xpose.msra.mxu0 0
        %621 = vmatprep.subr.bf16.mxu0 0
        %622 = vmatpush1.bf16.xpose.msra.mxu0 0
        %623 = vmatprep.subr.bf16.mxu0 0
        %624 = vmatpush1.bf16.xpose.msra.mxu0 0
        %625 = vmatprep.subr.bf16.mxu0 0
        %626 = vmatpush1.bf16.xpose.msra.mxu0 0
        %627 = vmatprep.subr.bf16.mxu0 0
        %628 = vmatpush1.bf16.xpose.msra.mxu0 0
        %629 = vmatprep.subr.bf16.mxu0 0
        %630 = vmatpush1.bf16.xpose.msra.mxu0 0
        %631 = vmatprep.subr.bf16.mxu0 0
        %632 = vmatpush1.bf16.xpose.msra.mxu0 0
        %633 = vmatprep.subr.bf16.mxu0 0
        %634 = vmatpush1.bf16.xpose.msra.mxu0 0
        %635 = vmatprep.subr.bf16.mxu0 0
        %636 = vmatpush1.bf16.xpose.msra.mxu0 0
        %637 = vmatprep.subr.bf16.mxu0 0
        %638 = vmatpush1.bf16.xpose.msra.mxu0 0
        %639 = vmatprep.subr.bf16.mxu0 0
        %640 = vmatpush1.bf16.xpose.msra.mxu0 0
        %641 = vmatprep.subr.bf16.mxu0 0
        %642 = vmatpush1.bf16.xpose.msra.mxu0 0
        %643 = vmatprep.mubr.bf16.mxu0 0
        %644 = vmatmul.mubr.bf16.gmra.mrb[0].mxu0 %v606
        %v645 = vpop.f32.mrb[0].mxu0
        %v646 = vadd.f32 0.0, %v645
        %v647 = vpop.f32.mrb[0].mxu0
        %v648 = vpop.f32.mrb[0].mxu0
        %v649 = vadd.f32 0.0, %v648
        %v650 = vpop.f32.mrb[0].mxu0
        %651 = vdwg.mxu0
        %v652 = vmul.f32 %v646, 0.5
        %v653 = vmul.f32 %v649, 0.5
        %v654 = vadd.f32 %v652, %v391
        %v655 = vadd.f32 %v653, %v392
        %vm656 = vcmask 130048
        %v657 = vsel %vm656, %v654, -inf
        %658 = vmax.xlane.f32.xlu0 %v657
        %v659 = vpop.xlane.xlu0 %658
        %v660 = vsel %vm656, %v655, -inf
        %661 = vmax.xlane.f32.xlu0 %v660
        %v662 = vpop.xlane.xlu0 %661
        %v663 = vsub.f32 %v654, %v659
        %v664 = vsub.f32 %v655, %v662
        %v665 = vmul.f32 %v663, 1.442695
        %v666 = vpow.pop %v665
        %v667 = vmul.f32 %v664, 1.442695
        %v668 = vpow.pop %v667
        %v669 = vsel %vm656, %v666, 0.0
        %670 = vadd.xlane.f32.xlu0 %v669
        %v671 = vpop.xlane.xlu0 %670
        %v672 = vsel %vm656, %v668, 0.0
        %673 = vadd.xlane.f32.xlu0 %v672
        %v674 = vpop.xlane.xlu0 %673
        %v675 = vrcp.pop %v671
        %v676 = vmul.f32 %v666, %v675
        %v677 = vrcp.pop %v674
        %v678 = vmul.f32 %v668, %v677
        %v679 = vpack.c.bf16 %v678, %v676
        %v680 = vlaneseq
        %v681 = vshrl.u32 %v680, 7
        %v682 = vsub.s32 1, %v681
        %v683 = vrot.slane %v390, %v682
        %v684 = vmul.f32 %v581, %v683
        %v685 = vmul.f32 %v584, %v683
        %v686 = vpack.c.bf16 %v685, %v684
        %688 = vrot.lane.b32.xlu0 %v683, 64
        %v689 = vpop.permute.xlu0 %688
        %v691 = vmul.f32 %v581, %v689
        %v692 = vmul.f32 %v584, %v689
        %v693 = vpack.c.bf16 %v692, %v691
        %v695 = vsel %vm482, %v686, 0
        %697 = vmatprep.subr.bf16.mxu0 0
        %698 = vmatpush1.bf16.xpose.msra.mxu0 %v609
        %699 = vmatprep.subr.bf16.mxu0 0
        %700 = vmatpush1.bf16.xpose.msra.mxu0 0
        %701 = vmatprep.subr.bf16.mxu0 0
        %702 = vmatpush1.bf16.xpose.msra.mxu0 0
        %703 = vmatprep.subr.bf16.mxu0 0
        %704 = vmatpush1.bf16.xpose.msra.mxu0 0
        %705 = vmatprep.subr.bf16.mxu0 0
        %706 = vmatpush1.bf16.xpose.msra.mxu0 0
        %707 = vmatprep.subr.bf16.mxu0 0
        %708 = vmatpush1.bf16.xpose.msra.mxu0 0
        %709 = vmatprep.subr.bf16.mxu0 0
        %710 = vmatpush1.bf16.xpose.msra.mxu0 0
        %711 = vmatprep.subr.bf16.mxu0 0
        %712 = vmatpush1.bf16.xpose.msra.mxu0 0
        %713 = vmatprep.subr.bf16.mxu0 0
        %714 = vmatpush1.bf16.xpose.msra.mxu0 0
        %715 = vmatprep.subr.bf16.mxu0 0
        %716 = vmatpush1.bf16.xpose.msra.mxu0 0
        %717 = vmatprep.subr.bf16.mxu0 0
        %718 = vmatpush1.bf16.xpose.msra.mxu0 0
        %719 = vmatprep.subr.bf16.mxu0 0
        %720 = vmatpush1.bf16.xpose.msra.mxu0 0
        %721 = vmatprep.subr.bf16.mxu0 0
        %722 = vmatpush1.bf16.xpose.msra.mxu0 0
        %723 = vmatprep.subr.bf16.mxu0 0
        %724 = vmatpush1.bf16.xpose.msra.mxu0 0
        %725 = vmatprep.subr.bf16.mxu0 0
        %726 = vmatpush1.bf16.xpose.msra.mxu0 0
        %727 = vmatprep.subr.bf16.mxu0 0
        %728 = vmatpush1.bf16.xpose.msra.mxu0 0
        %729 = vmatprep.mubr.bf16.mxu0 0
        %730 = vmatmul.mubr.bf16.gmra.mrb[0].mxu0 %v695
        %v731 = vpop.f32.mrb[0].mxu0
        %v732 = vadd.f32 0.0, %v731
        %v733 = vpop.f32.mrb[0].mxu0
        %v734 = vpop.f32.mrb[0].mxu0
        %v735 = vadd.f32 0.0, %v734
        %v736 = vpop.f32.mrb[0].mxu0
        %737 = vdwg.mxu0
        %v738 = vmul.f32 %v732, 0.5
        %v739 = vmul.f32 %v735, 0.5
        %v740 = vadd.f32 %v738, %v391
        %v741 = vadd.f32 %v739, %v392
        %v742 = vsel %vm656, %v740, -inf
        %743 = vmax.xlane.f32.xlu0 %v742
        %v744 = vpop.xlane.xlu0 %743
        %v745 = vsel %vm656, %v741, -inf
        %746 = vmax.xlane.f32.xlu0 %v745
        %v747 = vpop.xlane.xlu0 %746
        %v748 = vsub.f32 %v740, %v744
        %v749 = vsub.f32 %v741, %v747
        %v750 = vmul.f32 %v748, 1.442695
        %v751 = vpow.pop %v750
        %v752 = vmul.f32 %v749, 1.442695
        %v753 = vpow.pop %v752
        %v754 = vsel %vm656, %v751, 0.0
        %755 = vadd.xlane.f32.xlu0 %v754
        %v756 = vpop.xlane.xlu0 %755
        %v757 = vsel %vm656, %v753, 0.0
        %758 = vadd.xlane.f32.xlu0 %v757
        %v759 = vpop.xlane.xlu0 %758
        %v760 = vrcp.pop %v756
        %v761 = vmul.f32 %v751, %v760
        %v762 = vrcp.pop %v759
        %v763 = vmul.f32 %v753, %v762
        %v764 = vpack.c.bf16 %v763, %v761
        %766 = vrot.lane.b32.xlu0 %v693, 64
        %v767 = vpop.permute.xlu0 %766
        %v770 = vsel %vm656, %v764, 0
        %772 = vmatprep.subr.bf16.mxu0 0
        %773 = vmatpush1.bf16.msra.mxu0 %v767
        %774 = vmatprep.subr.bf16.mxu0 0
        %775 = vmatpush1.bf16.msra.mxu0 0
        %776 = vmatprep.subr.bf16.mxu0 0
        %777 = vmatpush1.bf16.msra.mxu0 0
        %778 = vmatprep.subr.bf16.mxu0 0
        %779 = vmatpush1.bf16.msra.mxu0 0
        %780 = vmatprep.subr.bf16.mxu0 0
        %781 = vmatpush1.bf16.msra.mxu0 0
        %782 = vmatprep.subr.bf16.mxu0 0
        %783 = vmatpush1.bf16.msra.mxu0 0
        %784 = vmatprep.subr.bf16.mxu0 0
        %785 = vmatpush1.bf16.msra.mxu0 0
        %786 = vmatprep.subr.bf16.mxu0 0
        %787 = vmatpush1.bf16.msra.mxu0 0
        %788 = vmatprep.subr.bf16.mxu0 0
        %789 = vmatpush1.bf16.msra.mxu0 0
        %790 = vmatprep.subr.bf16.mxu0 0
        %791 = vmatpush1.bf16.msra.mxu0 0
        %792 = vmatprep.subr.bf16.mxu0 0
        %793 = vmatpush1.bf16.msra.mxu0 0
        %794 = vmatprep.subr.bf16.mxu0 0
        %795 = vmatpush1.bf16.msra.mxu0 0
        %796 = vmatprep.subr.bf16.mxu0 0
        %797 = vmatpush1.bf16.msra.mxu0 0
        %798 = vmatprep.subr.bf16.mxu0 0
        %799 = vmatpush1.bf16.msra.mxu0 0
        %800 = vmatprep.subr.bf16.mxu0 0
        %801 = vmatpush1.bf16.msra.mxu0 0
        %802 = vmatprep.subr.bf16.mxu0 0
        %803 = vmatpush1.bf16.msra.mxu0 0
        %804 = vmatprep.mubr.bf16.mxu0 0
        %805 = vmatmul.mubr.bf16.gmra.mrb[0].mxu0 %v770
        %v806 = vpop.f32.mrb[0].mxu0
        %v807 = vadd.f32 0.0, %v806
        %v808 = vpop.f32.mrb[0].mxu0
        %v809 = vpop.f32.mrb[0].mxu0
        %v810 = vadd.f32 0.0, %v809
        %v811 = vpop.f32.mrb[0].mxu0
        %812 = vdwg.mxu0
        %814 = vrot.lane.b32.xlu0 %v601, 64
        %v815 = vpop.permute.xlu0 %814
        %v818 = vsel %vm656, %v679, 0
        %820 = vmatprep.subr.bf16.mxu0 0
        %821 = vmatpush1.bf16.msra.mxu0 %v815
        %822 = vmatprep.subr.bf16.mxu0 0
        %823 = vmatpush1.bf16.msra.mxu0 0
        %824 = vmatprep.subr.bf16.mxu0 0
        %825 = vmatpush1.bf16.msra.mxu0 0
        %826 = vmatprep.subr.bf16.mxu0 0
        %827 = vmatpush1.bf16.msra.mxu0 0
        %828 = vmatprep.subr.bf16.mxu0 0
        %829 = vmatpush1.bf16.msra.mxu0 0
        %830 = vmatprep.subr.bf16.mxu0 0
        %831 = vmatpush1.bf16.msra.mxu0 0
        %832 = vmatprep.subr.bf16.mxu0 0
        %833 = vmatpush1.bf16.msra.mxu0 0
        %834 = vmatprep.subr.bf16.mxu0 0
        %835 = vmatpush1.bf16.msra.mxu0 0
        %836 = vmatprep.subr.bf16.mxu0 0
        %837 = vmatpush1.bf16.msra.mxu0 0
        %838 = vmatprep.subr.bf16.mxu0 0
        %839 = vmatpush1.bf16.msra.mxu0 0
        %840 = vmatprep.subr.bf16.mxu0 0
        %841 = vmatpush1.bf16.msra.mxu0 0
        %842 = vmatprep.subr.bf16.mxu0 0
        %843 = vmatpush1.bf16.msra.mxu0 0
        %844 = vmatprep.subr.bf16.mxu0 0
        %845 = vmatpush1.bf16.msra.mxu0 0
        %846 = vmatprep.subr.bf16.mxu0 0
        %847 = vmatpush1.bf16.msra.mxu0 0
        %848 = vmatprep.subr.bf16.mxu0 0
        %849 = vmatpush1.bf16.msra.mxu0 0
        %850 = vmatprep.subr.bf16.mxu0 0
        %851 = vmatpush1.bf16.msra.mxu0 0
        %852 = vmatprep.mubr.bf16.mxu0 0
        %853 = vmatmul.mubr.bf16.gmra.mrb[0].mxu0 %v818
        %v854 = vpop.f32.mrb[0].mxu0
        %v855 = vadd.f32 %v807, %v854
        %v856 = vpop.f32.mrb[0].mxu0
        %v857 = vpop.f32.mrb[0].mxu0
        %v858 = vadd.f32 %v810, %v857
        %v859 = vpop.f32.mrb[0].mxu0
        %860 = vdwg.mxu0
        %v861 = vlaneseq
        %v862 = vshrl.u32 %v861, 7
        %v863 = vsub.s32 2, %v862
        %v864 = vrot.slane %v390, %v863
        %v865 = vmul.f32 %v581, %v864
        %v866 = vmul.f32 %v584, %v864
        %v867 = vpack.c.bf16 %v866, %v865
        %869 = vrot.lane.b32.xlu0 %v864, 64
        %v870 = vpop.permute.xlu0 %869
        %v872 = vmul.f32 %v581, %v870
        %v873 = vmul.f32 %v584, %v870
        %v874 = vpack.c.bf16 %v873, %v872
        %v876 = vsel %vm482, %v867, 0
        %878 = vmatprep.subr.bf16.mxu0 0
        %879 = vmatpush1.bf16.xpose.msra.mxu0 %v609
        %880 = vmatprep.subr.bf16.mxu0 0
        %881 = vmatpush1.bf16.xpose.msra.mxu0 0
        %882 = vmatprep.subr.bf16.mxu0 0
        %883 = vmatpush1.bf16.xpose.msra.mxu0 0
        %884 = vmatprep.subr.bf16.mxu0 0
        %885 = vmatpush1.bf16.xpose.msra.mxu0 0
        %886 = vmatprep.subr.bf16.mxu0 0
        %887 = vmatpush1.bf16.xpose.msra.mxu0 0
        %888 = vmatprep.subr.bf16.mxu0 0
        %889 = vmatpush1.bf16.xpose.msra.mxu0 0
        %890 = vmatprep.subr.bf16.mxu0 0
        %891 = vmatpush1.bf16.xpose.msra.mxu0 0
        %892 = vmatprep.subr.bf16.mxu0 0
        %893 = vmatpush1.bf16.xpose.msra.mxu0 0
        %894 = vmatprep.subr.bf16.mxu0 0
        %895 = vmatpush1.bf16.xpose.msra.mxu0 0
        %896 = vmatprep.subr.bf16.mxu0 0
        %897 = vmatpush1.bf16.xpose.msra.mxu0 0
        %898 = vmatprep.subr.bf16.mxu0 0
        %899 = vmatpush1.bf16.xpose.msra.mxu0 0
        %900 = vmatprep.subr.bf16.mxu0 0
        %901 = vmatpush1.bf16.xpose.msra.mxu0 0
        %902 = vmatprep.subr.bf16.mxu0 0
        %903 = vmatpush1.bf16.xpose.msra.mxu0 0
        %904 = vmatprep.subr.bf16.mxu0 0
        %905 = vmatpush1.bf16.xpose.msra.mxu0 0
        %906 = vmatprep.subr.bf16.mxu0 0
        %907 = vmatpush1.bf16.xpose.msra.mxu0 0
        %908 = vmatprep.subr.bf16.mxu0 0
        %909 = vmatpush1.bf16.xpose.msra.mxu0 0
        %910 = vmatprep.mubr.bf16.mxu0 0
        %911 = vmatmul.mubr.bf16.gmra.mrb[0].mxu0 %v876
        %v912 = vpop.f32.mrb[0].mxu0
        %v913 = vadd.f32 0.0, %v912
        %v914 = vpop.f32.mrb[0].mxu0
        %v915 = vpop.f32.mrb[0].mxu0
        %v916 = vadd.f32 0.0, %v915
        %v917 = vpop.f32.mrb[0].mxu0
        %918 = vdwg.mxu0
        %v919 = vmul.f32 %v913, 0.5
        %v920 = vmul.f32 %v916, 0.5
        %v921 = vadd.f32 %v919, %v391
        %v922 = vadd.f32 %v920, %v392
        %v923 = vsel %vm656, %v921, -inf
        %924 = vmax.xlane.f32.xlu0 %v923
        %v925 = vpop.xlane.xlu0 %924
        %v926 = vsel %vm656, %v922, -inf
        %927 = vmax.xlane.f32.xlu0 %v926
        %v928 = vpop.xlane.xlu0 %927
        %v929 = vsub.f32 %v921, %v925
        %v930 = vsub.f32 %v922, %v928
        %v931 = vmul.f32 %v929, 1.442695
        %v932 = vpow.pop %v931
        %v933 = vmul.f32 %v930, 1.442695
        %v934 = vpow.pop %v933
        %v935 = vsel %vm656, %v932, 0.0
        %936 = vadd.xlane.f32.xlu0 %v935
        %v937 = vpop.xlane.xlu0 %936
        %v938 = vsel %vm656, %v934, 0.0
        %939 = vadd.xlane.f32.xlu0 %v938
        %v940 = vpop.xlane.xlu0 %939
        %v941 = vrcp.pop %v937
        %v942 = vmul.f32 %v932, %v941
        %v943 = vrcp.pop %v940
        %v944 = vmul.f32 %v934, %v943
        %v945 = vpack.c.bf16 %v944, %v942
        %947 = vrot.lane.b32.xlu0 %v874, 64
        %v948 = vpop.permute.xlu0 %947
        %v951 = vsel %vm656, %v945, 0
        %953 = vmatprep.subr.bf16.mxu0 0
        %954 = vmatpush1.bf16.msra.mxu0 %v948
        %955 = vmatprep.subr.bf16.mxu0 0
        %956 = vmatpush1.bf16.msra.mxu0 0
        %957 = vmatprep.subr.bf16.mxu0 0
        %958 = vmatpush1.bf16.msra.mxu0 0
        %959 = vmatprep.subr.bf16.mxu0 0
        %960 = vmatpush1.bf16.msra.mxu0 0
        %961 = vmatprep.subr.bf16.mxu0 0
        %962 = vmatpush1.bf16.msra.mxu0 0
        %963 = vmatprep.subr.bf16.mxu0 0
        %964 = vmatpush1.bf16.msra.mxu0 0
        %965 = vmatprep.subr.bf16.mxu0 0
        %966 = vmatpush1.bf16.msra.mxu0 0
        %967 = vmatprep.subr.bf16.mxu0 0
        %968 = vmatpush1.bf16.msra.mxu0 0
        %969 = vmatprep.subr.bf16.mxu0 0
        %970 = vmatpush1.bf16.msra.mxu0 0
        %971 = vmatprep.subr.bf16.mxu0 0
        %972 = vmatpush1.bf16.msra.mxu0 0
        %973 = vmatprep.subr.bf16.mxu0 0
        %974 = vmatpush1.bf16.msra.mxu0 0
        %975 = vmatprep.subr.bf16.mxu0 0
        %976 = vmatpush1.bf16.msra.mxu0 0
        %977 = vmatprep.subr.bf16.mxu0 0
        %978 = vmatpush1.bf16.msra.mxu0 0
        %979 = vmatprep.subr.bf16.mxu0 0
        %980 = vmatpush1.bf16.msra.mxu0 0
        %981 = vmatprep.subr.bf16.mxu0 0
        %982 = vmatpush1.bf16.msra.mxu0 0
        %983 = vmatprep.subr.bf16.mxu0 0
        %984 = vmatpush1.bf16.msra.mxu0 0
        %985 = vmatprep.mubr.bf16.mxu0 0
        %986 = vmatmul.mubr.bf16.gmra.mrb[0].mxu0 %v951
        %v987 = vpop.f32.mrb[0].mxu0
        %v988 = vadd.f32 0.0, %v987
        %v989 = vpop.f32.mrb[0].mxu0
        %v990 = vpop.f32.mrb[0].mxu0
        %v991 = vadd.f32 0.0, %v990
        %v992 = vpop.f32.mrb[0].mxu0
        %993 = vdwg.mxu0
        %v994 = vadd.f32 %v855, %v988
        %v995 = vadd.f32 %v858, %v991
        %v996 = vlaneseq
        %v997 = vshrl.u32 %v996, 7
        %v998 = vsub.s32 3, %v997
        %v999 = vrot.slane %v390, %v998
        %v1000 = vmul.f32 %v581, %v999
        %v1001 = vmul.f32 %v584, %v999
        %v1002 = vpack.c.bf16 %v1001, %v1000
        %1004 = vrot.lane.b32.xlu0 %v999, 64
        %v1005 = vpop.permute.xlu0 %1004
        %v1007 = vmul.f32 %v581, %v1005
        %v1008 = vmul.f32 %v584, %v1005
        %v1009 = vpack.c.bf16 %v1008, %v1007
        %v1011 = vsel %vm482, %v1002, 0
        %1013 = vmatprep.subr.bf16.mxu0 0
        %1014 = vmatpush1.bf16.xpose.msra.mxu0 %v609
        %1015 = vmatprep.subr.bf16.mxu0 0
        %1016 = vmatpush1.bf16.xpose.msra.mxu0 0
        %1017 = vmatprep.subr.bf16.mxu0 0
        %1018 = vmatpush1.bf16.xpose.msra.mxu0 0
        %1019 = vmatprep.subr.bf16.mxu0 0
        %1020 = vmatpush1.bf16.xpose.msra.mxu0 0
        %1021 = vmatprep.subr.bf16.mxu0 0
        %1022 = vmatpush1.bf16.xpose.msra.mxu0 0
        %1023 = vmatprep.subr.bf16.mxu0 0
        %1024 = vmatpush1.bf16.xpose.msra.mxu0 0
        %1025 = vmatprep.subr.bf16.mxu0 0
        %1026 = vmatpush1.bf16.xpose.msra.mxu0 0
        %1027 = vmatprep.subr.bf16.mxu0 0
        %1028 = vmatpush1.bf16.xpose.msra.mxu0 0
        %1029 = vmatprep.subr.bf16.mxu0 0
        %1030 = vmatpush1.bf16.xpose.msra.mxu0 0
        %1031 = vmatprep.subr.bf16.mxu0 0
        %1032 = vmatpush1.bf16.xpose.msra.mxu0 0
        %1033 = vmatprep.subr.bf16.mxu0 0
        %1034 = vmatpush1.bf16.xpose.msra.mxu0 0
        %1035 = vmatprep.subr.bf16.mxu0 0
        %1036 = vmatpush1.bf16.xpose.msra.mxu0 0
        %1037 = vmatprep.subr.bf16.mxu0 0
        %1038 = vmatpush1.bf16.xpose.msra.mxu0 0
        %1039 = vmatprep.subr.bf16.mxu0 0
        %1040 = vmatpush1.bf16.xpose.msra.mxu0 0
        %1041 = vmatprep.subr.bf16.mxu0 0
        %1042 = vmatpush1.bf16.xpose.msra.mxu0 0
        %1043 = vmatprep.subr.bf16.mxu0 0
        %1044 = vmatpush1.bf16.xpose.msra.mxu0 0
        %1045 = vmatprep.mubr.bf16.mxu0 0
        %1046 = vmatmul.mubr.bf16.gmra.mrb[0].mxu0 %v1011
        %v1047 = vpop.f32.mrb[0].mxu0
        %v1048 = vadd.f32 0.0, %v1047
        %v1049 = vpop.f32.mrb[0].mxu0
        %v1050 = vpop.f32.mrb[0].mxu0
        %v1051 = vadd.f32 0.0, %v1050
        %v1052 = vpop.f32.mrb[0].mxu0
        %1053 = vdwg.mxu0
        %v1054 = vmul.f32 %v1048, 0.5
        %v1055 = vmul.f32 %v1051, 0.5
        %v1056 = vadd.f32 %v1054, %v391
        %v1057 = vadd.f32 %v1055, %v392
        %v1058 = vsel %vm656, %v1056, -inf
        %1059 = vmax.xlane.f32.xlu0 %v1058
        %v1060 = vpop.xlane.xlu0 %1059
        %v1061 = vsel %vm656, %v1057, -inf
        %1062 = vmax.xlane.f32.xlu0 %v1061
        %v1063 = vpop.xlane.xlu0 %1062
        %v1064 = vsub.f32 %v1056, %v1060
        %v1065 = vsub.f32 %v1057, %v1063
        %v1066 = vmul.f32 %v1064, 1.442695
        %v1067 = vpow.pop %v1066
        %v1068 = vmul.f32 %v1065, 1.442695
        %v1069 = vpow.pop %v1068
        %v1070 = vsel %vm656, %v1067, 0.0
        %1071 = vadd.xlane.f32.xlu0 %v1070
        %v1072 = vpop.xlane.xlu0 %1071
        %v1073 = vsel %vm656, %v1069, 0.0
        %1074 = vadd.xlane.f32.xlu0 %v1073
        %v1075 = vpop.xlane.xlu0 %1074
        %v1076 = vrcp.pop %v1072
        %v1077 = vmul.f32 %v1067, %v1076
        %v1078 = vrcp.pop %v1075
        %v1079 = vmul.f32 %v1069, %v1078
        %v1080 = vpack.c.bf16 %v1079, %v1077
        %1082 = vrot.lane.b32.xlu0 %v1009, 64
        %v1083 = vpop.permute.xlu0 %1082
        %v1086 = vsel %vm656, %v1080, 0
        %1088 = vmatprep.subr.bf16.mxu0 0
        %1089 = vmatpush1.bf16.msra.mxu0 %v1083
        %1090 = vmatprep.subr.bf16.mxu0 0
        %1091 = vmatpush1.bf16.msra.mxu0 0
        %1092 = vmatprep.subr.bf16.mxu0 0
        %1093 = vmatpush1.bf16.msra.mxu0 0
        %1094 = vmatprep.subr.bf16.mxu0 0
        %1095 = vmatpush1.bf16.msra.mxu0 0
        %1096 = vmatprep.subr.bf16.mxu0 0
        %1097 = vmatpush1.bf16.msra.mxu0 0
        %1098 = vmatprep.subr.bf16.mxu0 0
        %1099 = vmatpush1.bf16.msra.mxu0 0
        %1100 = vmatprep.subr.bf16.mxu0 0
        %1101 = vmatpush1.bf16.msra.mxu0 0
        %1102 = vmatprep.subr.bf16.mxu0 0
        %1103 = vmatpush1.bf16.msra.mxu0 0
        %1104 = vmatprep.subr.bf16.mxu0 0
        %1105 = vmatpush1.bf16.msra.mxu0 0
        %1106 = vmatprep.subr.bf16.mxu0 0
        %1107 = vmatpush1.bf16.msra.mxu0 0
        %1108 = vmatprep.subr.bf16.mxu0 0
        %1109 = vmatpush1.bf16.msra.mxu0 0
        %1110 = vmatprep.subr.bf16.mxu0 0
        %1111 = vmatpush1.bf16.msra.mxu0 0
        %1112 = vmatprep.subr.bf16.mxu0 0
        %1113 = vmatpush1.bf16.msra.mxu0 0
        %1114 = vmatprep.subr.bf16.mxu0 0
        %1115 = vmatpush1.bf16.msra.mxu0 0
        %1116 = vmatprep.subr.bf16.mxu0 0
        %1117 = vmatpush1.bf16.msra.mxu0 0
        %1118 = vmatprep.subr.bf16.mxu0 0
        %1119 = vmatpush1.bf16.msra.mxu0 0
        %1120 = vmatprep.mubr.bf16.mxu0 0
        %1121 = vmatmul.mubr.bf16.gmra.mrb[0].mxu0 %v1086
        %v1122 = vpop.f32.mrb[0].mxu0
        %v1123 = vadd.f32 0.0, %v1122
        %v1124 = vpop.f32.mrb[0].mxu0
        %v1125 = vpop.f32.mrb[0].mxu0
        %v1126 = vadd.f32 0.0, %v1125
        %v1127 = vpop.f32.mrb[0].mxu0
        %1128 = vdwg.mxu0
        %v1129 = vadd.f32 %v994, %v1123
        %v1130 = vadd.f32 %v995, %v1126
        %v1131 = vlaneseq
        %v1132 = vshrl.u32 %v1131, 7
        %v1133 = vsub.s32 4, %v1132
        %v1134 = vrot.slane %v390, %v1133
        %v1135 = vmul.f32 %v581, %v1134
        %v1136 = vmul.f32 %v584, %v1134
        %v1137 = vpack.c.bf16 %v1136, %v1135
        %1139 = vrot.lane.b32.xlu0 %v1134, 64
        %v1140 = vpop.permute.xlu0 %1139
        %v1142 = vmul.f32 %v581, %v1140
        %v1143 = vmul.f32 %v584, %v1140
        %v1144 = vpack.c.bf16 %v1143, %v1142
        %v1146 = vsel %vm482, %v1137, 0
        %1148 = vmatprep.subr.bf16.mxu0 0
        %1149 = vmatpush1.bf16.xpose.msra.mxu0 %v609
        %1150 = vmatprep.subr.bf16.mxu0 0
        %1151 = vmatpush1.bf16.xpose.msra.mxu0 0
        %1152 = vmatprep.subr.bf16.mxu0 0
        %1153 = vmatpush1.bf16.xpose.msra.mxu0 0
        %1154 = vmatprep.subr.bf16.mxu0 0
        %1155 = vmatpush1.bf16.xpose.msra.mxu0 0
        %1156 = vmatprep.subr.bf16.mxu0 0
        %1157 = vmatpush1.bf16.xpose.msra.mxu0 0
        %1158 = vmatprep.subr.bf16.mxu0 0
        %1159 = vmatpush1.bf16.xpose.msra.mxu0 0
        %1160 = vmatprep.subr.bf16.mxu0 0
        %1161 = vmatpush1.bf16.xpose.msra.mxu0 0
        %1162 = vmatprep.subr.bf16.mxu0 0
        %1163 = vmatpush1.bf16.xpose.msra.mxu0 0
        %1164 = vmatprep.subr.bf16.mxu0 0
        %1165 = vmatpush1.bf16.xpose.msra.mxu0 0
        %1166 = vmatprep.subr.bf16.mxu0 0
        %1167 = vmatpush1.bf16.xpose.msra.mxu0 0
        %1168 = vmatprep.subr.bf16.mxu0 0
        %1169 = vmatpush1.bf16.xpose.msra.mxu0 0
        %1170 = vmatprep.subr.bf16.mxu0 0
        %1171 = vmatpush1.bf16.xpose.msra.mxu0 0
        %1172 = vmatprep.subr.bf16.mxu0 0
        %1173 = vmatpush1.bf16.xpose.msra.mxu0 0
        %1174 = vmatprep.subr.bf16.mxu0 0
        %1175 = vmatpush1.bf16.xpose.msra.mxu0 0
        %1176 = vmatprep.subr.bf16.mxu0 0
        %1177 = vmatpush1.bf16.xpose.msra.mxu0 0
        %1178 = vmatprep.subr.bf16.mxu0 0
        %1179 = vmatpush1.bf16.xpose.msra.mxu0 0
        %1180 = vmatprep.mubr.bf16.mxu0 0
        %1181 = vmatmul.mubr.bf16.gmra.mrb[0].mxu0 %v1146
        %v1182 = vpop.f32.mrb[0].mxu0
        %v1183 = vadd.f32 0.0, %v1182
        %v1184 = vpop.f32.mrb[0].mxu0
        %v1185 = vpop.f32.mrb[0].mxu0
        %v1186 = vadd.f32 0.0, %v1185
        %v1187 = vpop.f32.mrb[0].mxu0
        %1188 = vdwg.mxu0
        %v1189 = vmul.f32 %v1183, 0.5
        %v1190 = vmul.f32 %v1186, 0.5
        %v1191 = vadd.f32 %v1189, %v391
        %v1192 = vadd.f32 %v1190, %v392
        %v1193 = vsel %vm656, %v1191, -inf
        %1194 = vmax.xlane.f32.xlu0 %v1193
        %v1195 = vpop.xlane.xlu0 %1194
        %v1196 = vsel %vm656, %v1192, -inf
        %1197 = vmax.xlane.f32.xlu0 %v1196
        %v1198 = vpop.xlane.xlu0 %1197
        %v1199 = vsub.f32 %v1191, %v1195
        %v1200 = vsub.f32 %v1192, %v1198
        %v1201 = vmul.f32 %v1199, 1.442695
        %v1202 = vpow.pop %v1201
        %v1203 = vmul.f32 %v1200, 1.442695
        %v1204 = vpow.pop %v1203
        %v1205 = vsel %vm656, %v1202, 0.0
        %1206 = vadd.xlane.f32.xlu0 %v1205
        %v1207 = vpop.xlane.xlu0 %1206
        %v1208 = vsel %vm656, %v1204, 0.0
        %1209 = vadd.xlane.f32.xlu0 %v1208
        %v1210 = vpop.xlane.xlu0 %1209
        %v1211 = vrcp.pop %v1207
        %v1212 = vmul.f32 %v1202, %v1211
        %v1213 = vrcp.pop %v1210
        %v1214 = vmul.f32 %v1204, %v1213
        %v1215 = vpack.c.bf16 %v1214, %v1212
        %1217 = vrot.lane.b32.xlu0 %v1144, 64
        %v1218 = vpop.permute.xlu0 %1217
        %v1221 = vsel %vm656, %v1215, 0
        %1223 = vmatprep.subr.bf16.mxu0 0
        %1224 = vmatpush1.bf16.msra.mxu0 %v1218
        %1225 = vmatprep.subr.bf16.mxu0 0
        %1226 = vmatpush1.bf16.msra.mxu0 0
        %1227 = vmatprep.subr.bf16.mxu0 0
        %1228 = vmatpush1.bf16.msra.mxu0 0
        %1229 = vmatprep.subr.bf16.mxu0 0
        %1230 = vmatpush1.bf16.msra.mxu0 0
        %1231 = vmatprep.subr.bf16.mxu0 0
        %1232 = vmatpush1.bf16.msra.mxu0 0
        %1233 = vmatprep.subr.bf16.mxu0 0
        %1234 = vmatpush1.bf16.msra.mxu0 0
        %1235 = vmatprep.subr.bf16.mxu0 0
        %1236 = vmatpush1.bf16.msra.mxu0 0
        %1237 = vmatprep.subr.bf16.mxu0 0
        %1238 = vmatpush1.bf16.msra.mxu0 0
        %1239 = vmatprep.subr.bf16.mxu0 0
        %1240 = vmatpush1.bf16.msra.mxu0 0
        %1241 = vmatprep.subr.bf16.mxu0 0
        %1242 = vmatpush1.bf16.msra.mxu0 0
        %1243 = vmatprep.subr.bf16.mxu0 0
        %1244 = vmatpush1.bf16.msra.mxu0 0
        %1245 = vmatprep.subr.bf16.mxu0 0
        %1246 = vmatpush1.bf16.msra.mxu0 0
        %1247 = vmatprep.subr.bf16.mxu0 0
        %1248 = vmatpush1.bf16.msra.mxu0 0
        %1249 = vmatprep.subr.bf16.mxu0 0
        %1250 = vmatpush1.bf16.msra.mxu0 0
        %1251 = vmatprep.subr.bf16.mxu0 0
        %1252 = vmatpush1.bf16.msra.mxu0 0
        %1253 = vmatprep.subr.bf16.mxu0 0
        %1254 = vmatpush1.bf16.msra.mxu0 0
        %1255 = vmatprep.mubr.bf16.mxu0 0
        %1256 = vmatmul.mubr.bf16.gmra.mrb[0].mxu0 %v1221
        %v1257 = vpop.f32.mrb[0].mxu0
        %v1258 = vadd.f32 0.0, %v1257
        %v1259 = vpop.f32.mrb[0].mxu0
        %v1260 = vpop.f32.mrb[0].mxu0
        %v1261 = vadd.f32 0.0, %v1260
        %v1262 = vpop.f32.mrb[0].mxu0
        %1263 = vdwg.mxu0
        %v1264 = vadd.f32 %v1129, %v1258
        %v1265 = vadd.f32 %v1130, %v1261
        %v1266 = vlaneseq
        %v1267 = vshrl.u32 %v1266, 7
        %v1268 = vsub.s32 5, %v1267
        %v1269 = vrot.slane %v390, %v1268
        %v1270 = vmul.f32 %v581, %v1269
        %v1271 = vmul.f32 %v584, %v1269
        %v1272 = vpack.c.bf16 %v1271, %v1270
        %1274 = vrot.lane.b32.xlu0 %v1269, 64
        %v1275 = vpop.permute.xlu0 %1274
        %v1277 = vmul.f32 %v581, %v1275
        %v1278 = vmul.f32 %v584, %v1275
        %v1279 = vpack.c.bf16 %v1278, %v1277
        %v1281 = vsel %vm482, %v1272, 0
        %1283 = vmatprep.subr.bf16.mxu0 0
        %1284 = vmatpush1.bf16.xpose.msra.mxu0 %v609
        %1285 = vmatprep.subr.bf16.mxu0 0
        %1286 = vmatpush1.bf16.xpose.msra.mxu0 0
        %1287 = vmatprep.subr.bf16.mxu0 0
        %1288 = vmatpush1.bf16.xpose.msra.mxu0 0
        %1289 = vmatprep.subr.bf16.mxu0 0
        %1290 = vmatpush1.bf16.xpose.msra.mxu0 0
        %1291 = vmatprep.subr.bf16.mxu0 0
        %1292 = vmatpush1.bf16.xpose.msra.mxu0 0
        %1293 = vmatprep.subr.bf16.mxu0 0
        %1294 = vmatpush1.bf16.xpose.msra.mxu0 0
        %1295 = vmatprep.subr.bf16.mxu0 0
        %1296 = vmatpush1.bf16.xpose.msra.mxu0 0
        %1297 = vmatprep.subr.bf16.mxu0 0
        %1298 = vmatpush1.bf16.xpose.msra.mxu0 0
        %1299 = vmatprep.subr.bf16.mxu0 0
        %1300 = vmatpush1.bf16.xpose.msra.mxu0 0
        %1301 = vmatprep.subr.bf16.mxu0 0
        %1302 = vmatpush1.bf16.xpose.msra.mxu0 0
        %1303 = vmatprep.subr.bf16.mxu0 0
        %1304 = vmatpush1.bf16.xpose.msra.mxu0 0
        %1305 = vmatprep.subr.bf16.mxu0 0
        %1306 = vmatpush1.bf16.xpose.msra.mxu0 0
        %1307 = vmatprep.subr.bf16.mxu0 0
        %1308 = vmatpush1.bf16.xpose.msra.mxu0 0
        %1309 = vmatprep.subr.bf16.mxu0 0
        %1310 = vmatpush1.bf16.xpose.msra.mxu0 0
        %1311 = vmatprep.subr.bf16.mxu0 0
        %1312 = vmatpush1.bf16.xpose.msra.mxu0 0
        %1313 = vmatprep.subr.bf16.mxu0 0
        %1314 = vmatpush1.bf16.xpose.msra.mxu0 0
        %1315 = vmatprep.mubr.bf16.mxu0 0
        %1316 = vmatmul.mubr.bf16.gmra.mrb[0].mxu0 %v1281
        %v1317 = vpop.f32.mrb[0].mxu0
        %v1318 = vadd.f32 0.0, %v1317
        %v1319 = vpop.f32.mrb[0].mxu0
        %v1320 = vpop.f32.mrb[0].mxu0
        %v1321 = vadd.f32 0.0, %v1320
        %v1322 = vpop.f32.mrb[0].mxu0
        %1323 = vdwg.mxu0
        %v1324 = vmul.f32 %v1318, 0.5
        %v1325 = vmul.f32 %v1321, 0.5
        %v1326 = vadd.f32 %v1324, %v391
        %v1327 = vadd.f32 %v1325, %v392
        %v1328 = vsel %vm656, %v1326, -inf
        %1329 = vmax.xlane.f32.xlu0 %v1328
        %v1330 = vpop.xlane.xlu0 %1329
        %v1331 = vsel %vm656, %v1327, -inf
        %1332 = vmax.xlane.f32.xlu0 %v1331
        %v1333 = vpop.xlane.xlu0 %1332
        %v1334 = vsub.f32 %v1326, %v1330
        %v1335 = vsub.f32 %v1327, %v1333
        %v1336 = vmul.f32 %v1334, 1.442695
        %v1337 = vpow.pop %v1336
        %v1338 = vmul.f32 %v1335, 1.442695
        %v1339 = vpow.pop %v1338
        %v1340 = vsel %vm656, %v1337, 0.0
        %1341 = vadd.xlane.f32.xlu0 %v1340
        %v1342 = vpop.xlane.xlu0 %1341
        %v1343 = vsel %vm656, %v1339, 0.0
        %1344 = vadd.xlane.f32.xlu0 %v1343
        %v1345 = vpop.xlane.xlu0 %1344
        %v1346 = vrcp.pop %v1342
        %v1347 = vmul.f32 %v1337, %v1346
        %v1348 = vrcp.pop %v1345
        %v1349 = vmul.f32 %v1339, %v1348
        %v1350 = vpack.c.bf16 %v1349, %v1347
        %1352 = vrot.lane.b32.xlu0 %v1279, 64
        %v1353 = vpop.permute.xlu0 %1352
        %v1356 = vsel %vm656, %v1350, 0
        %1358 = vmatprep.subr.bf16.mxu0 0
        %1359 = vmatpush1.bf16.msra.mxu0 %v1353
        %1360 = vmatprep.subr.bf16.mxu0 0
        %1361 = vmatpush1.bf16.msra.mxu0 0
        %1362 = vmatprep.subr.bf16.mxu0 0
        %1363 = vmatpush1.bf16.msra.mxu0 0
        %1364 = vmatprep.subr.bf16.mxu0 0
        %1365 = vmatpush1.bf16.msra.mxu0 0
        %1366 = vmatprep.subr.bf16.mxu0 0
        %1367 = vmatpush1.bf16.msra.mxu0 0
        %1368 = vmatprep.subr.bf16.mxu0 0
        %1369 = vmatpush1.bf16.msra.mxu0 0
        %1370 = vmatprep.subr.bf16.mxu0 0
        %1371 = vmatpush1.bf16.msra.mxu0 0
        %1372 = vmatprep.subr.bf16.mxu0 0
        %1373 = vmatpush1.bf16.msra.mxu0 0
        %1374 = vmatprep.subr.bf16.mxu0 0
        %1375 = vmatpush1.bf16.msra.mxu0 0
        %1376 = vmatprep.subr.bf16.mxu0 0
        %1377 = vmatpush1.bf16.msra.mxu0 0
        %1378 = vmatprep.subr.bf16.mxu0 0
        %1379 = vmatpush1.bf16.msra.mxu0 0
        %1380 = vmatprep.subr.bf16.mxu0 0
        %1381 = vmatpush1.bf16.msra.mxu0 0
        %1382 = vmatprep.subr.bf16.mxu0 0
        %1383 = vmatpush1.bf16.msra.mxu0 0
        %1384 = vmatprep.subr.bf16.mxu0 0
        %1385 = vmatpush1.bf16.msra.mxu0 0
        %1386 = vmatprep.subr.bf16.mxu0 0
        %1387 = vmatpush1.bf16.msra.mxu0 0
        %1388 = vmatprep.subr.bf16.mxu0 0
        %1389 = vmatpush1.bf16.msra.mxu0 0
        %1390 = vmatprep.mubr.bf16.mxu0 0
        %1391 = vmatmul.mubr.bf16.gmra.mrb[0].mxu0 %v1356
        %v1392 = vpop.f32.mrb[0].mxu0
        %v1393 = vadd.f32 0.0, %v1392
        %v1394 = vpop.f32.mrb[0].mxu0
        %v1395 = vpop.f32.mrb[0].mxu0
        %v1396 = vadd.f32 0.0, %v1395
        %v1397 = vpop.f32.mrb[0].mxu0
        %1398 = vdwg.mxu0
        %v1399 = vadd.f32 %v1264, %v1393
        %v1400 = vadd.f32 %v1265, %v1396
        %v1401 = vlaneseq
        %v1402 = vshrl.u32 %v1401, 7
        %v1403 = vsub.s32 6, %v1402
        %v1404 = vrot.slane %v390, %v1403
        %v1405 = vmul.f32 %v581, %v1404
        %v1406 = vmul.f32 %v584, %v1404
        %v1407 = vpack.c.bf16 %v1406, %v1405
        %1409 = vrot.lane.b32.xlu0 %v1404, 64
        %v1410 = vpop.permute.xlu0 %1409
        %v1412 = vmul.f32 %v581, %v1410
        %v1413 = vmul.f32 %v584, %v1410
        %v1414 = vpack.c.bf16 %v1413, %v1412
        %v1416 = vsel %vm482, %v1407, 0
        %1418 = vmatprep.subr.bf16.mxu0 0
        %1419 = vmatpush1.bf16.xpose.msra.mxu0 %v609
        %1420 = vmatprep.subr.bf16.mxu0 0
        %1421 = vmatpush1.bf16.xpose.msra.mxu0 0
        %1422 = vmatprep.subr.bf16.mxu0 0
        %1423 = vmatpush1.bf16.xpose.msra.mxu0 0
        %1424 = vmatprep.subr.bf16.mxu0 0
        %1425 = vmatpush1.bf16.xpose.msra.mxu0 0
        %1426 = vmatprep.subr.bf16.mxu0 0
        %1427 = vmatpush1.bf16.xpose.msra.mxu0 0
        %1428 = vmatprep.subr.bf16.mxu0 0
        %1429 = vmatpush1.bf16.xpose.msra.mxu0 0
        %1430 = vmatprep.subr.bf16.mxu0 0
        %1431 = vmatpush1.bf16.xpose.msra.mxu0 0
        %1432 = vmatprep.subr.bf16.mxu0 0
        %1433 = vmatpush1.bf16.xpose.msra.mxu0 0
        %1434 = vmatprep.subr.bf16.mxu0 0
        %1435 = vmatpush1.bf16.xpose.msra.mxu0 0
        %1436 = vmatprep.subr.bf16.mxu0 0
        %1437 = vmatpush1.bf16.xpose.msra.mxu0 0
        %1438 = vmatprep.subr.bf16.mxu0 0
        %1439 = vmatpush1.bf16.xpose.msra.mxu0 0
        %1440 = vmatprep.subr.bf16.mxu0 0
        %1441 = vmatpush1.bf16.xpose.msra.mxu0 0
        %1442 = vmatprep.subr.bf16.mxu0 0
        %1443 = vmatpush1.bf16.xpose.msra.mxu0 0
        %1444 = vmatprep.subr.bf16.mxu0 0
        %1445 = vmatpush1.bf16.xpose.msra.mxu0 0
        %1446 = vmatprep.subr.bf16.mxu0 0
        %1447 = vmatpush1.bf16.xpose.msra.mxu0 0
        %1448 = vmatprep.subr.bf16.mxu0 0
        %1449 = vmatpush1.bf16.xpose.msra.mxu0 0
        %1450 = vmatprep.mubr.bf16.mxu0 0
        %1451 = vmatmul.mubr.bf16.gmra.mrb[0].mxu0 %v1416
        %v1452 = vpop.f32.mrb[0].mxu0
        %v1453 = vadd.f32 0.0, %v1452
        %v1454 = vpop.f32.mrb[0].mxu0
        %v1455 = vpop.f32.mrb[0].mxu0
        %v1456 = vadd.f32 0.0, %v1455
        %v1457 = vpop.f32.mrb[0].mxu0
        %1458 = vdwg.mxu0
        %v1459 = vmul.f32 %v1453, 0.5
        %v1460 = vmul.f32 %v1456, 0.5
        %v1461 = vadd.f32 %v1459, %v391
        %v1462 = vadd.f32 %v1460, %v392
        %v1463 = vsel %vm656, %v1461, -inf
        %1464 = vmax.xlane.f32.xlu0 %v1463
        %v1465 = vpop.xlane.xlu0 %1464
        %v1466 = vsel %vm656, %v1462, -inf
        %1467 = vmax.xlane.f32.xlu0 %v1466
        %v1468 = vpop.xlane.xlu0 %1467
        %v1469 = vsub.f32 %v1461, %v1465
        %v1470 = vsub.f32 %v1462, %v1468
        %v1471 = vmul.f32 %v1469, 1.442695
        %v1472 = vpow.pop %v1471
        %v1473 = vmul.f32 %v1470, 1.442695
        %v1474 = vpow.pop %v1473
        %v1475 = vsel %vm656, %v1472, 0.0
        %1476 = vadd.xlane.f32.xlu0 %v1475
        %v1477 = vpop.xlane.xlu0 %1476
        %v1478 = vsel %vm656, %v1474, 0.0
        %1479 = vadd.xlane.f32.xlu0 %v1478
        %v1480 = vpop.xlane.xlu0 %1479
        %v1481 = vrcp.pop %v1477
        %v1482 = vmul.f32 %v1472, %v1481
        %v1483 = vrcp.pop %v1480
        %v1484 = vmul.f32 %v1474, %v1483
        %v1485 = vpack.c.bf16 %v1484, %v1482
        %1487 = vrot.lane.b32.xlu0 %v1414, 64
        %v1488 = vpop.permute.xlu0 %1487
        %v1491 = vsel %vm656, %v1485, 0
        %1493 = vmatprep.subr.bf16.mxu0 0
        %1494 = vmatpush1.bf16.msra.mxu0 %v1488
        %1495 = vmatprep.subr.bf16.mxu0 0
        %1496 = vmatpush1.bf16.msra.mxu0 0
        %1497 = vmatprep.subr.bf16.mxu0 0
        %1498 = vmatpush1.bf16.msra.mxu0 0
        %1499 = vmatprep.subr.bf16.mxu0 0
        %1500 = vmatpush1.bf16.msra.mxu0 0
        %1501 = vmatprep.subr.bf16.mxu0 0
        %1502 = vmatpush1.bf16.msra.mxu0 0
        %1503 = vmatprep.subr.bf16.mxu0 0
        %1504 = vmatpush1.bf16.msra.mxu0 0
        %1505 = vmatprep.subr.bf16.mxu0 0
        %1506 = vmatpush1.bf16.msra.mxu0 0
        %1507 = vmatprep.subr.bf16.mxu0 0
        %1508 = vmatpush1.bf16.msra.mxu0 0
        %1509 = vmatprep.subr.bf16.mxu0 0
        %1510 = vmatpush1.bf16.msra.mxu0 0
        %1511 = vmatprep.subr.bf16.mxu0 0
        %1512 = vmatpush1.bf16.msra.mxu0 0
        %1513 = vmatprep.subr.bf16.mxu0 0
        %1514 = vmatpush1.bf16.msra.mxu0 0
        %1515 = vmatprep.subr.bf16.mxu0 0
        %1516 = vmatpush1.bf16.msra.mxu0 0
        %1517 = vmatprep.subr.bf16.mxu0 0
        %1518 = vmatpush1.bf16.msra.mxu0 0
        %1519 = vmatprep.subr.bf16.mxu0 0
        %1520 = vmatpush1.bf16.msra.mxu0 0
        %1521 = vmatprep.subr.bf16.mxu0 0
        %1522 = vmatpush1.bf16.msra.mxu0 0
        %1523 = vmatprep.subr.bf16.mxu0 0
        %1524 = vmatpush1.bf16.msra.mxu0 0
        %1525 = vmatprep.mubr.bf16.mxu0 0
        %1526 = vmatmul.mubr.bf16.gmra.mrb[0].mxu0 %v1491
        %v1527 = vpop.f32.mrb[0].mxu0
        %v1528 = vadd.f32 0.0, %v1527
        %v1529 = vpop.f32.mrb[0].mxu0
        %v1530 = vpop.f32.mrb[0].mxu0
        %v1531 = vadd.f32 0.0, %v1530
        %v1532 = vpop.f32.mrb[0].mxu0
        %1533 = vdwg.mxu0
        %v1534 = vadd.f32 %v1399, %v1528
        %v1535 = vadd.f32 %v1400, %v1531
        %v1536 = vlaneseq
        %v1537 = vshrl.u32 %v1536, 7
        %v1538 = vsub.s32 7, %v1537
        %v1539 = vrot.slane %v390, %v1538
        %v1540 = vmul.f32 %v581, %v1539
        %v1541 = vmul.f32 %v584, %v1539
        %v1542 = vpack.c.bf16 %v1541, %v1540
        %1544 = vrot.lane.b32.xlu0 %v1539, 64
        %v1545 = vpop.permute.xlu0 %1544
        %v1547 = vmul.f32 %v581, %v1545
        %v1548 = vmul.f32 %v584, %v1545
        %v1549 = vpack.c.bf16 %v1548, %v1547
        %v1551 = vsel %vm482, %v1542, 0
        %1553 = vmatprep.subr.bf16.mxu0 0
        %1554 = vmatpush1.bf16.xpose.msra.mxu0 %v609
        %1555 = vmatprep.subr.bf16.mxu0 0
        %1556 = vmatpush1.bf16.xpose.msra.mxu0 0
        %1557 = vmatprep.subr.bf16.mxu0 0
        %1558 = vmatpush1.bf16.xpose.msra.mxu0 0
        %1559 = vmatprep.subr.bf16.mxu0 0
        %1560 = vmatpush1.bf16.xpose.msra.mxu0 0
        %1561 = vmatprep.subr.bf16.mxu0 0
        %1562 = vmatpush1.bf16.xpose.msra.mxu0 0
        %1563 = vmatprep.subr.bf16.mxu0 0
        %1564 = vmatpush1.bf16.xpose.msra.mxu0 0
        %1565 = vmatprep.subr.bf16.mxu0 0
        %1566 = vmatpush1.bf16.xpose.msra.mxu0 0
        %1567 = vmatprep.subr.bf16.mxu0 0
        %1568 = vmatpush1.bf16.xpose.msra.mxu0 0
        %1569 = vmatprep.subr.bf16.mxu0 0
        %1570 = vmatpush1.bf16.xpose.msra.mxu0 0
        %1571 = vmatprep.subr.bf16.mxu0 0
        %1572 = vmatpush1.bf16.xpose.msra.mxu0 0
        %1573 = vmatprep.subr.bf16.mxu0 0
        %1574 = vmatpush1.bf16.xpose.msra.mxu0 0
        %1575 = vmatprep.subr.bf16.mxu0 0
        %1576 = vmatpush1.bf16.xpose.msra.mxu0 0
        %1577 = vmatprep.subr.bf16.mxu0 0
        %1578 = vmatpush1.bf16.xpose.msra.mxu0 0
        %1579 = vmatprep.subr.bf16.mxu0 0
        %1580 = vmatpush1.bf16.xpose.msra.mxu0 0
        %1581 = vmatprep.subr.bf16.mxu0 0
        %1582 = vmatpush1.bf16.xpose.msra.mxu0 0
        %1583 = vmatprep.subr.bf16.mxu0 0
        %1584 = vmatpush1.bf16.xpose.msra.mxu0 0
        %1585 = vmatprep.mubr.bf16.mxu0 0
        %1586 = vmatmul.mubr.bf16.gmra.mrb[0].mxu0 %v1551
        %v1587 = vpop.f32.mrb[0].mxu0
        %v1588 = vadd.f32 0.0, %v1587
        %v1589 = vpop.f32.mrb[0].mxu0
        %v1590 = vpop.f32.mrb[0].mxu0
        %v1591 = vadd.f32 0.0, %v1590
        %v1592 = vpop.f32.mrb[0].mxu0
        %1593 = vdwg.mxu0
        %v1594 = vmul.f32 %v1588, 0.5
        %v1595 = vmul.f32 %v1591, 0.5
        %v1596 = vadd.f32 %v1594, %v391
        %v1597 = vadd.f32 %v1595, %v392
        %v1598 = vsel %vm656, %v1596, -inf
        %1599 = vmax.xlane.f32.xlu0 %v1598
        %v1600 = vpop.xlane.xlu0 %1599
        %v1601 = vsel %vm656, %v1597, -inf
        %1602 = vmax.xlane.f32.xlu0 %v1601
        %v1603 = vpop.xlane.xlu0 %1602
        %v1604 = vsub.f32 %v1596, %v1600
        %v1605 = vsub.f32 %v1597, %v1603
        %v1606 = vmul.f32 %v1604, 1.442695
        %v1607 = vpow.pop %v1606
        %v1608 = vmul.f32 %v1605, 1.442695
        %v1609 = vpow.pop %v1608
        %v1610 = vsel %vm656, %v1607, 0.0
        %1611 = vadd.xlane.f32.xlu0 %v1610
        %v1612 = vpop.xlane.xlu0 %1611
        %v1613 = vsel %vm656, %v1609, 0.0
        %1614 = vadd.xlane.f32.xlu0 %v1613
        %v1615 = vpop.xlane.xlu0 %1614
        %v1616 = vrcp.pop %v1612
        %v1617 = vmul.f32 %v1607, %v1616
        %v1618 = vrcp.pop %v1615
        %v1619 = vmul.f32 %v1609, %v1618
        %v1620 = vpack.c.bf16 %v1619, %v1617
        %1622 = vrot.lane.b32.xlu0 %v1549, 64
        %v1623 = vpop.permute.xlu0 %1622
        %v1626 = vsel %vm656, %v1620, 0
        %1628 = vmatprep.subr.bf16.mxu0 0
        %1629 = vmatpush1.bf16.msra.mxu0 %v1623
        %1630 = vmatprep.subr.bf16.mxu0 0
        %1631 = vmatpush1.bf16.msra.mxu0 0
        %1632 = vmatprep.subr.bf16.mxu0 0
        %1633 = vmatpush1.bf16.msra.mxu0 0
        %1634 = vmatprep.subr.bf16.mxu0 0
        %1635 = vmatpush1.bf16.msra.mxu0 0
        %1636 = vmatprep.subr.bf16.mxu0 0
        %1637 = vmatpush1.bf16.msra.mxu0 0
        %1638 = vmatprep.subr.bf16.mxu0 0
        %1639 = vmatpush1.bf16.msra.mxu0 0
        %1640 = vmatprep.subr.bf16.mxu0 0
        %1641 = vmatpush1.bf16.msra.mxu0 0
        %1642 = vmatprep.subr.bf16.mxu0 0
        %1643 = vmatpush1.bf16.msra.mxu0 0
        %1644 = vmatprep.subr.bf16.mxu0 0
        %1645 = vmatpush1.bf16.msra.mxu0 0
        %1646 = vmatprep.subr.bf16.mxu0 0
        %1647 = vmatpush1.bf16.msra.mxu0 0
        %1648 = vmatprep.subr.bf16.mxu0 0
        %1649 = vmatpush1.bf16.msra.mxu0 0
        %1650 = vmatprep.subr.bf16.mxu0 0
        %1651 = vmatpush1.bf16.msra.mxu0 0
        %1652 = vmatprep.subr.bf16.mxu0 0
        %1653 = vmatpush1.bf16.msra.mxu0 0
        %1654 = vmatprep.subr.bf16.mxu0 0
        %1655 = vmatpush1.bf16.msra.mxu0 0
        %1656 = vmatprep.subr.bf16.mxu0 0
        %1657 = vmatpush1.bf16.msra.mxu0 0
        %1658 = vmatprep.subr.bf16.mxu0 0
        %1659 = vmatpush1.bf16.msra.mxu0 0
        %1660 = vmatprep.mubr.bf16.mxu0 0
        %1661 = vmatmul.mubr.bf16.gmra.mrb[0].mxu0 %v1626
        %v1662 = vpop.f32.mrb[0].mxu0
        %v1663 = vadd.f32 0.0, %v1662
        %v1664 = vpop.f32.mrb[0].mxu0
        %v1665 = vpop.f32.mrb[0].mxu0
        %v1666 = vadd.f32 0.0, %v1665
        %v1667 = vpop.f32.mrb[0].mxu0
        %1668 = vdwg.mxu0
        %v1669 = vadd.f32 %v1534, %v1663
        %v1670 = vadd.f32 %v1535, %v1666
        %v1671 = vpack.c.bf16 %v1670, %v1669
        %v1672 = vld [vmem:[%s4] sm:$0xf]
        %v1673 = vld [vmem:[%s4 + $0x4] sm:$0xf]
        %v1674 = vld [vmem:[%s4 + $0x8] sm:$0xf]
        %v1675 = vld [vmem:[%s4 + $0xc] sm:$0xf]
        %v1680 = vunpack.c.l.b16 %v1672
        %v1681 = vunpack.c.l.b16 %v1673
        %v1682 = vunpack.c.l.b16 %v1674
        %v1683 = vunpack.c.l.b16 %v1675
        %v1684 = vpack.c.b16 %v1681, %v1680
        %v1685 = vpack.c.b16 %v1683, %v1682
        %v1689 = vsel %vm482, %v1671, 0
        %1691 = vmatprep.subr.bf16.mxu0 0
        %1692 = vmatpush1.bf16.msra.mxu0 %v1684
        %1693 = vmatprep.subr.bf16.mxu0 0
        %1694 = vmatpush1.bf16.msra.mxu0 %v1685
        %1695 = vmatprep.subr.bf16.mxu0 0
        %1696 = vmatpush1.bf16.msra.mxu0 0
        %1697 = vmatprep.subr.bf16.mxu0 0
        %1698 = vmatpush1.bf16.msra.mxu0 0
        %1699 = vmatprep.subr.bf16.mxu0 0
        %1700 = vmatpush1.bf16.msra.mxu0 0
        %1701 = vmatprep.subr.bf16.mxu0 0
        %1702 = vmatpush1.bf16.msra.mxu0 0
        %1703 = vmatprep.subr.bf16.mxu0 0
        %1704 = vmatpush1.bf16.msra.mxu0 0
        %1705 = vmatprep.subr.bf16.mxu0 0
        %1706 = vmatpush1.bf16.msra.mxu0 0
        %1707 = vmatprep.subr.bf16.mxu0 0
        %1708 = vmatpush1.bf16.msra.mxu0 0
        %1709 = vmatprep.subr.bf16.mxu0 0
        %1710 = vmatpush1.bf16.msra.mxu0 0
        %1711 = vmatprep.subr.bf16.mxu0 0
        %1712 = vmatpush1.bf16.msra.mxu0 0
        %1713 = vmatprep.subr.bf16.mxu0 0
        %1714 = vmatpush1.bf16.msra.mxu0 0
        %1715 = vmatprep.subr.bf16.mxu0 0
        %1716 = vmatpush1.bf16.msra.mxu0 0
        %1717 = vmatprep.subr.bf16.mxu0 0
        %1718 = vmatpush1.bf16.msra.mxu0 0
        %1719 = vmatprep.subr.bf16.mxu0 0
        %1720 = vmatpush1.bf16.msra.mxu0 0
        %1721 = vmatprep.subr.bf16.mxu0 0
        %1722 = vmatpush1.bf16.msra.mxu0 0
        %1723 = vmatprep.mubr.bf16.mxu0 0
        %1724 = vmatmul.mubr.bf16.gmra.mrb[0].mxu0 %v1689
        %v1725 = vpop.f32.mrb[0].mxu0
        %v1726 = vadd.f32 0.0, %v1725
        %v1727 = vpop.f32.mrb[0].mxu0
        %v1728 = vpop.f32.mrb[0].mxu0
        %v1729 = vadd.f32 0.0, %v1728
        %v1730 = vpop.f32.mrb[0].mxu0
        %1731 = vdwg.mxu0
        %v1732 = vadd.f32 %v480, %v1726
        %v1733 = vadd.f32 %v481, %v1729
        %v1734 = vlaneseq
        %v1735 = vshrl.u32 %v1734, 7
        %v1736 = vsub.s32 0, %v1735
        %v1737 = vrot.slane %v388, %v1736
        %v1738 = vadd.f32 %v1732, %v1737
        %v1739 = vadd.f32 %v1733, %v1737
        %v1740 = vsel %vm482, %v1738, 0.0
        %1741 = vadd.xlane.f32.xlu0 %v1740
        %v1742 = vpop.xlane.xlu0 %1741
        %v1743 = vsel %vm482, %v1739, 0.0
        %1744 = vadd.xlane.f32.xlu0 %v1743
        %v1745 = vpop.xlane.xlu0 %1744
        %v1746 = vmul.f32 %v1742, %v489
        %v1747 = vmul.f32 %v1745, %v489
        %v1748 = vsub.f32 %v1738, %v1746
        %v1749 = vsub.f32 %v1739, %v1747
        %v1750 = vmul.f32 %v1748, %v1748
        %v1751 = vmul.f32 %v1749, %v1749
        %v1752 = vsel %vm482, %v1750, 0.0
        %1753 = vadd.xlane.f32.xlu0 %v1752
        %v1754 = vpop.xlane.xlu0 %1753
        %v1755 = vsel %vm482, %v1751, 0.0
        %1756 = vadd.xlane.f32.xlu0 %v1755
        %v1757 = vpop.xlane.xlu0 %1756
        %v1758 = vmul.f32 %v1754, %v489
        %v1759 = vmul.f32 %v1757, %v489
        %v1760 = vadd.f32 %v1758, 1e-05
        %v1761 = vadd.f32 %v1759, 1e-05
        %v1762 = vrsqrt.pop %v1760
        %v1763 = vrsqrt.pop %v1761
        %v1764 = vmul.f32 %v1748, %v1762
        %v1765 = vmul.f32 %v1749, %v1763
        %v1766 = vlaneseq
        %v1767 = vshrl.u32 %v1766, 7
        %v1768 = vsub.s32 4, %v1767
        %v1769 = vrot.slane %v385, %v1768
        %v1770 = vmul.f32 %v1764, %v1769
        %v1771 = vmul.f32 %v1765, %v1769
        %v1772 = vlaneseq
        %v1773 = vshrl.u32 %v1772, 7
        %v1774 = vsub.s32 5, %v1773
        %v1775 = vrot.slane %v385, %v1774
        %v1776 = vadd.f32 %v1770, %v1775
        %v1777 = vadd.f32 %v1771, %v1775
        %v1778 = vpack.c.bf16 %v1777, %v1776
        %v1779 = vld [vmem:[%s5] sm:$0xf]
        %v1780 = vld [vmem:[%s5 + $0x4] sm:$0xf]
        %v1781 = vld [vmem:[%s5 + $0x8] sm:$0xf]
        %v1782 = vld [vmem:[%s5 + $0xc] sm:$0xf]
        %v1783 = vlaneseq
        %v1784 = vshrl.u32 %v1783, 7
        %v1785 = vsub.s32 4, %v1784
        %v1786 = vrot.slane %v388, %v1785
        %v1791 = vunpack.c.l.b16 %v1779
        %v1792 = vunpack.c.l.b16 %v1780
        %v1793 = vunpack.c.l.b16 %v1781
        %v1794 = vunpack.c.l.b16 %v1782
        %v1795 = vpack.c.b16 %v1792, %v1791
        %v1796 = vpack.c.b16 %v1794, %v1793
        %v1800 = vsel %vm482, %v1778, 0
        %1802 = vmatprep.subr.bf16.mxu0 0
        %1803 = vmatpush1.bf16.msra.mxu0 %v1795
        %1804 = vmatprep.subr.bf16.mxu0 0
        %1805 = vmatpush1.bf16.msra.mxu0 %v1796
        %1806 = vmatprep.subr.bf16.mxu0 0
        %1807 = vmatpush1.bf16.msra.mxu0 0
        %1808 = vmatprep.subr.bf16.mxu0 0
        %1809 = vmatpush1.bf16.msra.mxu0 0
        %1810 = vmatprep.subr.bf16.mxu0 0
        %1811 = vmatpush1.bf16.msra.mxu0 0
        %1812 = vmatprep.subr.bf16.mxu0 0
        %1813 = vmatpush1.bf16.msra.mxu0 0
        %1814 = vmatprep.subr.bf16.mxu0 0
        %1815 = vmatpush1.bf16.msra.mxu0 0
        %1816 = vmatprep.subr.bf16.mxu0 0
        %1817 = vmatpush1.bf16.msra.mxu0 0
        %1818 = vmatprep.subr.bf16.mxu0 0
        %1819 = vmatpush1.bf16.msra.mxu0 0
        %1820 = vmatprep.subr.bf16.mxu0 0
        %1821 = vmatpush1.bf16.msra.mxu0 0
        %1822 = vmatprep.subr.bf16.mxu0 0
        %1823 = vmatpush1.bf16.msra.mxu0 0
        %1824 = vmatprep.subr.bf16.mxu0 0
        %1825 = vmatpush1.bf16.msra.mxu0 0
        %1826 = vmatprep.subr.bf16.mxu0 0
        %1827 = vmatpush1.bf16.msra.mxu0 0
        %1828 = vmatprep.subr.bf16.mxu0 0
        %1829 = vmatpush1.bf16.msra.mxu0 0
        %1830 = vmatprep.subr.bf16.mxu0 0
        %1831 = vmatpush1.bf16.msra.mxu0 0
        %1832 = vmatprep.subr.bf16.mxu0 0
        %1833 = vmatpush1.bf16.msra.mxu0 0
        %1834 = vmatprep.mubr.bf16.mxu0 0
        %1835 = vmatmul.mubr.bf16.gmra.mrb[0].mxu0 %v1800
        %v1836 = vpop.f32.mrb[0].mxu0
        %v1837 = vadd.f32 %v1786, %v1836
        %v1838 = vpop.f32.mrb[0].mxu0
        %v1839 = vpop.f32.mrb[0].mxu0
        %v1840 = vadd.f32 %v1786, %v1839
        %v1841 = vpop.f32.mrb[0].mxu0
        %1842 = vdwg.mxu0
        %v1843 = vxor.u32 %v1837, 2147483648
        %v1844 = vxor.u32 %v1840, 2147483648
        %v1845 = vmul.f32 %v1843, 1.442695
        %v1846 = vpow.pop %v1845
        %v1847 = vmul.f32 %v1844, 1.442695
        %v1848 = vpow.pop %v1847
        %v1849 = vadd.f32 %v1846, 1.0
        %v1850 = vadd.f32 %v1848, 1.0
        %v1851 = vrcp.pop %v1849
        %v1852 = vmul.f32 1.0, %v1851
        %v1853 = vrcp.pop %v1850
        %v1854 = vmul.f32 1.0, %v1853
        %v1855 = vmul.f32 %v1837, %v1852
        %v1856 = vmul.f32 %v1840, %v1854
        %v1857 = vpack.c.bf16 %v1856, %v1855
        %v1858 = vld [vmem:[%s6] sm:$0xf]
        %v1859 = vld [vmem:[%s6 + $0x4] sm:$0xf]
        %v1860 = vld [vmem:[%s6 + $0x8] sm:$0xf]
        %v1861 = vld [vmem:[%s6 + $0xc] sm:$0xf]
        %v1862 = vld [vmem:[%s6 + $0x10] sm:$0xf]
        %v1863 = vld [vmem:[%s6 + $0x14] sm:$0xf]
        %v1864 = vld [vmem:[%s6 + $0x18] sm:$0xf]
        %v1865 = vld [vmem:[%s6 + $0x1c] sm:$0xf]
        %v1874 = vunpack.c.l.b16 %v1858
        %v1875 = vunpack.c.l.b16 %v1859
        %v1876 = vunpack.c.l.b16 %v1860
        %v1877 = vunpack.c.l.b16 %v1861
        %v1878 = vunpack.c.l.b16 %v1862
        %v1879 = vunpack.c.l.b16 %v1863
        %v1880 = vunpack.c.l.b16 %v1864
        %v1881 = vunpack.c.l.b16 %v1865
        %v1882 = vpack.c.b16 %v1875, %v1874
        %v1883 = vpack.c.b16 %v1877, %v1876
        %v1884 = vpack.c.b16 %v1879, %v1878
        %v1885 = vpack.c.b16 %v1881, %v1880
        %v1891 = vsel %vm433, %v1857, 0
        %1893 = vmatprep.subr.bf16.mxu0 0
        %1894 = vmatpush1.bf16.msra.mxu0 %v1882
        %1895 = vmatprep.subr.bf16.mxu0 0
        %1896 = vmatpush1.bf16.msra.mxu0 %v1883
        %1897 = vmatprep.subr.bf16.mxu0 0
        %1898 = vmatpush1.bf16.msra.mxu0 %v1884
        %1899 = vmatprep.subr.bf16.mxu0 0
        %1900 = vmatpush1.bf16.msra.mxu0 %v1885
        %1901 = vmatprep.subr.bf16.mxu0 0
        %1902 = vmatpush1.bf16.msra.mxu0 0
        %1903 = vmatprep.subr.bf16.mxu0 0
        %1904 = vmatpush1.bf16.msra.mxu0 0
        %1905 = vmatprep.subr.bf16.mxu0 0
        %1906 = vmatpush1.bf16.msra.mxu0 0
        %1907 = vmatprep.subr.bf16.mxu0 0
        %1908 = vmatpush1.bf16.msra.mxu0 0
        %1909 = vmatprep.subr.bf16.mxu0 0
        %1910 = vmatpush1.bf16.msra.mxu0 0
        %1911 = vmatprep.subr.bf16.mxu0 0
        %1912 = vmatpush1.bf16.msra.mxu0 0
        %1913 = vmatprep.subr.bf16.mxu0 0
        %1914 = vmatpush1.bf16.msra.mxu0 0
        %1915 = vmatprep.subr.bf16.mxu0 0
        %1916 = vmatpush1.bf16.msra.mxu0 0
        %1917 = vmatprep.subr.bf16.mxu0 0
        %1918 = vmatpush1.bf16.msra.mxu0 0
        %1919 = vmatprep.subr.bf16.mxu0 0
        %1920 = vmatpush1.bf16.msra.mxu0 0
        %1921 = vmatprep.subr.bf16.mxu0 0
        %1922 = vmatpush1.bf16.msra.mxu0 0
        %1923 = vmatprep.subr.bf16.mxu0 0
        %1924 = vmatpush1.bf16.msra.mxu0 0
        %1925 = vmatprep.mubr.bf16.mxu0 0
        %1926 = vmatmul.mubr.bf16.gmra.mrb[0].mxu0 %v1891
        %v1927 = vpop.f32.mrb[0].mxu0
        %v1928 = vadd.f32 0.0, %v1927
        %v1929 = vpop.f32.mrb[0].mxu0
        %v1930 = vpop.f32.mrb[0].mxu0
        %v1931 = vadd.f32 0.0, %v1930
        %v1932 = vpop.f32.mrb[0].mxu0
        %1933 = vdwg.mxu0
        %v1934 = vadd.f32 %v1738, %v1928
        %v1935 = vadd.f32 %v1739, %v1931
        %v1936 = vlaneseq
        %v1937 = vshrl.u32 %v1936, 7
        %v1938 = vsub.s32 7, %v1937
        %v1939 = vrot.slane %v388, %v1938
        %v1940 = vadd.f32 %v1934, %v1939
        %v1941 = vadd.f32 %v1935, %v1939
        %v1942 = vsel %vm482, %v1940, 0.0
        %1943 = vadd.xlane.f32.xlu0 %v1942
        %v1944 = vpop.xlane.xlu0 %1943
        %v1945 = vsel %vm482, %v1941, 0.0
        %1946 = vadd.xlane.f32.xlu0 %v1945
        %v1947 = vpop.xlane.xlu0 %1946
        %v1948 = vmul.f32 %v1944, %v489
        %v1949 = vmul.f32 %v1947, %v489
        %v1950 = vsub.f32 %v1940, %v1948
        %v1951 = vsub.f32 %v1941, %v1949
        %v1952 = vmul.f32 %v1950, %v1950
        %v1953 = vmul.f32 %v1951, %v1951
        %v1954 = vsel %vm482, %v1952, 0.0
        %1955 = vadd.xlane.f32.xlu0 %v1954
        %v1956 = vpop.xlane.xlu0 %1955
        %v1957 = vsel %vm482, %v1953, 0.0
        %1958 = vadd.xlane.f32.xlu0 %v1957
        %v1959 = vpop.xlane.xlu0 %1958
        %v1960 = vmul.f32 %v1956, %v489
        %v1961 = vmul.f32 %v1959, %v489
        %v1962 = vadd.f32 %v1960, 1e-05
        %v1963 = vadd.f32 %v1961, 1e-05
        %v1964 = vrsqrt.pop %v1962
        %v1965 = vrsqrt.pop %v1963
        %v1966 = vmul.f32 %v1950, %v1964
        %v1967 = vmul.f32 %v1951, %v1965
        %v1968 = vlaneseq
        %v1969 = vshrl.u32 %v1968, 7
        %v1970 = vsub.s32 6, %v1969
        %v1971 = vrot.slane %v385, %v1970
        %v1972 = vmul.f32 %v1966, %v1971
        %v1973 = vmul.f32 %v1967, %v1971
        %v1974 = vlaneseq
        %v1975 = vshrl.u32 %v1974, 7
        %v1976 = vsub.s32 7, %v1975
        %v1977 = vrot.slane %v385, %v1976
        %v1978 = vadd.f32 %v1972, %v1977
        %v1979 = vadd.f32 %v1973, %v1977
        %v1980 = vpack.c.bf16 %v1979, %v1978
        %s1981 = scalar_lea.vmem %s3, 16
        %v1982 = vld [vmem:[%s1981] sm:$0xf]
        %v1983 = vld [vmem:[%s1981 + $0x4] sm:$0xf]
        %v1984 = vld [vmem:[%s1981 + $0x8] sm:$0xf]
        %v1985 = vld [vmem:[%s1981 + $0xc] sm:$0xf]
        %v1986 = vlaneseq
        %v1987 = vshrl.u32 %v1986, 7
        %v1988 = vsub.s32 5, %v1987
        %v1989 = vrot.slane %v387, %v1988
        %v1994 = vunpack.c.l.b16 %v1982
        %v1995 = vunpack.c.l.b16 %v1983
        %v1996 = vunpack.c.l.b16 %v1984
        %v1997 = vunpack.c.l.b16 %v1985
        %v1998 = vpack.c.b16 %v1995, %v1994
        %v1999 = vpack.c.b16 %v1997, %v1996
        %v2003 = vsel %vm482, %v1980, 0
        %2005 = vmatprep.subr.bf16.mxu0 0
        %2006 = vmatpush1.bf16.msra.mxu0 %v1998
        %2007 = vmatprep.subr.bf16.mxu0 0
        %2008 = vmatpush1.bf16.msra.mxu0 %v1999
        %2009 = vmatprep.subr.bf16.mxu0 0
        %2010 = vmatpush1.bf16.msra.mxu0 0
        %2011 = vmatprep.subr.bf16.mxu0 0
        %2012 = vmatpush1.bf16.msra.mxu0 0
        %2013 = vmatprep.subr.bf16.mxu0 0
        %2014 = vmatpush1.bf16.msra.mxu0 0
        %2015 = vmatprep.subr.bf16.mxu0 0
        %2016 = vmatpush1.bf16.msra.mxu0 0
        %2017 = vmatprep.subr.bf16.mxu0 0
        %2018 = vmatpush1.bf16.msra.mxu0 0
        %2019 = vmatprep.subr.bf16.mxu0 0
        %2020 = vmatpush1.bf16.msra.mxu0 0
        %2021 = vmatprep.subr.bf16.mxu0 0
        %2022 = vmatpush1.bf16.msra.mxu0 0
        %2023 = vmatprep.subr.bf16.mxu0 0
        %2024 = vmatpush1.bf16.msra.mxu0 0
        %2025 = vmatprep.subr.bf16.mxu0 0
        %2026 = vmatpush1.bf16.msra.mxu0 0
        %2027 = vmatprep.subr.bf16.mxu0 0
        %2028 = vmatpush1.bf16.msra.mxu0 0
        %2029 = vmatprep.subr.bf16.mxu0 0
        %2030 = vmatpush1.bf16.msra.mxu0 0
        %2031 = vmatprep.subr.bf16.mxu0 0
        %2032 = vmatpush1.bf16.msra.mxu0 0
        %2033 = vmatprep.subr.bf16.mxu0 0
        %2034 = vmatpush1.bf16.msra.mxu0 0
        %2035 = vmatprep.subr.bf16.mxu0 0
        %2036 = vmatpush1.bf16.msra.mxu0 0
        %2037 = vmatprep.mubr.bf16.mxu0 0
        %2038 = vmatmul.mubr.bf16.gmra.mrb[0].mxu0 %v2003
        %v2039 = vpop.f32.mrb[0].mxu0
        %v2040 = vadd.f32 %v1989, %v2039
        %v2041 = vpop.f32.mrb[0].mxu0
        %v2042 = vpop.f32.mrb[0].mxu0
        %v2043 = vadd.f32 %v1989, %v2042
        %v2044 = vpop.f32.mrb[0].mxu0
        %2045 = vdwg.mxu0
        %v2046 = vpack.c.bf16 %v2043, %v2040
        %v2047 = vmul.f32 %v2040, %v591
        %v2048 = vmul.f32 %v2043, %v591
        %v2049 = vpack.c.bf16 %v2048, %v2047
        %v2050 = vmul.f32 %v2040, %v597
        %v2051 = vmul.f32 %v2043, %v597
        %v2052 = vpack.c.bf16 %v2051, %v2050
        %2054 = vrot.lane.b32.xlu0 %v2046, 96
        %v2055 = vpop.permute.xlu0 %2054
        %v2057 = vsel %vm482, %v2049, 0
        %v2060 = vsel %vm482, %v2055, 0
        %2062 = vmatprep.subr.bf16.mxu0 0
        %2063 = vmatpush1.bf16.xpose.msra.mxu0 %v2060
        %2064 = vmatprep.subr.bf16.mxu0 0
        %2065 = vmatpush1.bf16.xpose.msra.mxu0 0
        %2066 = vmatprep.subr.bf16.mxu0 0
        %2067 = vmatpush1.bf16.xpose.msra.mxu0 0
        %2068 = vmatprep.subr.bf16.mxu0 0
        %2069 = vmatpush1.bf16.xpose.msra.mxu0 0
        %2070 = vmatprep.subr.bf16.mxu0 0
        %2071 = vmatpush1.bf16.xpose.msra.mxu0 0
        %2072 = vmatprep.subr.bf16.mxu0 0
        %2073 = vmatpush1.bf16.xpose.msra.mxu0 0
        %2074 = vmatprep.subr.bf16.mxu0 0
        %2075 = vmatpush1.bf16.xpose.msra.mxu0 0
        %2076 = vmatprep.subr.bf16.mxu0 0
        %2077 = vmatpush1.bf16.xpose.msra.mxu0 0
        %2078 = vmatprep.subr.bf16.mxu0 0
        %2079 = vmatpush1.bf16.xpose.msra.mxu0 0
        %2080 = vmatprep.subr.bf16.mxu0 0
        %2081 = vmatpush1.bf16.xpose.msra.mxu0 0
        %2082 = vmatprep.subr.bf16.mxu0 0
        %2083 = vmatpush1.bf16.xpose.msra.mxu0 0
        %2084 = vmatprep.subr.bf16.mxu0 0
        %2085 = vmatpush1.bf16.xpose.msra.mxu0 0
        %2086 = vmatprep.subr.bf16.mxu0 0
        %2087 = vmatpush1.bf16.xpose.msra.mxu0 0
        %2088 = vmatprep.subr.bf16.mxu0 0
        %2089 = vmatpush1.bf16.xpose.msra.mxu0 0
        %2090 = vmatprep.subr.bf16.mxu0 0
        %2091 = vmatpush1.bf16.xpose.msra.mxu0 0
        %2092 = vmatprep.subr.bf16.mxu0 0
        %2093 = vmatpush1.bf16.xpose.msra.mxu0 0
        %2094 = vmatprep.mubr.bf16.mxu0 0
        %2095 = vmatmul.mubr.bf16.gmra.mrb[0].mxu0 %v2057
        %v2096 = vpop.f32.mrb[0].mxu0
        %v2097 = vadd.f32 0.0, %v2096
        %v2098 = vpop.f32.mrb[0].mxu0
        %v2099 = vpop.f32.mrb[0].mxu0
        %v2100 = vadd.f32 0.0, %v2099
        %v2101 = vpop.f32.mrb[0].mxu0
        %2102 = vdwg.mxu0
        %v2103 = vmul.f32 %v2097, 0.5
        %v2104 = vmul.f32 %v2100, 0.5
        %v2105 = vadd.f32 %v2103, %v391
        %v2106 = vadd.f32 %v2104, %v392
        %v2107 = vsel %vm656, %v2105, -inf
        %2108 = vmax.xlane.f32.xlu0 %v2107
        %v2109 = vpop.xlane.xlu0 %2108
        %v2110 = vsel %vm656, %v2106, -inf
        %2111 = vmax.xlane.f32.xlu0 %v2110
        %v2112 = vpop.xlane.xlu0 %2111
        %v2113 = vsub.f32 %v2105, %v2109
        %v2114 = vsub.f32 %v2106, %v2112
        %v2115 = vmul.f32 %v2113, 1.442695
        %v2116 = vpow.pop %v2115
        %v2117 = vmul.f32 %v2114, 1.442695
        %v2118 = vpow.pop %v2117
        %v2119 = vsel %vm656, %v2116, 0.0
        %2120 = vadd.xlane.f32.xlu0 %v2119
        %v2121 = vpop.xlane.xlu0 %2120
        %v2122 = vsel %vm656, %v2118, 0.0
        %2123 = vadd.xlane.f32.xlu0 %v2122
        %v2124 = vpop.xlane.xlu0 %2123
        %v2125 = vrcp.pop %v2121
        %v2126 = vmul.f32 %v2116, %v2125
        %v2127 = vrcp.pop %v2124
        %v2128 = vmul.f32 %v2118, %v2127
        %v2129 = vpack.c.bf16 %v2128, %v2126
        %v2130 = vmul.f32 %v2040, %v683
        %v2131 = vmul.f32 %v2043, %v683
        %v2132 = vpack.c.bf16 %v2131, %v2130
        %v2133 = vmul.f32 %v2040, %v689
        %v2134 = vmul.f32 %v2043, %v689
        %v2135 = vpack.c.bf16 %v2134, %v2133
        %v2137 = vsel %vm482, %v2132, 0
        %2139 = vmatprep.subr.bf16.mxu0 0
        %2140 = vmatpush1.bf16.xpose.msra.mxu0 %v2060
        %2141 = vmatprep.subr.bf16.mxu0 0
        %2142 = vmatpush1.bf16.xpose.msra.mxu0 0
        %2143 = vmatprep.subr.bf16.mxu0 0
        %2144 = vmatpush1.bf16.xpose.msra.mxu0 0
        %2145 = vmatprep.subr.bf16.mxu0 0
        %2146 = vmatpush1.bf16.xpose.msra.mxu0 0
        %2147 = vmatprep.subr.bf16.mxu0 0
        %2148 = vmatpush1.bf16.xpose.msra.mxu0 0
        %2149 = vmatprep.subr.bf16.mxu0 0
        %2150 = vmatpush1.bf16.xpose.msra.mxu0 0
        %2151 = vmatprep.subr.bf16.mxu0 0
        %2152 = vmatpush1.bf16.xpose.msra.mxu0 0
        %2153 = vmatprep.subr.bf16.mxu0 0
        %2154 = vmatpush1.bf16.xpose.msra.mxu0 0
        %2155 = vmatprep.subr.bf16.mxu0 0
        %2156 = vmatpush1.bf16.xpose.msra.mxu0 0
        %2157 = vmatprep.subr.bf16.mxu0 0
        %2158 = vmatpush1.bf16.xpose.msra.mxu0 0
        %2159 = vmatprep.subr.bf16.mxu0 0
        %2160 = vmatpush1.bf16.xpose.msra.mxu0 0
        %2161 = vmatprep.subr.bf16.mxu0 0
        %2162 = vmatpush1.bf16.xpose.msra.mxu0 0
        %2163 = vmatprep.subr.bf16.mxu0 0
        %2164 = vmatpush1.bf16.xpose.msra.mxu0 0
        %2165 = vmatprep.subr.bf16.mxu0 0
        %2166 = vmatpush1.bf16.xpose.msra.mxu0 0
        %2167 = vmatprep.subr.bf16.mxu0 0
        %2168 = vmatpush1.bf16.xpose.msra.mxu0 0
        %2169 = vmatprep.subr.bf16.mxu0 0
        %2170 = vmatpush1.bf16.xpose.msra.mxu0 0
        %2171 = vmatprep.mubr.bf16.mxu0 0
        %2172 = vmatmul.mubr.bf16.gmra.mrb[0].mxu0 %v2137
        %v2173 = vpop.f32.mrb[0].mxu0
        %v2174 = vadd.f32 0.0, %v2173
        %v2175 = vpop.f32.mrb[0].mxu0
        %v2176 = vpop.f32.mrb[0].mxu0
        %v2177 = vadd.f32 0.0, %v2176
        %v2178 = vpop.f32.mrb[0].mxu0
        %2179 = vdwg.mxu0
        %v2180 = vmul.f32 %v2174, 0.5
        %v2181 = vmul.f32 %v2177, 0.5
        %v2182 = vadd.f32 %v2180, %v391
        %v2183 = vadd.f32 %v2181, %v392
        %v2184 = vsel %vm656, %v2182, -inf
        %2185 = vmax.xlane.f32.xlu0 %v2184
        %v2186 = vpop.xlane.xlu0 %2185
        %v2187 = vsel %vm656, %v2183, -inf
        %2188 = vmax.xlane.f32.xlu0 %v2187
        %v2189 = vpop.xlane.xlu0 %2188
        %v2190 = vsub.f32 %v2182, %v2186
        %v2191 = vsub.f32 %v2183, %v2189
        %v2192 = vmul.f32 %v2190, 1.442695
        %v2193 = vpow.pop %v2192
        %v2194 = vmul.f32 %v2191, 1.442695
        %v2195 = vpow.pop %v2194
        %v2196 = vsel %vm656, %v2193, 0.0
        %2197 = vadd.xlane.f32.xlu0 %v2196
        %v2198 = vpop.xlane.xlu0 %2197
        %v2199 = vsel %vm656, %v2195, 0.0
        %2200 = vadd.xlane.f32.xlu0 %v2199
        %v2201 = vpop.xlane.xlu0 %2200
        %v2202 = vrcp.pop %v2198
        %v2203 = vmul.f32 %v2193, %v2202
        %v2204 = vrcp.pop %v2201
        %v2205 = vmul.f32 %v2195, %v2204
        %v2206 = vpack.c.bf16 %v2205, %v2203
        %2208 = vrot.lane.b32.xlu0 %v2135, 64
        %v2209 = vpop.permute.xlu0 %2208
        %v2212 = vsel %vm656, %v2206, 0
        %2214 = vmatprep.subr.bf16.mxu0 0
        %2215 = vmatpush1.bf16.msra.mxu0 %v2209
        %2216 = vmatprep.subr.bf16.mxu0 0
        %2217 = vmatpush1.bf16.msra.mxu0 0
        %2218 = vmatprep.subr.bf16.mxu0 0
        %2219 = vmatpush1.bf16.msra.mxu0 0
        %2220 = vmatprep.subr.bf16.mxu0 0
        %2221 = vmatpush1.bf16.msra.mxu0 0
        %2222 = vmatprep.subr.bf16.mxu0 0
        %2223 = vmatpush1.bf16.msra.mxu0 0
        %2224 = vmatprep.subr.bf16.mxu0 0
        %2225 = vmatpush1.bf16.msra.mxu0 0
        %2226 = vmatprep.subr.bf16.mxu0 0
        %2227 = vmatpush1.bf16.msra.mxu0 0
        %2228 = vmatprep.subr.bf16.mxu0 0
        %2229 = vmatpush1.bf16.msra.mxu0 0
        %2230 = vmatprep.subr.bf16.mxu0 0
        %2231 = vmatpush1.bf16.msra.mxu0 0
        %2232 = vmatprep.subr.bf16.mxu0 0
        %2233 = vmatpush1.bf16.msra.mxu0 0
        %2234 = vmatprep.subr.bf16.mxu0 0
        %2235 = vmatpush1.bf16.msra.mxu0 0
        %2236 = vmatprep.subr.bf16.mxu0 0
        %2237 = vmatpush1.bf16.msra.mxu0 0
        %2238 = vmatprep.subr.bf16.mxu0 0
        %2239 = vmatpush1.bf16.msra.mxu0 0
        %2240 = vmatprep.subr.bf16.mxu0 0
        %2241 = vmatpush1.bf16.msra.mxu0 0
        %2242 = vmatprep.subr.bf16.mxu0 0
        %2243 = vmatpush1.bf16.msra.mxu0 0
        %2244 = vmatprep.subr.bf16.mxu0 0
        %2245 = vmatpush1.bf16.msra.mxu0 0
        %2246 = vmatprep.mubr.bf16.mxu0 0
        %2247 = vmatmul.mubr.bf16.gmra.mrb[0].mxu0 %v2212
        %v2248 = vpop.f32.mrb[0].mxu0
        %v2249 = vadd.f32 0.0, %v2248
        %v2250 = vpop.f32.mrb[0].mxu0
        %v2251 = vpop.f32.mrb[0].mxu0
        %v2252 = vadd.f32 0.0, %v2251
        %v2253 = vpop.f32.mrb[0].mxu0
        %2254 = vdwg.mxu0
        %2256 = vrot.lane.b32.xlu0 %v2052, 64
        %v2257 = vpop.permute.xlu0 %2256
        %v2260 = vsel %vm656, %v2129, 0
        %2262 = vmatprep.subr.bf16.mxu0 0
        %2263 = vmatpush1.bf16.msra.mxu0 %v2257
        %2264 = vmatprep.subr.bf16.mxu0 0
        %2265 = vmatpush1.bf16.msra.mxu0 0
        %2266 = vmatprep.subr.bf16.mxu0 0
        %2267 = vmatpush1.bf16.msra.mxu0 0
        %2268 = vmatprep.subr.bf16.mxu0 0
        %2269 = vmatpush1.bf16.msra.mxu0 0
        %2270 = vmatprep.subr.bf16.mxu0 0
        %2271 = vmatpush1.bf16.msra.mxu0 0
        %2272 = vmatprep.subr.bf16.mxu0 0
        %2273 = vmatpush1.bf16.msra.mxu0 0
        %2274 = vmatprep.subr.bf16.mxu0 0
        %2275 = vmatpush1.bf16.msra.mxu0 0
        %2276 = vmatprep.subr.bf16.mxu0 0
        %2277 = vmatpush1.bf16.msra.mxu0 0
        %2278 = vmatprep.subr.bf16.mxu0 0
        %2279 = vmatpush1.bf16.msra.mxu0 0
        %2280 = vmatprep.subr.bf16.mxu0 0
        %2281 = vmatpush1.bf16.msra.mxu0 0
        %2282 = vmatprep.subr.bf16.mxu0 0
        %2283 = vmatpush1.bf16.msra.mxu0 0
        %2284 = vmatprep.subr.bf16.mxu0 0
        %2285 = vmatpush1.bf16.msra.mxu0 0
        %2286 = vmatprep.subr.bf16.mxu0 0
        %2287 = vmatpush1.bf16.msra.mxu0 0
        %2288 = vmatprep.subr.bf16.mxu0 0
        %2289 = vmatpush1.bf16.msra.mxu0 0
        %2290 = vmatprep.subr.bf16.mxu0 0
        %2291 = vmatpush1.bf16.msra.mxu0 0
        %2292 = vmatprep.subr.bf16.mxu0 0
        %2293 = vmatpush1.bf16.msra.mxu0 0
        %2294 = vmatprep.mubr.bf16.mxu0 0
        %2295 = vmatmul.mubr.bf16.gmra.mrb[0].mxu0 %v2260
        %v2296 = vpop.f32.mrb[0].mxu0
        %v2297 = vadd.f32 %v2249, %v2296
        %v2298 = vpop.f32.mrb[0].mxu0
        %v2299 = vpop.f32.mrb[0].mxu0
        %v2300 = vadd.f32 %v2252, %v2299
        %v2301 = vpop.f32.mrb[0].mxu0
        %2302 = vdwg.mxu0
        %v2303 = vmul.f32 %v2040, %v864
        %v2304 = vmul.f32 %v2043, %v864
        %v2305 = vpack.c.bf16 %v2304, %v2303
        %v2306 = vmul.f32 %v2040, %v870
        %v2307 = vmul.f32 %v2043, %v870
        %v2308 = vpack.c.bf16 %v2307, %v2306
        %v2310 = vsel %vm482, %v2305, 0
        %2312 = vmatprep.subr.bf16.mxu0 0
        %2313 = vmatpush1.bf16.xpose.msra.mxu0 %v2060
        %2314 = vmatprep.subr.bf16.mxu0 0
        %2315 = vmatpush1.bf16.xpose.msra.mxu0 0
        %2316 = vmatprep.subr.bf16.mxu0 0
        %2317 = vmatpush1.bf16.xpose.msra.mxu0 0
        %2318 = vmatprep.subr.bf16.mxu0 0
        %2319 = vmatpush1.bf16.xpose.msra.mxu0 0
        %2320 = vmatprep.subr.bf16.mxu0 0
        %2321 = vmatpush1.bf16.xpose.msra.mxu0 0
        %2322 = vmatprep.subr.bf16.mxu0 0
        %2323 = vmatpush1.bf16.xpose.msra.mxu0 0
        %2324 = vmatprep.subr.bf16.mxu0 0
        %2325 = vmatpush1.bf16.xpose.msra.mxu0 0
        %2326 = vmatprep.subr.bf16.mxu0 0
        %2327 = vmatpush1.bf16.xpose.msra.mxu0 0
        %2328 = vmatprep.subr.bf16.mxu0 0
        %2329 = vmatpush1.bf16.xpose.msra.mxu0 0
        %2330 = vmatprep.subr.bf16.mxu0 0
        %2331 = vmatpush1.bf16.xpose.msra.mxu0 0
        %2332 = vmatprep.subr.bf16.mxu0 0
        %2333 = vmatpush1.bf16.xpose.msra.mxu0 0
        %2334 = vmatprep.subr.bf16.mxu0 0
        %2335 = vmatpush1.bf16.xpose.msra.mxu0 0
        %2336 = vmatprep.subr.bf16.mxu0 0
        %2337 = vmatpush1.bf16.xpose.msra.mxu0 0
        %2338 = vmatprep.subr.bf16.mxu0 0
        %2339 = vmatpush1.bf16.xpose.msra.mxu0 0
        %2340 = vmatprep.subr.bf16.mxu0 0
        %2341 = vmatpush1.bf16.xpose.msra.mxu0 0
        %2342 = vmatprep.subr.bf16.mxu0 0
        %2343 = vmatpush1.bf16.xpose.msra.mxu0 0
        %2344 = vmatprep.mubr.bf16.mxu0 0
        %2345 = vmatmul.mubr.bf16.gmra.mrb[0].mxu0 %v2310
        %v2346 = vpop.f32.mrb[0].mxu0
        %v2347 = vadd.f32 0.0, %v2346
        %v2348 = vpop.f32.mrb[0].mxu0
        %v2349 = vpop.f32.mrb[0].mxu0
        %v2350 = vadd.f32 0.0, %v2349
        %v2351 = vpop.f32.mrb[0].mxu0
        %2352 = vdwg.mxu0
        %v2353 = vmul.f32 %v2347, 0.5
        %v2354 = vmul.f32 %v2350, 0.5
        %v2355 = vadd.f32 %v2353, %v391
        %v2356 = vadd.f32 %v2354, %v392
        %v2357 = vsel %vm656, %v2355, -inf
        %2358 = vmax.xlane.f32.xlu0 %v2357
        %v2359 = vpop.xlane.xlu0 %2358
        %v2360 = vsel %vm656, %v2356, -inf
        %2361 = vmax.xlane.f32.xlu0 %v2360
        %v2362 = vpop.xlane.xlu0 %2361
        %v2363 = vsub.f32 %v2355, %v2359
        %v2364 = vsub.f32 %v2356, %v2362
        %v2365 = vmul.f32 %v2363, 1.442695
        %v2366 = vpow.pop %v2365
        %v2367 = vmul.f32 %v2364, 1.442695
        %v2368 = vpow.pop %v2367
        %v2369 = vsel %vm656, %v2366, 0.0
        %2370 = vadd.xlane.f32.xlu0 %v2369
        %v2371 = vpop.xlane.xlu0 %2370
        %v2372 = vsel %vm656, %v2368, 0.0
        %2373 = vadd.xlane.f32.xlu0 %v2372
        %v2374 = vpop.xlane.xlu0 %2373
        %v2375 = vrcp.pop %v2371
        %v2376 = vmul.f32 %v2366, %v2375
        %v2377 = vrcp.pop %v2374
        %v2378 = vmul.f32 %v2368, %v2377
        %v2379 = vpack.c.bf16 %v2378, %v2376
        %2381 = vrot.lane.b32.xlu0 %v2308, 64
        %v2382 = vpop.permute.xlu0 %2381
        %v2385 = vsel %vm656, %v2379, 0
        %2387 = vmatprep.subr.bf16.mxu0 0
        %2388 = vmatpush1.bf16.msra.mxu0 %v2382
        %2389 = vmatprep.subr.bf16.mxu0 0
        %2390 = vmatpush1.bf16.msra.mxu0 0
        %2391 = vmatprep.subr.bf16.mxu0 0
        %2392 = vmatpush1.bf16.msra.mxu0 0
        %2393 = vmatprep.subr.bf16.mxu0 0
        %2394 = vmatpush1.bf16.msra.mxu0 0
        %2395 = vmatprep.subr.bf16.mxu0 0
        %2396 = vmatpush1.bf16.msra.mxu0 0
        %2397 = vmatprep.subr.bf16.mxu0 0
        %2398 = vmatpush1.bf16.msra.mxu0 0
        %2399 = vmatprep.subr.bf16.mxu0 0
        %2400 = vmatpush1.bf16.msra.mxu0 0
        %2401 = vmatprep.subr.bf16.mxu0 0
        %2402 = vmatpush1.bf16.msra.mxu0 0
        %2403 = vmatprep.subr.bf16.mxu0 0
        %2404 = vmatpush1.bf16.msra.mxu0 0
        %2405 = vmatprep.subr.bf16.mxu0 0
        %2406 = vmatpush1.bf16.msra.mxu0 0
        %2407 = vmatprep.subr.bf16.mxu0 0
        %2408 = vmatpush1.bf16.msra.mxu0 0
        %2409 = vmatprep.subr.bf16.mxu0 0
        %2410 = vmatpush1.bf16.msra.mxu0 0
        %2411 = vmatprep.subr.bf16.mxu0 0
        %2412 = vmatpush1.bf16.msra.mxu0 0
        %2413 = vmatprep.subr.bf16.mxu0 0
        %2414 = vmatpush1.bf16.msra.mxu0 0
        %2415 = vmatprep.subr.bf16.mxu0 0
        %2416 = vmatpush1.bf16.msra.mxu0 0
        %2417 = vmatprep.subr.bf16.mxu0 0
        %2418 = vmatpush1.bf16.msra.mxu0 0
        %2419 = vmatprep.mubr.bf16.mxu0 0
        %2420 = vmatmul.mubr.bf16.gmra.mrb[0].mxu0 %v2385
        %v2421 = vpop.f32.mrb[0].mxu0
        %v2422 = vadd.f32 0.0, %v2421
        %v2423 = vpop.f32.mrb[0].mxu0
        %v2424 = vpop.f32.mrb[0].mxu0
        %v2425 = vadd.f32 0.0, %v2424
        %v2426 = vpop.f32.mrb[0].mxu0
        %2427 = vdwg.mxu0
        %v2428 = vadd.f32 %v2297, %v2422
        %v2429 = vadd.f32 %v2300, %v2425
        %v2430 = vmul.f32 %v2040, %v999
        %v2431 = vmul.f32 %v2043, %v999
        %v2432 = vpack.c.bf16 %v2431, %v2430
        %v2433 = vmul.f32 %v2040, %v1005
        %v2434 = vmul.f32 %v2043, %v1005
        %v2435 = vpack.c.bf16 %v2434, %v2433
        %v2437 = vsel %vm482, %v2432, 0
        %2439 = vmatprep.subr.bf16.mxu0 0
        %2440 = vmatpush1.bf16.xpose.msra.mxu0 %v2060
        %2441 = vmatprep.subr.bf16.mxu0 0
        %2442 = vmatpush1.bf16.xpose.msra.mxu0 0
        %2443 = vmatprep.subr.bf16.mxu0 0
        %2444 = vmatpush1.bf16.xpose.msra.mxu0 0
        %2445 = vmatprep.subr.bf16.mxu0 0
        %2446 = vmatpush1.bf16.xpose.msra.mxu0 0
        %2447 = vmatprep.subr.bf16.mxu0 0
        %2448 = vmatpush1.bf16.xpose.msra.mxu0 0
        %2449 = vmatprep.subr.bf16.mxu0 0
        %2450 = vmatpush1.bf16.xpose.msra.mxu0 0
        %2451 = vmatprep.subr.bf16.mxu0 0
        %2452 = vmatpush1.bf16.xpose.msra.mxu0 0
        %2453 = vmatprep.subr.bf16.mxu0 0
        %2454 = vmatpush1.bf16.xpose.msra.mxu0 0
        %2455 = vmatprep.subr.bf16.mxu0 0
        %2456 = vmatpush1.bf16.xpose.msra.mxu0 0
        %2457 = vmatprep.subr.bf16.mxu0 0
        %2458 = vmatpush1.bf16.xpose.msra.mxu0 0
        %2459 = vmatprep.subr.bf16.mxu0 0
        %2460 = vmatpush1.bf16.xpose.msra.mxu0 0
        %2461 = vmatprep.subr.bf16.mxu0 0
        %2462 = vmatpush1.bf16.xpose.msra.mxu0 0
        %2463 = vmatprep.subr.bf16.mxu0 0
        %2464 = vmatpush1.bf16.xpose.msra.mxu0 0
        %2465 = vmatprep.subr.bf16.mxu0 0
        %2466 = vmatpush1.bf16.xpose.msra.mxu0 0
        %2467 = vmatprep.subr.bf16.mxu0 0
        %2468 = vmatpush1.bf16.xpose.msra.mxu0 0
        %2469 = vmatprep.subr.bf16.mxu0 0
        %2470 = vmatpush1.bf16.xpose.msra.mxu0 0
        %2471 = vmatprep.mubr.bf16.mxu0 0
        %2472 = vmatmul.mubr.bf16.gmra.mrb[0].mxu0 %v2437
        %v2473 = vpop.f32.mrb[0].mxu0
        %v2474 = vadd.f32 0.0, %v2473
        %v2475 = vpop.f32.mrb[0].mxu0
        %v2476 = vpop.f32.mrb[0].mxu0
        %v2477 = vadd.f32 0.0, %v2476
        %v2478 = vpop.f32.mrb[0].mxu0
        %2479 = vdwg.mxu0
        %v2480 = vmul.f32 %v2474, 0.5
        %v2481 = vmul.f32 %v2477, 0.5
        %v2482 = vadd.f32 %v2480, %v391
        %v2483 = vadd.f32 %v2481, %v392
        %v2484 = vsel %vm656, %v2482, -inf
        %2485 = vmax.xlane.f32.xlu0 %v2484
        %v2486 = vpop.xlane.xlu0 %2485
        %v2487 = vsel %vm656, %v2483, -inf
        %2488 = vmax.xlane.f32.xlu0 %v2487
        %v2489 = vpop.xlane.xlu0 %2488
        %v2490 = vsub.f32 %v2482, %v2486
        %v2491 = vsub.f32 %v2483, %v2489
        %v2492 = vmul.f32 %v2490, 1.442695
        %v2493 = vpow.pop %v2492
        %v2494 = vmul.f32 %v2491, 1.442695
        %v2495 = vpow.pop %v2494
        %v2496 = vsel %vm656, %v2493, 0.0
        %2497 = vadd.xlane.f32.xlu0 %v2496
        %v2498 = vpop.xlane.xlu0 %2497
        %v2499 = vsel %vm656, %v2495, 0.0
        %2500 = vadd.xlane.f32.xlu0 %v2499
        %v2501 = vpop.xlane.xlu0 %2500
        %v2502 = vrcp.pop %v2498
        %v2503 = vmul.f32 %v2493, %v2502
        %v2504 = vrcp.pop %v2501
        %v2505 = vmul.f32 %v2495, %v2504
        %v2506 = vpack.c.bf16 %v2505, %v2503
        %2508 = vrot.lane.b32.xlu0 %v2435, 64
        %v2509 = vpop.permute.xlu0 %2508
        %v2512 = vsel %vm656, %v2506, 0
        %2514 = vmatprep.subr.bf16.mxu0 0
        %2515 = vmatpush1.bf16.msra.mxu0 %v2509
        %2516 = vmatprep.subr.bf16.mxu0 0
        %2517 = vmatpush1.bf16.msra.mxu0 0
        %2518 = vmatprep.subr.bf16.mxu0 0
        %2519 = vmatpush1.bf16.msra.mxu0 0
        %2520 = vmatprep.subr.bf16.mxu0 0
        %2521 = vmatpush1.bf16.msra.mxu0 0
        %2522 = vmatprep.subr.bf16.mxu0 0
        %2523 = vmatpush1.bf16.msra.mxu0 0
        %2524 = vmatprep.subr.bf16.mxu0 0
        %2525 = vmatpush1.bf16.msra.mxu0 0
        %2526 = vmatprep.subr.bf16.mxu0 0
        %2527 = vmatpush1.bf16.msra.mxu0 0
        %2528 = vmatprep.subr.bf16.mxu0 0
        %2529 = vmatpush1.bf16.msra.mxu0 0
        %2530 = vmatprep.subr.bf16.mxu0 0
        %2531 = vmatpush1.bf16.msra.mxu0 0
        %2532 = vmatprep.subr.bf16.mxu0 0
        %2533 = vmatpush1.bf16.msra.mxu0 0
        %2534 = vmatprep.subr.bf16.mxu0 0
        %2535 = vmatpush1.bf16.msra.mxu0 0
        %2536 = vmatprep.subr.bf16.mxu0 0
        %2537 = vmatpush1.bf16.msra.mxu0 0
        %2538 = vmatprep.subr.bf16.mxu0 0
        %2539 = vmatpush1.bf16.msra.mxu0 0
        %2540 = vmatprep.subr.bf16.mxu0 0
        %2541 = vmatpush1.bf16.msra.mxu0 0
        %2542 = vmatprep.subr.bf16.mxu0 0
        %2543 = vmatpush1.bf16.msra.mxu0 0
        %2544 = vmatprep.subr.bf16.mxu0 0
        %2545 = vmatpush1.bf16.msra.mxu0 0
        %2546 = vmatprep.mubr.bf16.mxu0 0
        %2547 = vmatmul.mubr.bf16.gmra.mrb[0].mxu0 %v2512
        %v2548 = vpop.f32.mrb[0].mxu0
        %v2549 = vadd.f32 0.0, %v2548
        %v2550 = vpop.f32.mrb[0].mxu0
        %v2551 = vpop.f32.mrb[0].mxu0
        %v2552 = vadd.f32 0.0, %v2551
        %v2553 = vpop.f32.mrb[0].mxu0
        %2554 = vdwg.mxu0
        %v2555 = vadd.f32 %v2428, %v2549
        %v2556 = vadd.f32 %v2429, %v2552
        %v2557 = vmul.f32 %v2040, %v1134
        %v2558 = vmul.f32 %v2043, %v1134
        %v2559 = vpack.c.bf16 %v2558, %v2557
        %v2560 = vmul.f32 %v2040, %v1140
        %v2561 = vmul.f32 %v2043, %v1140
        %v2562 = vpack.c.bf16 %v2561, %v2560
        %v2564 = vsel %vm482, %v2559, 0
        %2566 = vmatprep.subr.bf16.mxu0 0
        %2567 = vmatpush1.bf16.xpose.msra.mxu0 %v2060
        %2568 = vmatprep.subr.bf16.mxu0 0
        %2569 = vmatpush1.bf16.xpose.msra.mxu0 0
        %2570 = vmatprep.subr.bf16.mxu0 0
        %2571 = vmatpush1.bf16.xpose.msra.mxu0 0
        %2572 = vmatprep.subr.bf16.mxu0 0
        %2573 = vmatpush1.bf16.xpose.msra.mxu0 0
        %2574 = vmatprep.subr.bf16.mxu0 0
        %2575 = vmatpush1.bf16.xpose.msra.mxu0 0
        %2576 = vmatprep.subr.bf16.mxu0 0
        %2577 = vmatpush1.bf16.xpose.msra.mxu0 0
        %2578 = vmatprep.subr.bf16.mxu0 0
        %2579 = vmatpush1.bf16.xpose.msra.mxu0 0
        %2580 = vmatprep.subr.bf16.mxu0 0
        %2581 = vmatpush1.bf16.xpose.msra.mxu0 0
        %2582 = vmatprep.subr.bf16.mxu0 0
        %2583 = vmatpush1.bf16.xpose.msra.mxu0 0
        %2584 = vmatprep.subr.bf16.mxu0 0
        %2585 = vmatpush1.bf16.xpose.msra.mxu0 0
        %2586 = vmatprep.subr.bf16.mxu0 0
        %2587 = vmatpush1.bf16.xpose.msra.mxu0 0
        %2588 = vmatprep.subr.bf16.mxu0 0
        %2589 = vmatpush1.bf16.xpose.msra.mxu0 0
        %2590 = vmatprep.subr.bf16.mxu0 0
        %2591 = vmatpush1.bf16.xpose.msra.mxu0 0
        %2592 = vmatprep.subr.bf16.mxu0 0
        %2593 = vmatpush1.bf16.xpose.msra.mxu0 0
        %2594 = vmatprep.subr.bf16.mxu0 0
        %2595 = vmatpush1.bf16.xpose.msra.mxu0 0
        %2596 = vmatprep.subr.bf16.mxu0 0
        %2597 = vmatpush1.bf16.xpose.msra.mxu0 0
        %2598 = vmatprep.mubr.bf16.mxu0 0
        %2599 = vmatmul.mubr.bf16.gmra.mrb[0].mxu0 %v2564
        %v2600 = vpop.f32.mrb[0].mxu0
        %v2601 = vadd.f32 0.0, %v2600
        %v2602 = vpop.f32.mrb[0].mxu0
        %v2603 = vpop.f32.mrb[0].mxu0
        %v2604 = vadd.f32 0.0, %v2603
        %v2605 = vpop.f32.mrb[0].mxu0
        %2606 = vdwg.mxu0
        %v2607 = vmul.f32 %v2601, 0.5
        %v2608 = vmul.f32 %v2604, 0.5
        %v2609 = vadd.f32 %v2607, %v391
        %v2610 = vadd.f32 %v2608, %v392
        %v2611 = vsel %vm656, %v2609, -inf
        %2612 = vmax.xlane.f32.xlu0 %v2611
        %v2613 = vpop.xlane.xlu0 %2612
        %v2614 = vsel %vm656, %v2610, -inf
        %2615 = vmax.xlane.f32.xlu0 %v2614
        %v2616 = vpop.xlane.xlu0 %2615
        %v2617 = vsub.f32 %v2609, %v2613
        %v2618 = vsub.f32 %v2610, %v2616
        %v2619 = vmul.f32 %v2617, 1.442695
        %v2620 = vpow.pop %v2619
        %v2621 = vmul.f32 %v2618, 1.442695
        %v2622 = vpow.pop %v2621
        %v2623 = vsel %vm656, %v2620, 0.0
        %2624 = vadd.xlane.f32.xlu0 %v2623
        %v2625 = vpop.xlane.xlu0 %2624
        %v2626 = vsel %vm656, %v2622, 0.0
        %2627 = vadd.xlane.f32.xlu0 %v2626
        %v2628 = vpop.xlane.xlu0 %2627
        %v2629 = vrcp.pop %v2625
        %v2630 = vmul.f32 %v2620, %v2629
        %v2631 = vrcp.pop %v2628
        %v2632 = vmul.f32 %v2622, %v2631
        %v2633 = vpack.c.bf16 %v2632, %v2630
        %2635 = vrot.lane.b32.xlu0 %v2562, 64
        %v2636 = vpop.permute.xlu0 %2635
        %v2639 = vsel %vm656, %v2633, 0
        %2641 = vmatprep.subr.bf16.mxu0 0
        %2642 = vmatpush1.bf16.msra.mxu0 %v2636
        %2643 = vmatprep.subr.bf16.mxu0 0
        %2644 = vmatpush1.bf16.msra.mxu0 0
        %2645 = vmatprep.subr.bf16.mxu0 0
        %2646 = vmatpush1.bf16.msra.mxu0 0
        %2647 = vmatprep.subr.bf16.mxu0 0
        %2648 = vmatpush1.bf16.msra.mxu0 0
        %2649 = vmatprep.subr.bf16.mxu0 0
        %2650 = vmatpush1.bf16.msra.mxu0 0
        %2651 = vmatprep.subr.bf16.mxu0 0
        %2652 = vmatpush1.bf16.msra.mxu0 0
        %2653 = vmatprep.subr.bf16.mxu0 0
        %2654 = vmatpush1.bf16.msra.mxu0 0
        %2655 = vmatprep.subr.bf16.mxu0 0
        %2656 = vmatpush1.bf16.msra.mxu0 0
        %2657 = vmatprep.subr.bf16.mxu0 0
        %2658 = vmatpush1.bf16.msra.mxu0 0
        %2659 = vmatprep.subr.bf16.mxu0 0
        %2660 = vmatpush1.bf16.msra.mxu0 0
        %2661 = vmatprep.subr.bf16.mxu0 0
        %2662 = vmatpush1.bf16.msra.mxu0 0
        %2663 = vmatprep.subr.bf16.mxu0 0
        %2664 = vmatpush1.bf16.msra.mxu0 0
        %2665 = vmatprep.subr.bf16.mxu0 0
        %2666 = vmatpush1.bf16.msra.mxu0 0
        %2667 = vmatprep.subr.bf16.mxu0 0
        %2668 = vmatpush1.bf16.msra.mxu0 0
        %2669 = vmatprep.subr.bf16.mxu0 0
        %2670 = vmatpush1.bf16.msra.mxu0 0
        %2671 = vmatprep.subr.bf16.mxu0 0
        %2672 = vmatpush1.bf16.msra.mxu0 0
        %2673 = vmatprep.mubr.bf16.mxu0 0
        %2674 = vmatmul.mubr.bf16.gmra.mrb[0].mxu0 %v2639
        %v2675 = vpop.f32.mrb[0].mxu0
        %v2676 = vadd.f32 0.0, %v2675
        %v2677 = vpop.f32.mrb[0].mxu0
        %v2678 = vpop.f32.mrb[0].mxu0
        %v2679 = vadd.f32 0.0, %v2678
        %v2680 = vpop.f32.mrb[0].mxu0
        %2681 = vdwg.mxu0
        %v2682 = vadd.f32 %v2555, %v2676
        %v2683 = vadd.f32 %v2556, %v2679
        %v2684 = vmul.f32 %v2040, %v1269
        %v2685 = vmul.f32 %v2043, %v1269
        %v2686 = vpack.c.bf16 %v2685, %v2684
        %v2687 = vmul.f32 %v2040, %v1275
        %v2688 = vmul.f32 %v2043, %v1275
        %v2689 = vpack.c.bf16 %v2688, %v2687
        %v2691 = vsel %vm482, %v2686, 0
        %2693 = vmatprep.subr.bf16.mxu0 0
        %2694 = vmatpush1.bf16.xpose.msra.mxu0 %v2060
        %2695 = vmatprep.subr.bf16.mxu0 0
        %2696 = vmatpush1.bf16.xpose.msra.mxu0 0
        %2697 = vmatprep.subr.bf16.mxu0 0
        %2698 = vmatpush1.bf16.xpose.msra.mxu0 0
        %2699 = vmatprep.subr.bf16.mxu0 0
        %2700 = vmatpush1.bf16.xpose.msra.mxu0 0
        %2701 = vmatprep.subr.bf16.mxu0 0
        %2702 = vmatpush1.bf16.xpose.msra.mxu0 0
        %2703 = vmatprep.subr.bf16.mxu0 0
        %2704 = vmatpush1.bf16.xpose.msra.mxu0 0
        %2705 = vmatprep.subr.bf16.mxu0 0
        %2706 = vmatpush1.bf16.xpose.msra.mxu0 0
        %2707 = vmatprep.subr.bf16.mxu0 0
        %2708 = vmatpush1.bf16.xpose.msra.mxu0 0
        %2709 = vmatprep.subr.bf16.mxu0 0
        %2710 = vmatpush1.bf16.xpose.msra.mxu0 0
        %2711 = vmatprep.subr.bf16.mxu0 0
        %2712 = vmatpush1.bf16.xpose.msra.mxu0 0
        %2713 = vmatprep.subr.bf16.mxu0 0
        %2714 = vmatpush1.bf16.xpose.msra.mxu0 0
        %2715 = vmatprep.subr.bf16.mxu0 0
        %2716 = vmatpush1.bf16.xpose.msra.mxu0 0
        %2717 = vmatprep.subr.bf16.mxu0 0
        %2718 = vmatpush1.bf16.xpose.msra.mxu0 0
        %2719 = vmatprep.subr.bf16.mxu0 0
        %2720 = vmatpush1.bf16.xpose.msra.mxu0 0
        %2721 = vmatprep.subr.bf16.mxu0 0
        %2722 = vmatpush1.bf16.xpose.msra.mxu0 0
        %2723 = vmatprep.subr.bf16.mxu0 0
        %2724 = vmatpush1.bf16.xpose.msra.mxu0 0
        %2725 = vmatprep.mubr.bf16.mxu0 0
        %2726 = vmatmul.mubr.bf16.gmra.mrb[0].mxu0 %v2691
        %v2727 = vpop.f32.mrb[0].mxu0
        %v2728 = vadd.f32 0.0, %v2727
        %v2729 = vpop.f32.mrb[0].mxu0
        %v2730 = vpop.f32.mrb[0].mxu0
        %v2731 = vadd.f32 0.0, %v2730
        %v2732 = vpop.f32.mrb[0].mxu0
        %2733 = vdwg.mxu0
        %v2734 = vmul.f32 %v2728, 0.5
        %v2735 = vmul.f32 %v2731, 0.5
        %v2736 = vadd.f32 %v2734, %v391
        %v2737 = vadd.f32 %v2735, %v392
        %v2738 = vsel %vm656, %v2736, -inf
        %2739 = vmax.xlane.f32.xlu0 %v2738
        %v2740 = vpop.xlane.xlu0 %2739
        %v2741 = vsel %vm656, %v2737, -inf
        %2742 = vmax.xlane.f32.xlu0 %v2741
        %v2743 = vpop.xlane.xlu0 %2742
        %v2744 = vsub.f32 %v2736, %v2740
        %v2745 = vsub.f32 %v2737, %v2743
        %v2746 = vmul.f32 %v2744, 1.442695
        %v2747 = vpow.pop %v2746
        %v2748 = vmul.f32 %v2745, 1.442695
        %v2749 = vpow.pop %v2748
        %v2750 = vsel %vm656, %v2747, 0.0
        %2751 = vadd.xlane.f32.xlu0 %v2750
        %v2752 = vpop.xlane.xlu0 %2751
        %v2753 = vsel %vm656, %v2749, 0.0
        %2754 = vadd.xlane.f32.xlu0 %v2753
        %v2755 = vpop.xlane.xlu0 %2754
        %v2756 = vrcp.pop %v2752
        %v2757 = vmul.f32 %v2747, %v2756
        %v2758 = vrcp.pop %v2755
        %v2759 = vmul.f32 %v2749, %v2758
        %v2760 = vpack.c.bf16 %v2759, %v2757
        %2762 = vrot.lane.b32.xlu0 %v2689, 64
        %v2763 = vpop.permute.xlu0 %2762
        %v2766 = vsel %vm656, %v2760, 0
        %2768 = vmatprep.subr.bf16.mxu0 0
        %2769 = vmatpush1.bf16.msra.mxu0 %v2763
        %2770 = vmatprep.subr.bf16.mxu0 0
        %2771 = vmatpush1.bf16.msra.mxu0 0
        %2772 = vmatprep.subr.bf16.mxu0 0
        %2773 = vmatpush1.bf16.msra.mxu0 0
        %2774 = vmatprep.subr.bf16.mxu0 0
        %2775 = vmatpush1.bf16.msra.mxu0 0
        %2776 = vmatprep.subr.bf16.mxu0 0
        %2777 = vmatpush1.bf16.msra.mxu0 0
        %2778 = vmatprep.subr.bf16.mxu0 0
        %2779 = vmatpush1.bf16.msra.mxu0 0
        %2780 = vmatprep.subr.bf16.mxu0 0
        %2781 = vmatpush1.bf16.msra.mxu0 0
        %2782 = vmatprep.subr.bf16.mxu0 0
        %2783 = vmatpush1.bf16.msra.mxu0 0
        %2784 = vmatprep.subr.bf16.mxu0 0
        %2785 = vmatpush1.bf16.msra.mxu0 0
        %2786 = vmatprep.subr.bf16.mxu0 0
        %2787 = vmatpush1.bf16.msra.mxu0 0
        %2788 = vmatprep.subr.bf16.mxu0 0
        %2789 = vmatpush1.bf16.msra.mxu0 0
        %2790 = vmatprep.subr.bf16.mxu0 0
        %2791 = vmatpush1.bf16.msra.mxu0 0
        %2792 = vmatprep.subr.bf16.mxu0 0
        %2793 = vmatpush1.bf16.msra.mxu0 0
        %2794 = vmatprep.subr.bf16.mxu0 0
        %2795 = vmatpush1.bf16.msra.mxu0 0
        %2796 = vmatprep.subr.bf16.mxu0 0
        %2797 = vmatpush1.bf16.msra.mxu0 0
        %2798 = vmatprep.subr.bf16.mxu0 0
        %2799 = vmatpush1.bf16.msra.mxu0 0
        %2800 = vmatprep.mubr.bf16.mxu0 0
        %2801 = vmatmul.mubr.bf16.gmra.mrb[0].mxu0 %v2766
        %v2802 = vpop.f32.mrb[0].mxu0
        %v2803 = vadd.f32 0.0, %v2802
        %v2804 = vpop.f32.mrb[0].mxu0
        %v2805 = vpop.f32.mrb[0].mxu0
        %v2806 = vadd.f32 0.0, %v2805
        %v2807 = vpop.f32.mrb[0].mxu0
        %2808 = vdwg.mxu0
        %v2809 = vadd.f32 %v2682, %v2803
        %v2810 = vadd.f32 %v2683, %v2806
        %v2811 = vmul.f32 %v2040, %v1404
        %v2812 = vmul.f32 %v2043, %v1404
        %v2813 = vpack.c.bf16 %v2812, %v2811
        %v2814 = vmul.f32 %v2040, %v1410
        %v2815 = vmul.f32 %v2043, %v1410
        %v2816 = vpack.c.bf16 %v2815, %v2814
        %v2818 = vsel %vm482, %v2813, 0
        %2820 = vmatprep.subr.bf16.mxu0 0
        %2821 = vmatpush1.bf16.xpose.msra.mxu0 %v2060
        %2822 = vmatprep.subr.bf16.mxu0 0
        %2823 = vmatpush1.bf16.xpose.msra.mxu0 0
        %2824 = vmatprep.subr.bf16.mxu0 0
        %2825 = vmatpush1.bf16.xpose.msra.mxu0 0
        %2826 = vmatprep.subr.bf16.mxu0 0
        %2827 = vmatpush1.bf16.xpose.msra.mxu0 0
        %2828 = vmatprep.subr.bf16.mxu0 0
        %2829 = vmatpush1.bf16.xpose.msra.mxu0 0
        %2830 = vmatprep.subr.bf16.mxu0 0
        %2831 = vmatpush1.bf16.xpose.msra.mxu0 0
        %2832 = vmatprep.subr.bf16.mxu0 0
        %2833 = vmatpush1.bf16.xpose.msra.mxu0 0
        %2834 = vmatprep.subr.bf16.mxu0 0
        %2835 = vmatpush1.bf16.xpose.msra.mxu0 0
        %2836 = vmatprep.subr.bf16.mxu0 0
        %2837 = vmatpush1.bf16.xpose.msra.mxu0 0
        %2838 = vmatprep.subr.bf16.mxu0 0
        %2839 = vmatpush1.bf16.xpose.msra.mxu0 0
        %2840 = vmatprep.subr.bf16.mxu0 0
        %2841 = vmatpush1.bf16.xpose.msra.mxu0 0
        %2842 = vmatprep.subr.bf16.mxu0 0
        %2843 = vmatpush1.bf16.xpose.msra.mxu0 0
        %2844 = vmatprep.subr.bf16.mxu0 0
        %2845 = vmatpush1.bf16.xpose.msra.mxu0 0
        %2846 = vmatprep.subr.bf16.mxu0 0
        %2847 = vmatpush1.bf16.xpose.msra.mxu0 0
        %2848 = vmatprep.subr.bf16.mxu0 0
        %2849 = vmatpush1.bf16.xpose.msra.mxu0 0
        %2850 = vmatprep.subr.bf16.mxu0 0
        %2851 = vmatpush1.bf16.xpose.msra.mxu0 0
        %2852 = vmatprep.mubr.bf16.mxu0 0
        %2853 = vmatmul.mubr.bf16.gmra.mrb[0].mxu0 %v2818
        %v2854 = vpop.f32.mrb[0].mxu0
        %v2855 = vadd.f32 0.0, %v2854
        %v2856 = vpop.f32.mrb[0].mxu0
        %v2857 = vpop.f32.mrb[0].mxu0
        %v2858 = vadd.f32 0.0, %v2857
        %v2859 = vpop.f32.mrb[0].mxu0
        %2860 = vdwg.mxu0
        %v2861 = vmul.f32 %v2855, 0.5
        %v2862 = vmul.f32 %v2858, 0.5
        %v2863 = vadd.f32 %v2861, %v391
        %v2864 = vadd.f32 %v2862, %v392
        %v2865 = vsel %vm656, %v2863, -inf
        %2866 = vmax.xlane.f32.xlu0 %v2865
        %v2867 = vpop.xlane.xlu0 %2866
        %v2868 = vsel %vm656, %v2864, -inf
        %2869 = vmax.xlane.f32.xlu0 %v2868
        %v2870 = vpop.xlane.xlu0 %2869
        %v2871 = vsub.f32 %v2863, %v2867
        %v2872 = vsub.f32 %v2864, %v2870
        %v2873 = vmul.f32 %v2871, 1.442695
        %v2874 = vpow.pop %v2873
        %v2875 = vmul.f32 %v2872, 1.442695
        %v2876 = vpow.pop %v2875
        %v2877 = vsel %vm656, %v2874, 0.0
        %2878 = vadd.xlane.f32.xlu0 %v2877
        %v2879 = vpop.xlane.xlu0 %2878
        %v2880 = vsel %vm656, %v2876, 0.0
        %2881 = vadd.xlane.f32.xlu0 %v2880
        %v2882 = vpop.xlane.xlu0 %2881
        %v2883 = vrcp.pop %v2879
        %v2884 = vmul.f32 %v2874, %v2883
        %v2885 = vrcp.pop %v2882
        %v2886 = vmul.f32 %v2876, %v2885
        %v2887 = vpack.c.bf16 %v2886, %v2884
        %2889 = vrot.lane.b32.xlu0 %v2816, 64
        %v2890 = vpop.permute.xlu0 %2889
        %v2893 = vsel %vm656, %v2887, 0
        %2895 = vmatprep.subr.bf16.mxu0 0
        %2896 = vmatpush1.bf16.msra.mxu0 %v2890
        %2897 = vmatprep.subr.bf16.mxu0 0
        %2898 = vmatpush1.bf16.msra.mxu0 0
        %2899 = vmatprep.subr.bf16.mxu0 0
        %2900 = vmatpush1.bf16.msra.mxu0 0
        %2901 = vmatprep.subr.bf16.mxu0 0
        %2902 = vmatpush1.bf16.msra.mxu0 0
        %2903 = vmatprep.subr.bf16.mxu0 0
        %2904 = vmatpush1.bf16.msra.mxu0 0
        %2905 = vmatprep.subr.bf16.mxu0 0
        %2906 = vmatpush1.bf16.msra.mxu0 0
        %2907 = vmatprep.subr.bf16.mxu0 0
        %2908 = vmatpush1.bf16.msra.mxu0 0
        %2909 = vmatprep.subr.bf16.mxu0 0
        %2910 = vmatpush1.bf16.msra.mxu0 0
        %2911 = vmatprep.subr.bf16.mxu0 0
        %2912 = vmatpush1.bf16.msra.mxu0 0
        %2913 = vmatprep.subr.bf16.mxu0 0
        %2914 = vmatpush1.bf16.msra.mxu0 0
        %2915 = vmatprep.subr.bf16.mxu0 0
        %2916 = vmatpush1.bf16.msra.mxu0 0
        %2917 = vmatprep.subr.bf16.mxu0 0
        %2918 = vmatpush1.bf16.msra.mxu0 0
        %2919 = vmatprep.subr.bf16.mxu0 0
        %2920 = vmatpush1.bf16.msra.mxu0 0
        %2921 = vmatprep.subr.bf16.mxu0 0
        %2922 = vmatpush1.bf16.msra.mxu0 0
        %2923 = vmatprep.subr.bf16.mxu0 0
        %2924 = vmatpush1.bf16.msra.mxu0 0
        %2925 = vmatprep.subr.bf16.mxu0 0
        %2926 = vmatpush1.bf16.msra.mxu0 0
        %2927 = vmatprep.mubr.bf16.mxu0 0
        %2928 = vmatmul.mubr.bf16.gmra.mrb[0].mxu0 %v2893
        %v2929 = vpop.f32.mrb[0].mxu0
        %v2930 = vadd.f32 0.0, %v2929
        %v2931 = vpop.f32.mrb[0].mxu0
        %v2932 = vpop.f32.mrb[0].mxu0
        %v2933 = vadd.f32 0.0, %v2932
        %v2934 = vpop.f32.mrb[0].mxu0
        %2935 = vdwg.mxu0
        %v2936 = vadd.f32 %v2809, %v2930
        %v2937 = vadd.f32 %v2810, %v2933
        %v2938 = vmul.f32 %v2040, %v1539
        %v2939 = vmul.f32 %v2043, %v1539
        %v2940 = vpack.c.bf16 %v2939, %v2938
        %v2941 = vmul.f32 %v2040, %v1545
        %v2942 = vmul.f32 %v2043, %v1545
        %v2943 = vpack.c.bf16 %v2942, %v2941
        %v2945 = vsel %vm482, %v2940, 0
        %2947 = vmatprep.subr.bf16.mxu0 0
        %2948 = vmatpush1.bf16.xpose.msra.mxu0 %v2060
        %2949 = vmatprep.subr.bf16.mxu0 0
        %2950 = vmatpush1.bf16.xpose.msra.mxu0 0
        %2951 = vmatprep.subr.bf16.mxu0 0
        %2952 = vmatpush1.bf16.xpose.msra.mxu0 0
        %2953 = vmatprep.subr.bf16.mxu0 0
        %2954 = vmatpush1.bf16.xpose.msra.mxu0 0
        %2955 = vmatprep.subr.bf16.mxu0 0
        %2956 = vmatpush1.bf16.xpose.msra.mxu0 0
        %2957 = vmatprep.subr.bf16.mxu0 0
        %2958 = vmatpush1.bf16.xpose.msra.mxu0 0
        %2959 = vmatprep.subr.bf16.mxu0 0
        %2960 = vmatpush1.bf16.xpose.msra.mxu0 0
        %2961 = vmatprep.subr.bf16.mxu0 0
        %2962 = vmatpush1.bf16.xpose.msra.mxu0 0
        %2963 = vmatprep.subr.bf16.mxu0 0
        %2964 = vmatpush1.bf16.xpose.msra.mxu0 0
        %2965 = vmatprep.subr.bf16.mxu0 0
        %2966 = vmatpush1.bf16.xpose.msra.mxu0 0
        %2967 = vmatprep.subr.bf16.mxu0 0
        %2968 = vmatpush1.bf16.xpose.msra.mxu0 0
        %2969 = vmatprep.subr.bf16.mxu0 0
        %2970 = vmatpush1.bf16.xpose.msra.mxu0 0
        %2971 = vmatprep.subr.bf16.mxu0 0
        %2972 = vmatpush1.bf16.xpose.msra.mxu0 0
        %2973 = vmatprep.subr.bf16.mxu0 0
        %2974 = vmatpush1.bf16.xpose.msra.mxu0 0
        %2975 = vmatprep.subr.bf16.mxu0 0
        %2976 = vmatpush1.bf16.xpose.msra.mxu0 0
        %2977 = vmatprep.subr.bf16.mxu0 0
        %2978 = vmatpush1.bf16.xpose.msra.mxu0 0
        %2979 = vmatprep.mubr.bf16.mxu0 0
        %2980 = vmatmul.mubr.bf16.gmra.mrb[0].mxu0 %v2945
        %v2981 = vpop.f32.mrb[0].mxu0
        %v2982 = vadd.f32 0.0, %v2981
        %v2983 = vpop.f32.mrb[0].mxu0
        %v2984 = vpop.f32.mrb[0].mxu0
        %v2985 = vadd.f32 0.0, %v2984
        %v2986 = vpop.f32.mrb[0].mxu0
        %2987 = vdwg.mxu0
        %v2988 = vmul.f32 %v2982, 0.5
        %v2989 = vmul.f32 %v2985, 0.5
        %v2990 = vadd.f32 %v2988, %v391
        %v2991 = vadd.f32 %v2989, %v392
        %v2992 = vsel %vm656, %v2990, -inf
        %2993 = vmax.xlane.f32.xlu0 %v2992
        %v2994 = vpop.xlane.xlu0 %2993
        %v2995 = vsel %vm656, %v2991, -inf
        %2996 = vmax.xlane.f32.xlu0 %v2995
        %v2997 = vpop.xlane.xlu0 %2996
        %v2998 = vsub.f32 %v2990, %v2994
        %v2999 = vsub.f32 %v2991, %v2997
        %v3000 = vmul.f32 %v2998, 1.442695
        %v3001 = vpow.pop %v3000
        %v3002 = vmul.f32 %v2999, 1.442695
        %v3003 = vpow.pop %v3002
        %v3004 = vsel %vm656, %v3001, 0.0
        %3005 = vadd.xlane.f32.xlu0 %v3004
        %v3006 = vpop.xlane.xlu0 %3005
        %v3007 = vsel %vm656, %v3003, 0.0
        %3008 = vadd.xlane.f32.xlu0 %v3007
        %v3009 = vpop.xlane.xlu0 %3008
        %v3010 = vrcp.pop %v3006
        %v3011 = vmul.f32 %v3001, %v3010
        %v3012 = vrcp.pop %v3009
        %v3013 = vmul.f32 %v3003, %v3012
        %v3014 = vpack.c.bf16 %v3013, %v3011
        %3016 = vrot.lane.b32.xlu0 %v2943, 64
        %v3017 = vpop.permute.xlu0 %3016
        %v3020 = vsel %vm656, %v3014, 0
        %3022 = vmatprep.subr.bf16.mxu0 0
        %3023 = vmatpush1.bf16.msra.mxu0 %v3017
        %3024 = vmatprep.subr.bf16.mxu0 0
        %3025 = vmatpush1.bf16.msra.mxu0 0
        %3026 = vmatprep.subr.bf16.mxu0 0
        %3027 = vmatpush1.bf16.msra.mxu0 0
        %3028 = vmatprep.subr.bf16.mxu0 0
        %3029 = vmatpush1.bf16.msra.mxu0 0
        %3030 = vmatprep.subr.bf16.mxu0 0
        %3031 = vmatpush1.bf16.msra.mxu0 0
        %3032 = vmatprep.subr.bf16.mxu0 0
        %3033 = vmatpush1.bf16.msra.mxu0 0
        %3034 = vmatprep.subr.bf16.mxu0 0
        %3035 = vmatpush1.bf16.msra.mxu0 0
        %3036 = vmatprep.subr.bf16.mxu0 0
        %3037 = vmatpush1.bf16.msra.mxu0 0
        %3038 = vmatprep.subr.bf16.mxu0 0
        %3039 = vmatpush1.bf16.msra.mxu0 0
        %3040 = vmatprep.subr.bf16.mxu0 0
        %3041 = vmatpush1.bf16.msra.mxu0 0
        %3042 = vmatprep.subr.bf16.mxu0 0
        %3043 = vmatpush1.bf16.msra.mxu0 0
        %3044 = vmatprep.subr.bf16.mxu0 0
        %3045 = vmatpush1.bf16.msra.mxu0 0
        %3046 = vmatprep.subr.bf16.mxu0 0
        %3047 = vmatpush1.bf16.msra.mxu0 0
        %3048 = vmatprep.subr.bf16.mxu0 0
        %3049 = vmatpush1.bf16.msra.mxu0 0
        %3050 = vmatprep.subr.bf16.mxu0 0
        %3051 = vmatpush1.bf16.msra.mxu0 0
        %3052 = vmatprep.subr.bf16.mxu0 0
        %3053 = vmatpush1.bf16.msra.mxu0 0
        %3054 = vmatprep.mubr.bf16.mxu0 0
        %3055 = vmatmul.mubr.bf16.gmra.mrb[0].mxu0 %v3020
        %v3056 = vpop.f32.mrb[0].mxu0
        %v3057 = vadd.f32 0.0, %v3056
        %v3058 = vpop.f32.mrb[0].mxu0
        %v3059 = vpop.f32.mrb[0].mxu0
        %v3060 = vadd.f32 0.0, %v3059
        %v3061 = vpop.f32.mrb[0].mxu0
        %3062 = vdwg.mxu0
        %v3063 = vadd.f32 %v2936, %v3057
        %v3064 = vadd.f32 %v2937, %v3060
        %v3065 = vpack.c.bf16 %v3064, %v3063
        %s3066 = scalar_lea.vmem %s4, 16
        %v3067 = vld [vmem:[%s3066] sm:$0xf]
        %v3068 = vld [vmem:[%s3066 + $0x4] sm:$0xf]
        %v3069 = vld [vmem:[%s3066 + $0x8] sm:$0xf]
        %v3070 = vld [vmem:[%s3066 + $0xc] sm:$0xf]
        %v3075 = vunpack.c.l.b16 %v3067
        %v3076 = vunpack.c.l.b16 %v3068
        %v3077 = vunpack.c.l.b16 %v3069
        %v3078 = vunpack.c.l.b16 %v3070
        %v3079 = vpack.c.b16 %v3076, %v3075
        %v3080 = vpack.c.b16 %v3078, %v3077
        %v3084 = vsel %vm482, %v3065, 0
        %3086 = vmatprep.subr.bf16.mxu0 0
        %3087 = vmatpush1.bf16.msra.mxu0 %v3079
        %3088 = vmatprep.subr.bf16.mxu0 0
        %3089 = vmatpush1.bf16.msra.mxu0 %v3080
        %3090 = vmatprep.subr.bf16.mxu0 0
        %3091 = vmatpush1.bf16.msra.mxu0 0
        %3092 = vmatprep.subr.bf16.mxu0 0
        %3093 = vmatpush1.bf16.msra.mxu0 0
        %3094 = vmatprep.subr.bf16.mxu0 0
        %3095 = vmatpush1.bf16.msra.mxu0 0
        %3096 = vmatprep.subr.bf16.mxu0 0
        %3097 = vmatpush1.bf16.msra.mxu0 0
        %3098 = vmatprep.subr.bf16.mxu0 0
        %3099 = vmatpush1.bf16.msra.mxu0 0
        %3100 = vmatprep.subr.bf16.mxu0 0
        %3101 = vmatpush1.bf16.msra.mxu0 0
        %3102 = vmatprep.subr.bf16.mxu0 0
        %3103 = vmatpush1.bf16.msra.mxu0 0
        %3104 = vmatprep.subr.bf16.mxu0 0
        %3105 = vmatpush1.bf16.msra.mxu0 0
        %3106 = vmatprep.subr.bf16.mxu0 0
        %3107 = vmatpush1.bf16.msra.mxu0 0
        %3108 = vmatprep.subr.bf16.mxu0 0
        %3109 = vmatpush1.bf16.msra.mxu0 0
        %3110 = vmatprep.subr.bf16.mxu0 0
        %3111 = vmatpush1.bf16.msra.mxu0 0
        %3112 = vmatprep.subr.bf16.mxu0 0
        %3113 = vmatpush1.bf16.msra.mxu0 0
        %3114 = vmatprep.subr.bf16.mxu0 0
        %3115 = vmatpush1.bf16.msra.mxu0 0
        %3116 = vmatprep.subr.bf16.mxu0 0
        %3117 = vmatpush1.bf16.msra.mxu0 0
        %3118 = vmatprep.mubr.bf16.mxu0 0
        %3119 = vmatmul.mubr.bf16.gmra.mrb[0].mxu0 %v3084
        %v3120 = vpop.f32.mrb[0].mxu0
        %v3121 = vadd.f32 0.0, %v3120
        %v3122 = vpop.f32.mrb[0].mxu0
        %v3123 = vpop.f32.mrb[0].mxu0
        %v3124 = vadd.f32 0.0, %v3123
        %v3125 = vpop.f32.mrb[0].mxu0
        %3126 = vdwg.mxu0
        %v3127 = vadd.f32 %v1940, %v3121
        %v3128 = vadd.f32 %v1941, %v3124
        %v3129 = vlaneseq
        %v3130 = vshrl.u32 %v3129, 7
        %v3131 = vsub.s32 1, %v3130
        %v3132 = vrot.slane %v388, %v3131
        %v3133 = vadd.f32 %v3127, %v3132
        %v3134 = vadd.f32 %v3128, %v3132
        %v3135 = vsel %vm482, %v3133, 0.0
        %3136 = vadd.xlane.f32.xlu0 %v3135
        %v3137 = vpop.xlane.xlu0 %3136
        %v3138 = vsel %vm482, %v3134, 0.0
        %3139 = vadd.xlane.f32.xlu0 %v3138
        %v3140 = vpop.xlane.xlu0 %3139
        %v3141 = vmul.f32 %v3137, %v489
        %v3142 = vmul.f32 %v3140, %v489
        %v3143 = vsub.f32 %v3133, %v3141
        %v3144 = vsub.f32 %v3134, %v3142
        %v3145 = vmul.f32 %v3143, %v3143
        %v3146 = vmul.f32 %v3144, %v3144
        %v3147 = vsel %vm482, %v3145, 0.0
        %3148 = vadd.xlane.f32.xlu0 %v3147
        %v3149 = vpop.xlane.xlu0 %3148
        %v3150 = vsel %vm482, %v3146, 0.0
        %3151 = vadd.xlane.f32.xlu0 %v3150
        %v3152 = vpop.xlane.xlu0 %3151
        %v3153 = vmul.f32 %v3149, %v489
        %v3154 = vmul.f32 %v3152, %v489
        %v3155 = vadd.f32 %v3153, 1e-05
        %v3156 = vadd.f32 %v3154, 1e-05
        %v3157 = vrsqrt.pop %v3155
        %v3158 = vrsqrt.pop %v3156
        %v3159 = vmul.f32 %v3143, %v3157
        %v3160 = vmul.f32 %v3144, %v3158
        %v3161 = vlaneseq
        %v3162 = vshrl.u32 %v3161, 7
        %v3163 = vsub.s32 0, %v3162
        %v3164 = vrot.slane %v386, %v3163
        %v3165 = vmul.f32 %v3159, %v3164
        %v3166 = vmul.f32 %v3160, %v3164
        %v3167 = vlaneseq
        %v3168 = vshrl.u32 %v3167, 7
        %v3169 = vsub.s32 1, %v3168
        %v3170 = vrot.slane %v386, %v3169
        %v3171 = vadd.f32 %v3165, %v3170
        %v3172 = vadd.f32 %v3166, %v3170
        %v3173 = vpack.c.bf16 %v3172, %v3171
        %s3174 = scalar_lea.vmem %s5, 16
        %v3175 = vld [vmem:[%s3174] sm:$0xf]
        %v3176 = vld [vmem:[%s3174 + $0x4] sm:$0xf]
        %v3177 = vld [vmem:[%s3174 + $0x8] sm:$0xf]
        %v3178 = vld [vmem:[%s3174 + $0xc] sm:$0xf]
        %v3179 = vlaneseq
        %v3180 = vshrl.u32 %v3179, 7
        %v3181 = vsub.s32 5, %v3180
        %v3182 = vrot.slane %v388, %v3181
        %v3187 = vunpack.c.l.b16 %v3175
        %v3188 = vunpack.c.l.b16 %v3176
        %v3189 = vunpack.c.l.b16 %v3177
        %v3190 = vunpack.c.l.b16 %v3178
        %v3191 = vpack.c.b16 %v3188, %v3187
        %v3192 = vpack.c.b16 %v3190, %v3189
        %v3196 = vsel %vm482, %v3173, 0
        %3198 = vmatprep.subr.bf16.mxu0 0
        %3199 = vmatpush1.bf16.msra.mxu0 %v3191
        %3200 = vmatprep.subr.bf16.mxu0 0
        %3201 = vmatpush1.bf16.msra.mxu0 %v3192
        %3202 = vmatprep.subr.bf16.mxu0 0
        %3203 = vmatpush1.bf16.msra.mxu0 0
        %3204 = vmatprep.subr.bf16.mxu0 0
        %3205 = vmatpush1.bf16.msra.mxu0 0
        %3206 = vmatprep.subr.bf16.mxu0 0
        %3207 = vmatpush1.bf16.msra.mxu0 0
        %3208 = vmatprep.subr.bf16.mxu0 0
        %3209 = vmatpush1.bf16.msra.mxu0 0
        %3210 = vmatprep.subr.bf16.mxu0 0
        %3211 = vmatpush1.bf16.msra.mxu0 0
        %3212 = vmatprep.subr.bf16.mxu0 0
        %3213 = vmatpush1.bf16.msra.mxu0 0
        %3214 = vmatprep.subr.bf16.mxu0 0
        %3215 = vmatpush1.bf16.msra.mxu0 0
        %3216 = vmatprep.subr.bf16.mxu0 0
        %3217 = vmatpush1.bf16.msra.mxu0 0
        %3218 = vmatprep.subr.bf16.mxu0 0
        %3219 = vmatpush1.bf16.msra.mxu0 0
        %3220 = vmatprep.subr.bf16.mxu0 0
        %3221 = vmatpush1.bf16.msra.mxu0 0
        %3222 = vmatprep.subr.bf16.mxu0 0
        %3223 = vmatpush1.bf16.msra.mxu0 0
        %3224 = vmatprep.subr.bf16.mxu0 0
        %3225 = vmatpush1.bf16.msra.mxu0 0
        %3226 = vmatprep.subr.bf16.mxu0 0
        %3227 = vmatpush1.bf16.msra.mxu0 0
        %3228 = vmatprep.subr.bf16.mxu0 0
        %3229 = vmatpush1.bf16.msra.mxu0 0
        %3230 = vmatprep.mubr.bf16.mxu0 0
        %3231 = vmatmul.mubr.bf16.gmra.mrb[0].mxu0 %v3196
        %v3232 = vpop.f32.mrb[0].mxu0
        %v3233 = vadd.f32 %v3182, %v3232
        %v3234 = vpop.f32.mrb[0].mxu0
        %v3235 = vpop.f32.mrb[0].mxu0
        %v3236 = vadd.f32 %v3182, %v3235
        %v3237 = vpop.f32.mrb[0].mxu0
        %3238 = vdwg.mxu0
        %v3239 = vxor.u32 %v3233, 2147483648
        %v3240 = vxor.u32 %v3236, 2147483648
        %v3241 = vmul.f32 %v3239, 1.442695
        %v3242 = vpow.pop %v3241
        %v3243 = vmul.f32 %v3240, 1.442695
        %v3244 = vpow.pop %v3243
        %v3245 = vadd.f32 %v3242, 1.0
        %v3246 = vadd.f32 %v3244, 1.0
        %v3247 = vrcp.pop %v3245
        %v3248 = vmul.f32 1.0, %v3247
        %v3249 = vrcp.pop %v3246
        %v3250 = vmul.f32 1.0, %v3249
        %v3251 = vmul.f32 %v3233, %v3248
        %v3252 = vmul.f32 %v3236, %v3250
        %v3253 = vpack.c.bf16 %v3252, %v3251
        %s3254 = scalar_lea.vmem %s6, 32
        %v3255 = vld [vmem:[%s3254] sm:$0xf]
        %v3256 = vld [vmem:[%s3254 + $0x4] sm:$0xf]
        %v3257 = vld [vmem:[%s3254 + $0x8] sm:$0xf]
        %v3258 = vld [vmem:[%s3254 + $0xc] sm:$0xf]
        %v3259 = vld [vmem:[%s3254 + $0x10] sm:$0xf]
        %v3260 = vld [vmem:[%s3254 + $0x14] sm:$0xf]
        %v3261 = vld [vmem:[%s3254 + $0x18] sm:$0xf]
        %v3262 = vld [vmem:[%s3254 + $0x1c] sm:$0xf]
        %v3271 = vunpack.c.l.b16 %v3255
        %v3272 = vunpack.c.l.b16 %v3256
        %v3273 = vunpack.c.l.b16 %v3257
        %v3274 = vunpack.c.l.b16 %v3258
        %v3275 = vunpack.c.l.b16 %v3259
        %v3276 = vunpack.c.l.b16 %v3260
        %v3277 = vunpack.c.l.b16 %v3261
        %v3278 = vunpack.c.l.b16 %v3262
        %v3279 = vpack.c.b16 %v3272, %v3271
        %v3280 = vpack.c.b16 %v3274, %v3273
        %v3281 = vpack.c.b16 %v3276, %v3275
        %v3282 = vpack.c.b16 %v3278, %v3277
        %v3288 = vsel %vm433, %v3253, 0
        %3290 = vmatprep.subr.bf16.mxu0 0
        %3291 = vmatpush1.bf16.msra.mxu0 %v3279
        %3292 = vmatprep.subr.bf16.mxu0 0
        %3293 = vmatpush1.bf16.msra.mxu0 %v3280
        %3294 = vmatprep.subr.bf16.mxu0 0
        %3295 = vmatpush1.bf16.msra.mxu0 %v3281
        %3296 = vmatprep.subr.bf16.mxu0 0
        %3297 = vmatpush1.bf16.msra.mxu0 %v3282
        %3298 = vmatprep.subr.bf16.mxu0 0
        %3299 = vmatpush1.bf16.msra.mxu0 0
        %3300 = vmatprep.subr.bf16.mxu0 0
        %3301 = vmatpush1.bf16.msra.mxu0 0
        %3302 = vmatprep.subr.bf16.mxu0 0
        %3303 = vmatpush1.bf16.msra.mxu0 0
        %3304 = vmatprep.subr.bf16.mxu0 0
        %3305 = vmatpush1.bf16.msra.mxu0 0
        %3306 = vmatprep.subr.bf16.mxu0 0
        %3307 = vmatpush1.bf16.msra.mxu0 0
        %3308 = vmatprep.subr.bf16.mxu0 0
        %3309 = vmatpush1.bf16.msra.mxu0 0
        %3310 = vmatprep.subr.bf16.mxu0 0
        %3311 = vmatpush1.bf16.msra.mxu0 0
        %3312 = vmatprep.subr.bf16.mxu0 0
        %3313 = vmatpush1.bf16.msra.mxu0 0
        %3314 = vmatprep.subr.bf16.mxu0 0
        %3315 = vmatpush1.bf16.msra.mxu0 0
        %3316 = vmatprep.subr.bf16.mxu0 0
        %3317 = vmatpush1.bf16.msra.mxu0 0
        %3318 = vmatprep.subr.bf16.mxu0 0
        %3319 = vmatpush1.bf16.msra.mxu0 0
        %3320 = vmatprep.subr.bf16.mxu0 0
        %3321 = vmatpush1.bf16.msra.mxu0 0
        %3322 = vmatprep.mubr.bf16.mxu0 0
        %3323 = vmatmul.mubr.bf16.gmra.mrb[0].mxu0 %v3288
        %v3324 = vpop.f32.mrb[0].mxu0
        %v3325 = vadd.f32 0.0, %v3324
        %v3326 = vpop.f32.mrb[0].mxu0
        %v3327 = vpop.f32.mrb[0].mxu0
        %v3328 = vadd.f32 0.0, %v3327
        %v3329 = vpop.f32.mrb[0].mxu0
        %3330 = vdwg.mxu0
        %v3331 = vadd.f32 %v3133, %v3325
        %v3332 = vadd.f32 %v3134, %v3328
        %v3333 = vlaneseq
        %v3334 = vshrl.u32 %v3333, 7
        %v3335 = vsub.s32 0, %v3334
        %v3336 = vrot.slane %v389, %v3335
        %v3337 = vadd.f32 %v3331, %v3336
        %v3338 = vadd.f32 %v3332, %v3336
        %v3339 = vsel %vm482, %v3337, 0.0
        %3340 = vadd.xlane.f32.xlu0 %v3339
        %v3341 = vpop.xlane.xlu0 %3340
        %v3342 = vsel %vm482, %v3338, 0.0
        %3343 = vadd.xlane.f32.xlu0 %v3342
        %v3344 = vpop.xlane.xlu0 %3343
        %v3345 = vmul.f32 %v3341, %v489
        %v3346 = vmul.f32 %v3344, %v489
        %v3347 = vsub.f32 %v3337, %v3345
        %v3348 = vsub.f32 %v3338, %v3346
        %v3349 = vmul.f32 %v3347, %v3347
        %v3350 = vmul.f32 %v3348, %v3348
        %v3351 = vsel %vm482, %v3349, 0.0
        %3352 = vadd.xlane.f32.xlu0 %v3351
        %v3353 = vpop.xlane.xlu0 %3352
        %v3354 = vsel %vm482, %v3350, 0.0
        %3355 = vadd.xlane.f32.xlu0 %v3354
        %v3356 = vpop.xlane.xlu0 %3355
        %v3357 = vmul.f32 %v3353, %v489
        %v3358 = vmul.f32 %v3356, %v489
        %v3359 = vadd.f32 %v3357, 1e-05
        %v3360 = vadd.f32 %v3358, 1e-05
        %v3361 = vrsqrt.pop %v3359
        %v3362 = vrsqrt.pop %v3360
        %v3363 = vmul.f32 %v3347, %v3361
        %v3364 = vmul.f32 %v3348, %v3362
        %v3365 = vlaneseq
        %v3366 = vshrl.u32 %v3365, 7
        %v3367 = vsub.s32 2, %v3366
        %v3368 = vrot.slane %v386, %v3367
        %v3369 = vmul.f32 %v3363, %v3368
        %v3370 = vmul.f32 %v3364, %v3368
        %v3371 = vlaneseq
        %v3372 = vshrl.u32 %v3371, 7
        %v3373 = vsub.s32 3, %v3372
        %v3374 = vrot.slane %v386, %v3373
        %v3375 = vadd.f32 %v3369, %v3374
        %v3376 = vadd.f32 %v3370, %v3374
        %vm3377 = vcmask 254977
        %v3378 = vsel %vm3377, %v385, 0.0
        %3379 = vadd.xlane.f32.xlu0 %v3378
        %v3380 = vpop.xlane.xlu0 %3379
        %v3381 = vmul.f32 %v3380, %v489
        %v3382 = vsub.f32 %v385, %v3381
        %v3383 = vmul.f32 %v3382, %v3382
        %v3384 = vsel %vm3377, %v3383, 0.0
        %3385 = vadd.xlane.f32.xlu0 %v3384
        %v3386 = vpop.xlane.xlu0 %3385
        %v3387 = vmul.f32 %v3386, %v489
        %v3388 = vadd.f32 %v3387, 1e-05
        %v3389 = vrsqrt.pop %v3388
        %v3390 = vmul.f32 %v3382, %v3389
        %v3392 = vrot.slane %v386, 3
        %v3394 = vmul.f32 %v3390, %v3392
        %v3395 = vrot.slane %v386, 4
        %v3397 = vadd.f32 %v3394, %v3395
        %v3398 = vpack.c.bf16 %v3397, %v3397
        %s3399 = scalar_lea.vmem %s3, 32
        %v3400 = vld [vmem:[%s3399] sm:$0xf]
        %v3401 = vld [vmem:[%s3399 + $0x4] sm:$0xf]
        %v3402 = vld [vmem:[%s3399 + $0x8] sm:$0xf]
        %v3403 = vld [vmem:[%s3399 + $0xc] sm:$0xf]
        %v3405 = vshrl.u32 %v3398, 16
        %v3411 = vunpack.c.l.b16 %v3400
        %v3412 = vunpack.c.l.b16 %v3401
        %v3413 = vunpack.c.l.b16 %v3402
        %v3414 = vunpack.c.l.b16 %v3403
        %v3415 = vpack.c.b16 %v3412, %v3411
        %v3416 = vpack.c.b16 %v3414, %v3413
        %v3420 = vrot.slane %v387, 6
        %v3423 = vsel %vm482, %v3405, 0
        %3425 = vmatprep.subr.bf16.mxu0 0
        %3426 = vmatpush1.bf16.msra.mxu0 %v3415
        %3427 = vmatprep.subr.bf16.mxu0 0
        %3428 = vmatpush1.bf16.msra.mxu0 %v3416
        %3429 = vmatprep.subr.bf16.mxu0 0
        %3430 = vmatpush1.bf16.msra.mxu0 0
        %3431 = vmatprep.subr.bf16.mxu0 0
        %3432 = vmatpush1.bf16.msra.mxu0 0
        %3433 = vmatprep.subr.bf16.mxu0 0
        %3434 = vmatpush1.bf16.msra.mxu0 0
        %3435 = vmatprep.subr.bf16.mxu0 0
        %3436 = vmatpush1.bf16.msra.mxu0 0
        %3437 = vmatprep.subr.bf16.mxu0 0
        %3438 = vmatpush1.bf16.msra.mxu0 0
        %3439 = vmatprep.subr.bf16.mxu0 0
        %3440 = vmatpush1.bf16.msra.mxu0 0
        %3441 = vmatprep.subr.bf16.mxu0 0
        %3442 = vmatpush1.bf16.msra.mxu0 0
        %3443 = vmatprep.subr.bf16.mxu0 0
        %3444 = vmatpush1.bf16.msra.mxu0 0
        %3445 = vmatprep.subr.bf16.mxu0 0
        %3446 = vmatpush1.bf16.msra.mxu0 0
        %3447 = vmatprep.subr.bf16.mxu0 0
        %3448 = vmatpush1.bf16.msra.mxu0 0
        %3449 = vmatprep.subr.bf16.mxu0 0
        %3450 = vmatpush1.bf16.msra.mxu0 0
        %3451 = vmatprep.subr.bf16.mxu0 0
        %3452 = vmatpush1.bf16.msra.mxu0 0
        %3453 = vmatprep.subr.bf16.mxu0 0
        %3454 = vmatpush1.bf16.msra.mxu0 0
        %3455 = vmatprep.subr.bf16.mxu0 0
        %3456 = vmatpush1.bf16.msra.mxu0 0
        %3457 = vmatprep.mubr.bf16.mxu0 0
        %3458 = vmatmul.mubr.bf16.gmra.mrb[0].mxu0 %v3423
        %v3459 = vpop.f32.mrb[0].mxu0
        %v3460 = vadd.f32 %v3420, %v3459
        %v3461 = vpop.f32.mrb[0].mxu0
        %v3462 = vpop.f32.mrb[0].mxu0
        %v3463 = vpop.f32.mrb[0].mxu0
        %3464 = vdwg.mxu0
        %v3465 = vpack.c.bf16 %v3460, %v3460
        %s3466 = scalar_lea.vmem %s4, 32
        %v3467 = vld [vmem:[%s3466] sm:$0xf]
        %v3468 = vld [vmem:[%s3466 + $0x4] sm:$0xf]
        %v3469 = vld [vmem:[%s3466 + $0x8] sm:$0xf]
        %v3470 = vld [vmem:[%s3466 + $0xc] sm:$0xf]
        %3472 = vrot.lane.b32.xlu0 %v3465, 64
        %v3473 = vpop.permute.xlu0 %3472
        %v3478 = vunpack.c.l.b16 %v3467
        %v3479 = vunpack.c.l.b16 %v3468
        %v3480 = vunpack.c.l.b16 %v3469
        %v3481 = vunpack.c.l.b16 %v3470
        %v3482 = vpack.c.b16 %v3479, %v3478
        %v3483 = vpack.c.b16 %v3481, %v3480
        %v3487 = vsel %vm482, %v3473, 0
        %3489 = vmatprep.subr.bf16.mxu0 0
        %3490 = vmatpush1.bf16.msra.mxu0 %v3482
        %3491 = vmatprep.subr.bf16.mxu0 0
        %3492 = vmatpush1.bf16.msra.mxu0 %v3483
        %3493 = vmatprep.subr.bf16.mxu0 0
        %3494 = vmatpush1.bf16.msra.mxu0 0
        %3495 = vmatprep.subr.bf16.mxu0 0
        %3496 = vmatpush1.bf16.msra.mxu0 0
        %3497 = vmatprep.subr.bf16.mxu0 0
        %3498 = vmatpush1.bf16.msra.mxu0 0
        %3499 = vmatprep.subr.bf16.mxu0 0
        %3500 = vmatpush1.bf16.msra.mxu0 0
        %3501 = vmatprep.subr.bf16.mxu0 0
        %3502 = vmatpush1.bf16.msra.mxu0 0
        %3503 = vmatprep.subr.bf16.mxu0 0
        %3504 = vmatpush1.bf16.msra.mxu0 0
        %3505 = vmatprep.subr.bf16.mxu0 0
        %3506 = vmatpush1.bf16.msra.mxu0 0
        %3507 = vmatprep.subr.bf16.mxu0 0
        %3508 = vmatpush1.bf16.msra.mxu0 0
        %3509 = vmatprep.subr.bf16.mxu0 0
        %3510 = vmatpush1.bf16.msra.mxu0 0
        %3511 = vmatprep.subr.bf16.mxu0 0
        %3512 = vmatpush1.bf16.msra.mxu0 0
        %3513 = vmatprep.subr.bf16.mxu0 0
        %3514 = vmatpush1.bf16.msra.mxu0 0
        %3515 = vmatprep.subr.bf16.mxu0 0
        %3516 = vmatpush1.bf16.msra.mxu0 0
        %3517 = vmatprep.subr.bf16.mxu0 0
        %3518 = vmatpush1.bf16.msra.mxu0 0
        %3519 = vmatprep.subr.bf16.mxu0 0
        %3520 = vmatpush1.bf16.msra.mxu0 0
        %3521 = vmatprep.mubr.bf16.mxu0 0
        %3522 = vmatmul.mubr.bf16.gmra.mrb[0].mxu0 %v3487
        %v3523 = vpop.f32.mrb[0].mxu0
        %v3524 = vadd.f32 0.0, %v3523
        %v3525 = vpop.f32.mrb[0].mxu0
        %v3526 = vpop.f32.mrb[0].mxu0
        %v3527 = vpop.f32.mrb[0].mxu0
        %3528 = vdwg.mxu0
        %v3530 = vrot.slane %v3524, 7
        %v3532 = vadd.f32 %v385, %v3530
        %v3534 = vrot.slane %v388, 1
        %v3536 = vadd.f32 %v3532, %v3534
        %v3537 = vsel %vm3377, %v3536, 0.0
        %3538 = vadd.xlane.f32.xlu0 %v3537
        %v3539 = vpop.xlane.xlu0 %3538
        %v3540 = vmul.f32 %v3539, %v489
        %v3541 = vsub.f32 %v3536, %v3540
        %v3542 = vmul.f32 %v3541, %v3541
        %v3543 = vsel %vm3377, %v3542, 0.0
        %3544 = vadd.xlane.f32.xlu0 %v3543
        %v3545 = vpop.xlane.xlu0 %3544
        %v3546 = vmul.f32 %v3545, %v489
        %v3547 = vadd.f32 %v3546, 1e-05
        %v3548 = vrsqrt.pop %v3547
        %v3549 = vmul.f32 %v3541, %v3548
        %v3550 = vrot.slane %v386, 5
        %v3552 = vmul.f32 %v3549, %v3550
        %v3553 = vrot.slane %v386, 6
        %v3555 = vadd.f32 %v3552, %v3553
        %v3556 = vpack.c.bf16 %v3555, %v3555
        %s3557 = scalar_lea.vmem %s3, 48
        %v3558 = vld [vmem:[%s3557] sm:$0xf]
        %v3559 = vld [vmem:[%s3557 + $0x4] sm:$0xf]
        %v3560 = vld [vmem:[%s3557 + $0x8] sm:$0xf]
        %v3561 = vld [vmem:[%s3557 + $0xc] sm:$0xf]
        %v3563 = vshrl.u32 %v3556, 16
        %v3569 = vunpack.c.l.b16 %v3558
        %v3570 = vunpack.c.l.b16 %v3559
        %v3571 = vunpack.c.l.b16 %v3560
        %v3572 = vunpack.c.l.b16 %v3561
        %v3573 = vpack.c.b16 %v3570, %v3569
        %v3574 = vpack.c.b16 %v3572, %v3571
        %v3577 = vrot.slane %v387, 7
        %v3580 = vsel %vm482, %v3563, 0
        %3582 = vmatprep.subr.bf16.mxu0 0
        %3583 = vmatpush1.bf16.msra.mxu0 %v3573
        %3584 = vmatprep.subr.bf16.mxu0 0
        %3585 = vmatpush1.bf16.msra.mxu0 %v3574
        %3586 = vmatprep.subr.bf16.mxu0 0
        %3587 = vmatpush1.bf16.msra.mxu0 0
        %3588 = vmatprep.subr.bf16.mxu0 0
        %3589 = vmatpush1.bf16.msra.mxu0 0
        %3590 = vmatprep.subr.bf16.mxu0 0
        %3591 = vmatpush1.bf16.msra.mxu0 0
        %3592 = vmatprep.subr.bf16.mxu0 0
        %3593 = vmatpush1.bf16.msra.mxu0 0
        %3594 = vmatprep.subr.bf16.mxu0 0
        %3595 = vmatpush1.bf16.msra.mxu0 0
        %3596 = vmatprep.subr.bf16.mxu0 0
        %3597 = vmatpush1.bf16.msra.mxu0 0
        %3598 = vmatprep.subr.bf16.mxu0 0
        %3599 = vmatpush1.bf16.msra.mxu0 0
        %3600 = vmatprep.subr.bf16.mxu0 0
        %3601 = vmatpush1.bf16.msra.mxu0 0
        %3602 = vmatprep.subr.bf16.mxu0 0
        %3603 = vmatpush1.bf16.msra.mxu0 0
        %3604 = vmatprep.subr.bf16.mxu0 0
        %3605 = vmatpush1.bf16.msra.mxu0 0
        %3606 = vmatprep.subr.bf16.mxu0 0
        %3607 = vmatpush1.bf16.msra.mxu0 0
        %3608 = vmatprep.subr.bf16.mxu0 0
        %3609 = vmatpush1.bf16.msra.mxu0 0
        %3610 = vmatprep.subr.bf16.mxu0 0
        %3611 = vmatpush1.bf16.msra.mxu0 0
        %3612 = vmatprep.subr.bf16.mxu0 0
        %3613 = vmatpush1.bf16.msra.mxu0 0
        %3614 = vmatprep.mubr.bf16.mxu0 0
        %3615 = vmatmul.mubr.bf16.gmra.mrb[0].mxu0 %v3580
        %v3616 = vpop.f32.mrb[0].mxu0
        %v3617 = vadd.f32 %v3577, %v3616
        %v3618 = vpop.f32.mrb[0].mxu0
        %v3619 = vpop.f32.mrb[0].mxu0
        %v3620 = vpop.f32.mrb[0].mxu0
        %3621 = vdwg.mxu0
        %v3622 = vpack.c.bf16 %v3376, %v3375
        %v3623 = vlaneseq
        %v3624 = vshrl.u32 %v3623, 7
        %v3625 = vsub.s32 7, %v3624
        %v3626 = vrot.slane %v387, %v3625
        %v3628 = vsel %vm482, %v3622, 0
        %3630 = vmatprep.subr.bf16.mxu0 0
        %3631 = vmatpush1.bf16.msra.mxu0 %v3573
        %3632 = vmatprep.subr.bf16.mxu0 0
        %3633 = vmatpush1.bf16.msra.mxu0 %v3574
        %3634 = vmatprep.subr.bf16.mxu0 0
        %3635 = vmatpush1.bf16.msra.mxu0 0
        %3636 = vmatprep.subr.bf16.mxu0 0
        %3637 = vmatpush1.bf16.msra.mxu0 0
        %3638 = vmatprep.subr.bf16.mxu0 0
        %3639 = vmatpush1.bf16.msra.mxu0 0
        %3640 = vmatprep.subr.bf16.mxu0 0
        %3641 = vmatpush1.bf16.msra.mxu0 0
        %3642 = vmatprep.subr.bf16.mxu0 0
        %3643 = vmatpush1.bf16.msra.mxu0 0
        %3644 = vmatprep.subr.bf16.mxu0 0
        %3645 = vmatpush1.bf16.msra.mxu0 0
        %3646 = vmatprep.subr.bf16.mxu0 0
        %3647 = vmatpush1.bf16.msra.mxu0 0
        %3648 = vmatprep.subr.bf16.mxu0 0
        %3649 = vmatpush1.bf16.msra.mxu0 0
        %3650 = vmatprep.subr.bf16.mxu0 0
        %3651 = vmatpush1.bf16.msra.mxu0 0
        %3652 = vmatprep.subr.bf16.mxu0 0
        %3653 = vmatpush1.bf16.msra.mxu0 0
        %3654 = vmatprep.subr.bf16.mxu0 0
        %3655 = vmatpush1.bf16.msra.mxu0 0
        %3656 = vmatprep.subr.bf16.mxu0 0
        %3657 = vmatpush1.bf16.msra.mxu0 0
        %3658 = vmatprep.subr.bf16.mxu0 0
        %3659 = vmatpush1.bf16.msra.mxu0 0
        %3660 = vmatprep.subr.bf16.mxu0 0
        %3661 = vmatpush1.bf16.msra.mxu0 0
        %3662 = vmatprep.mubr.bf16.mxu0 0
        %3663 = vmatmul.mubr.bf16.gmra.mrb[0].mxu0 %v3628
        %v3664 = vpop.f32.mrb[0].mxu0
        %v3665 = vadd.f32 %v3626, %v3664
        %v3666 = vpop.f32.mrb[0].mxu0
        %v3667 = vpop.f32.mrb[0].mxu0
        %v3668 = vadd.f32 %v3626, %v3667
        %v3669 = vpop.f32.mrb[0].mxu0
        %3670 = vdwg.mxu0
        %v3671 = vpack.c.bf16 %v3668, %v3665
        %v3672 = vmul.f32 %v3617, %v390
        %v3673 = vpack.c.bf16 %v3672, %v3672
        %v3674 = vmul.f32 %v3665, %v597
        %v3675 = vmul.f32 %v3668, %v597
        %v3676 = vpack.c.bf16 %v3675, %v3674
        %3678 = vrot.lane.b32.xlu0 %v3671, 96
        %v3679 = vpop.permute.xlu0 %3678
        %v3681 = vsel %vm482, %v3673, 0
        %v3684 = vsel %vm482, %v3679, 0
        %3686 = vmatprep.subr.bf16.mxu0 0
        %3687 = vmatpush1.bf16.xpose.msra.mxu0 %v3684
        %3688 = vmatprep.subr.bf16.mxu0 0
        %3689 = vmatpush1.bf16.xpose.msra.mxu0 0
        %3690 = vmatprep.subr.bf16.mxu0 0
        %3691 = vmatpush1.bf16.xpose.msra.mxu0 0
        %3692 = vmatprep.subr.bf16.mxu0 0
        %3693 = vmatpush1.bf16.xpose.msra.mxu0 0
        %3694 = vmatprep.subr.bf16.mxu0 0
        %3695 = vmatpush1.bf16.xpose.msra.mxu0 0
        %3696 = vmatprep.subr.bf16.mxu0 0
        %3697 = vmatpush1.bf16.xpose.msra.mxu0 0
        %3698 = vmatprep.subr.bf16.mxu0 0
        %3699 = vmatpush1.bf16.xpose.msra.mxu0 0
        %3700 = vmatprep.subr.bf16.mxu0 0
        %3701 = vmatpush1.bf16.xpose.msra.mxu0 0
        %3702 = vmatprep.subr.bf16.mxu0 0
        %3703 = vmatpush1.bf16.xpose.msra.mxu0 0
        %3704 = vmatprep.subr.bf16.mxu0 0
        %3705 = vmatpush1.bf16.xpose.msra.mxu0 0
        %3706 = vmatprep.subr.bf16.mxu0 0
        %3707 = vmatpush1.bf16.xpose.msra.mxu0 0
        %3708 = vmatprep.subr.bf16.mxu0 0
        %3709 = vmatpush1.bf16.xpose.msra.mxu0 0
        %3710 = vmatprep.subr.bf16.mxu0 0
        %3711 = vmatpush1.bf16.xpose.msra.mxu0 0
        %3712 = vmatprep.subr.bf16.mxu0 0
        %3713 = vmatpush1.bf16.xpose.msra.mxu0 0
        %3714 = vmatprep.subr.bf16.mxu0 0
        %3715 = vmatpush1.bf16.xpose.msra.mxu0 0
        %3716 = vmatprep.subr.bf16.mxu0 0
        %3717 = vmatpush1.bf16.xpose.msra.mxu0 0
        %3718 = vmatprep.mubr.bf16.mxu0 0
        %3719 = vmatmul.mubr.bf16.gmra.mrb[0].mxu0 %v3681
        %v3720 = vpop.f32.mrb[0].mxu0
        %v3721 = vadd.f32 0.0, %v3720
        %v3722 = vpop.f32.mrb[0].mxu0
        %v3723 = vpop.f32.mrb[0].mxu0
        %v3724 = vpop.f32.mrb[0].mxu0
        %3725 = vdwg.mxu0
        %v3726 = vmul.f32 %v3721, 0.5
        %v3727 = vadd.f32 %v3726, %v393
        %vm3728 = vcmask 122880
        %v3729 = vsel %vm3728, %v3727, -inf
        %3730 = vmax.xlane.f32.xlu0 %v3729
        %v3731 = vpop.xlane.xlu0 %3730
        %v3732 = vsub.f32 %v3727, %v3731
        %v3733 = vmul.f32 %v3732, 1.442695
        %v3734 = vpow.pop %v3733
        %v3735 = vsel %vm3728, %v3734, 0.0
        %3736 = vadd.xlane.f32.xlu0 %v3735
        %v3737 = vpop.xlane.xlu0 %3736
        %v3738 = vrcp.pop %v3737
        %v3739 = vmul.f32 %v3734, %v3738
        %v3740 = vpack.c.bf16 %v3739, %v3739
        %v3742 = vrot.slane %v390, 1
        %v3744 = vmul.f32 %v3617, %v3742
        %v3745 = vpack.c.bf16 %v3744, %v3744
        %v3746 = vmul.f32 %v3665, %v689
        %v3747 = vmul.f32 %v3668, %v689
        %v3748 = vpack.c.bf16 %v3747, %v3746
        %v3750 = vsel %vm482, %v3745, 0
        %3752 = vmatprep.subr.bf16.mxu0 0
        %3753 = vmatpush1.bf16.xpose.msra.mxu0 %v3684
        %3754 = vmatprep.subr.bf16.mxu0 0
        %3755 = vmatpush1.bf16.xpose.msra.mxu0 0
        %3756 = vmatprep.subr.bf16.mxu0 0
        %3757 = vmatpush1.bf16.xpose.msra.mxu0 0
        %3758 = vmatprep.subr.bf16.mxu0 0
        %3759 = vmatpush1.bf16.xpose.msra.mxu0 0
        %3760 = vmatprep.subr.bf16.mxu0 0
        %3761 = vmatpush1.bf16.xpose.msra.mxu0 0
        %3762 = vmatprep.subr.bf16.mxu0 0
        %3763 = vmatpush1.bf16.xpose.msra.mxu0 0
        %3764 = vmatprep.subr.bf16.mxu0 0
        %3765 = vmatpush1.bf16.xpose.msra.mxu0 0
        %3766 = vmatprep.subr.bf16.mxu0 0
        %3767 = vmatpush1.bf16.xpose.msra.mxu0 0
        %3768 = vmatprep.subr.bf16.mxu0 0
        %3769 = vmatpush1.bf16.xpose.msra.mxu0 0
        %3770 = vmatprep.subr.bf16.mxu0 0
        %3771 = vmatpush1.bf16.xpose.msra.mxu0 0
        %3772 = vmatprep.subr.bf16.mxu0 0
        %3773 = vmatpush1.bf16.xpose.msra.mxu0 0
        %3774 = vmatprep.subr.bf16.mxu0 0
        %3775 = vmatpush1.bf16.xpose.msra.mxu0 0
        %3776 = vmatprep.subr.bf16.mxu0 0
        %3777 = vmatpush1.bf16.xpose.msra.mxu0 0
        %3778 = vmatprep.subr.bf16.mxu0 0
        %3779 = vmatpush1.bf16.xpose.msra.mxu0 0
        %3780 = vmatprep.subr.bf16.mxu0 0
        %3781 = vmatpush1.bf16.xpose.msra.mxu0 0
        %3782 = vmatprep.subr.bf16.mxu0 0
        %3783 = vmatpush1.bf16.xpose.msra.mxu0 0
        %3784 = vmatprep.mubr.bf16.mxu0 0
        %3785 = vmatmul.mubr.bf16.gmra.mrb[0].mxu0 %v3750
        %v3786 = vpop.f32.mrb[0].mxu0
        %v3787 = vadd.f32 0.0, %v3786
        %v3788 = vpop.f32.mrb[0].mxu0
        %v3789 = vpop.f32.mrb[0].mxu0
        %v3790 = vpop.f32.mrb[0].mxu0
        %3791 = vdwg.mxu0
        %v3792 = vmul.f32 %v3787, 0.5
        %v3793 = vadd.f32 %v3792, %v393
        %v3794 = vsel %vm3728, %v3793, -inf
        %3795 = vmax.xlane.f32.xlu0 %v3794
        %v3796 = vpop.xlane.xlu0 %3795
        %v3797 = vsub.f32 %v3793, %v3796
        %v3798 = vmul.f32 %v3797, 1.442695
        %v3799 = vpow.pop %v3798
        %v3800 = vsel %vm3728, %v3799, 0.0
        %3801 = vadd.xlane.f32.xlu0 %v3800
        %v3802 = vpop.xlane.xlu0 %3801
        %v3803 = vrcp.pop %v3802
        %v3804 = vmul.f32 %v3799, %v3803
        %v3805 = vpack.c.bf16 %v3804, %v3804
        %3807 = vrot.lane.b32.xlu0 %v3748, 64
        %v3808 = vpop.permute.xlu0 %3807
        %v3811 = vsel %vm656, %v3805, 0
        %3813 = vmatprep.subr.bf16.mxu0 0
        %3814 = vmatpush1.bf16.msra.mxu0 %v3808
        %3815 = vmatprep.subr.bf16.mxu0 0
        %3816 = vmatpush1.bf16.msra.mxu0 0
        %3817 = vmatprep.subr.bf16.mxu0 0
        %3818 = vmatpush1.bf16.msra.mxu0 0
        %3819 = vmatprep.subr.bf16.mxu0 0
        %3820 = vmatpush1.bf16.msra.mxu0 0
        %3821 = vmatprep.subr.bf16.mxu0 0
        %3822 = vmatpush1.bf16.msra.mxu0 0
        %3823 = vmatprep.subr.bf16.mxu0 0
        %3824 = vmatpush1.bf16.msra.mxu0 0
        %3825 = vmatprep.subr.bf16.mxu0 0
        %3826 = vmatpush1.bf16.msra.mxu0 0
        %3827 = vmatprep.subr.bf16.mxu0 0
        %3828 = vmatpush1.bf16.msra.mxu0 0
        %3829 = vmatprep.subr.bf16.mxu0 0
        %3830 = vmatpush1.bf16.msra.mxu0 0
        %3831 = vmatprep.subr.bf16.mxu0 0
        %3832 = vmatpush1.bf16.msra.mxu0 0
        %3833 = vmatprep.subr.bf16.mxu0 0
        %3834 = vmatpush1.bf16.msra.mxu0 0
        %3835 = vmatprep.subr.bf16.mxu0 0
        %3836 = vmatpush1.bf16.msra.mxu0 0
        %3837 = vmatprep.subr.bf16.mxu0 0
        %3838 = vmatpush1.bf16.msra.mxu0 0
        %3839 = vmatprep.subr.bf16.mxu0 0
        %3840 = vmatpush1.bf16.msra.mxu0 0
        %3841 = vmatprep.subr.bf16.mxu0 0
        %3842 = vmatpush1.bf16.msra.mxu0 0
        %3843 = vmatprep.subr.bf16.mxu0 0
        %3844 = vmatpush1.bf16.msra.mxu0 0
        %3845 = vmatprep.mubr.bf16.mxu0 0
        %3846 = vmatmul.mubr.bf16.gmra.mrb[0].mxu0 %v3811
        %v3847 = vpop.f32.mrb[0].mxu0
        %v3848 = vadd.f32 0.0, %v3847
        %v3849 = vpop.f32.mrb[0].mxu0
        %v3850 = vpop.f32.mrb[0].mxu0
        %v3851 = vpop.f32.mrb[0].mxu0
        %3852 = vdwg.mxu0
        %3854 = vrot.lane.b32.xlu0 %v3676, 64
        %v3855 = vpop.permute.xlu0 %3854
        %v3858 = vsel %vm656, %v3740, 0
        %3860 = vmatprep.subr.bf16.mxu0 0
        %3861 = vmatpush1.bf16.msra.mxu0 %v3855
        %3862 = vmatprep.subr.bf16.mxu0 0
        %3863 = vmatpush1.bf16.msra.mxu0 0
        %3864 = vmatprep.subr.bf16.mxu0 0
        %3865 = vmatpush1.bf16.msra.mxu0 0
        %3866 = vmatprep.subr.bf16.mxu0 0
        %3867 = vmatpush1.bf16.msra.mxu0 0
        %3868 = vmatprep.subr.bf16.mxu0 0
        %3869 = vmatpush1.bf16.msra.mxu0 0
        %3870 = vmatprep.subr.bf16.mxu0 0
        %3871 = vmatpush1.bf16.msra.mxu0 0
        %3872 = vmatprep.subr.bf16.mxu0 0
        %3873 = vmatpush1.bf16.msra.mxu0 0
        %3874 = vmatprep.subr.bf16.mxu0 0
        %3875 = vmatpush1.bf16.msra.mxu0 0
        %3876 = vmatprep.subr.bf16.mxu0 0
        %3877 = vmatpush1.bf16.msra.mxu0 0
        %3878 = vmatprep.subr.bf16.mxu0 0
        %3879 = vmatpush1.bf16.msra.mxu0 0
        %3880 = vmatprep.subr.bf16.mxu0 0
        %3881 = vmatpush1.bf16.msra.mxu0 0
        %3882 = vmatprep.subr.bf16.mxu0 0
        %3883 = vmatpush1.bf16.msra.mxu0 0
        %3884 = vmatprep.subr.bf16.mxu0 0
        %3885 = vmatpush1.bf16.msra.mxu0 0
        %3886 = vmatprep.subr.bf16.mxu0 0
        %3887 = vmatpush1.bf16.msra.mxu0 0
        %3888 = vmatprep.subr.bf16.mxu0 0
        %3889 = vmatpush1.bf16.msra.mxu0 0
        %3890 = vmatprep.subr.bf16.mxu0 0
        %3891 = vmatpush1.bf16.msra.mxu0 0
        %3892 = vmatprep.mubr.bf16.mxu0 0
        %3893 = vmatmul.mubr.bf16.gmra.mrb[0].mxu0 %v3858
        %v3894 = vpop.f32.mrb[0].mxu0
        %v3895 = vadd.f32 %v3848, %v3894
        %v3896 = vpop.f32.mrb[0].mxu0
        %v3897 = vpop.f32.mrb[0].mxu0
        %v3898 = vpop.f32.mrb[0].mxu0
        %3899 = vdwg.mxu0
        %v3900 = vrot.slane %v390, 2
        %v3902 = vmul.f32 %v3617, %v3900
        %v3903 = vpack.c.bf16 %v3902, %v3902
        %v3904 = vmul.f32 %v3665, %v870
        %v3905 = vmul.f32 %v3668, %v870
        %v3906 = vpack.c.bf16 %v3905, %v3904
        %v3908 = vsel %vm482, %v3903, 0
        %3910 = vmatprep.subr.bf16.mxu0 0
        %3911 = vmatpush1.bf16.xpose.msra.mxu0 %v3684
        %3912 = vmatprep.subr.bf16.mxu0 0
        %3913 = vmatpush1.bf16.xpose.msra.mxu0 0
        %3914 = vmatprep.subr.bf16.mxu0 0
        %3915 = vmatpush1.bf16.xpose.msra.mxu0 0
        %3916 = vmatprep.subr.bf16.mxu0 0
        %3917 = vmatpush1.bf16.xpose.msra.mxu0 0
        %3918 = vmatprep.subr.bf16.mxu0 0
        %3919 = vmatpush1.bf16.xpose.msra.mxu0 0
        %3920 = vmatprep.subr.bf16.mxu0 0
        %3921 = vmatpush1.bf16.xpose.msra.mxu0 0
        %3922 = vmatprep.subr.bf16.mxu0 0
        %3923 = vmatpush1.bf16.xpose.msra.mxu0 0
        %3924 = vmatprep.subr.bf16.mxu0 0
        %3925 = vmatpush1.bf16.xpose.msra.mxu0 0
        %3926 = vmatprep.subr.bf16.mxu0 0
        %3927 = vmatpush1.bf16.xpose.msra.mxu0 0
        %3928 = vmatprep.subr.bf16.mxu0 0
        %3929 = vmatpush1.bf16.xpose.msra.mxu0 0
        %3930 = vmatprep.subr.bf16.mxu0 0
        %3931 = vmatpush1.bf16.xpose.msra.mxu0 0
        %3932 = vmatprep.subr.bf16.mxu0 0
        %3933 = vmatpush1.bf16.xpose.msra.mxu0 0
        %3934 = vmatprep.subr.bf16.mxu0 0
        %3935 = vmatpush1.bf16.xpose.msra.mxu0 0
        %3936 = vmatprep.subr.bf16.mxu0 0
        %3937 = vmatpush1.bf16.xpose.msra.mxu0 0
        %3938 = vmatprep.subr.bf16.mxu0 0
        %3939 = vmatpush1.bf16.xpose.msra.mxu0 0
        %3940 = vmatprep.subr.bf16.mxu0 0
        %3941 = vmatpush1.bf16.xpose.msra.mxu0 0
        %3942 = vmatprep.mubr.bf16.mxu0 0
        %3943 = vmatmul.mubr.bf16.gmra.mrb[0].mxu0 %v3908
        %v3944 = vpop.f32.mrb[0].mxu0
        %v3945 = vadd.f32 0.0, %v3944
        %v3946 = vpop.f32.mrb[0].mxu0
        %v3947 = vpop.f32.mrb[0].mxu0
        %v3948 = vpop.f32.mrb[0].mxu0
        %3949 = vdwg.mxu0
        %v3950 = vmul.f32 %v3945, 0.5
        %v3951 = vadd.f32 %v3950, %v393
        %v3952 = vsel %vm3728, %v3951, -inf
        %3953 = vmax.xlane.f32.xlu0 %v3952
        %v3954 = vpop.xlane.xlu0 %3953
        %v3955 = vsub.f32 %v3951, %v3954
        %v3956 = vmul.f32 %v3955, 1.442695
        %v3957 = vpow.pop %v3956
        %v3958 = vsel %vm3728, %v3957, 0.0
        %3959 = vadd.xlane.f32.xlu0 %v3958
        %v3960 = vpop.xlane.xlu0 %3959
        %v3961 = vrcp.pop %v3960
        %v3962 = vmul.f32 %v3957, %v3961
        %v3963 = vpack.c.bf16 %v3962, %v3962
        %3965 = vrot.lane.b32.xlu0 %v3906, 64
        %v3966 = vpop.permute.xlu0 %3965
        %v3969 = vsel %vm656, %v3963, 0
        %3971 = vmatprep.subr.bf16.mxu0 0
        %3972 = vmatpush1.bf16.msra.mxu0 %v3966
        %3973 = vmatprep.subr.bf16.mxu0 0
        %3974 = vmatpush1.bf16.msra.mxu0 0
        %3975 = vmatprep.subr.bf16.mxu0 0
        %3976 = vmatpush1.bf16.msra.mxu0 0
        %3977 = vmatprep.subr.bf16.mxu0 0
        %3978 = vmatpush1.bf16.msra.mxu0 0
        %3979 = vmatprep.subr.bf16.mxu0 0
        %3980 = vmatpush1.bf16.msra.mxu0 0
        %3981 = vmatprep.subr.bf16.mxu0 0
        %3982 = vmatpush1.bf16.msra.mxu0 0
        %3983 = vmatprep.subr.bf16.mxu0 0
        %3984 = vmatpush1.bf16.msra.mxu0 0
        %3985 = vmatprep.subr.bf16.mxu0 0
        %3986 = vmatpush1.bf16.msra.mxu0 0
        %3987 = vmatprep.subr.bf16.mxu0 0
        %3988 = vmatpush1.bf16.msra.mxu0 0
        %3989 = vmatprep.subr.bf16.mxu0 0
        %3990 = vmatpush1.bf16.msra.mxu0 0
        %3991 = vmatprep.subr.bf16.mxu0 0
        %3992 = vmatpush1.bf16.msra.mxu0 0
        %3993 = vmatprep.subr.bf16.mxu0 0
        %3994 = vmatpush1.bf16.msra.mxu0 0
        %3995 = vmatprep.subr.bf16.mxu0 0
        %3996 = vmatpush1.bf16.msra.mxu0 0
        %3997 = vmatprep.subr.bf16.mxu0 0
        %3998 = vmatpush1.bf16.msra.mxu0 0
        %3999 = vmatprep.subr.bf16.mxu0 0
        %4000 = vmatpush1.bf16.msra.mxu0 0
        %4001 = vmatprep.subr.bf16.mxu0 0
        %4002 = vmatpush1.bf16.msra.mxu0 0
        %4003 = vmatprep.mubr.bf16.mxu0 0
        %4004 = vmatmul.mubr.bf16.gmra.mrb[0].mxu0 %v3969
        %v4005 = vpop.f32.mrb[0].mxu0
        %v4006 = vadd.f32 0.0, %v4005
        %v4007 = vpop.f32.mrb[0].mxu0
        %v4008 = vpop.f32.mrb[0].mxu0
        %v4009 = vpop.f32.mrb[0].mxu0
        %4010 = vdwg.mxu0
        %v4011 = vadd.f32 %v3895, %v4006
        %v4012 = vrot.slane %v390, 3
        %v4014 = vmul.f32 %v3617, %v4012
        %v4015 = vpack.c.bf16 %v4014, %v4014
        %v4016 = vmul.f32 %v3665, %v1005
        %v4017 = vmul.f32 %v3668, %v1005
        %v4018 = vpack.c.bf16 %v4017, %v4016
        %v4020 = vsel %vm482, %v4015, 0
        %4022 = vmatprep.subr.bf16.mxu0 0
        %4023 = vmatpush1.bf16.xpose.msra.mxu0 %v3684
        %4024 = vmatprep.subr.bf16.mxu0 0
        %4025 = vmatpush1.bf16.xpose.msra.mxu0 0
        %4026 = vmatprep.subr.bf16.mxu0 0
        %4027 = vmatpush1.bf16.xpose.msra.mxu0 0
        %4028 = vmatprep.subr.bf16.mxu0 0
        %4029 = vmatpush1.bf16.xpose.msra.mxu0 0
        %4030 = vmatprep.subr.bf16.mxu0 0
        %4031 = vmatpush1.bf16.xpose.msra.mxu0 0
        %4032 = vmatprep.subr.bf16.mxu0 0
        %4033 = vmatpush1.bf16.xpose.msra.mxu0 0
        %4034 = vmatprep.subr.bf16.mxu0 0
        %4035 = vmatpush1.bf16.xpose.msra.mxu0 0
        %4036 = vmatprep.subr.bf16.mxu0 0
        %4037 = vmatpush1.bf16.xpose.msra.mxu0 0
        %4038 = vmatprep.subr.bf16.mxu0 0
        %4039 = vmatpush1.bf16.xpose.msra.mxu0 0
        %4040 = vmatprep.subr.bf16.mxu0 0
        %4041 = vmatpush1.bf16.xpose.msra.mxu0 0
        %4042 = vmatprep.subr.bf16.mxu0 0
        %4043 = vmatpush1.bf16.xpose.msra.mxu0 0
        %4044 = vmatprep.subr.bf16.mxu0 0
        %4045 = vmatpush1.bf16.xpose.msra.mxu0 0
        %4046 = vmatprep.subr.bf16.mxu0 0
        %4047 = vmatpush1.bf16.xpose.msra.mxu0 0
        %4048 = vmatprep.subr.bf16.mxu0 0
        %4049 = vmatpush1.bf16.xpose.msra.mxu0 0
        %4050 = vmatprep.subr.bf16.mxu0 0
        %4051 = vmatpush1.bf16.xpose.msra.mxu0 0
        %4052 = vmatprep.subr.bf16.mxu0 0
        %4053 = vmatpush1.bf16.xpose.msra.mxu0 0
        %4054 = vmatprep.mubr.bf16.mxu0 0
        %4055 = vmatmul.mubr.bf16.gmra.mrb[0].mxu0 %v4020
        %v4056 = vpop.f32.mrb[0].mxu0
        %v4057 = vadd.f32 0.0, %v4056
        %v4058 = vpop.f32.mrb[0].mxu0
        %v4059 = vpop.f32.mrb[0].mxu0
        %v4060 = vpop.f32.mrb[0].mxu0
        %4061 = vdwg.mxu0
        %v4062 = vmul.f32 %v4057, 0.5
        %v4063 = vadd.f32 %v4062, %v393
        %v4064 = vsel %vm3728, %v4063, -inf
        %4065 = vmax.xlane.f32.xlu0 %v4064
        %v4066 = vpop.xlane.xlu0 %4065
        %v4067 = vsub.f32 %v4063, %v4066
        %v4068 = vmul.f32 %v4067, 1.442695
        %v4069 = vpow.pop %v4068
        %v4070 = vsel %vm3728, %v4069, 0.0
        %4071 = vadd.xlane.f32.xlu0 %v4070
        %v4072 = vpop.xlane.xlu0 %4071
        %v4073 = vrcp.pop %v4072
        %v4074 = vmul.f32 %v4069, %v4073
        %v4075 = vpack.c.bf16 %v4074, %v4074
        %4077 = vrot.lane.b32.xlu0 %v4018, 64
        %v4078 = vpop.permute.xlu0 %4077
        %v4081 = vsel %vm656, %v4075, 0
        %4083 = vmatprep.subr.bf16.mxu0 0
        %4084 = vmatpush1.bf16.msra.mxu0 %v4078
        %4085 = vmatprep.subr.bf16.mxu0 0
        %4086 = vmatpush1.bf16.msra.mxu0 0
        %4087 = vmatprep.subr.bf16.mxu0 0
        %4088 = vmatpush1.bf16.msra.mxu0 0
        %4089 = vmatprep.subr.bf16.mxu0 0
        %4090 = vmatpush1.bf16.msra.mxu0 0
        %4091 = vmatprep.subr.bf16.mxu0 0
        %4092 = vmatpush1.bf16.msra.mxu0 0
        %4093 = vmatprep.subr.bf16.mxu0 0
        %4094 = vmatpush1.bf16.msra.mxu0 0
        %4095 = vmatprep.subr.bf16.mxu0 0
        %4096 = vmatpush1.bf16.msra.mxu0 0
        %4097 = vmatprep.subr.bf16.mxu0 0
        %4098 = vmatpush1.bf16.msra.mxu0 0
        %4099 = vmatprep.subr.bf16.mxu0 0
        %4100 = vmatpush1.bf16.msra.mxu0 0
        %4101 = vmatprep.subr.bf16.mxu0 0
        %4102 = vmatpush1.bf16.msra.mxu0 0
        %4103 = vmatprep.subr.bf16.mxu0 0
        %4104 = vmatpush1.bf16.msra.mxu0 0
        %4105 = vmatprep.subr.bf16.mxu0 0
        %4106 = vmatpush1.bf16.msra.mxu0 0
        %4107 = vmatprep.subr.bf16.mxu0 0
        %4108 = vmatpush1.bf16.msra.mxu0 0
        %4109 = vmatprep.subr.bf16.mxu0 0
        %4110 = vmatpush1.bf16.msra.mxu0 0
        %4111 = vmatprep.subr.bf16.mxu0 0
        %4112 = vmatpush1.bf16.msra.mxu0 0
        %4113 = vmatprep.subr.bf16.mxu0 0
        %4114 = vmatpush1.bf16.msra.mxu0 0
        %4115 = vmatprep.mubr.bf16.mxu0 0
        %4116 = vmatmul.mubr.bf16.gmra.mrb[0].mxu0 %v4081
        %v4117 = vpop.f32.mrb[0].mxu0
        %v4118 = vadd.f32 0.0, %v4117
        %v4119 = vpop.f32.mrb[0].mxu0
        %v4120 = vpop.f32.mrb[0].mxu0
        %v4121 = vpop.f32.mrb[0].mxu0
        %4122 = vdwg.mxu0
        %v4123 = vadd.f32 %v4011, %v4118
        %v4124 = vrot.slane %v390, 4
        %v4126 = vmul.f32 %v3617, %v4124
        %v4127 = vpack.c.bf16 %v4126, %v4126
        %v4128 = vmul.f32 %v3665, %v1140
        %v4129 = vmul.f32 %v3668, %v1140
        %v4130 = vpack.c.bf16 %v4129, %v4128
        %v4132 = vsel %vm482, %v4127, 0
        %4134 = vmatprep.subr.bf16.mxu0 0
        %4135 = vmatpush1.bf16.xpose.msra.mxu0 %v3684
        %4136 = vmatprep.subr.bf16.mxu0 0
        %4137 = vmatpush1.bf16.xpose.msra.mxu0 0
        %4138 = vmatprep.subr.bf16.mxu0 0
        %4139 = vmatpush1.bf16.xpose.msra.mxu0 0
        %4140 = vmatprep.subr.bf16.mxu0 0
        %4141 = vmatpush1.bf16.xpose.msra.mxu0 0
        %4142 = vmatprep.subr.bf16.mxu0 0
        %4143 = vmatpush1.bf16.xpose.msra.mxu0 0
        %4144 = vmatprep.subr.bf16.mxu0 0
        %4145 = vmatpush1.bf16.xpose.msra.mxu0 0
        %4146 = vmatprep.subr.bf16.mxu0 0
        %4147 = vmatpush1.bf16.xpose.msra.mxu0 0
        %4148 = vmatprep.subr.bf16.mxu0 0
        %4149 = vmatpush1.bf16.xpose.msra.mxu0 0
        %4150 = vmatprep.subr.bf16.mxu0 0
        %4151 = vmatpush1.bf16.xpose.msra.mxu0 0
        %4152 = vmatprep.subr.bf16.mxu0 0
        %4153 = vmatpush1.bf16.xpose.msra.mxu0 0
        %4154 = vmatprep.subr.bf16.mxu0 0
        %4155 = vmatpush1.bf16.xpose.msra.mxu0 0
        %4156 = vmatprep.subr.bf16.mxu0 0
        %4157 = vmatpush1.bf16.xpose.msra.mxu0 0
        %4158 = vmatprep.subr.bf16.mxu0 0
        %4159 = vmatpush1.bf16.xpose.msra.mxu0 0
        %4160 = vmatprep.subr.bf16.mxu0 0
        %4161 = vmatpush1.bf16.xpose.msra.mxu0 0
        %4162 = vmatprep.subr.bf16.mxu0 0
        %4163 = vmatpush1.bf16.xpose.msra.mxu0 0
        %4164 = vmatprep.subr.bf16.mxu0 0
        %4165 = vmatpush1.bf16.xpose.msra.mxu0 0
        %4166 = vmatprep.mubr.bf16.mxu0 0
        %4167 = vmatmul.mubr.bf16.gmra.mrb[0].mxu0 %v4132
        %v4168 = vpop.f32.mrb[0].mxu0
        %v4169 = vadd.f32 0.0, %v4168
        %v4170 = vpop.f32.mrb[0].mxu0
        %v4171 = vpop.f32.mrb[0].mxu0
        %v4172 = vpop.f32.mrb[0].mxu0
        %4173 = vdwg.mxu0
        %v4174 = vmul.f32 %v4169, 0.5
        %v4175 = vadd.f32 %v4174, %v393
        %v4176 = vsel %vm3728, %v4175, -inf
        %4177 = vmax.xlane.f32.xlu0 %v4176
        %v4178 = vpop.xlane.xlu0 %4177
        %v4179 = vsub.f32 %v4175, %v4178
        %v4180 = vmul.f32 %v4179, 1.442695
        %v4181 = vpow.pop %v4180
        %v4182 = vsel %vm3728, %v4181, 0.0
        %4183 = vadd.xlane.f32.xlu0 %v4182
        %v4184 = vpop.xlane.xlu0 %4183
        %v4185 = vrcp.pop %v4184
        %v4186 = vmul.f32 %v4181, %v4185
        %v4187 = vpack.c.bf16 %v4186, %v4186
        %4189 = vrot.lane.b32.xlu0 %v4130, 64
        %v4190 = vpop.permute.xlu0 %4189
        %v4193 = vsel %vm656, %v4187, 0
        %4195 = vmatprep.subr.bf16.mxu0 0
        %4196 = vmatpush1.bf16.msra.mxu0 %v4190
        %4197 = vmatprep.subr.bf16.mxu0 0
        %4198 = vmatpush1.bf16.msra.mxu0 0
        %4199 = vmatprep.subr.bf16.mxu0 0
        %4200 = vmatpush1.bf16.msra.mxu0 0
        %4201 = vmatprep.subr.bf16.mxu0 0
        %4202 = vmatpush1.bf16.msra.mxu0 0
        %4203 = vmatprep.subr.bf16.mxu0 0
        %4204 = vmatpush1.bf16.msra.mxu0 0
        %4205 = vmatprep.subr.bf16.mxu0 0
        %4206 = vmatpush1.bf16.msra.mxu0 0
        %4207 = vmatprep.subr.bf16.mxu0 0
        %4208 = vmatpush1.bf16.msra.mxu0 0
        %4209 = vmatprep.subr.bf16.mxu0 0
        %4210 = vmatpush1.bf16.msra.mxu0 0
        %4211 = vmatprep.subr.bf16.mxu0 0
        %4212 = vmatpush1.bf16.msra.mxu0 0
        %4213 = vmatprep.subr.bf16.mxu0 0
        %4214 = vmatpush1.bf16.msra.mxu0 0
        %4215 = vmatprep.subr.bf16.mxu0 0
        %4216 = vmatpush1.bf16.msra.mxu0 0
        %4217 = vmatprep.subr.bf16.mxu0 0
        %4218 = vmatpush1.bf16.msra.mxu0 0
        %4219 = vmatprep.subr.bf16.mxu0 0
        %4220 = vmatpush1.bf16.msra.mxu0 0
        %4221 = vmatprep.subr.bf16.mxu0 0
        %4222 = vmatpush1.bf16.msra.mxu0 0
        %4223 = vmatprep.subr.bf16.mxu0 0
        %4224 = vmatpush1.bf16.msra.mxu0 0
        %4225 = vmatprep.subr.bf16.mxu0 0
        %4226 = vmatpush1.bf16.msra.mxu0 0
        %4227 = vmatprep.mubr.bf16.mxu0 0
        %4228 = vmatmul.mubr.bf16.gmra.mrb[0].mxu0 %v4193
        %v4229 = vpop.f32.mrb[0].mxu0
        %v4230 = vadd.f32 0.0, %v4229
        %v4231 = vpop.f32.mrb[0].mxu0
        %v4232 = vpop.f32.mrb[0].mxu0
        %v4233 = vpop.f32.mrb[0].mxu0
        %4234 = vdwg.mxu0
        %v4235 = vadd.f32 %v4123, %v4230
        %v4236 = vrot.slane %v390, 5
        %v4238 = vmul.f32 %v3617, %v4236
        %v4239 = vpack.c.bf16 %v4238, %v4238
        %v4240 = vmul.f32 %v3665, %v1275
        %v4241 = vmul.f32 %v3668, %v1275
        %v4242 = vpack.c.bf16 %v4241, %v4240
        %v4244 = vsel %vm482, %v4239, 0
        %4246 = vmatprep.subr.bf16.mxu0 0
        %4247 = vmatpush1.bf16.xpose.msra.mxu0 %v3684
        %4248 = vmatprep.subr.bf16.mxu0 0
        %4249 = vmatpush1.bf16.xpose.msra.mxu0 0
        %4250 = vmatprep.subr.bf16.mxu0 0
        %4251 = vmatpush1.bf16.xpose.msra.mxu0 0
        %4252 = vmatprep.subr.bf16.mxu0 0
        %4253 = vmatpush1.bf16.xpose.msra.mxu0 0
        %4254 = vmatprep.subr.bf16.mxu0 0
        %4255 = vmatpush1.bf16.xpose.msra.mxu0 0
        %4256 = vmatprep.subr.bf16.mxu0 0
        %4257 = vmatpush1.bf16.xpose.msra.mxu0 0
        %4258 = vmatprep.subr.bf16.mxu0 0
        %4259 = vmatpush1.bf16.xpose.msra.mxu0 0
        %4260 = vmatprep.subr.bf16.mxu0 0
        %4261 = vmatpush1.bf16.xpose.msra.mxu0 0
        %4262 = vmatprep.subr.bf16.mxu0 0
        %4263 = vmatpush1.bf16.xpose.msra.mxu0 0
        %4264 = vmatprep.subr.bf16.mxu0 0
        %4265 = vmatpush1.bf16.xpose.msra.mxu0 0
        %4266 = vmatprep.subr.bf16.mxu0 0
        %4267 = vmatpush1.bf16.xpose.msra.mxu0 0
        %4268 = vmatprep.subr.bf16.mxu0 0
        %4269 = vmatpush1.bf16.xpose.msra.mxu0 0
        %4270 = vmatprep.subr.bf16.mxu0 0
        %4271 = vmatpush1.bf16.xpose.msra.mxu0 0
        %4272 = vmatprep.subr.bf16.mxu0 0
        %4273 = vmatpush1.bf16.xpose.msra.mxu0 0
        %4274 = vmatprep.subr.bf16.mxu0 0
        %4275 = vmatpush1.bf16.xpose.msra.mxu0 0
        %4276 = vmatprep.subr.bf16.mxu0 0
        %4277 = vmatpush1.bf16.xpose.msra.mxu0 0
        %4278 = vmatprep.mubr.bf16.mxu0 0
        %4279 = vmatmul.mubr.bf16.gmra.mrb[0].mxu0 %v4244
        %v4280 = vpop.f32.mrb[0].mxu0
        %v4281 = vadd.f32 0.0, %v4280
        %v4282 = vpop.f32.mrb[0].mxu0
        %v4283 = vpop.f32.mrb[0].mxu0
        %v4284 = vpop.f32.mrb[0].mxu0
        %4285 = vdwg.mxu0
        %v4286 = vmul.f32 %v4281, 0.5
        %v4287 = vadd.f32 %v4286, %v393
        %v4288 = vsel %vm3728, %v4287, -inf
        %4289 = vmax.xlane.f32.xlu0 %v4288
        %v4290 = vpop.xlane.xlu0 %4289
        %v4291 = vsub.f32 %v4287, %v4290
        %v4292 = vmul.f32 %v4291, 1.442695
        %v4293 = vpow.pop %v4292
        %v4294 = vsel %vm3728, %v4293, 0.0
        %4295 = vadd.xlane.f32.xlu0 %v4294
        %v4296 = vpop.xlane.xlu0 %4295
        %v4297 = vrcp.pop %v4296
        %v4298 = vmul.f32 %v4293, %v4297
        %v4299 = vpack.c.bf16 %v4298, %v4298
        %4301 = vrot.lane.b32.xlu0 %v4242, 64
        %v4302 = vpop.permute.xlu0 %4301
        %v4305 = vsel %vm656, %v4299, 0
        %4307 = vmatprep.subr.bf16.mxu0 0
        %4308 = vmatpush1.bf16.msra.mxu0 %v4302
        %4309 = vmatprep.subr.bf16.mxu0 0
        %4310 = vmatpush1.bf16.msra.mxu0 0
        %4311 = vmatprep.subr.bf16.mxu0 0
        %4312 = vmatpush1.bf16.msra.mxu0 0
        %4313 = vmatprep.subr.bf16.mxu0 0
        %4314 = vmatpush1.bf16.msra.mxu0 0
        %4315 = vmatprep.subr.bf16.mxu0 0
        %4316 = vmatpush1.bf16.msra.mxu0 0
        %4317 = vmatprep.subr.bf16.mxu0 0
        %4318 = vmatpush1.bf16.msra.mxu0 0
        %4319 = vmatprep.subr.bf16.mxu0 0
        %4320 = vmatpush1.bf16.msra.mxu0 0
        %4321 = vmatprep.subr.bf16.mxu0 0
        %4322 = vmatpush1.bf16.msra.mxu0 0
        %4323 = vmatprep.subr.bf16.mxu0 0
        %4324 = vmatpush1.bf16.msra.mxu0 0
        %4325 = vmatprep.subr.bf16.mxu0 0
        %4326 = vmatpush1.bf16.msra.mxu0 0
        %4327 = vmatprep.subr.bf16.mxu0 0
        %4328 = vmatpush1.bf16.msra.mxu0 0
        %4329 = vmatprep.subr.bf16.mxu0 0
        %4330 = vmatpush1.bf16.msra.mxu0 0
        %4331 = vmatprep.subr.bf16.mxu0 0
        %4332 = vmatpush1.bf16.msra.mxu0 0
        %4333 = vmatprep.subr.bf16.mxu0 0
        %4334 = vmatpush1.bf16.msra.mxu0 0
        %4335 = vmatprep.subr.bf16.mxu0 0
        %4336 = vmatpush1.bf16.msra.mxu0 0
        %4337 = vmatprep.subr.bf16.mxu0 0
        %4338 = vmatpush1.bf16.msra.mxu0 0
        %4339 = vmatprep.mubr.bf16.mxu0 0
        %4340 = vmatmul.mubr.bf16.gmra.mrb[0].mxu0 %v4305
        %v4341 = vpop.f32.mrb[0].mxu0
        %v4342 = vadd.f32 0.0, %v4341
        %v4343 = vpop.f32.mrb[0].mxu0
        %v4344 = vpop.f32.mrb[0].mxu0
        %v4345 = vpop.f32.mrb[0].mxu0
        %4346 = vdwg.mxu0
        %v4347 = vadd.f32 %v4235, %v4342
        %v4348 = vrot.slane %v390, 6
        %v4350 = vmul.f32 %v3617, %v4348
        %v4351 = vpack.c.bf16 %v4350, %v4350
        %v4352 = vmul.f32 %v3665, %v1410
        %v4353 = vmul.f32 %v3668, %v1410
        %v4354 = vpack.c.bf16 %v4353, %v4352
        %v4356 = vsel %vm482, %v4351, 0
        %4358 = vmatprep.subr.bf16.mxu0 0
        %4359 = vmatpush1.bf16.xpose.msra.mxu0 %v3684
        %4360 = vmatprep.subr.bf16.mxu0 0
        %4361 = vmatpush1.bf16.xpose.msra.mxu0 0
        %4362 = vmatprep.subr.bf16.mxu0 0
        %4363 = vmatpush1.bf16.xpose.msra.mxu0 0
        %4364 = vmatprep.subr.bf16.mxu0 0
        %4365 = vmatpush1.bf16.xpose.msra.mxu0 0
        %4366 = vmatprep.subr.bf16.mxu0 0
        %4367 = vmatpush1.bf16.xpose.msra.mxu0 0
        %4368 = vmatprep.subr.bf16.mxu0 0
        %4369 = vmatpush1.bf16.xpose.msra.mxu0 0
        %4370 = vmatprep.subr.bf16.mxu0 0
        %4371 = vmatpush1.bf16.xpose.msra.mxu0 0
        %4372 = vmatprep.subr.bf16.mxu0 0
        %4373 = vmatpush1.bf16.xpose.msra.mxu0 0
        %4374 = vmatprep.subr.bf16.mxu0 0
        %4375 = vmatpush1.bf16.xpose.msra.mxu0 0
        %4376 = vmatprep.subr.bf16.mxu0 0
        %4377 = vmatpush1.bf16.xpose.msra.mxu0 0
        %4378 = vmatprep.subr.bf16.mxu0 0
        %4379 = vmatpush1.bf16.xpose.msra.mxu0 0
        %4380 = vmatprep.subr.bf16.mxu0 0
        %4381 = vmatpush1.bf16.xpose.msra.mxu0 0
        %4382 = vmatprep.subr.bf16.mxu0 0
        %4383 = vmatpush1.bf16.xpose.msra.mxu0 0
        %4384 = vmatprep.subr.bf16.mxu0 0
        %4385 = vmatpush1.bf16.xpose.msra.mxu0 0
        %4386 = vmatprep.subr.bf16.mxu0 0
        %4387 = vmatpush1.bf16.xpose.msra.mxu0 0
        %4388 = vmatprep.subr.bf16.mxu0 0
        %4389 = vmatpush1.bf16.xpose.msra.mxu0 0
        %4390 = vmatprep.mubr.bf16.mxu0 0
        %4391 = vmatmul.mubr.bf16.gmra.mrb[0].mxu0 %v4356
        %v4392 = vpop.f32.mrb[0].mxu0
        %v4393 = vadd.f32 0.0, %v4392
        %v4394 = vpop.f32.mrb[0].mxu0
        %v4395 = vpop.f32.mrb[0].mxu0
        %v4396 = vpop.f32.mrb[0].mxu0
        %4397 = vdwg.mxu0
        %v4398 = vmul.f32 %v4393, 0.5
        %v4399 = vadd.f32 %v4398, %v393
        %v4400 = vsel %vm3728, %v4399, -inf
        %4401 = vmax.xlane.f32.xlu0 %v4400
        %v4402 = vpop.xlane.xlu0 %4401
        %v4403 = vsub.f32 %v4399, %v4402
        %v4404 = vmul.f32 %v4403, 1.442695
        %v4405 = vpow.pop %v4404
        %v4406 = vsel %vm3728, %v4405, 0.0
        %4407 = vadd.xlane.f32.xlu0 %v4406
        %v4408 = vpop.xlane.xlu0 %4407
        %v4409 = vrcp.pop %v4408
        %v4410 = vmul.f32 %v4405, %v4409
        %v4411 = vpack.c.bf16 %v4410, %v4410
        %4413 = vrot.lane.b32.xlu0 %v4354, 64
        %v4414 = vpop.permute.xlu0 %4413
        %v4417 = vsel %vm656, %v4411, 0
        %4419 = vmatprep.subr.bf16.mxu0 0
        %4420 = vmatpush1.bf16.msra.mxu0 %v4414
        %4421 = vmatprep.subr.bf16.mxu0 0
        %4422 = vmatpush1.bf16.msra.mxu0 0
        %4423 = vmatprep.subr.bf16.mxu0 0
        %4424 = vmatpush1.bf16.msra.mxu0 0
        %4425 = vmatprep.subr.bf16.mxu0 0
        %4426 = vmatpush1.bf16.msra.mxu0 0
        %4427 = vmatprep.subr.bf16.mxu0 0
        %4428 = vmatpush1.bf16.msra.mxu0 0
        %4429 = vmatprep.subr.bf16.mxu0 0
        %4430 = vmatpush1.bf16.msra.mxu0 0
        %4431 = vmatprep.subr.bf16.mxu0 0
        %4432 = vmatpush1.bf16.msra.mxu0 0
        %4433 = vmatprep.subr.bf16.mxu0 0
        %4434 = vmatpush1.bf16.msra.mxu0 0
        %4435 = vmatprep.subr.bf16.mxu0 0
        %4436 = vmatpush1.bf16.msra.mxu0 0
        %4437 = vmatprep.subr.bf16.mxu0 0
        %4438 = vmatpush1.bf16.msra.mxu0 0
        %4439 = vmatprep.subr.bf16.mxu0 0
        %4440 = vmatpush1.bf16.msra.mxu0 0
        %4441 = vmatprep.subr.bf16.mxu0 0
        %4442 = vmatpush1.bf16.msra.mxu0 0
        %4443 = vmatprep.subr.bf16.mxu0 0
        %4444 = vmatpush1.bf16.msra.mxu0 0
        %4445 = vmatprep.subr.bf16.mxu0 0
        %4446 = vmatpush1.bf16.msra.mxu0 0
        %4447 = vmatprep.subr.bf16.mxu0 0
        %4448 = vmatpush1.bf16.msra.mxu0 0
        %4449 = vmatprep.subr.bf16.mxu0 0
        %4450 = vmatpush1.bf16.msra.mxu0 0
        %4451 = vmatprep.mubr.bf16.mxu0 0
        %4452 = vmatmul.mubr.bf16.gmra.mrb[0].mxu0 %v4417
        %v4453 = vpop.f32.mrb[0].mxu0
        %v4454 = vadd.f32 0.0, %v4453
        %v4455 = vpop.f32.mrb[0].mxu0
        %v4456 = vpop.f32.mrb[0].mxu0
        %v4457 = vpop.f32.mrb[0].mxu0
        %4458 = vdwg.mxu0
        %v4459 = vadd.f32 %v4347, %v4454
        %v4460 = vrot.slane %v390, 7
        %v4462 = vmul.f32 %v3617, %v4460
        %v4463 = vpack.c.bf16 %v4462, %v4462
        %v4464 = vmul.f32 %v3665, %v1545
        %v4465 = vmul.f32 %v3668, %v1545
        %v4466 = vpack.c.bf16 %v4465, %v4464
        %v4468 = vsel %vm482, %v4463, 0
        %4470 = vmatprep.subr.bf16.mxu0 0
        %4471 = vmatpush1.bf16.xpose.msra.mxu0 %v3684
        %4472 = vmatprep.subr.bf16.mxu0 0
        %4473 = vmatpush1.bf16.xpose.msra.mxu0 0
        %4474 = vmatprep.subr.bf16.mxu0 0
        %4475 = vmatpush1.bf16.xpose.msra.mxu0 0
        %4476 = vmatprep.subr.bf16.mxu0 0
        %4477 = vmatpush1.bf16.xpose.msra.mxu0 0
        %4478 = vmatprep.subr.bf16.mxu0 0
        %4479 = vmatpush1.bf16.xpose.msra.mxu0 0
        %4480 = vmatprep.subr.bf16.mxu0 0
        %4481 = vmatpush1.bf16.xpose.msra.mxu0 0
        %4482 = vmatprep.subr.bf16.mxu0 0
        %4483 = vmatpush1.bf16.xpose.msra.mxu0 0
        %4484 = vmatprep.subr.bf16.mxu0 0
        %4485 = vmatpush1.bf16.xpose.msra.mxu0 0
        %4486 = vmatprep.subr.bf16.mxu0 0
        %4487 = vmatpush1.bf16.xpose.msra.mxu0 0
        %4488 = vmatprep.subr.bf16.mxu0 0
        %4489 = vmatpush1.bf16.xpose.msra.mxu0 0
        %4490 = vmatprep.subr.bf16.mxu0 0
        %4491 = vmatpush1.bf16.xpose.msra.mxu0 0
        %4492 = vmatprep.subr.bf16.mxu0 0
        %4493 = vmatpush1.bf16.xpose.msra.mxu0 0
        %4494 = vmatprep.subr.bf16.mxu0 0
        %4495 = vmatpush1.bf16.xpose.msra.mxu0 0
        %4496 = vmatprep.subr.bf16.mxu0 0
        %4497 = vmatpush1.bf16.xpose.msra.mxu0 0
        %4498 = vmatprep.subr.bf16.mxu0 0
        %4499 = vmatpush1.bf16.xpose.msra.mxu0 0
        %4500 = vmatprep.subr.bf16.mxu0 0
        %4501 = vmatpush1.bf16.xpose.msra.mxu0 0
        %4502 = vmatprep.mubr.bf16.mxu0 0
        %4503 = vmatmul.mubr.bf16.gmra.mrb[0].mxu0 %v4468
        %v4504 = vpop.f32.mrb[0].mxu0
        %v4505 = vadd.f32 0.0, %v4504
        %v4506 = vpop.f32.mrb[0].mxu0
        %v4507 = vpop.f32.mrb[0].mxu0
        %v4508 = vpop.f32.mrb[0].mxu0
        %4509 = vdwg.mxu0
        %v4510 = vmul.f32 %v4505, 0.5
        %v4511 = vadd.f32 %v4510, %v393
        %v4512 = vsel %vm3728, %v4511, -inf
        %4513 = vmax.xlane.f32.xlu0 %v4512
        %v4514 = vpop.xlane.xlu0 %4513
        %v4515 = vsub.f32 %v4511, %v4514
        %v4516 = vmul.f32 %v4515, 1.442695
        %v4517 = vpow.pop %v4516
        %v4518 = vsel %vm3728, %v4517, 0.0
        %4519 = vadd.xlane.f32.xlu0 %v4518
        %v4520 = vpop.xlane.xlu0 %4519
        %v4521 = vrcp.pop %v4520
        %v4522 = vmul.f32 %v4517, %v4521
        %v4523 = vpack.c.bf16 %v4522, %v4522
        %4525 = vrot.lane.b32.xlu0 %v4466, 64
        %v4526 = vpop.permute.xlu0 %4525
        %v4529 = vsel %vm656, %v4523, 0
        %4531 = vmatprep.subr.bf16.mxu0 0
        %4532 = vmatpush1.bf16.msra.mxu0 %v4526
        %4533 = vmatprep.subr.bf16.mxu0 0
        %4534 = vmatpush1.bf16.msra.mxu0 0
        %4535 = vmatprep.subr.bf16.mxu0 0
        %4536 = vmatpush1.bf16.msra.mxu0 0
        %4537 = vmatprep.subr.bf16.mxu0 0
        %4538 = vmatpush1.bf16.msra.mxu0 0
        %4539 = vmatprep.subr.bf16.mxu0 0
        %4540 = vmatpush1.bf16.msra.mxu0 0
        %4541 = vmatprep.subr.bf16.mxu0 0
        %4542 = vmatpush1.bf16.msra.mxu0 0
        %4543 = vmatprep.subr.bf16.mxu0 0
        %4544 = vmatpush1.bf16.msra.mxu0 0
        %4545 = vmatprep.subr.bf16.mxu0 0
        %4546 = vmatpush1.bf16.msra.mxu0 0
        %4547 = vmatprep.subr.bf16.mxu0 0
        %4548 = vmatpush1.bf16.msra.mxu0 0
        %4549 = vmatprep.subr.bf16.mxu0 0
        %4550 = vmatpush1.bf16.msra.mxu0 0
        %4551 = vmatprep.subr.bf16.mxu0 0
        %4552 = vmatpush1.bf16.msra.mxu0 0
        %4553 = vmatprep.subr.bf16.mxu0 0
        %4554 = vmatpush1.bf16.msra.mxu0 0
        %4555 = vmatprep.subr.bf16.mxu0 0
        %4556 = vmatpush1.bf16.msra.mxu0 0
        %4557 = vmatprep.subr.bf16.mxu0 0
        %4558 = vmatpush1.bf16.msra.mxu0 0
        %4559 = vmatprep.subr.bf16.mxu0 0
        %4560 = vmatpush1.bf16.msra.mxu0 0
        %4561 = vmatprep.subr.bf16.mxu0 0
        %4562 = vmatpush1.bf16.msra.mxu0 0
        %4563 = vmatprep.mubr.bf16.mxu0 0
        %4564 = vmatmul.mubr.bf16.gmra.mrb[0].mxu0 %v4529
        %v4565 = vpop.f32.mrb[0].mxu0
        %v4566 = vadd.f32 0.0, %v4565
        %v4567 = vpop.f32.mrb[0].mxu0
        %v4568 = vpop.f32.mrb[0].mxu0
        %v4569 = vpop.f32.mrb[0].mxu0
        %4570 = vdwg.mxu0
        %v4571 = vadd.f32 %v4459, %v4566
        %v4572 = vpack.c.bf16 %v4571, %v4571
        %s4573 = scalar_lea.vmem %s4, 48
        %v4574 = vld [vmem:[%s4573] sm:$0xf]
        %v4575 = vld [vmem:[%s4573 + $0x4] sm:$0xf]
        %v4576 = vld [vmem:[%s4573 + $0x8] sm:$0xf]
        %v4577 = vld [vmem:[%s4573 + $0xc] sm:$0xf]
        %v4582 = vunpack.c.l.b16 %v4574
        %v4583 = vunpack.c.l.b16 %v4575
        %v4584 = vunpack.c.l.b16 %v4576
        %v4585 = vunpack.c.l.b16 %v4577
        %v4586 = vpack.c.b16 %v4583, %v4582
        %v4587 = vpack.c.b16 %v4585, %v4584
        %v4591 = vsel %vm482, %v4572, 0
        %4593 = vmatprep.subr.bf16.mxu0 0
        %4594 = vmatpush1.bf16.msra.mxu0 %v4586
        %4595 = vmatprep.subr.bf16.mxu0 0
        %4596 = vmatpush1.bf16.msra.mxu0 %v4587
        %4597 = vmatprep.subr.bf16.mxu0 0
        %4598 = vmatpush1.bf16.msra.mxu0 0
        %4599 = vmatprep.subr.bf16.mxu0 0
        %4600 = vmatpush1.bf16.msra.mxu0 0
        %4601 = vmatprep.subr.bf16.mxu0 0
        %4602 = vmatpush1.bf16.msra.mxu0 0
        %4603 = vmatprep.subr.bf16.mxu0 0
        %4604 = vmatpush1.bf16.msra.mxu0 0
        %4605 = vmatprep.subr.bf16.mxu0 0
        %4606 = vmatpush1.bf16.msra.mxu0 0
        %4607 = vmatprep.subr.bf16.mxu0 0
        %4608 = vmatpush1.bf16.msra.mxu0 0
        %4609 = vmatprep.subr.bf16.mxu0 0
        %4610 = vmatpush1.bf16.msra.mxu0 0
        %4611 = vmatprep.subr.bf16.mxu0 0
        %4612 = vmatpush1.bf16.msra.mxu0 0
        %4613 = vmatprep.subr.bf16.mxu0 0
        %4614 = vmatpush1.bf16.msra.mxu0 0
        %4615 = vmatprep.subr.bf16.mxu0 0
        %4616 = vmatpush1.bf16.msra.mxu0 0
        %4617 = vmatprep.subr.bf16.mxu0 0
        %4618 = vmatpush1.bf16.msra.mxu0 0
        %4619 = vmatprep.subr.bf16.mxu0 0
        %4620 = vmatpush1.bf16.msra.mxu0 0
        %4621 = vmatprep.subr.bf16.mxu0 0
        %4622 = vmatpush1.bf16.msra.mxu0 0
        %4623 = vmatprep.subr.bf16.mxu0 0
        %4624 = vmatpush1.bf16.msra.mxu0 0
        %4625 = vmatprep.mubr.bf16.mxu0 0
        %4626 = vmatmul.mubr.bf16.gmra.mrb[0].mxu0 %v4591
        %v4627 = vpop.f32.mrb[0].mxu0
        %v4628 = vadd.f32 0.0, %v4627
        %v4629 = vpop.f32.mrb[0].mxu0
        %v4630 = vpop.f32.mrb[0].mxu0
        %v4631 = vpop.f32.mrb[0].mxu0
        %4632 = vdwg.mxu0
        %v4634 = vrot.slane %v4628, 7
        %v4636 = vadd.f32 %v3536, %v4634
        %v4637 = vrot.slane %v388, 2
        %v4639 = vadd.f32 %v4636, %v4637
        %v4640 = vsel %vm3377, %v4639, 0.0
        %4641 = vadd.xlane.f32.xlu0 %v4640
        %v4642 = vpop.xlane.xlu0 %4641
        %v4643 = vmul.f32 %v4642, %v489
        %v4644 = vsub.f32 %v4639, %v4643
        %v4645 = vmul.f32 %v4644, %v4644
        %v4646 = vsel %vm3377, %v4645, 0.0
        %4647 = vadd.xlane.f32.xlu0 %v4646
        %v4648 = vpop.xlane.xlu0 %4647
        %v4649 = vmul.f32 %v4648, %v489
        %v4650 = vadd.f32 %v4649, 1e-05
        %v4651 = vrsqrt.pop %v4650
        %v4652 = vmul.f32 %v4644, %v4651
        %v4653 = vmul.f32 %v4652, %v3577
        %v4654 = vadd.f32 %v4653, %v387
        %v4655 = vpack.c.bf16 %v4654, %v4654
        %s4656 = scalar_lea.vmem %s5, 32
        %v4657 = vld [vmem:[%s4656] sm:$0xf]
        %v4658 = vld [vmem:[%s4656 + $0x4] sm:$0xf]
        %v4659 = vld [vmem:[%s4656 + $0x8] sm:$0xf]
        %v4660 = vld [vmem:[%s4656 + $0xc] sm:$0xf]
        %v4662 = vshrl.u32 %v4655, 16
        %v4668 = vunpack.c.l.b16 %v4657
        %v4669 = vunpack.c.l.b16 %v4658
        %v4670 = vunpack.c.l.b16 %v4659
        %v4671 = vunpack.c.l.b16 %v4660
        %v4672 = vpack.c.b16 %v4669, %v4668
        %v4673 = vpack.c.b16 %v4671, %v4670
        %v4676 = vrot.slane %v388, 6
        %v4679 = vsel %vm482, %v4662, 0
        %4681 = vmatprep.subr.bf16.mxu0 0
        %4682 = vmatpush1.bf16.msra.mxu0 %v4672
        %4683 = vmatprep.subr.bf16.mxu0 0
        %4684 = vmatpush1.bf16.msra.mxu0 %v4673
        %4685 = vmatprep.subr.bf16.mxu0 0
        %4686 = vmatpush1.bf16.msra.mxu0 0
        %4687 = vmatprep.subr.bf16.mxu0 0
        %4688 = vmatpush1.bf16.msra.mxu0 0
        %4689 = vmatprep.subr.bf16.mxu0 0
        %4690 = vmatpush1.bf16.msra.mxu0 0
        %4691 = vmatprep.subr.bf16.mxu0 0
        %4692 = vmatpush1.bf16.msra.mxu0 0
        %4693 = vmatprep.subr.bf16.mxu0 0
        %4694 = vmatpush1.bf16.msra.mxu0 0
        %4695 = vmatprep.subr.bf16.mxu0 0
        %4696 = vmatpush1.bf16.msra.mxu0 0
        %4697 = vmatprep.subr.bf16.mxu0 0
        %4698 = vmatpush1.bf16.msra.mxu0 0
        %4699 = vmatprep.subr.bf16.mxu0 0
        %4700 = vmatpush1.bf16.msra.mxu0 0
        %4701 = vmatprep.subr.bf16.mxu0 0
        %4702 = vmatpush1.bf16.msra.mxu0 0
        %4703 = vmatprep.subr.bf16.mxu0 0
        %4704 = vmatpush1.bf16.msra.mxu0 0
        %4705 = vmatprep.subr.bf16.mxu0 0
        %4706 = vmatpush1.bf16.msra.mxu0 0
        %4707 = vmatprep.subr.bf16.mxu0 0
        %4708 = vmatpush1.bf16.msra.mxu0 0
        %4709 = vmatprep.subr.bf16.mxu0 0
        %4710 = vmatpush1.bf16.msra.mxu0 0
        %4711 = vmatprep.subr.bf16.mxu0 0
        %4712 = vmatpush1.bf16.msra.mxu0 0
        %4713 = vmatprep.mubr.bf16.mxu0 0
        %4714 = vmatmul.mubr.bf16.gmra.mrb[0].mxu0 %v4679
        %v4715 = vpop.f32.mrb[0].mxu0
        %v4716 = vadd.f32 %v4676, %v4715
        %v4717 = vpop.f32.mrb[0].mxu0
        %v4718 = vpop.f32.mrb[0].mxu0
        %v4719 = vpop.f32.mrb[0].mxu0
        %4720 = vdwg.mxu0
        %v4721 = vxor.u32 %v4716, 2147483648
        %v4722 = vmul.f32 %v4721, 1.442695
        %v4723 = vpow.pop %v4722
        %v4724 = vadd.f32 %v4723, 1.0
        %v4725 = vrcp.pop %v4724
        %v4726 = vmul.f32 1.0, %v4725
        %v4727 = vmul.f32 %v4716, %v4726
        %v4728 = vpack.c.bf16 %v4727, %v4727
        %s4729 = scalar_lea.vmem %s6, 64
        %v4730 = vld [vmem:[%s4729] sm:$0xf]
        %v4731 = vld [vmem:[%s4729 + $0x4] sm:$0xf]
        %v4732 = vld [vmem:[%s4729 + $0x8] sm:$0xf]
        %v4733 = vld [vmem:[%s4729 + $0xc] sm:$0xf]
        %v4734 = vld [vmem:[%s4729 + $0x10] sm:$0xf]
        %v4735 = vld [vmem:[%s4729 + $0x14] sm:$0xf]
        %v4736 = vld [vmem:[%s4729 + $0x18] sm:$0xf]
        %v4737 = vld [vmem:[%s4729 + $0x1c] sm:$0xf]
        %v4746 = vunpack.c.l.b16 %v4730
        %v4747 = vunpack.c.l.b16 %v4731
        %v4748 = vunpack.c.l.b16 %v4732
        %v4749 = vunpack.c.l.b16 %v4733
        %v4750 = vunpack.c.l.b16 %v4734
        %v4751 = vunpack.c.l.b16 %v4735
        %v4752 = vunpack.c.l.b16 %v4736
        %v4753 = vunpack.c.l.b16 %v4737
        %v4754 = vpack.c.b16 %v4747, %v4746
        %v4755 = vpack.c.b16 %v4749, %v4748
        %v4756 = vpack.c.b16 %v4751, %v4750
        %v4757 = vpack.c.b16 %v4753, %v4752
        %v4763 = vsel %vm433, %v4728, 0
        %4765 = vmatprep.subr.bf16.mxu0 0
        %4766 = vmatpush1.bf16.msra.mxu0 %v4754
        %4767 = vmatprep.subr.bf16.mxu0 0
        %4768 = vmatpush1.bf16.msra.mxu0 %v4755
        %4769 = vmatprep.subr.bf16.mxu0 0
        %4770 = vmatpush1.bf16.msra.mxu0 %v4756
        %4771 = vmatprep.subr.bf16.mxu0 0
        %4772 = vmatpush1.bf16.msra.mxu0 %v4757
        %4773 = vmatprep.subr.bf16.mxu0 0
        %4774 = vmatpush1.bf16.msra.mxu0 0
        %4775 = vmatprep.subr.bf16.mxu0 0
        %4776 = vmatpush1.bf16.msra.mxu0 0
        %4777 = vmatprep.subr.bf16.mxu0 0
        %4778 = vmatpush1.bf16.msra.mxu0 0
        %4779 = vmatprep.subr.bf16.mxu0 0
        %4780 = vmatpush1.bf16.msra.mxu0 0
        %4781 = vmatprep.subr.bf16.mxu0 0
        %4782 = vmatpush1.bf16.msra.mxu0 0
        %4783 = vmatprep.subr.bf16.mxu0 0
        %4784 = vmatpush1.bf16.msra.mxu0 0
        %4785 = vmatprep.subr.bf16.mxu0 0
        %4786 = vmatpush1.bf16.msra.mxu0 0
        %4787 = vmatprep.subr.bf16.mxu0 0
        %4788 = vmatpush1.bf16.msra.mxu0 0
        %4789 = vmatprep.subr.bf16.mxu0 0
        %4790 = vmatpush1.bf16.msra.mxu0 0
        %4791 = vmatprep.subr.bf16.mxu0 0
        %4792 = vmatpush1.bf16.msra.mxu0 0
        %4793 = vmatprep.subr.bf16.mxu0 0
        %4794 = vmatpush1.bf16.msra.mxu0 0
        %4795 = vmatprep.subr.bf16.mxu0 0
        %4796 = vmatpush1.bf16.msra.mxu0 0
        %4797 = vmatprep.mubr.bf16.mxu0 0
        %4798 = vmatmul.mubr.bf16.gmra.mrb[0].mxu0 %v4763
        %v4799 = vpop.f32.mrb[0].mxu0
        %v4800 = vadd.f32 0.0, %v4799
        %v4801 = vpop.f32.mrb[0].mxu0
        %v4802 = vpop.f32.mrb[0].mxu0
        %v4803 = vpop.f32.mrb[0].mxu0
        %4804 = vdwg.mxu0
        %v4806 = vrot.slane %v4800, 7
        %v4808 = vadd.f32 %v4639, %v4806
        %v4809 = vadd.f32 %v4808, %v389
        %v4810 = vsel %vm3377, %v4809, 0.0
        %4811 = vadd.xlane.f32.xlu0 %v4810
        %v4812 = vpop.xlane.xlu0 %4811
        %v4813 = vmul.f32 %v4812, %v489
        %v4814 = vsub.f32 %v4809, %v4813
        %v4815 = vmul.f32 %v4814, %v4814
        %v4816 = vsel %vm3377, %v4815, 0.0
        %4817 = vadd.xlane.f32.xlu0 %v4816
        %v4818 = vpop.xlane.xlu0 %4817
        %v4819 = vmul.f32 %v4818, %v489
        %v4820 = vadd.f32 %v4819, 1e-05
        %v4821 = vrsqrt.pop %v4820
        %v4822 = vmul.f32 %v4814, %v4821
        %v4823 = vrot.slane %v387, 1
        %v4825 = vmul.f32 %v4822, %v4823
        %v4826 = vrot.slane %v387, 2
        %v4828 = vadd.f32 %v4825, %v4826
        %4829 = vst.msk [vmem:[%s378 - $0x1] sm:$0x2] %vm3377, %v4828
        %s4830 = sand.u32 %s269, 1
        %s4831 = scalar_lea.sflag [#allocation3], %s4830
        %s4832 = sand.u32 %s269, 1
        %s4833 = scalar_lea.vmem [#allocation2], %s4832
        // Predicated region
        $region65: #{forward.1} parent=63 // pred_check
          %p4834 = pneg %p279
        $region66: #{forward.1} parent=63 // pred_check_branch
          %4836 = sbr.rel (%p4834) target = $region68
        $region67: #{forward.1} parent=63 // pred_region
          %s4838 = ssub.s32 16, 16
          %4839 = vsyncadd %s4831, %s4838
          %s4840 = smul.addr %s25, 16
          %s4841 = scalar_lea.hbm %s11, %s4840
          %s4843 = sshll.u32 %s4833, 4
          %s4844 = int_to_ptr.vmem [resolvable:$true] %s4843
          %4846 = dma.vmem_to_hbm [thread:$0]  %s4844, 16, %s4841, %s4831
        $region68: #{forward.1} parent=63 // pred_fallthru
          _
      $region64: #{forward.1} parent=5 // pred_fallthru
        _
      %p4847 = scmp.le.s32.totalorder 2, %s20
      // Predicated region
      $region69: #{forward.1} parent=5 // pred_check
        %p4848 = pneg %p4847
      $region70: #{forward.1} parent=5 // pred_check_branch
        %4850 = sbr.rel (%p4848) target = $region72
      $region71: #{forward.1} parent=5 // pred_region
        %s4851 = ssub.s32 %s20, 2
        // Predicated region
        $region73: #{forward.1} parent=71 // pred_check
          %p4852 = pneg %p285
        $region74: #{forward.1} parent=71 // pred_check_branch
          %4854 = sbr.rel (%p4852) target = $region76
        $region75: #{forward.1} parent=71 // pred_region
          %s4855 = sand.u32 %s270, 1
          %s4856 = scalar_lea.sflag [#allocation3], %s4855
          %s4857 = sand.u32 %s270, 1
          %s4858 = scalar_lea.vmem [#allocation2], %s4857
          %4859 = dma.done %s4856, 16
        $region76: #{forward.1} parent=71 // pred_fallthru
          _
      $region72: #{forward.1} parent=5 // pred_fallthru
        _
    $region6: #{forward.1} parent=1 // loop_footer
      %s24 = sadd.s32 1, %s20
    $region7: #{forward.1} parent=1 // loop_footer_branch
      %19 = sbr.rel target = $region3
    $region8: #{forward.1} parent=1 // loop_exit
      _
    %4860 = vsyncpa [#allocation3], 1
    %s4861 = scalar_lea.sflag [#allocation3], 1
    %4862 = vsyncpa %s4861, 1

</llo_original>
